<compile_context>
chip_gen: v6e
topology: v6e:2x2x1
jax: 0.10.0
libtpu: 0.0.40
codegen_flags: <defaults>
</compile_context>

<pallas_src>
import functools

import jax
import jax.numpy as jnp
from jax.experimental import pallas as pl
from jax.experimental.pallas import tpu as pltpu


# ---------------------------------------------------------------------------
# Fused conv5x5(pad=2) + bias + ReLU + maxpool2x2 kernel (one matmul per step)
# ---------------------------------------------------------------------------
def _conv_pool_kernel(x_ref, w_ref, b_ref, o_ref, *, NP):
    # x_ref: [MT, K]      bf16  (MT = BT*Ho rows; K = 6 * Wp * Cin "3-window" lanes)
    # w_ref: [K, 4*NP]    bf16  (banded conv weights; 4 pool partners in NP-lane blocks)
    # b_ref: [1, NP]      f32
    # o_ref: [MT, NP]     bf16  (lane-dense, NP multiple of 128)
    acc = jnp.dot(x_ref[...], w_ref[...], preferred_element_type=jnp.float32)
    # 2x2 maxpool = max over the four 128-aligned NP-lane blocks (pure lane slices)
    pooled = jnp.maximum(
        jnp.maximum(acc[:, 0 * NP:1 * NP], acc[:, 1 * NP:2 * NP]),
        jnp.maximum(acc[:, 2 * NP:3 * NP], acc[:, 3 * NP:4 * NP]))
    o_ref[...] = jnp.maximum(pooled + b_ref[...], 0.0).astype(o_ref.dtype)


def conv_pool(x, w, brow, *, BT, Ho, NP):
    """x: [B*Ho, K] bf16, w: [K, 4*NP] bf16, brow: [1, NP] f32 -> [B*Ho, NP] bf16."""
    Mtot, K = x.shape
    Kw, N4 = w.shape
    assert Kw == K and N4 == 4 * NP and brow.shape == (1, NP)
    MT = BT * Ho
    assert Mtot % MT == 0
    grid = (Mtot // MT,)
    flops = 2 * Mtot * K * N4
    bytes_accessed = x.size * 2 + w.size * 2 + brow.size * 4 + Mtot * NP * 2
    return pl.pallas_call(
        functools.partial(_conv_pool_kernel, NP=NP),
        out_shape=jax.ShapeDtypeStruct((Mtot, NP), jnp.bfloat16),
        grid=grid,
        in_specs=[
            pl.BlockSpec((MT, K), lambda i: (i, 0)),     # activations (batch-folded rows)
            pl.BlockSpec((K, N4), lambda i: (0, 0)),     # banded weights (resident)
            pl.BlockSpec((1, NP), lambda i: (0, 0)),     # bias (resident)
        ],
        out_specs=pl.BlockSpec((MT, NP), lambda i: (i, 0)),
        compiler_params=pltpu.CompilerParams(
            dimension_semantics=("parallel",),
            vmem_limit_bytes=32 * 1024 * 1024),
        cost_estimate=pl.CostEstimate(flops=flops, transcendentals=0,
                                      bytes_accessed=bytes_accessed),
    )(x, w, brow)


# ---------------------------------------------------------------------------
# Fully-connected (matmul + bias) kernel, lane-dense output
# ---------------------------------------------------------------------------
def _fc_kernel(x_ref, w_ref, b_ref, o_ref):
    o_ref[...] = jnp.dot(x_ref[...], w_ref[...],
                         preferred_element_type=jnp.float32) + b_ref[...]


def fc_bias(x, w, b, *, row_tile=1024):
    """x: [M, K] bf16, w: [K, N] bf16 (N multiple of 128), b: [1, N] f32 -> [M, N] f32."""
    M, K = x.shape
    _, N = w.shape
    TM = M if M <= row_tile else row_tile
    grid = (pl.cdiv(M, TM),)
    return pl.pallas_call(
        _fc_kernel,
        out_shape=jax.ShapeDtypeStruct((M, N), jnp.float32),
        grid=grid,
        in_specs=[pl.BlockSpec((TM, K), lambda i: (i, 0)),
                  pl.BlockSpec((K, N), lambda i: (0, 0)),     # weights resident
                  pl.BlockSpec((1, N), lambda i: (0, 0))],    # bias resident
        out_specs=pl.BlockSpec((TM, N), lambda i: (i, 0)),
        compiler_params=pltpu.CompilerParams(
            dimension_semantics=("parallel",),
            vmem_limit_bytes=32 * 1024 * 1024),
        cost_estimate=pl.CostEstimate(
            flops=2 * M * K * N, transcendentals=0,
            bytes_accessed=x.size * 2 + w.size * 2 + b.size * 4 + M * N * 4),
    )(x, w, b)


# ---------------------------------------------------------------------------
# Parameters (PyTorch-like uniform(-1/sqrt(fan_in), 1/sqrt(fan_in)))
# ---------------------------------------------------------------------------
def init_params(key):
    ks = jax.random.split(key, 6)

    def u(k, shape, fan_in):
        bound = 1.0 / jnp.sqrt(jnp.float32(fan_in))
        return jax.random.uniform(k, shape, jnp.float32, -bound, bound)

    return {
        "W1": u(ks[0], (16, 1, 5, 5), 1 * 5 * 5),
        "b1": u(ks[1], (16,), 1 * 5 * 5),
        "W2": u(ks[2], (32, 16, 5, 5), 16 * 5 * 5),
        "b2": u(ks[3], (32,), 16 * 5 * 5),
        "Wf": u(ks[4], (10, 32 * 7 * 7), 32 * 7 * 7),
        "bf": u(ks[5], (10,), 32 * 7 * 7),
    }


# One-time weight preprocessing: merged banded conv matrices (all 6 bands stacked on K,
# pool partners in 128-aligned lane blocks), tiled bias rows, permuted + padded FC weight.
def prepare_params(params):
    def conv_mats(Wc, b, Win, NP, lane_off):
        Cout, Cin, KH, KW = Wc.shape
        Wp, Wo, KH2 = Win + KW - 1, Win // 2, KH + 1
        NB = Wo * Cout
        # height indicator  A[z, hb, kh] = (z == hb + kh);  z = padded-row offset 0..5
        z = jnp.arange(KH2)[:, None, None]
        hb = jnp.arange(2)[None, :, None]
        kh = jnp.arange(KH)[None, None, :]
        A = (z == hb + kh).astype(jnp.float32)                      # [KH2, 2, KH]
        # width indicator   Bm[kw, wp, wb, wo] = (wp == 2*wo + wb + kw)
        kw = jnp.arange(KW)[:, None, None, None]
        wp = jnp.arange(Wp)[None, :, None, None]
        wb = jnp.arange(2)[None, None, :, None]
        wo = jnp.arange(Wo)[None, None, None, :]
        Bm = (wp == 2 * wo + wb + kw).astype(jnp.float32)           # [KW, Wp, 2, Wo]
        Wt = jnp.transpose(Wc, (2, 3, 1, 0)).astype(jnp.float32)    # [KH, KW, Cin, Cout]
        # M[z, wp, ci, hb, wb, wo, co] = W[co, ci, z-hb, wp-(2*wo+wb)]   (banded)
        M = jnp.einsum("zbh,kpvo,hkic->zpibvoc", A, Bm, Wt)
        M = M.reshape(KH2, Wp * Cin, 4, NB)
        M = jnp.pad(M, ((0, 0), (0, 0), (0, 0), (lane_off, NP - lane_off - NB)))
        M = M.reshape(KH2 * Wp * Cin, 4 * NP).astype(jnp.bfloat16)
        brow = jnp.pad(jnp.tile(b.astype(jnp.float32), Wo),
                       (lane_off, NP - lane_off - NB)).reshape(1, NP)
        return M, brow

    # conv1: data at lane offset 32 of a 384-lane block -> output rows are already
    # conv2's column-padded rows (32 zero lanes on each side of the 224 data lanes).
    M1, b1r = conv_mats(params["W1"], params["b1"], 28, NP=384, lane_off=32)
    # conv2: 224 data lanes padded to 256 (zero tail lanes consumed by zero FC rows).
    M2, b2r = conv_mats(params["W2"], params["b2"], 14, NP=256, lane_off=0)

    # FC weight: PyTorch flatten order (c, h, w)  ->  kernel order (h, w, c) with each
    # h-block padded to 256 lanes; pad the 10 output lanes to 128 for a lane-dense store.
    Wf_hwc = jnp.transpose(params["Wf"].reshape(10, 32, 7, 7), (0, 2, 3, 1))  # [10,h,w,c]
    Wf_blk = jnp.pad(Wf_hwc.reshape(10, 7, 224), ((0, 0), (0, 0), (0, 32)))   # [10,7,256]
    Wf_k = jnp.pad(Wf_blk.reshape(10, 7 * 256).T, ((0, 0), (0, 118)))         # [1792,128]
    bf_k = jnp.pad(params["bf"], (0, 118)).astype(jnp.float32).reshape(1, 128)
    return {"M1": M1, "b1r": b1r, "M2": M2, "b2r": b2r,
            "Wf_k": Wf_k.astype(jnp.bfloat16), "bf_k": bf_k}


def _pick_bt(B, target=32):
    """Batch tile BT and padded batch Bp (= BT * num_steps >= B)."""
    if B <= target:
        return B, B
    nsteps = -(-B // target)
    bt = -(-B // nsteps)
    bt = -(-bt // 8) * 8          # multiple of 8 so BT*7 / BT*14 row blocks are aligned
    return bt, bt * nsteps


# ---------------------------------------------------------------------------
# Forward pass (mirrors CNN.forward)
# ---------------------------------------------------------------------------
def cnn_forward(kparams, x_nchw, *, batch_tile=32):
    B = x_nchw.shape[0]
    BT, Bp = _pick_bt(B, batch_tile)

    # conv1 input: pad to 32x32, lane-pack even/odd rows, 3-packed-row windows on lanes
    x = jnp.transpose(x_nchw, (0, 2, 3, 1)).astype(jnp.bfloat16)            # [B,28,28,1]
    x = jnp.pad(x, ((0, Bp - B), (2, 2), (2, 2), (0, 0)))                   # [Bp,32,32,1]
    xp = x.reshape(Bp, 16, 64)                                              # packed rows
    x1 = jnp.concatenate([xp[:, 0:14], xp[:, 1:15], xp[:, 2:16]], axis=-1)  # [Bp,14,192]

    # conv1 (1->16, k5, p2) + ReLU + MaxPool(2): one matmul, M = BT*14, K = 192
    y1 = conv_pool(x1.reshape(Bp * 14, 192), kparams["M1"], kparams["b1r"],
                   BT=BT, Ho=14, NP=384)                                    # [Bp*14,384]

    # conv2 input: rows are already column-padded; pair rows -> packed rows, add zero
    # border rows, build 3-packed-row windows (free reshapes + 2 concats, no transpose)
    y1 = y1.reshape(Bp, 14, 384)[:, :, :288].reshape(Bp, 7, 576)
    zrow = jnp.zeros((Bp, 1, 576), jnp.bfloat16)
    p2 = jnp.concatenate([zrow, y1, zrow], axis=1)                          # [Bp,9,576]
    x2 = jnp.concatenate([p2[:, 0:7], p2[:, 1:8], p2[:, 2:9]], axis=-1)     # [Bp,7,1728]

    # conv2 (16->32, k5, p2) + ReLU + MaxPool(2): one matmul, M = BT*7, K = 1728
    y2 = conv_pool(x2.reshape(Bp * 7, 1728), kparams["M2"], kparams["b2r"],
                   BT=BT, Ho=7, NP=256)                                     # [Bp*7,256]

    # flatten (free reshape; matches the pre-permuted/padded Wf order) + Linear
    logits = fc_bias(y2.reshape(Bp, 7 * 256), kparams["Wf_k"], kparams["bf_k"])
    return logits[:B, :10]


# Pure-JAX f32 reference (matches the PyTorch module) for the self-test.
def cnn_reference(params, x_nchw):
    hp = jax.lax.Precision.HIGHEST

    def conv(x, W, b):
        y = jax.lax.conv_general_dilated(
            x, W, window_strides=(1, 1), padding=((2, 2), (2, 2)),
            dimension_numbers=("NCHW", "OIHW", "NCHW"), precision=hp)
        return jax.nn.relu(y + b[None, :, None, None])

    def pool(x):
        return jax.lax.reduce_window(x, -jnp.inf, jax.lax.max,
                                     (1, 1, 2, 2), (1, 1, 2, 2), "VALID")

    y = pool(conv(x_nchw, params["W1"], params["b1"]))
    y = pool(conv(y, params["W2"], params["b2"]))
    flat = y.reshape(y.shape[0], -1)
    return jnp.dot(flat, params["Wf"].T, precision=hp) + params["bf"]


if __name__ == "__main__":
    key = jax.random.PRNGKey(0)
    kp_key, kx = jax.random.split(key)
    params = init_params(kp_key)
    kparams = prepare_params(params)

    fwd = jax.jit(cnn_forward)

    # Small batch (single grid step per kernel).  28x28 input is required so the
    # 32*7*7 flatten matches nn.Linear.
    x_small = jax.random.normal(kx, (2, 1, 28, 28), jnp.float32)
    out = jax.block_until_ready(fwd(kparams, x_small))
    assert out.shape == (2, 10) and out.dtype == jnp.float32
    ref = cnn_reference(params, x_small)
    err = float(jnp.max(jnp.abs(out - ref)))
    # bf16 MXU path -> loose-ish tolerance; a layout bug would be O(logit magnitude).
    assert jnp.allclose(out, ref, atol=5e-2, rtol=5e-2), err

    # Larger batch exercising the tiled (grid > 1) + batch-padding path.
    x_big = jax.random.normal(jax.random.PRNGKey(1), (40, 1, 28, 28), jnp.float32)
    out_b = jax.block_until_ready(fwd(kparams, x_big))
    assert out_b.shape == (40, 10)
    ref_b = cnn_reference(params, x_big)
    err_b = float(jnp.max(jnp.abs(out_b - ref_b)))
    assert jnp.allclose(out_b, ref_b, atol=5e-2, rtol=5e-2), err_b

    print("KERNEL_OK")
</pallas_src>

<mosaic_0001>
module attributes {stable_mosaic.version = 11 : i64} {
  func.func @_conv_pool_kernel(%arg0: i32, %arg1: memref<28x192xbf16, #tpu.memory_space<vmem>>, %arg2: memref<192x1536xbf16, #tpu.memory_space<vmem>>, %arg3: memref<1x384xf32, #tpu.memory_space<vmem>>, %arg4: memref<28x384xbf16, #tpu.memory_space<vmem>>) attributes {dimension_semantics = [#tpu.dimension_semantics<parallel>], iteration_bounds = array<i64: 1>, scalar_prefetch = 0 : i64, scratch_operands = 0 : i64, tpu.core_type = #tpu.core_type<tc>, window_params = [{transform_indices = @transform_0, window_bounds = array<i64: 28, 192>}, {pipeline_mode = #tpu.pipeline_mode<synchronous>, transform_indices = @transform_1, window_bounds = array<i64: 192, 1536>}, {pipeline_mode = #tpu.pipeline_mode<synchronous>, transform_indices = @transform_2, window_bounds = array<i64: 1, 384>}, {transform_indices = @transform_3, window_bounds = array<i64: 28, 384>}]} {
    %c0 = arith.constant 0 : index
    %c0_0 = arith.constant 0 : index
    %0 = vector.load %arg1[%c0, %c0_0] : memref<28x192xbf16, #tpu.memory_space<vmem>>, vector<28x192xbf16>
    %c0_1 = arith.constant 0 : index
    %c0_2 = arith.constant 0 : index
    %1 = vector.load %arg2[%c0_1, %c0_2] : memref<192x1536xbf16, #tpu.memory_space<vmem>>, vector<192x1536xbf16>
    %cst = arith.constant dense<0.000000e+00> : vector<28x1536xf32>
    %2 = tpu.matmul %0, %1, %cst {dimension_numbers = #tpu.dot_dimension_numbers<[1], [0], [0], [1], [0, 0, 1, 1], [], []>} : vector<28x192xbf16>, vector<192x1536xbf16>, vector<28x1536xf32> -> vector<28x1536xf32>
    %3 = vector.extract_strided_slice %2 {offsets = [0, 0], sizes = [28, 384], strides = [1, 1]} : vector<28x1536xf32> to vector<28x384xf32>
    %4 = vector.extract_strided_slice %2 {offsets = [0, 384], sizes = [28, 384], strides = [1, 1]} : vector<28x1536xf32> to vector<28x384xf32>
    %5 = arith.maximumf %3, %4 : vector<28x384xf32>
    %6 = vector.extract_strided_slice %2 {offsets = [0, 768], sizes = [28, 384], strides = [1, 1]} : vector<28x1536xf32> to vector<28x384xf32>
    %7 = vector.extract_strided_slice %2 {offsets = [0, 1152], sizes = [28, 384], strides = [1, 1]} : vector<28x1536xf32> to vector<28x384xf32>
    %8 = arith.maximumf %6, %7 : vector<28x384xf32>
    %9 = arith.maximumf %5, %8 : vector<28x384xf32>
    %c0_3 = arith.constant 0 : index
    %c0_4 = arith.constant 0 : index
    %10 = vector.load %arg3[%c0_3, %c0_4] : memref<1x384xf32, #tpu.memory_space<vmem>>, vector<1x384xf32>
    %11 = vector.broadcast %10 : vector<1x384xf32> to vector<28x384xf32>
    %12 = arith.addf %9, %11 : vector<28x384xf32>
    %cst_5 = arith.constant 0.000000e+00 : f32
    %13 = vector.broadcast %cst_5 : f32 to vector<28x384xf32>
    %14 = arith.maximumf %12, %13 : vector<28x384xf32>
    %15 = arith.truncf %14 : vector<28x384xf32> to vector<28x384xbf16>
    %c0_6 = arith.constant 0 : index
    %c0_7 = arith.constant 0 : index
    %16 = vector.load %arg4[%c0_6, %c0_7] : memref<28x384xbf16, #tpu.memory_space<vmem>>, vector<28x384xbf16>
    tpu.vector_store %arg4[%c0_6, %c0_7], %15 {strides = array<i32>} : memref<28x384xbf16, #tpu.memory_space<vmem>>, vector<28x384xbf16>,
    return
  }
  func.func @transform_0(%arg0: i32) -> (i32, i32) {
    %c0_i32 = arith.constant 0 : i32
    %c0_i32_0 = arith.constant 0 : i32
    return %arg0, %c0_i32 : i32, i32
  }
  func.func @transform_1(%arg0: i32) -> (i32, i32) {
    %c0_i32 = arith.constant 0 : i32
    %c0_i32_0 = arith.constant 0 : i32
    %c0_i32_1 = arith.constant 0 : i32
    return %c0_i32, %c0_i32_0 : i32, i32
  }
  func.func @transform_2(%arg0: i32) -> (i32, i32) {
    %c0_i32 = arith.constant 0 : i32
    %c0_i32_0 = arith.constant 0 : i32
    %c0_i32_1 = arith.constant 0 : i32
    return %c0_i32, %c0_i32_0 : i32, i32
  }
  func.func @transform_3(%arg0: i32) -> (i32, i32) {
    %c0_i32 = arith.constant 0 : i32
    %c0_i32_0 = arith.constant 0 : i32
    return %arg0, %c0_i32 : i32, i32
  }
}

module attributes {stable_mosaic.version = 11 : i64} {
  func.func @_fc_kernel(%arg0: i32, %arg1: memref<2x1792xbf16, #tpu.memory_space<vmem>>, %arg2: memref<1792x128xbf16, #tpu.memory_space<vmem>>, %arg3: memref<1x128xf32, #tpu.memory_space<vmem>>, %arg4: memref<2x128xf32, #tpu.memory_space<vmem>>) attributes {dimension_semantics = [#tpu.dimension_semantics<parallel>], iteration_bounds = array<i64: 1>, scalar_prefetch = 0 : i64, scratch_operands = 0 : i64, tpu.core_type = #tpu.core_type<tc>, window_params = [{transform_indices = @transform_0, window_bounds = array<i64: 2, 1792>}, {pipeline_mode = #tpu.pipeline_mode<synchronous>, transform_indices = @transform_1, window_bounds = array<i64: 1792, 128>}, {pipeline_mode = #tpu.pipeline_mode<synchronous>, transform_indices = @transform_2, window_bounds = array<i64: 1, 128>}, {transform_indices = @transform_3, window_bounds = array<i64: 2, 128>}]} {
    %c0 = arith.constant 0 : index
    %c0_0 = arith.constant 0 : index
    %0 = vector.load %arg1[%c0, %c0_0] : memref<2x1792xbf16, #tpu.memory_space<vmem>>, vector<2x1792xbf16>
    %c0_1 = arith.constant 0 : index
    %c0_2 = arith.constant 0 : index
    %1 = vector.load %arg2[%c0_1, %c0_2] : memref<1792x128xbf16, #tpu.memory_space<vmem>>, vector<1792x128xbf16>
    %cst = arith.constant dense<0.000000e+00> : vector<2x128xf32>
    %2 = tpu.matmul %0, %1, %cst {dimension_numbers = #tpu.dot_dimension_numbers<[1], [0], [0], [1], [0, 0, 1, 1], [], []>} : vector<2x1792xbf16>, vector<1792x128xbf16>, vector<2x128xf32> -> vector<2x128xf32>
    %c0_3 = arith.constant 0 : index
    %c0_4 = arith.constant 0 : index
    %3 = vector.load %arg3[%c0_3, %c0_4] : memref<1x128xf32, #tpu.memory_space<vmem>>, vector<1x128xf32>
    %4 = vector.broadcast %3 : vector<1x128xf32> to vector<2x128xf32>
    %5 = arith.addf %2, %4 : vector<2x128xf32>
    %c0_5 = arith.constant 0 : index
    %c0_6 = arith.constant 0 : index
    %6 = vector.load %arg4[%c0_5, %c0_6] : memref<2x128xf32, #tpu.memory_space<vmem>>, vector<2x128xf32>
    tpu.vector_store %arg4[%c0_5, %c0_6], %5 {strides = array<i32>} : memref<2x128xf32, #tpu.memory_space<vmem>>, vector<2x128xf32>,
    return
  }
  func.func @transform_0(%arg0: i32) -> (i32, i32) {
    %c0_i32 = arith.constant 0 : i32
    %c0_i32_0 = arith.constant 0 : i32
    return %arg0, %c0_i32 : i32, i32
  }
  func.func @transform_1(%arg0: i32) -> (i32, i32) {
    %c0_i32 = arith.constant 0 : i32
    %c0_i32_0 = arith.constant 0 : i32
    %c0_i32_1 = arith.constant 0 : i32
    return %c0_i32, %c0_i32_0 : i32, i32
  }
  func.func @transform_2(%arg0: i32) -> (i32, i32) {
    %c0_i32 = arith.constant 0 : i32
    %c0_i32_0 = arith.constant 0 : i32
    %c0_i32_1 = arith.constant 0 : i32
    return %c0_i32, %c0_i32_0 : i32, i32
  }
  func.func @transform_3(%arg0: i32) -> (i32, i32) {
    %c0_i32 = arith.constant 0 : i32
    %c0_i32_0 = arith.constant 0 : i32
    return %arg0, %c0_i32 : i32, i32
  }
}

module attributes {stable_mosaic.version = 11 : i64} {
  func.func @_conv_pool_kernel(%arg0: i32, %arg1: memref<14x1728xbf16, #tpu.memory_space<vmem>>, %arg2: memref<1728x1024xbf16, #tpu.memory_space<vmem>>, %arg3: memref<1x256xf32, #tpu.memory_space<vmem>>, %arg4: memref<14x256xbf16, #tpu.memory_space<vmem>>) attributes {dimension_semantics = [#tpu.dimension_semantics<parallel>], iteration_bounds = array<i64: 1>, scalar_prefetch = 0 : i64, scratch_operands = 0 : i64, tpu.core_type = #tpu.core_type<tc>, window_params = [{transform_indices = @transform_0, window_bounds = array<i64: 14, 1728>}, {pipeline_mode = #tpu.pipeline_mode<synchronous>, transform_indices = @transform_1, window_bounds = array<i64: 1728, 1024>}, {pipeline_mode = #tpu.pipeline_mode<synchronous>, transform_indices = @transform_2, window_bounds = array<i64: 1, 256>}, {transform_indices = @transform_3, window_bounds = array<i64: 14, 256>}]} {
    %c0 = arith.constant 0 : index
    %c0_0 = arith.constant 0 : index
    %0 = vector.load %arg1[%c0, %c0_0] : memref<14x1728xbf16, #tpu.memory_space<vmem>>, vector<14x1728xbf16>
    %c0_1 = arith.constant 0 : index
    %c0_2 = arith.constant 0 : index
    %1 = vector.load %arg2[%c0_1, %c0_2] : memref<1728x1024xbf16, #tpu.memory_space<vmem>>, vector<1728x1024xbf16>
    %cst = arith.constant dense<0.000000e+00> : vector<14x1024xf32>
    %2 = tpu.matmul %0, %1, %cst {dimension_numbers = #tpu.dot_dimension_numbers<[1], [0], [0], [1], [0, 0, 1, 1], [], []>} : vector<14x1728xbf16>, vector<1728x1024xbf16>, vector<14x1024xf32> -> vector<14x1024xf32>
    %3 = vector.extract_strided_slice %2 {offsets = [0, 0], sizes = [14, 256], strides = [1, 1]} : vector<14x1024xf32> to vector<14x256xf32>
    %4 = vector.extract_strided_slice %2 {offsets = [0, 256], sizes = [14, 256], strides = [1, 1]} : vector<14x1024xf32> to vector<14x256xf32>
    %5 = arith.maximumf %3, %4 : vector<14x256xf32>
    %6 = vector.extract_strided_slice %2 {offsets = [0, 512], sizes = [14, 256], strides = [1, 1]} : vector<14x1024xf32> to vector<14x256xf32>
    %7 = vector.extract_strided_slice %2 {offsets = [0, 768], sizes = [14, 256], strides = [1, 1]} : vector<14x1024xf32> to vector<14x256xf32>
    %8 = arith.maximumf %6, %7 : vector<14x256xf32>
    %9 = arith.maximumf %5, %8 : vector<14x256xf32>
    %c0_3 = arith.constant 0 : index
    %c0_4 = arith.constant 0 : index
    %10 = vector.load %arg3[%c0_3, %c0_4] : memref<1x256xf32, #tpu.memory_space<vmem>>, vector<1x256xf32>
    %11 = vector.broadcast %10 : vector<1x256xf32> to vector<14x256xf32>
    %12 = arith.addf %9, %11 : vector<14x256xf32>
    %cst_5 = arith.constant 0.000000e+00 : f32
    %13 = vector.broadcast %cst_5 : f32 to vector<14x256xf32>
    %14 = arith.maximumf %12, %13 : vector<14x256xf32>
    %15 = arith.truncf %14 : vector<14x256xf32> to vector<14x256xbf16>
    %c0_6 = arith.constant 0 : index
    %c0_7 = arith.constant 0 : index
    %16 = vector.load %arg4[%c0_6, %c0_7] : memref<14x256xbf16, #tpu.memory_space<vmem>>, vector<14x256xbf16>
    tpu.vector_store %arg4[%c0_6, %c0_7], %15 {strides = array<i32>} : memref<14x256xbf16, #tpu.memory_space<vmem>>, vector<14x256xbf16>,
    return
  }
  func.func @transform_0(%arg0: i32) -> (i32, i32) {
    %c0_i32 = arith.constant 0 : i32
    %c0_i32_0 = arith.constant 0 : i32
    return %arg0, %c0_i32 : i32, i32
  }
  func.func @transform_1(%arg0: i32) -> (i32, i32) {
    %c0_i32 = arith.constant 0 : i32
    %c0_i32_0 = arith.constant 0 : i32
    %c0_i32_1 = arith.constant 0 : i32
    return %c0_i32, %c0_i32_0 : i32, i32
  }
  func.func @transform_2(%arg0: i32) -> (i32, i32) {
    %c0_i32 = arith.constant 0 : i32
    %c0_i32_0 = arith.constant 0 : i32
    %c0_i32_1 = arith.constant 0 : i32
    return %c0_i32, %c0_i32_0 : i32, i32
  }
  func.func @transform_3(%arg0: i32) -> (i32, i32) {
    %c0_i32 = arith.constant 0 : i32
    %c0_i32_0 = arith.constant 0 : i32
    return %arg0, %c0_i32 : i32, i32
  }
}

</mosaic_0001>

<llo_original>
// kernel: cnn_forward.3
$region0: #{cnn_forward.3}
  #allocation0 [shape = 'u32[]', space=smem, size = 0x4, offset = 0x4, fixed_abs, tag = 'smem constant byte address 0x4 - core index']
  #allocation1 [shape = 'u32[144,128]{1,0:T(1,128)}', space=vmem, size = 0x12000, scoped, tag = 'internal scratch']
  %s0 = inlined_call_operand.vmem [shape: bf16[28,192], index: 0, kind: input, shape index: {}]
  %s1 = inlined_call_operand.hbm [shape: bf16[192,1536], index: 1, kind: input, shape index: {}]
  %s2 = inlined_call_operand.hbm [shape: f32[1,384], index: 2, kind: input, shape index: {}]
  %s3 = inlined_call_operand.vmem [shape: bf16[28,384], index: 3, kind: output, shape index: {}]
  %s4 = sld [smem:[#allocation0]]
  $region30: #{cnn_forward.3} parent=0
    _
  %s6 = ssub.s32 1, %s4
  %s7 = scalar_select 0, %s6, %s4
  $region1: #{cnn_forward.3} parent=0
    #allocation2 [shape = 'u8[589824]{0}', space=vmem, size = 0x90000, scoped, tag = 'input window, operand 1, single buffered']
    #allocation3 [shape = 's32[1]{0}', space=sflag, size = 0x4, scoped, tag = 'scoped memory for cnn_forward.3']
    #allocation4 [shape = 'u8[1536]{0}', space=vmem, size = 0x800, scoped, tag = 'input window, operand 2, single buffered']
    #allocation5 [shape = 's32[1]{0}', space=sflag, size = 0x4, scoped, tag = 'scoped memory for cnn_forward.3']
    %8 = vsyncpa [#allocation3], 0
    %9 = vsyncpa [#allocation5], 0
    // Predicated region
    $region2: #{cnn_forward.3} parent=1 // pred_check
      _
    $region3: #{cnn_forward.3} parent=1 // pred_check_branch
      %11 = sbr.rel (0) target = $region5
    $region4: #{cnn_forward.3} parent=1 // pred_region
      _
    $region5: #{cnn_forward.3} parent=1 // pred_fallthru
      _
    // Predicated region
    $region6: #{cnn_forward.3} parent=1 // pred_check
      _
    $region7: #{cnn_forward.3} parent=1 // pred_check_branch
      %13 = sbr.rel (0) target = $region9
    $region8: #{cnn_forward.3} parent=1 // pred_region
      %s15 = ssub.s32 18432, 18432
      %16 = vsyncadd [#allocation3], %s15
      %s17 = sshll.u32 [#allocation2], 4
      %s18 = int_to_ptr.vmem [resolvable:$true] %s17
      %23 = dma.hbm_to_vmem [thread:$0]  %s1, 18432, %s18, [#allocation3], 768, 768, 48
    $region9: #{cnn_forward.3} parent=1 // pred_fallthru
      _
    // Predicated region
    $region10: #{cnn_forward.3} parent=1 // pred_check
      _
    $region11: #{cnn_forward.3} parent=1 // pred_check_branch
      %25 = sbr.rel (0) target = $region13
    $region12: #{cnn_forward.3} parent=1 // pred_region
      %s27 = ssub.s32 48, 48
      %28 = vsyncadd [#allocation5], %s27
      %s30 = sshll.u32 [#allocation4], 4
      %s31 = int_to_ptr.vmem [resolvable:$true] %s30
      %33 = dma.hbm_to_vmem [thread:$0]  %s2, 48, %s31, [#allocation5]
    $region13: #{cnn_forward.3} parent=1 // pred_fallthru
      _
    // Predicated region
    $region14: #{cnn_forward.3} parent=1 // pred_check
      _
    $region15: #{cnn_forward.3} parent=1 // pred_check_branch
      %35 = sbr.rel (0) target = $region17
    $region16: #{cnn_forward.3} parent=1 // pred_region
      %36 = dma.done [#allocation3], 18432
    $region17: #{cnn_forward.3} parent=1 // pred_fallthru
      _
    // Predicated region
    $region18: #{cnn_forward.3} parent=1 // pred_check
      _
    $region19: #{cnn_forward.3} parent=1 // pred_check_branch
      %38 = sbr.rel (0) target = $region21
    $region20: #{cnn_forward.3} parent=1 // pred_region
      %39 = dma.done [#allocation5], 48
    $region21: #{cnn_forward.3} parent=1 // pred_fallthru
      _
    %v41 = vld [vmem:[%s0] sm:$0xff]
    %v42 = vld [vmem:[%s0 + $0x8] sm:$0xff]
    %v43 = vld [vmem:[%s0 + $0x10] sm:$0xff]
    %v44 = vld [vmem:[%s0 + $0x18] sm:$0x33]
    %v45 = vld [vmem:[#allocation2] sm:$0xff]
    %v46 = vld [vmem:[#allocation2 + $0x8] sm:$0xff]
    %v47 = vld [vmem:[#allocation2 + $0x10] sm:$0xff]
    %v48 = vld [vmem:[#allocation2 + $0x18] sm:$0xff]
    %v49 = vld [vmem:[#allocation2 + $0x20] sm:$0xff]
    %v50 = vld [vmem:[#allocation2 + $0x28] sm:$0xff]
    %v51 = vld [vmem:[#allocation2 + $0x30] sm:$0xff]
    %v52 = vld [vmem:[#allocation2 + $0x38] sm:$0xff]
    %v53 = vld [vmem:[#allocation2 + $0x40] sm:$0xff]
    %v54 = vld [vmem:[#allocation2 + $0x48] sm:$0xff]
    %v55 = vld [vmem:[#allocation2 + $0x50] sm:$0xff]
    %v56 = vld [vmem:[#allocation2 + $0x58] sm:$0xff]
    %v57 = vld [vmem:[#allocation2 + $0x60] sm:$0xff]
    %v58 = vld [vmem:[#allocation2 + $0x68] sm:$0xff]
    %v59 = vld [vmem:[#allocation2 + $0x70] sm:$0xff]
    %v60 = vld [vmem:[#allocation2 + $0x78] sm:$0xff]
    %v61 = vld [vmem:[#allocation2 + $0x80] sm:$0xff]
    %v62 = vld [vmem:[#allocation2 + $0x88] sm:$0xff]
    %v63 = vld [vmem:[#allocation2 + $0x90] sm:$0xff]
    %v64 = vld [vmem:[#allocation2 + $0x98] sm:$0xff]
    %v65 = vld [vmem:[#allocation2 + $0xa0] sm:$0xff]
    %v66 = vld [vmem:[#allocation2 + $0xa8] sm:$0xff]
    %v67 = vld [vmem:[#allocation2 + $0xb0] sm:$0xff]
    %v68 = vld [vmem:[#allocation2 + $0xb8] sm:$0xff]
    %v69 = vld [vmem:[#allocation2 + $0xc0] sm:$0xff]
    %v70 = vld [vmem:[#allocation2 + $0xc8] sm:$0xff]
    %v71 = vld [vmem:[#allocation2 + $0xd0] sm:$0xff]
    %v72 = vld [vmem:[#allocation2 + $0xd8] sm:$0xff]
    %v73 = vld [vmem:[#allocation2 + $0xe0] sm:$0xff]
    %v74 = vld [vmem:[#allocation2 + $0xe8] sm:$0xff]
    %v75 = vld [vmem:[#allocation2 + $0xf0] sm:$0xff]
    %v76 = vld [vmem:[#allocation2 + $0xf8] sm:$0xff]
    %v77 = vld [vmem:[#allocation2 + $0x100] sm:$0xff]
    %v78 = vld [vmem:[#allocation2 + $0x108] sm:$0xff]
    %v79 = vld [vmem:[#allocation2 + $0x110] sm:$0xff]
    %v80 = vld [vmem:[#allocation2 + $0x118] sm:$0xff]
    %v81 = vld [vmem:[#allocation2 + $0x120] sm:$0xff]
    %v82 = vld [vmem:[#allocation2 + $0x128] sm:$0xff]
    %v83 = vld [vmem:[#allocation2 + $0x130] sm:$0xff]
    %v84 = vld [vmem:[#allocation2 + $0x138] sm:$0xff]
    %v85 = vld [vmem:[#allocation2 + $0x140] sm:$0xff]
    %v86 = vld [vmem:[#allocation2 + $0x148] sm:$0xff]
    %v87 = vld [vmem:[#allocation2 + $0x150] sm:$0xff]
    %v88 = vld [vmem:[#allocation2 + $0x158] sm:$0xff]
    %v89 = vld [vmem:[#allocation2 + $0x160] sm:$0xff]
    %v90 = vld [vmem:[#allocation2 + $0x168] sm:$0xff]
    %v91 = vld [vmem:[#allocation2 + $0x170] sm:$0xff]
    %v92 = vld [vmem:[#allocation2 + $0x178] sm:$0xff]
    %v93 = vld [vmem:[#allocation2 + $0x180] sm:$0xff]
    %v94 = vld [vmem:[#allocation2 + $0x188] sm:$0xff]
    %v95 = vld [vmem:[#allocation2 + $0x190] sm:$0xff]
    %v96 = vld [vmem:[#allocation2 + $0x198] sm:$0xff]
    %v97 = vld [vmem:[#allocation2 + $0x1a0] sm:$0xff]
    %v98 = vld [vmem:[#allocation2 + $0x1a8] sm:$0xff]
    %v99 = vld [vmem:[#allocation2 + $0x1b0] sm:$0xff]
    %v100 = vld [vmem:[#allocation2 + $0x1b8] sm:$0xff]
    %v101 = vld [vmem:[#allocation2 + $0x1c0] sm:$0xff]
    %v102 = vld [vmem:[#allocation2 + $0x1c8] sm:$0xff]
    %v103 = vld [vmem:[#allocation2 + $0x1d0] sm:$0xff]
    %v104 = vld [vmem:[#allocation2 + $0x1d8] sm:$0xff]
    %v105 = vld [vmem:[#allocation2 + $0x1e0] sm:$0xff]
    %v106 = vld [vmem:[#allocation2 + $0x1e8] sm:$0xff]
    %v107 = vld [vmem:[#allocation2 + $0x1f0] sm:$0xff]
    %v108 = vld [vmem:[#allocation2 + $0x1f8] sm:$0xff]
    %v109 = vld [vmem:[#allocation2 + $0x200] sm:$0xff]
    %v110 = vld [vmem:[#allocation2 + $0x208] sm:$0xff]
    %v111 = vld [vmem:[#allocation2 + $0x210] sm:$0xff]
    %v112 = vld [vmem:[#allocation2 + $0x218] sm:$0xff]
    %v113 = vld [vmem:[#allocation2 + $0x220] sm:$0xff]
    %v114 = vld [vmem:[#allocation2 + $0x228] sm:$0xff]
    %v115 = vld [vmem:[#allocation2 + $0x230] sm:$0xff]
    %v116 = vld [vmem:[#allocation2 + $0x238] sm:$0xff]
    %v117 = vld [vmem:[#allocation2 + $0x240] sm:$0xff]
    %v118 = vld [vmem:[#allocation2 + $0x248] sm:$0xff]
    %v119 = vld [vmem:[#allocation2 + $0x250] sm:$0xff]
    %v120 = vld [vmem:[#allocation2 + $0x258] sm:$0xff]
    %v121 = vld [vmem:[#allocation2 + $0x260] sm:$0xff]
    %v122 = vld [vmem:[#allocation2 + $0x268] sm:$0xff]
    %v123 = vld [vmem:[#allocation2 + $0x270] sm:$0xff]
    %v124 = vld [vmem:[#allocation2 + $0x278] sm:$0xff]
    %v125 = vld [vmem:[#allocation2 + $0x280] sm:$0xff]
    %v126 = vld [vmem:[#allocation2 + $0x288] sm:$0xff]
    %v127 = vld [vmem:[#allocation2 + $0x290] sm:$0xff]
    %v128 = vld [vmem:[#allocation2 + $0x298] sm:$0xff]
    %v129 = vld [vmem:[#allocation2 + $0x2a0] sm:$0xff]
    %v130 = vld [vmem:[#allocation2 + $0x2a8] sm:$0xff]
    %v131 = vld [vmem:[#allocation2 + $0x2b0] sm:$0xff]
    %v132 = vld [vmem:[#allocation2 + $0x2b8] sm:$0xff]
    %v133 = vld [vmem:[#allocation2 + $0x2c0] sm:$0xff]
    %v134 = vld [vmem:[#allocation2 + $0x2c8] sm:$0xff]
    %v135 = vld [vmem:[#allocation2 + $0x2d0] sm:$0xff]
    %v136 = vld [vmem:[#allocation2 + $0x2d8] sm:$0xff]
    %v137 = vld [vmem:[#allocation2 + $0x2e0] sm:$0xff]
    %v138 = vld [vmem:[#allocation2 + $0x2e8] sm:$0xff]
    %v139 = vld [vmem:[#allocation2 + $0x2f0] sm:$0xff]
    %v140 = vld [vmem:[#allocation2 + $0x2f8] sm:$0xff]
    %v141 = vld [vmem:[#allocation2 + $0x300] sm:$0xff]
    %v142 = vld [vmem:[#allocation2 + $0x308] sm:$0xff]
    %v143 = vld [vmem:[#allocation2 + $0x310] sm:$0xff]
    %v144 = vld [vmem:[#allocation2 + $0x318] sm:$0xff]
    %v145 = vld [vmem:[#allocation2 + $0x320] sm:$0xff]
    %v146 = vld [vmem:[#allocation2 + $0x328] sm:$0xff]
    %v147 = vld [vmem:[#allocation2 + $0x330] sm:$0xff]
    %v148 = vld [vmem:[#allocation2 + $0x338] sm:$0xff]
    %v149 = vld [vmem:[#allocation2 + $0x340] sm:$0xff]
    %v150 = vld [vmem:[#allocation2 + $0x348] sm:$0xff]
    %v151 = vld [vmem:[#allocation2 + $0x350] sm:$0xff]
    %v152 = vld [vmem:[#allocation2 + $0x358] sm:$0xff]
    %v153 = vld [vmem:[#allocation2 + $0x360] sm:$0xff]
    %v154 = vld [vmem:[#allocation2 + $0x368] sm:$0xff]
    %v155 = vld [vmem:[#allocation2 + $0x370] sm:$0xff]
    %v156 = vld [vmem:[#allocation2 + $0x378] sm:$0xff]
    %v157 = vld [vmem:[#allocation2 + $0x380] sm:$0xff]
    %v158 = vld [vmem:[#allocation2 + $0x388] sm:$0xff]
    %v159 = vld [vmem:[#allocation2 + $0x390] sm:$0xff]
    %v160 = vld [vmem:[#allocation2 + $0x398] sm:$0xff]
    %v161 = vld [vmem:[#allocation2 + $0x3a0] sm:$0xff]
    %v162 = vld [vmem:[#allocation2 + $0x3a8] sm:$0xff]
    %v163 = vld [vmem:[#allocation2 + $0x3b0] sm:$0xff]
    %v164 = vld [vmem:[#allocation2 + $0x3b8] sm:$0xff]
    %v165 = vld [vmem:[#allocation2 + $0x3c0] sm:$0xff]
    %v166 = vld [vmem:[#allocation2 + $0x3c8] sm:$0xff]
    %v167 = vld [vmem:[#allocation2 + $0x3d0] sm:$0xff]
    %v168 = vld [vmem:[#allocation2 + $0x3d8] sm:$0xff]
    %v169 = vld [vmem:[#allocation2 + $0x3e0] sm:$0xff]
    %v170 = vld [vmem:[#allocation2 + $0x3e8] sm:$0xff]
    %v171 = vld [vmem:[#allocation2 + $0x3f0] sm:$0xff]
    %v172 = vld [vmem:[#allocation2 + $0x3f8] sm:$0xff]
    %v173 = vld [vmem:[#allocation2 + $0x400] sm:$0xff]
    %v174 = vld [vmem:[#allocation2 + $0x408] sm:$0xff]
    %v175 = vld [vmem:[#allocation2 + $0x410] sm:$0xff]
    %v176 = vld [vmem:[#allocation2 + $0x418] sm:$0xff]
    %v177 = vld [vmem:[#allocation2 + $0x420] sm:$0xff]
    %v178 = vld [vmem:[#allocation2 + $0x428] sm:$0xff]
    %v179 = vld [vmem:[#allocation2 + $0x430] sm:$0xff]
    %v180 = vld [vmem:[#allocation2 + $0x438] sm:$0xff]
    %v181 = vld [vmem:[#allocation2 + $0x440] sm:$0xff]
    %v182 = vld [vmem:[#allocation2 + $0x448] sm:$0xff]
    %v183 = vld [vmem:[#allocation2 + $0x450] sm:$0xff]
    %v184 = vld [vmem:[#allocation2 + $0x458] sm:$0xff]
    %v185 = vld [vmem:[#allocation2 + $0x460] sm:$0xff]
    %v186 = vld [vmem:[#allocation2 + $0x468] sm:$0xff]
    %v187 = vld [vmem:[#allocation2 + $0x470] sm:$0xff]
    %v188 = vld [vmem:[#allocation2 + $0x478] sm:$0xff]
    %v193 = vunpack.c.l.b16 %v41
    %v194 = vunpack.c.h.b16 %v41
    %v195 = vunpack.c.l.b16 %v42
    %v196 = vunpack.c.h.b16 %v42
    %v197 = vunpack.c.l.b16 %v43
    %v198 = vunpack.c.h.b16 %v43
    %v199 = vunpack.c.l.b16 %v44
    %v200 = vunpack.c.h.b16 %v44
    %v201 = vpack.c.b16 %v195, %v193
    %v202 = vpack.c.b16 %v196, %v194
    %v203 = vpack.c.b16 %v199, %v197
    %v204 = vpack.c.b16 %v200, %v198
    %v351 = vunpack.c.l.b16 %v45
    %v352 = vunpack.c.h.b16 %v45
    %v353 = vunpack.c.l.b16 %v46
    %v354 = vunpack.c.h.b16 %v46
    %v355 = vunpack.c.l.b16 %v47
    %v356 = vunpack.c.h.b16 %v47
    %v357 = vunpack.c.l.b16 %v48
    %v358 = vunpack.c.h.b16 %v48
    %v359 = vunpack.c.l.b16 %v49
    %v360 = vunpack.c.h.b16 %v49
    %v361 = vunpack.c.l.b16 %v50
    %v362 = vunpack.c.h.b16 %v50
    %v363 = vunpack.c.l.b16 %v51
    %v364 = vunpack.c.h.b16 %v51
    %v365 = vunpack.c.l.b16 %v52
    %v366 = vunpack.c.h.b16 %v52
    %v367 = vunpack.c.l.b16 %v53
    %v368 = vunpack.c.h.b16 %v53
    %v369 = vunpack.c.l.b16 %v54
    %v370 = vunpack.c.h.b16 %v54
    %v371 = vunpack.c.l.b16 %v55
    %v372 = vunpack.c.h.b16 %v55
    %v373 = vunpack.c.l.b16 %v56
    %v374 = vunpack.c.h.b16 %v56
    %v375 = vunpack.c.l.b16 %v57
    %v376 = vunpack.c.h.b16 %v57
    %v377 = vunpack.c.l.b16 %v58
    %v378 = vunpack.c.h.b16 %v58
    %v379 = vunpack.c.l.b16 %v59
    %v380 = vunpack.c.h.b16 %v59
    %v381 = vunpack.c.l.b16 %v60
    %v382 = vunpack.c.h.b16 %v60
    %v383 = vunpack.c.l.b16 %v61
    %v384 = vunpack.c.h.b16 %v61
    %v385 = vunpack.c.l.b16 %v62
    %v386 = vunpack.c.h.b16 %v62
    %v387 = vunpack.c.l.b16 %v63
    %v388 = vunpack.c.h.b16 %v63
    %v389 = vunpack.c.l.b16 %v64
    %v390 = vunpack.c.h.b16 %v64
    %v391 = vunpack.c.l.b16 %v65
    %v392 = vunpack.c.h.b16 %v65
    %v393 = vunpack.c.l.b16 %v66
    %v394 = vunpack.c.h.b16 %v66
    %v395 = vunpack.c.l.b16 %v67
    %v396 = vunpack.c.h.b16 %v67
    %v397 = vunpack.c.l.b16 %v68
    %v398 = vunpack.c.h.b16 %v68
    %v399 = vunpack.c.l.b16 %v69
    %v400 = vunpack.c.h.b16 %v69
    %v401 = vunpack.c.l.b16 %v70
    %v402 = vunpack.c.h.b16 %v70
    %v403 = vunpack.c.l.b16 %v71
    %v404 = vunpack.c.h.b16 %v71
    %v405 = vunpack.c.l.b16 %v72
    %v406 = vunpack.c.h.b16 %v72
    %v407 = vunpack.c.l.b16 %v73
    %v408 = vunpack.c.h.b16 %v73
    %v409 = vunpack.c.l.b16 %v74
    %v410 = vunpack.c.h.b16 %v74
    %v411 = vunpack.c.l.b16 %v75
    %v412 = vunpack.c.h.b16 %v75
    %v413 = vunpack.c.l.b16 %v76
    %v414 = vunpack.c.h.b16 %v76
    %v415 = vunpack.c.l.b16 %v77
    %v416 = vunpack.c.h.b16 %v77
    %v417 = vunpack.c.l.b16 %v78
    %v418 = vunpack.c.h.b16 %v78
    %v419 = vunpack.c.l.b16 %v79
    %v420 = vunpack.c.h.b16 %v79
    %v421 = vunpack.c.l.b16 %v80
    %v422 = vunpack.c.h.b16 %v80
    %v423 = vunpack.c.l.b16 %v81
    %v424 = vunpack.c.h.b16 %v81
    %v425 = vunpack.c.l.b16 %v82
    %v426 = vunpack.c.h.b16 %v82
    %v427 = vunpack.c.l.b16 %v83
    %v428 = vunpack.c.h.b16 %v83
    %v429 = vunpack.c.l.b16 %v84
    %v430 = vunpack.c.h.b16 %v84
    %v431 = vunpack.c.l.b16 %v85
    %v432 = vunpack.c.h.b16 %v85
    %v433 = vunpack.c.l.b16 %v86
    %v434 = vunpack.c.h.b16 %v86
    %v435 = vunpack.c.l.b16 %v87
    %v436 = vunpack.c.h.b16 %v87
    %v437 = vunpack.c.l.b16 %v88
    %v438 = vunpack.c.h.b16 %v88
    %v439 = vunpack.c.l.b16 %v89
    %v440 = vunpack.c.h.b16 %v89
    %v441 = vunpack.c.l.b16 %v90
    %v442 = vunpack.c.h.b16 %v90
    %v443 = vunpack.c.l.b16 %v91
    %v444 = vunpack.c.h.b16 %v91
    %v445 = vunpack.c.l.b16 %v92
    %v446 = vunpack.c.h.b16 %v92
    %v447 = vunpack.c.l.b16 %v93
    %v448 = vunpack.c.h.b16 %v93
    %v449 = vunpack.c.l.b16 %v94
    %v450 = vunpack.c.h.b16 %v94
    %v451 = vunpack.c.l.b16 %v95
    %v452 = vunpack.c.h.b16 %v95
    %v453 = vunpack.c.l.b16 %v96
    %v454 = vunpack.c.h.b16 %v96
    %v455 = vunpack.c.l.b16 %v97
    %v456 = vunpack.c.h.b16 %v97
    %v457 = vunpack.c.l.b16 %v98
    %v458 = vunpack.c.h.b16 %v98
    %v459 = vunpack.c.l.b16 %v99
    %v460 = vunpack.c.h.b16 %v99
    %v461 = vunpack.c.l.b16 %v100
    %v462 = vunpack.c.h.b16 %v100
    %v463 = vunpack.c.l.b16 %v101
    %v464 = vunpack.c.h.b16 %v101
    %v465 = vunpack.c.l.b16 %v102
    %v466 = vunpack.c.h.b16 %v102
    %v467 = vunpack.c.l.b16 %v103
    %v468 = vunpack.c.h.b16 %v103
    %v469 = vunpack.c.l.b16 %v104
    %v470 = vunpack.c.h.b16 %v104
    %v471 = vunpack.c.l.b16 %v105
    %v472 = vunpack.c.h.b16 %v105
    %v473 = vunpack.c.l.b16 %v106
    %v474 = vunpack.c.h.b16 %v106
    %v475 = vunpack.c.l.b16 %v107
    %v476 = vunpack.c.h.b16 %v107
    %v477 = vunpack.c.l.b16 %v108
    %v478 = vunpack.c.h.b16 %v108
    %v479 = vunpack.c.l.b16 %v109
    %v480 = vunpack.c.h.b16 %v109
    %v481 = vunpack.c.l.b16 %v110
    %v482 = vunpack.c.h.b16 %v110
    %v483 = vunpack.c.l.b16 %v111
    %v484 = vunpack.c.h.b16 %v111
    %v485 = vunpack.c.l.b16 %v112
    %v486 = vunpack.c.h.b16 %v112
    %v487 = vunpack.c.l.b16 %v113
    %v488 = vunpack.c.h.b16 %v113
    %v489 = vunpack.c.l.b16 %v114
    %v490 = vunpack.c.h.b16 %v114
    %v491 = vunpack.c.l.b16 %v115
    %v492 = vunpack.c.h.b16 %v115
    %v493 = vunpack.c.l.b16 %v116
    %v494 = vunpack.c.h.b16 %v116
    %v495 = vunpack.c.l.b16 %v117
    %v496 = vunpack.c.h.b16 %v117
    %v497 = vunpack.c.l.b16 %v118
    %v498 = vunpack.c.h.b16 %v118
    %v499 = vunpack.c.l.b16 %v119
    %v500 = vunpack.c.h.b16 %v119
    %v501 = vunpack.c.l.b16 %v120
    %v502 = vunpack.c.h.b16 %v120
    %v503 = vunpack.c.l.b16 %v121
    %v504 = vunpack.c.h.b16 %v121
    %v505 = vunpack.c.l.b16 %v122
    %v506 = vunpack.c.h.b16 %v122
    %v507 = vunpack.c.l.b16 %v123
    %v508 = vunpack.c.h.b16 %v123
    %v509 = vunpack.c.l.b16 %v124
    %v510 = vunpack.c.h.b16 %v124
    %v511 = vunpack.c.l.b16 %v125
    %v512 = vunpack.c.h.b16 %v125
    %v513 = vunpack.c.l.b16 %v126
    %v514 = vunpack.c.h.b16 %v126
    %v515 = vunpack.c.l.b16 %v127
    %v516 = vunpack.c.h.b16 %v127
    %v517 = vunpack.c.l.b16 %v128
    %v518 = vunpack.c.h.b16 %v128
    %v519 = vunpack.c.l.b16 %v129
    %v520 = vunpack.c.h.b16 %v129
    %v521 = vunpack.c.l.b16 %v130
    %v522 = vunpack.c.h.b16 %v130
    %v523 = vunpack.c.l.b16 %v131
    %v524 = vunpack.c.h.b16 %v131
    %v525 = vunpack.c.l.b16 %v132
    %v526 = vunpack.c.h.b16 %v132
    %v527 = vunpack.c.l.b16 %v133
    %v528 = vunpack.c.h.b16 %v133
    %v529 = vunpack.c.l.b16 %v134
    %v530 = vunpack.c.h.b16 %v134
    %v531 = vunpack.c.l.b16 %v135
    %v532 = vunpack.c.h.b16 %v135
    %v533 = vunpack.c.l.b16 %v136
    %v534 = vunpack.c.h.b16 %v136
    %v535 = vunpack.c.l.b16 %v137
    %v536 = vunpack.c.h.b16 %v137
    %v537 = vunpack.c.l.b16 %v138
    %v538 = vunpack.c.h.b16 %v138
    %v539 = vunpack.c.l.b16 %v139
    %v540 = vunpack.c.h.b16 %v139
    %v541 = vunpack.c.l.b16 %v140
    %v542 = vunpack.c.h.b16 %v140
    %v543 = vunpack.c.l.b16 %v141
    %v544 = vunpack.c.h.b16 %v141
    %v545 = vunpack.c.l.b16 %v142
    %v546 = vunpack.c.h.b16 %v142
    %v547 = vunpack.c.l.b16 %v143
    %v548 = vunpack.c.h.b16 %v143
    %v549 = vunpack.c.l.b16 %v144
    %v550 = vunpack.c.h.b16 %v144
    %v551 = vunpack.c.l.b16 %v145
    %v552 = vunpack.c.h.b16 %v145
    %v553 = vunpack.c.l.b16 %v146
    %v554 = vunpack.c.h.b16 %v146
    %v555 = vunpack.c.l.b16 %v147
    %v556 = vunpack.c.h.b16 %v147
    %v557 = vunpack.c.l.b16 %v148
    %v558 = vunpack.c.h.b16 %v148
    %v559 = vunpack.c.l.b16 %v149
    %v560 = vunpack.c.h.b16 %v149
    %v561 = vunpack.c.l.b16 %v150
    %v562 = vunpack.c.h.b16 %v150
    %v563 = vunpack.c.l.b16 %v151
    %v564 = vunpack.c.h.b16 %v151
    %v565 = vunpack.c.l.b16 %v152
    %v566 = vunpack.c.h.b16 %v152
    %v567 = vunpack.c.l.b16 %v153
    %v568 = vunpack.c.h.b16 %v153
    %v569 = vunpack.c.l.b16 %v154
    %v570 = vunpack.c.h.b16 %v154
    %v571 = vunpack.c.l.b16 %v155
    %v572 = vunpack.c.h.b16 %v155
    %v573 = vunpack.c.l.b16 %v156
    %v574 = vunpack.c.h.b16 %v156
    %v575 = vunpack.c.l.b16 %v157
    %v576 = vunpack.c.h.b16 %v157
    %v577 = vunpack.c.l.b16 %v158
    %v578 = vunpack.c.h.b16 %v158
    %v579 = vunpack.c.l.b16 %v159
    %v580 = vunpack.c.h.b16 %v159
    %v581 = vunpack.c.l.b16 %v160
    %v582 = vunpack.c.h.b16 %v160
    %v583 = vunpack.c.l.b16 %v161
    %v584 = vunpack.c.h.b16 %v161
    %v585 = vunpack.c.l.b16 %v162
    %v586 = vunpack.c.h.b16 %v162
    %v587 = vunpack.c.l.b16 %v163
    %v588 = vunpack.c.h.b16 %v163
    %v589 = vunpack.c.l.b16 %v164
    %v590 = vunpack.c.h.b16 %v164
    %v591 = vunpack.c.l.b16 %v165
    %v592 = vunpack.c.h.b16 %v165
    %v593 = vunpack.c.l.b16 %v166
    %v594 = vunpack.c.h.b16 %v166
    %v595 = vunpack.c.l.b16 %v167
    %v596 = vunpack.c.h.b16 %v167
    %v597 = vunpack.c.l.b16 %v168
    %v598 = vunpack.c.h.b16 %v168
    %v599 = vunpack.c.l.b16 %v169
    %v600 = vunpack.c.h.b16 %v169
    %v601 = vunpack.c.l.b16 %v170
    %v602 = vunpack.c.h.b16 %v170
    %v603 = vunpack.c.l.b16 %v171
    %v604 = vunpack.c.h.b16 %v171
    %v605 = vunpack.c.l.b16 %v172
    %v606 = vunpack.c.h.b16 %v172
    %v607 = vunpack.c.l.b16 %v173
    %v608 = vunpack.c.h.b16 %v173
    %v609 = vunpack.c.l.b16 %v174
    %v610 = vunpack.c.h.b16 %v174
    %v611 = vunpack.c.l.b16 %v175
    %v612 = vunpack.c.h.b16 %v175
    %v613 = vunpack.c.l.b16 %v176
    %v614 = vunpack.c.h.b16 %v176
    %v615 = vunpack.c.l.b16 %v177
    %v616 = vunpack.c.h.b16 %v177
    %v617 = vunpack.c.l.b16 %v178
    %v618 = vunpack.c.h.b16 %v178
    %v619 = vunpack.c.l.b16 %v179
    %v620 = vunpack.c.h.b16 %v179
    %v621 = vunpack.c.l.b16 %v180
    %v622 = vunpack.c.h.b16 %v180
    %v623 = vunpack.c.l.b16 %v181
    %v624 = vunpack.c.h.b16 %v181
    %v625 = vunpack.c.l.b16 %v182
    %v626 = vunpack.c.h.b16 %v182
    %v627 = vunpack.c.l.b16 %v183
    %v628 = vunpack.c.h.b16 %v183
    %v629 = vunpack.c.l.b16 %v184
    %v630 = vunpack.c.h.b16 %v184
    %v631 = vunpack.c.l.b16 %v185
    %v632 = vunpack.c.h.b16 %v185
    %v633 = vunpack.c.l.b16 %v186
    %v634 = vunpack.c.h.b16 %v186
    %v635 = vunpack.c.l.b16 %v187
    %v636 = vunpack.c.h.b16 %v187
    %v637 = vunpack.c.l.b16 %v188
    %v638 = vunpack.c.h.b16 %v188
    %v639 = vpack.c.b16 %v363, %v351
    %v640 = vpack.c.b16 %v364, %v352
    %v641 = vpack.c.b16 %v365, %v353
    %v642 = vpack.c.b16 %v366, %v354
    %v643 = vpack.c.b16 %v367, %v355
    %v644 = vpack.c.b16 %v368, %v356
    %v645 = vpack.c.b16 %v369, %v357
    %v646 = vpack.c.b16 %v370, %v358
    %v647 = vpack.c.b16 %v371, %v359
    %v648 = vpack.c.b16 %v372, %v360
    %v649 = vpack.c.b16 %v373, %v361
    %v650 = vpack.c.b16 %v374, %v362
    %v651 = vpack.c.b16 %v387, %v375
    %v652 = vpack.c.b16 %v388, %v376
    %v653 = vpack.c.b16 %v389, %v377
    %v654 = vpack.c.b16 %v390, %v378
    %v655 = vpack.c.b16 %v391, %v379
    %v656 = vpack.c.b16 %v392, %v380
    %v657 = vpack.c.b16 %v393, %v381
    %v658 = vpack.c.b16 %v394, %v382
    %v659 = vpack.c.b16 %v395, %v383
    %v660 = vpack.c.b16 %v396, %v384
    %v661 = vpack.c.b16 %v397, %v385
    %v662 = vpack.c.b16 %v398, %v386
    %v663 = vpack.c.b16 %v411, %v399
    %v664 = vpack.c.b16 %v412, %v400
    %v665 = vpack.c.b16 %v413, %v401
    %v666 = vpack.c.b16 %v414, %v402
    %v667 = vpack.c.b16 %v415, %v403
    %v668 = vpack.c.b16 %v416, %v404
    %v669 = vpack.c.b16 %v417, %v405
    %v670 = vpack.c.b16 %v418, %v406
    %v671 = vpack.c.b16 %v419, %v407
    %v672 = vpack.c.b16 %v420, %v408
    %v673 = vpack.c.b16 %v421, %v409
    %v674 = vpack.c.b16 %v422, %v410
    %v675 = vpack.c.b16 %v435, %v423
    %v676 = vpack.c.b16 %v436, %v424
    %v677 = vpack.c.b16 %v437, %v425
    %v678 = vpack.c.b16 %v438, %v426
    %v679 = vpack.c.b16 %v439, %v427
    %v680 = vpack.c.b16 %v440, %v428
    %v681 = vpack.c.b16 %v441, %v429
    %v682 = vpack.c.b16 %v442, %v430
    %v683 = vpack.c.b16 %v443, %v431
    %v684 = vpack.c.b16 %v444, %v432
    %v685 = vpack.c.b16 %v445, %v433
    %v686 = vpack.c.b16 %v446, %v434
    %v687 = vpack.c.b16 %v459, %v447
    %v688 = vpack.c.b16 %v460, %v448
    %v689 = vpack.c.b16 %v461, %v449
    %v690 = vpack.c.b16 %v462, %v450
    %v691 = vpack.c.b16 %v463, %v451
    %v692 = vpack.c.b16 %v464, %v452
    %v693 = vpack.c.b16 %v465, %v453
    %v694 = vpack.c.b16 %v466, %v454
    %v695 = vpack.c.b16 %v467, %v455
    %v696 = vpack.c.b16 %v468, %v456
    %v697 = vpack.c.b16 %v469, %v457
    %v698 = vpack.c.b16 %v470, %v458
    %v699 = vpack.c.b16 %v483, %v471
    %v700 = vpack.c.b16 %v484, %v472
    %v701 = vpack.c.b16 %v485, %v473
    %v702 = vpack.c.b16 %v486, %v474
    %v703 = vpack.c.b16 %v487, %v475
    %v704 = vpack.c.b16 %v488, %v476
    %v705 = vpack.c.b16 %v489, %v477
    %v706 = vpack.c.b16 %v490, %v478
    %v707 = vpack.c.b16 %v491, %v479
    %v708 = vpack.c.b16 %v492, %v480
    %v709 = vpack.c.b16 %v493, %v481
    %v710 = vpack.c.b16 %v494, %v482
    %v711 = vpack.c.b16 %v507, %v495
    %v712 = vpack.c.b16 %v508, %v496
    %v713 = vpack.c.b16 %v509, %v497
    %v714 = vpack.c.b16 %v510, %v498
    %v715 = vpack.c.b16 %v511, %v499
    %v716 = vpack.c.b16 %v512, %v500
    %v717 = vpack.c.b16 %v513, %v501
    %v718 = vpack.c.b16 %v514, %v502
    %v719 = vpack.c.b16 %v515, %v503
    %v720 = vpack.c.b16 %v516, %v504
    %v721 = vpack.c.b16 %v517, %v505
    %v722 = vpack.c.b16 %v518, %v506
    %v723 = vpack.c.b16 %v531, %v519
    %v724 = vpack.c.b16 %v532, %v520
    %v725 = vpack.c.b16 %v533, %v521
    %v726 = vpack.c.b16 %v534, %v522
    %v727 = vpack.c.b16 %v535, %v523
    %v728 = vpack.c.b16 %v536, %v524
    %v729 = vpack.c.b16 %v537, %v525
    %v730 = vpack.c.b16 %v538, %v526
    %v731 = vpack.c.b16 %v539, %v527
    %v732 = vpack.c.b16 %v540, %v528
    %v733 = vpack.c.b16 %v541, %v529
    %v734 = vpack.c.b16 %v542, %v530
    %v735 = vpack.c.b16 %v555, %v543
    %v736 = vpack.c.b16 %v556, %v544
    %v737 = vpack.c.b16 %v557, %v545
    %v738 = vpack.c.b16 %v558, %v546
    %v739 = vpack.c.b16 %v559, %v547
    %v740 = vpack.c.b16 %v560, %v548
    %v741 = vpack.c.b16 %v561, %v549
    %v742 = vpack.c.b16 %v562, %v550
    %v743 = vpack.c.b16 %v563, %v551
    %v744 = vpack.c.b16 %v564, %v552
    %v745 = vpack.c.b16 %v565, %v553
    %v746 = vpack.c.b16 %v566, %v554
    %v747 = vpack.c.b16 %v579, %v567
    %v748 = vpack.c.b16 %v580, %v568
    %v749 = vpack.c.b16 %v581, %v569
    %v750 = vpack.c.b16 %v582, %v570
    %v751 = vpack.c.b16 %v583, %v571
    %v752 = vpack.c.b16 %v584, %v572
    %v753 = vpack.c.b16 %v585, %v573
    %v754 = vpack.c.b16 %v586, %v574
    %v755 = vpack.c.b16 %v587, %v575
    %v756 = vpack.c.b16 %v588, %v576
    %v757 = vpack.c.b16 %v589, %v577
    %v758 = vpack.c.b16 %v590, %v578
    %v759 = vpack.c.b16 %v603, %v591
    %v760 = vpack.c.b16 %v604, %v592
    %v761 = vpack.c.b16 %v605, %v593
    %v762 = vpack.c.b16 %v606, %v594
    %v763 = vpack.c.b16 %v607, %v595
    %v764 = vpack.c.b16 %v608, %v596
    %v765 = vpack.c.b16 %v609, %v597
    %v766 = vpack.c.b16 %v610, %v598
    %v767 = vpack.c.b16 %v611, %v599
    %v768 = vpack.c.b16 %v612, %v600
    %v769 = vpack.c.b16 %v613, %v601
    %v770 = vpack.c.b16 %v614, %v602
    %v771 = vpack.c.b16 %v627, %v615
    %v772 = vpack.c.b16 %v628, %v616
    %v773 = vpack.c.b16 %v629, %v617
    %v774 = vpack.c.b16 %v630, %v618
    %v775 = vpack.c.b16 %v631, %v619
    %v776 = vpack.c.b16 %v632, %v620
    %v777 = vpack.c.b16 %v633, %v621
    %v778 = vpack.c.b16 %v634, %v622
    %v779 = vpack.c.b16 %v635, %v623
    %v780 = vpack.c.b16 %v636, %v624
    %v781 = vpack.c.b16 %v637, %v625
    %v782 = vpack.c.b16 %v638, %v626
    %vm927 = vcmask 523264
    %v929 = vsel %vm927, %v202, 0
    %v932 = vsel %vm927, %v204, 0
    %934 = vmatprep.subr.bf16.mxu0 %v724
    %935 = vmatpush1.bf16.msra.mxu0 %v723
    %936 = vmatprep.subr.bf16.mxu0 %v712
    %937 = vmatpush1.bf16.msra.mxu0 %v711
    %938 = vmatprep.subr.bf16.mxu0 %v700
    %939 = vmatpush1.bf16.msra.mxu0 %v699
    %940 = vmatprep.subr.bf16.mxu0 %v688
    %941 = vmatpush1.bf16.msra.mxu0 %v687
    %942 = vmatprep.subr.bf16.mxu0 %v676
    %943 = vmatpush1.bf16.msra.mxu0 %v675
    %944 = vmatprep.subr.bf16.mxu0 %v664
    %945 = vmatpush1.bf16.msra.mxu0 %v663
    %946 = vmatprep.subr.bf16.mxu0 %v652
    %947 = vmatpush1.bf16.msra.mxu0 %v651
    %948 = vmatprep.subr.bf16.mxu0 %v640
    %949 = vmatpush1.bf16.msra.mxu0 %v639
    %950 = vmatprep.subr.bf16.mxu0 0
    %951 = vmatpush2.bf16.msra.mxu0 0
    %952 = vmatprep.subr.bf16.mxu0 0
    %953 = vmatpush2.bf16.msra.mxu0 0
    %954 = vmatprep.subr.bf16.mxu0 0
    %955 = vmatpush2.bf16.msra.mxu0 0
    %956 = vmatprep.subr.bf16.mxu0 0
    %957 = vmatpush2.bf16.msra.mxu0 0
    %958 = vmatprep.subr.bf16.mxu0 %v772
    %959 = vmatpush2.bf16.msra.mxu0 %v771
    %960 = vmatprep.subr.bf16.mxu0 %v760
    %961 = vmatpush2.bf16.msra.mxu0 %v759
    %962 = vmatprep.subr.bf16.mxu0 %v748
    %963 = vmatpush2.bf16.msra.mxu0 %v747
    %964 = vmatprep.subr.bf16.mxu0 %v736
    %965 = vmatpush2.bf16.msra.mxu0 %v735
    %966 = vmatprep.mubr.bf16.mxu0 %v929
    %967 = vmatmul.mubr.bf16.gmra.mxu0 %v201
    %v968 = vpop.f32.mrf.mxu0
    %v969 = vadd.f32 0.0, %v968
    %v970 = vpop.f32.mrf.mxu0
    %v971 = vadd.f32 0.0, %v970
    %v972 = vpop.f32.mrf.mxu0
    %v973 = vadd.f32 0.0, %v972
    %v974 = vpop.f32.mrf.mxu0
    %v975 = vadd.f32 0.0, %v974
    %976 = vmatprep.mubr.bf16.mxu0 %v932
    %977 = vmatmul.mubr.bf16.gmra.mxu0 %v203
    %v978 = vpop.f32.mrf.mxu0
    %v979 = vadd.f32 0.0, %v978
    %v980 = vpop.f32.mrf.mxu0
    %v981 = vadd.f32 0.0, %v980
    %v982 = vpop.f32.mrf.mxu0
    %v983 = vadd.f32 0.0, %v982
    %v984 = vpop.f32.mrf.mxu0
    %v985 = vadd.f32 0.0, %v984
    %986 = vdwg.mxu0
    %987 = vmatprep.subr.bf16.mxu0 %v726
    %988 = vmatpush1.bf16.msra.mxu0 %v725
    %989 = vmatprep.subr.bf16.mxu0 %v714
    %990 = vmatpush1.bf16.msra.mxu0 %v713
    %991 = vmatprep.subr.bf16.mxu0 %v702
    %992 = vmatpush1.bf16.msra.mxu0 %v701
    %993 = vmatprep.subr.bf16.mxu0 %v690
    %994 = vmatpush1.bf16.msra.mxu0 %v689
    %995 = vmatprep.subr.bf16.mxu0 %v678
    %996 = vmatpush1.bf16.msra.mxu0 %v677
    %997 = vmatprep.subr.bf16.mxu0 %v666
    %998 = vmatpush1.bf16.msra.mxu0 %v665
    %999 = vmatprep.subr.bf16.mxu0 %v654
    %1000 = vmatpush1.bf16.msra.mxu0 %v653
    %1001 = vmatprep.subr.bf16.mxu0 %v642
    %1002 = vmatpush1.bf16.msra.mxu0 %v641
    %1003 = vmatprep.subr.bf16.mxu0 0
    %1004 = vmatpush2.bf16.msra.mxu0 0
    %1005 = vmatprep.subr.bf16.mxu0 0
    %1006 = vmatpush2.bf16.msra.mxu0 0
    %1007 = vmatprep.subr.bf16.mxu0 0
    %1008 = vmatpush2.bf16.msra.mxu0 0
    %1009 = vmatprep.subr.bf16.mxu0 0
    %1010 = vmatpush2.bf16.msra.mxu0 0
    %1011 = vmatprep.subr.bf16.mxu0 %v774
    %1012 = vmatpush2.bf16.msra.mxu0 %v773
    %1013 = vmatprep.subr.bf16.mxu0 %v762
    %1014 = vmatpush2.bf16.msra.mxu0 %v761
    %1015 = vmatprep.subr.bf16.mxu0 %v750
    %1016 = vmatpush2.bf16.msra.mxu0 %v749
    %1017 = vmatprep.subr.bf16.mxu0 %v738
    %1018 = vmatpush2.bf16.msra.mxu0 %v737
    %1019 = vmatprep.mubr.bf16.mxu0 %v929
    %1020 = vmatmul.mubr.bf16.gmra.mxu0 %v201
    %v1021 = vpop.f32.mrf.mxu0
    %v1022 = vadd.f32 0.0, %v1021
    %v1023 = vpop.f32.mrf.mxu0
    %v1024 = vadd.f32 0.0, %v1023
    %v1025 = vpop.f32.mrf.mxu0
    %v1026 = vadd.f32 0.0, %v1025
    %v1027 = vpop.f32.mrf.mxu0
    %v1028 = vadd.f32 0.0, %v1027
    %1029 = vmatprep.mubr.bf16.mxu0 %v932
    %1030 = vmatmul.mubr.bf16.gmra.mxu0 %v203
    %v1031 = vpop.f32.mrf.mxu0
    %v1032 = vadd.f32 0.0, %v1031
    %v1033 = vpop.f32.mrf.mxu0
    %v1034 = vadd.f32 0.0, %v1033
    %v1035 = vpop.f32.mrf.mxu0
    %v1036 = vadd.f32 0.0, %v1035
    %v1037 = vpop.f32.mrf.mxu0
    %v1038 = vadd.f32 0.0, %v1037
    %1039 = vdwg.mxu0
    %1040 = vmatprep.subr.bf16.mxu0 %v728
    %1041 = vmatpush1.bf16.msra.mxu0 %v727
    %1042 = vmatprep.subr.bf16.mxu0 %v716
    %1043 = vmatpush1.bf16.msra.mxu0 %v715
    %1044 = vmatprep.subr.bf16.mxu0 %v704
    %1045 = vmatpush1.bf16.msra.mxu0 %v703
    %1046 = vmatprep.subr.bf16.mxu0 %v692
    %1047 = vmatpush1.bf16.msra.mxu0 %v691
    %1048 = vmatprep.subr.bf16.mxu0 %v680
    %1049 = vmatpush1.bf16.msra.mxu0 %v679
    %1050 = vmatprep.subr.bf16.mxu0 %v668
    %1051 = vmatpush1.bf16.msra.mxu0 %v667
    %1052 = vmatprep.subr.bf16.mxu0 %v656
    %1053 = vmatpush1.bf16.msra.mxu0 %v655
    %1054 = vmatprep.subr.bf16.mxu0 %v644
    %1055 = vmatpush1.bf16.msra.mxu0 %v643
    %1056 = vmatprep.subr.bf16.mxu0 0
    %1057 = vmatpush2.bf16.msra.mxu0 0
    %1058 = vmatprep.subr.bf16.mxu0 0
    %1059 = vmatpush2.bf16.msra.mxu0 0
    %1060 = vmatprep.subr.bf16.mxu0 0
    %1061 = vmatpush2.bf16.msra.mxu0 0
    %1062 = vmatprep.subr.bf16.mxu0 0
    %1063 = vmatpush2.bf16.msra.mxu0 0
    %1064 = vmatprep.subr.bf16.mxu0 %v776
    %1065 = vmatpush2.bf16.msra.mxu0 %v775
    %1066 = vmatprep.subr.bf16.mxu0 %v764
    %1067 = vmatpush2.bf16.msra.mxu0 %v763
    %1068 = vmatprep.subr.bf16.mxu0 %v752
    %1069 = vmatpush2.bf16.msra.mxu0 %v751
    %1070 = vmatprep.subr.bf16.mxu0 %v740
    %1071 = vmatpush2.bf16.msra.mxu0 %v739
    %1072 = vmatprep.mubr.bf16.mxu0 %v929
    %1073 = vmatmul.mubr.bf16.gmra.mxu0 %v201
    %v1074 = vpop.f32.mrf.mxu0
    %v1075 = vadd.f32 0.0, %v1074
    %v1076 = vpop.f32.mrf.mxu0
    %v1077 = vadd.f32 0.0, %v1076
    %v1078 = vpop.f32.mrf.mxu0
    %v1079 = vadd.f32 0.0, %v1078
    %v1080 = vpop.f32.mrf.mxu0
    %v1081 = vadd.f32 0.0, %v1080
    %1082 = vmatprep.mubr.bf16.mxu0 %v932
    %1083 = vmatmul.mubr.bf16.gmra.mxu0 %v203
    %v1084 = vpop.f32.mrf.mxu0
    %v1085 = vadd.f32 0.0, %v1084
    %v1086 = vpop.f32.mrf.mxu0
    %v1087 = vadd.f32 0.0, %v1086
    %v1088 = vpop.f32.mrf.mxu0
    %v1089 = vadd.f32 0.0, %v1088
    %v1090 = vpop.f32.mrf.mxu0
    %v1091 = vadd.f32 0.0, %v1090
    %1092 = vdwg.mxu0
    %1093 = vmatprep.subr.bf16.mxu0 %v730
    %1094 = vmatpush1.bf16.msra.mxu0 %v729
    %1095 = vmatprep.subr.bf16.mxu0 %v718
    %1096 = vmatpush1.bf16.msra.mxu0 %v717
    %1097 = vmatprep.subr.bf16.mxu0 %v706
    %1098 = vmatpush1.bf16.msra.mxu0 %v705
    %1099 = vmatprep.subr.bf16.mxu0 %v694
    %1100 = vmatpush1.bf16.msra.mxu0 %v693
    %1101 = vmatprep.subr.bf16.mxu0 %v682
    %1102 = vmatpush1.bf16.msra.mxu0 %v681
    %1103 = vmatprep.subr.bf16.mxu0 %v670
    %1104 = vmatpush1.bf16.msra.mxu0 %v669
    %1105 = vmatprep.subr.bf16.mxu0 %v658
    %1106 = vmatpush1.bf16.msra.mxu0 %v657
    %1107 = vmatprep.subr.bf16.mxu0 %v646
    %1108 = vmatpush1.bf16.msra.mxu0 %v645
    %1109 = vmatprep.subr.bf16.mxu0 0
    %1110 = vmatpush2.bf16.msra.mxu0 0
    %1111 = vmatprep.subr.bf16.mxu0 0
    %1112 = vmatpush2.bf16.msra.mxu0 0
    %1113 = vmatprep.subr.bf16.mxu0 0
    %1114 = vmatpush2.bf16.msra.mxu0 0
    %1115 = vmatprep.subr.bf16.mxu0 0
    %1116 = vmatpush2.bf16.msra.mxu0 0
    %1117 = vmatprep.subr.bf16.mxu0 %v778
    %1118 = vmatpush2.bf16.msra.mxu0 %v777
    %1119 = vmatprep.subr.bf16.mxu0 %v766
    %1120 = vmatpush2.bf16.msra.mxu0 %v765
    %1121 = vmatprep.subr.bf16.mxu0 %v754
    %1122 = vmatpush2.bf16.msra.mxu0 %v753
    %1123 = vmatprep.subr.bf16.mxu0 %v742
    %1124 = vmatpush2.bf16.msra.mxu0 %v741
    %1125 = vmatprep.mubr.bf16.mxu0 %v929
    %1126 = vmatmul.mubr.bf16.gmra.mxu0 %v201
    %v1127 = vpop.f32.mrf.mxu0
    %v1128 = vadd.f32 0.0, %v1127
    %v1129 = vpop.f32.mrf.mxu0
    %v1130 = vadd.f32 0.0, %v1129
    %v1131 = vpop.f32.mrf.mxu0
    %v1132 = vadd.f32 0.0, %v1131
    %v1133 = vpop.f32.mrf.mxu0
    %v1134 = vadd.f32 0.0, %v1133
    %1135 = vmatprep.mubr.bf16.mxu0 %v932
    %1136 = vmatmul.mubr.bf16.gmra.mxu0 %v203
    %v1137 = vpop.f32.mrf.mxu0
    %v1138 = vadd.f32 0.0, %v1137
    %v1139 = vpop.f32.mrf.mxu0
    %v1140 = vadd.f32 0.0, %v1139
    %v1141 = vpop.f32.mrf.mxu0
    %v1142 = vadd.f32 0.0, %v1141
    %v1143 = vpop.f32.mrf.mxu0
    %v1144 = vadd.f32 0.0, %v1143
    %1145 = vdwg.mxu0
    %1146 = vmatprep.subr.bf16.mxu0 %v732
    %1147 = vmatpush1.bf16.msra.mxu0 %v731
    %1148 = vmatprep.subr.bf16.mxu0 %v720
    %1149 = vmatpush1.bf16.msra.mxu0 %v719
    %1150 = vmatprep.subr.bf16.mxu0 %v708
    %1151 = vmatpush1.bf16.msra.mxu0 %v707
    %1152 = vmatprep.subr.bf16.mxu0 %v696
    %1153 = vmatpush1.bf16.msra.mxu0 %v695
    %1154 = vmatprep.subr.bf16.mxu0 %v684
    %1155 = vmatpush1.bf16.msra.mxu0 %v683
    %1156 = vmatprep.subr.bf16.mxu0 %v672
    %1157 = vmatpush1.bf16.msra.mxu0 %v671
    %1158 = vmatprep.subr.bf16.mxu0 %v660
    %1159 = vmatpush1.bf16.msra.mxu0 %v659
    %1160 = vmatprep.subr.bf16.mxu0 %v648
    %1161 = vmatpush1.bf16.msra.mxu0 %v647
    %1162 = vmatprep.subr.bf16.mxu0 0
    %1163 = vmatpush2.bf16.msra.mxu0 0
    %1164 = vmatprep.subr.bf16.mxu0 0
    %1165 = vmatpush2.bf16.msra.mxu0 0
    %1166 = vmatprep.subr.bf16.mxu0 0
    %1167 = vmatpush2.bf16.msra.mxu0 0
    %1168 = vmatprep.subr.bf16.mxu0 0
    %1169 = vmatpush2.bf16.msra.mxu0 0
    %1170 = vmatprep.subr.bf16.mxu0 %v780
    %1171 = vmatpush2.bf16.msra.mxu0 %v779
    %1172 = vmatprep.subr.bf16.mxu0 %v768
    %1173 = vmatpush2.bf16.msra.mxu0 %v767
    %1174 = vmatprep.subr.bf16.mxu0 %v756
    %1175 = vmatpush2.bf16.msra.mxu0 %v755
    %1176 = vmatprep.subr.bf16.mxu0 %v744
    %1177 = vmatpush2.bf16.msra.mxu0 %v743
    %1178 = vmatprep.mubr.bf16.mxu0 %v929
    %1179 = vmatmul.mubr.bf16.gmra.mxu0 %v201
    %v1180 = vpop.f32.mrf.mxu0
    %v1181 = vadd.f32 0.0, %v1180
    %v1182 = vpop.f32.mrf.mxu0
    %v1183 = vadd.f32 0.0, %v1182
    %v1184 = vpop.f32.mrf.mxu0
    %v1185 = vadd.f32 0.0, %v1184
    %v1186 = vpop.f32.mrf.mxu0
    %v1187 = vadd.f32 0.0, %v1186
    %1188 = vmatprep.mubr.bf16.mxu0 %v932
    %1189 = vmatmul.mubr.bf16.gmra.mxu0 %v203
    %v1190 = vpop.f32.mrf.mxu0
    %v1191 = vadd.f32 0.0, %v1190
    %v1192 = vpop.f32.mrf.mxu0
    %v1193 = vadd.f32 0.0, %v1192
    %v1194 = vpop.f32.mrf.mxu0
    %v1195 = vadd.f32 0.0, %v1194
    %v1196 = vpop.f32.mrf.mxu0
    %v1197 = vadd.f32 0.0, %v1196
    %1198 = vdwg.mxu0
    %1199 = vmatprep.subr.bf16.mxu0 %v734
    %1200 = vmatpush1.bf16.msra.mxu0 %v733
    %1201 = vmatprep.subr.bf16.mxu0 %v722
    %1202 = vmatpush1.bf16.msra.mxu0 %v721
    %1203 = vmatprep.subr.bf16.mxu0 %v710
    %1204 = vmatpush1.bf16.msra.mxu0 %v709
    %1205 = vmatprep.subr.bf16.mxu0 %v698
    %1206 = vmatpush1.bf16.msra.mxu0 %v697
    %1207 = vmatprep.subr.bf16.mxu0 %v686
    %1208 = vmatpush1.bf16.msra.mxu0 %v685
    %1209 = vmatprep.subr.bf16.mxu0 %v674
    %1210 = vmatpush1.bf16.msra.mxu0 %v673
    %1211 = vmatprep.subr.bf16.mxu0 %v662
    %1212 = vmatpush1.bf16.msra.mxu0 %v661
    %1213 = vmatprep.subr.bf16.mxu0 %v650
    %1214 = vmatpush1.bf16.msra.mxu0 %v649
    %1215 = vmatprep.subr.bf16.mxu0 0
    %1216 = vmatpush2.bf16.msra.mxu0 0
    %1217 = vmatprep.subr.bf16.mxu0 0
    %1218 = vmatpush2.bf16.msra.mxu0 0
    %1219 = vmatprep.subr.bf16.mxu0 0
    %1220 = vmatpush2.bf16.msra.mxu0 0
    %1221 = vmatprep.subr.bf16.mxu0 0
    %1222 = vmatpush2.bf16.msra.mxu0 0
    %1223 = vmatprep.subr.bf16.mxu0 %v782
    %1224 = vmatpush2.bf16.msra.mxu0 %v781
    %1225 = vmatprep.subr.bf16.mxu0 %v770
    %1226 = vmatpush2.bf16.msra.mxu0 %v769
    %1227 = vmatprep.subr.bf16.mxu0 %v758
    %1228 = vmatpush2.bf16.msra.mxu0 %v757
    %1229 = vmatprep.subr.bf16.mxu0 %v746
    %1230 = vmatpush2.bf16.msra.mxu0 %v745
    %1231 = vmatprep.mubr.bf16.mxu0 %v929
    %1232 = vmatmul.mubr.bf16.gmra.mxu0 %v201
    %v1233 = vpop.f32.mrf.mxu0
    %v1234 = vadd.f32 0.0, %v1233
    %v1235 = vpop.f32.mrf.mxu0
    %v1236 = vadd.f32 0.0, %v1235
    %v1237 = vpop.f32.mrf.mxu0
    %v1238 = vadd.f32 0.0, %v1237
    %v1239 = vpop.f32.mrf.mxu0
    %v1240 = vadd.f32 0.0, %v1239
    %1241 = vmatprep.mubr.bf16.mxu0 %v932
    %1242 = vmatmul.mubr.bf16.gmra.mxu0 %v203
    %v1243 = vpop.f32.mrf.mxu0
    %v1244 = vadd.f32 0.0, %v1243
    %v1245 = vpop.f32.mrf.mxu0
    %v1246 = vadd.f32 0.0, %v1245
    %v1247 = vpop.f32.mrf.mxu0
    %v1248 = vadd.f32 0.0, %v1247
    %v1249 = vpop.f32.mrf.mxu0
    %v1250 = vadd.f32 0.0, %v1249
    %1251 = vdwg.mxu0
    %v1252 = vmax.f32 %v969, %v1024
    %v1253 = vmax.f32 %v971, %v1075
    %v1254 = vmax.f32 %v1022, %v1077
    %v1255 = vmax.f32 %v973, %v1028
    %v1256 = vmax.f32 %v975, %v1079
    %v1257 = vmax.f32 %v1026, %v1081
    %v1258 = vmax.f32 %v979, %v1034
    %v1259 = vmax.f32 %v981, %v1085
    %v1260 = vmax.f32 %v1032, %v1087
    %v1261 = vmax.f32 %v983, %v1038
    %v1262 = vmax.f32 %v985, %v1089
    %v1263 = vmax.f32 %v1036, %v1091
    %v1264 = vmax.f32 %v1128, %v1183
    %v1265 = vmax.f32 %v1130, %v1234
    %v1266 = vmax.f32 %v1181, %v1236
    %v1267 = vmax.f32 %v1132, %v1187
    %v1268 = vmax.f32 %v1134, %v1238
    %v1269 = vmax.f32 %v1185, %v1240
    %v1270 = vmax.f32 %v1138, %v1193
    %v1271 = vmax.f32 %v1140, %v1244
    %v1272 = vmax.f32 %v1191, %v1246
    %v1273 = vmax.f32 %v1142, %v1197
    %v1274 = vmax.f32 %v1144, %v1248
    %v1275 = vmax.f32 %v1195, %v1250
    %v1276 = vmax.f32 %v1252, %v1264
    %v1277 = vmax.f32 %v1253, %v1265
    %v1278 = vmax.f32 %v1254, %v1266
    %v1279 = vmax.f32 %v1255, %v1267
    %v1280 = vmax.f32 %v1256, %v1268
    %v1281 = vmax.f32 %v1257, %v1269
    %v1282 = vmax.f32 %v1258, %v1270
    %v1283 = vmax.f32 %v1259, %v1271
    %v1284 = vmax.f32 %v1260, %v1272
    %v1285 = vmax.f32 %v1261, %v1273
    %v1286 = vmax.f32 %v1262, %v1274
    %v1287 = vmax.f32 %v1263, %v1275
    %v1288 = vld [vmem:[#allocation4] sm:$0x7]
    %v1290 = vlaneseq
    %v1291 = vshrl.u32 %v1290, 7
    %v1292 = vsub.s32 0, %v1291
    %v1293 = vrot.slane %v1288, %v1292
    %v1294 = vlaneseq
    %v1295 = vshrl.u32 %v1294, 7
    %v1296 = vsub.s32 1, %v1295
    %v1297 = vrot.slane %v1288, %v1296
    %v1298 = vlaneseq
    %v1299 = vshrl.u32 %v1298, 7
    %v1300 = vsub.s32 2, %v1299
    %v1301 = vrot.slane %v1288, %v1300
    %v1305 = vadd.f32 %v1276, %v1293
    %v1306 = vadd.f32 %v1277, %v1297
    %v1307 = vadd.f32 %v1278, %v1301
    %v1308 = vadd.f32 %v1279, %v1293
    %v1309 = vadd.f32 %v1280, %v1297
    %v1310 = vadd.f32 %v1281, %v1301
    %v1311 = vadd.f32 %v1282, %v1293
    %v1312 = vadd.f32 %v1283, %v1297
    %v1313 = vadd.f32 %v1284, %v1301
    %v1314 = vadd.f32 %v1285, %v1293
    %v1315 = vadd.f32 %v1286, %v1297
    %v1316 = vadd.f32 %v1287, %v1301
    %v1317 = vmax.f32 %v1305, 0.0
    %v1318 = vmax.f32 %v1306, 0.0
    %v1319 = vmax.f32 %v1307, 0.0
    %v1320 = vmax.f32 %v1308, 0.0
    %v1321 = vmax.f32 %v1309, 0.0
    %v1322 = vmax.f32 %v1310, 0.0
    %v1323 = vmax.f32 %v1311, 0.0
    %v1324 = vmax.f32 %v1312, 0.0
    %v1325 = vmax.f32 %v1313, 0.0
    %v1326 = vmax.f32 %v1314, 0.0
    %v1327 = vmax.f32 %v1315, 0.0
    %v1328 = vmax.f32 %v1316, 0.0
    %v1329 = vpack.c.bf16 %v1320, %v1317
    %v1330 = vpack.c.bf16 %v1321, %v1318
    %v1331 = vpack.c.bf16 %v1322, %v1319
    %v1332 = vpack.c.bf16 %v1326, %v1323
    %v1333 = vpack.c.bf16 %v1327, %v1324
    %v1334 = vpack.c.bf16 %v1328, %v1325
    %v1341 = vunpack.c.l.b16 %v1329
    %v1342 = vunpack.c.l.b16 %v1330
    %v1343 = vunpack.c.l.b16 %v1331
    %v1344 = vunpack.c.h.b16 %v1329
    %v1345 = vunpack.c.h.b16 %v1330
    %v1346 = vunpack.c.h.b16 %v1331
    %v1347 = vunpack.c.l.b16 %v1332
    %v1348 = vunpack.c.l.b16 %v1333
    %v1349 = vunpack.c.l.b16 %v1334
    %v1350 = vunpack.c.h.b16 %v1332
    %v1351 = vunpack.c.h.b16 %v1333
    %v1352 = vunpack.c.h.b16 %v1334
    %v1353 = vpack.c.b16 %v1342, %v1341
    %v1354 = vpack.c.b16 %v1343, %v1343
    %v1355 = vpack.c.b16 %v1345, %v1344
    %v1356 = vpack.c.b16 %v1346, %v1346
    %v1357 = vpack.c.b16 %v1348, %v1347
    %v1358 = vpack.c.b16 %v1349, %v1349
    %v1359 = vpack.c.b16 %v1351, %v1350
    %v1360 = vpack.c.b16 %v1352, %v1352
    %1369 = vst [vmem:[%s3] sm:$0xff] %v1353
    %1370 = vst [vmem:[%s3 + $0x8] sm:$0xf] %v1354
    %1371 = vst [vmem:[%s3 + $0xc] sm:$0xff] %v1355
    %1372 = vst [vmem:[%s3 + $0x14] sm:$0xf] %v1356
    %1373 = vst [vmem:[%s3 + $0x18] sm:$0xff] %v1357
    %1374 = vst [vmem:[%s3 + $0x20] sm:$0xf] %v1358
    %1375 = vst [vmem:[%s3 + $0x24] sm:$0x33] %v1359
    %1376 = vst [vmem:[%s3 + $0x2c] sm:$0x3] %v1360
    // Predicated region
    $region22: #{cnn_forward.3} parent=1 // pred_check
      _
    $region23: #{cnn_forward.3} parent=1 // pred_check_branch
      %1378 = sbr.rel (0) target = $region25
    $region24: #{cnn_forward.3} parent=1 // pred_region
      _
    $region25: #{cnn_forward.3} parent=1 // pred_fallthru
      _
    // Predicated region
    $region26: #{cnn_forward.3} parent=1 // pred_check
      _
    $region27: #{cnn_forward.3} parent=1 // pred_check_branch
      %1380 = sbr.rel (0) target = $region29
    $region28: #{cnn_forward.3} parent=1 // pred_region
      _
    $region29: #{cnn_forward.3} parent=1 // pred_fallthru
      _
    %1381 = vsyncpa [#allocation3], 1
    %1382 = vsyncpa [#allocation5], 1

// kernel: cnn_forward.5
$region0: #{cnn_forward.5}
  #allocation0 [shape = 'u32[]', space=smem, size = 0x4, offset = 0x4, fixed_abs, tag = 'smem constant byte address 0x4 - core index']
  #allocation1 [shape = 'u32[144,128]{1,0:T(1,128)}', space=vmem, size = 0x12000, scoped, tag = 'internal scratch']
  %s0 = inlined_call_operand.vmem [shape: bf16[2,1792], index: 0, kind: input, shape index: {}]
  %s1 = inlined_call_operand.vmem [shape: bf16[1792,128], index: 1, kind: input, shape index: {}]
  %s2 = inlined_call_operand.vmem [shape: f32[1,128], index: 2, kind: input, shape index: {}]
  %s3 = inlined_call_operand.hbm [shape: f32[2,128], index: 3, kind: output, shape index: {}]
  %s4 = sld [smem:[#allocation0]]
  $region22: #{cnn_forward.5} parent=0
    _
  %s6 = ssub.s32 1, %s4
  %s7 = scalar_select 0, %s6, %s4
  $region1: #{cnn_forward.5} parent=0
    #allocation2 [shape = 'u8[1024]{0}', space=vmem, size = 0x400, scoped, tag = 'output window, operand 0, single buffered']
    #allocation3 [shape = 's32[1]{0}', space=sflag, size = 0x4, scoped, tag = 'scoped memory for cnn_forward.5']
    %8 = vsyncpa [#allocation3], 0
    // Predicated region
    $region2: #{cnn_forward.5} parent=1 // pred_check
      _
    $region3: #{cnn_forward.5} parent=1 // pred_check_branch
      %10 = sbr.rel (0) target = $region5
    $region4: #{cnn_forward.5} parent=1 // pred_region
      _
    $region5: #{cnn_forward.5} parent=1 // pred_fallthru
      _
    // Predicated region
    $region6: #{cnn_forward.5} parent=1 // pred_check
      _
    $region7: #{cnn_forward.5} parent=1 // pred_check_branch
      %12 = sbr.rel (0) target = $region9
    $region8: #{cnn_forward.5} parent=1 // pred_region
      _
    $region9: #{cnn_forward.5} parent=1 // pred_fallthru
      _
    // Predicated region
    $region10: #{cnn_forward.5} parent=1 // pred_check
      _
    $region11: #{cnn_forward.5} parent=1 // pred_check_branch
      %14 = sbr.rel (0) target = $region13
    $region12: #{cnn_forward.5} parent=1 // pred_region
      _
    $region13: #{cnn_forward.5} parent=1 // pred_fallthru
      _
    %v16 = vld [vmem:[%s0] sm:$0xff]
    %v17 = vld [vmem:[%s0 + $0x8] sm:$0x3f]
    %v18 = vld [vmem:[%s1] sm:$0xf]
    %v19 = vld [vmem:[%s1 + $0x4] sm:$0xf]
    %v20 = vld [vmem:[%s1 + $0x8] sm:$0xf]
    %v21 = vld [vmem:[%s1 + $0xc] sm:$0xf]
    %v22 = vld [vmem:[%s1 + $0x10] sm:$0xf]
    %v23 = vld [vmem:[%s1 + $0x14] sm:$0xf]
    %v24 = vld [vmem:[%s1 + $0x18] sm:$0xf]
    %v25 = vld [vmem:[%s1 + $0x1c] sm:$0xf]
    %v26 = vld [vmem:[%s1 + $0x20] sm:$0xf]
    %v27 = vld [vmem:[%s1 + $0x24] sm:$0xf]
    %v28 = vld [vmem:[%s1 + $0x28] sm:$0xf]
    %v29 = vld [vmem:[%s1 + $0x2c] sm:$0xf]
    %v30 = vld [vmem:[%s1 + $0x30] sm:$0xf]
    %v31 = vld [vmem:[%s1 + $0x34] sm:$0xf]
    %v32 = vld [vmem:[%s1 + $0x38] sm:$0xf]
    %v33 = vld [vmem:[%s1 + $0x3c] sm:$0xf]
    %v34 = vld [vmem:[%s1 + $0x40] sm:$0xf]
    %v35 = vld [vmem:[%s1 + $0x44] sm:$0xf]
    %v36 = vld [vmem:[%s1 + $0x48] sm:$0xf]
    %v37 = vld [vmem:[%s1 + $0x4c] sm:$0xf]
    %v38 = vld [vmem:[%s1 + $0x50] sm:$0xf]
    %v39 = vld [vmem:[%s1 + $0x54] sm:$0xf]
    %v40 = vld [vmem:[%s1 + $0x58] sm:$0xf]
    %v41 = vld [vmem:[%s1 + $0x5c] sm:$0xf]
    %v42 = vld [vmem:[%s1 + $0x60] sm:$0xf]
    %v43 = vld [vmem:[%s1 + $0x64] sm:$0xf]
    %v44 = vld [vmem:[%s1 + $0x68] sm:$0xf]
    %v45 = vld [vmem:[%s1 + $0x6c] sm:$0xf]
    %v46 = vld [vmem:[%s1 + $0x70] sm:$0xf]
    %v47 = vld [vmem:[%s1 + $0x74] sm:$0xf]
    %v48 = vld [vmem:[%s1 + $0x78] sm:$0xf]
    %v49 = vld [vmem:[%s1 + $0x7c] sm:$0xf]
    %v50 = vld [vmem:[%s1 + $0x80] sm:$0xf]
    %v51 = vld [vmem:[%s1 + $0x84] sm:$0xf]
    %v52 = vld [vmem:[%s1 + $0x88] sm:$0xf]
    %v53 = vld [vmem:[%s1 + $0x8c] sm:$0xf]
    %v54 = vld [vmem:[%s1 + $0x90] sm:$0xf]
    %v55 = vld [vmem:[%s1 + $0x94] sm:$0xf]
    %v56 = vld [vmem:[%s1 + $0x98] sm:$0xf]
    %v57 = vld [vmem:[%s1 + $0x9c] sm:$0xf]
    %v58 = vld [vmem:[%s1 + $0xa0] sm:$0xf]
    %v59 = vld [vmem:[%s1 + $0xa4] sm:$0xf]
    %v60 = vld [vmem:[%s1 + $0xa8] sm:$0xf]
    %v61 = vld [vmem:[%s1 + $0xac] sm:$0xf]
    %v62 = vld [vmem:[%s1 + $0xb0] sm:$0xf]
    %v63 = vld [vmem:[%s1 + $0xb4] sm:$0xf]
    %v64 = vld [vmem:[%s1 + $0xb8] sm:$0xf]
    %v65 = vld [vmem:[%s1 + $0xbc] sm:$0xf]
    %v66 = vld [vmem:[%s1 + $0xc0] sm:$0xf]
    %v67 = vld [vmem:[%s1 + $0xc4] sm:$0xf]
    %v68 = vld [vmem:[%s1 + $0xc8] sm:$0xf]
    %v69 = vld [vmem:[%s1 + $0xcc] sm:$0xf]
    %v70 = vld [vmem:[%s1 + $0xd0] sm:$0xf]
    %v71 = vld [vmem:[%s1 + $0xd4] sm:$0xf]
    %v72 = vld [vmem:[%s1 + $0xd8] sm:$0xf]
    %v73 = vld [vmem:[%s1 + $0xdc] sm:$0xf]
    %v74 = vld [vmem:[%s1 + $0xe0] sm:$0xf]
    %v75 = vld [vmem:[%s1 + $0xe4] sm:$0xf]
    %v76 = vld [vmem:[%s1 + $0xe8] sm:$0xf]
    %v77 = vld [vmem:[%s1 + $0xec] sm:$0xf]
    %v78 = vld [vmem:[%s1 + $0xf0] sm:$0xf]
    %v79 = vld [vmem:[%s1 + $0xf4] sm:$0xf]
    %v80 = vld [vmem:[%s1 + $0xf8] sm:$0xf]
    %v81 = vld [vmem:[%s1 + $0xfc] sm:$0xf]
    %v82 = vld [vmem:[%s1 + $0x100] sm:$0xf]
    %v83 = vld [vmem:[%s1 + $0x104] sm:$0xf]
    %v84 = vld [vmem:[%s1 + $0x108] sm:$0xf]
    %v85 = vld [vmem:[%s1 + $0x10c] sm:$0xf]
    %v86 = vld [vmem:[%s1 + $0x110] sm:$0xf]
    %v87 = vld [vmem:[%s1 + $0x114] sm:$0xf]
    %v88 = vld [vmem:[%s1 + $0x118] sm:$0xf]
    %v89 = vld [vmem:[%s1 + $0x11c] sm:$0xf]
    %v90 = vld [vmem:[%s1 + $0x120] sm:$0xf]
    %v91 = vld [vmem:[%s1 + $0x124] sm:$0xf]
    %v92 = vld [vmem:[%s1 + $0x128] sm:$0xf]
    %v93 = vld [vmem:[%s1 + $0x12c] sm:$0xf]
    %v94 = vld [vmem:[%s1 + $0x130] sm:$0xf]
    %v95 = vld [vmem:[%s1 + $0x134] sm:$0xf]
    %v96 = vld [vmem:[%s1 + $0x138] sm:$0xf]
    %v97 = vld [vmem:[%s1 + $0x13c] sm:$0xf]
    %v98 = vld [vmem:[%s1 + $0x140] sm:$0xf]
    %v99 = vld [vmem:[%s1 + $0x144] sm:$0xf]
    %v100 = vld [vmem:[%s1 + $0x148] sm:$0xf]
    %v101 = vld [vmem:[%s1 + $0x14c] sm:$0xf]
    %v102 = vld [vmem:[%s1 + $0x150] sm:$0xf]
    %v103 = vld [vmem:[%s1 + $0x154] sm:$0xf]
    %v104 = vld [vmem:[%s1 + $0x158] sm:$0xf]
    %v105 = vld [vmem:[%s1 + $0x15c] sm:$0xf]
    %v106 = vld [vmem:[%s1 + $0x160] sm:$0xf]
    %v107 = vld [vmem:[%s1 + $0x164] sm:$0xf]
    %v108 = vld [vmem:[%s1 + $0x168] sm:$0xf]
    %v109 = vld [vmem:[%s1 + $0x16c] sm:$0xf]
    %v110 = vld [vmem:[%s1 + $0x170] sm:$0xf]
    %v111 = vld [vmem:[%s1 + $0x174] sm:$0xf]
    %v112 = vld [vmem:[%s1 + $0x178] sm:$0xf]
    %v113 = vld [vmem:[%s1 + $0x17c] sm:$0xf]
    %v114 = vld [vmem:[%s1 + $0x180] sm:$0xf]
    %v115 = vld [vmem:[%s1 + $0x184] sm:$0xf]
    %v116 = vld [vmem:[%s1 + $0x188] sm:$0xf]
    %v117 = vld [vmem:[%s1 + $0x18c] sm:$0xf]
    %v118 = vld [vmem:[%s1 + $0x190] sm:$0xf]
    %v119 = vld [vmem:[%s1 + $0x194] sm:$0xf]
    %v120 = vld [vmem:[%s1 + $0x198] sm:$0xf]
    %v121 = vld [vmem:[%s1 + $0x19c] sm:$0xf]
    %v122 = vld [vmem:[%s1 + $0x1a0] sm:$0xf]
    %v123 = vld [vmem:[%s1 + $0x1a4] sm:$0xf]
    %v124 = vld [vmem:[%s1 + $0x1a8] sm:$0xf]
    %v125 = vld [vmem:[%s1 + $0x1ac] sm:$0xf]
    %v126 = vld [vmem:[%s1 + $0x1b0] sm:$0xf]
    %v127 = vld [vmem:[%s1 + $0x1b4] sm:$0xf]
    %v128 = vld [vmem:[%s1 + $0x1b8] sm:$0xf]
    %v129 = vld [vmem:[%s1 + $0x1bc] sm:$0xf]
    %v130 = vld [vmem:[%s1 + $0x1c0] sm:$0xf]
    %v131 = vld [vmem:[%s1 + $0x1c4] sm:$0xf]
    %v132 = vld [vmem:[%s1 + $0x1c8] sm:$0xf]
    %v133 = vld [vmem:[%s1 + $0x1cc] sm:$0xf]
    %v134 = vld [vmem:[%s1 + $0x1d0] sm:$0xf]
    %v135 = vld [vmem:[%s1 + $0x1d4] sm:$0xf]
    %v136 = vld [vmem:[%s1 + $0x1d8] sm:$0xf]
    %v137 = vld [vmem:[%s1 + $0x1dc] sm:$0xf]
    %v138 = vld [vmem:[%s1 + $0x1e0] sm:$0xf]
    %v139 = vld [vmem:[%s1 + $0x1e4] sm:$0xf]
    %v140 = vld [vmem:[%s1 + $0x1e8] sm:$0xf]
    %v141 = vld [vmem:[%s1 + $0x1ec] sm:$0xf]
    %v142 = vld [vmem:[%s1 + $0x1f0] sm:$0xf]
    %v143 = vld [vmem:[%s1 + $0x1f4] sm:$0xf]
    %v144 = vld [vmem:[%s1 + $0x1f8] sm:$0xf]
    %v145 = vld [vmem:[%s1 + $0x1fc] sm:$0xf]
    %v146 = vld [vmem:[%s1 + $0x200] sm:$0xf]
    %v147 = vld [vmem:[%s1 + $0x204] sm:$0xf]
    %v148 = vld [vmem:[%s1 + $0x208] sm:$0xf]
    %v149 = vld [vmem:[%s1 + $0x20c] sm:$0xf]
    %v150 = vld [vmem:[%s1 + $0x210] sm:$0xf]
    %v151 = vld [vmem:[%s1 + $0x214] sm:$0xf]
    %v152 = vld [vmem:[%s1 + $0x218] sm:$0xf]
    %v153 = vld [vmem:[%s1 + $0x21c] sm:$0xf]
    %v154 = vld [vmem:[%s1 + $0x220] sm:$0xf]
    %v155 = vld [vmem:[%s1 + $0x224] sm:$0xf]
    %v156 = vld [vmem:[%s1 + $0x228] sm:$0xf]
    %v157 = vld [vmem:[%s1 + $0x22c] sm:$0xf]
    %v158 = vld [vmem:[%s1 + $0x230] sm:$0xf]
    %v159 = vld [vmem:[%s1 + $0x234] sm:$0xf]
    %v160 = vld [vmem:[%s1 + $0x238] sm:$0xf]
    %v161 = vld [vmem:[%s1 + $0x23c] sm:$0xf]
    %v162 = vld [vmem:[%s1 + $0x240] sm:$0xf]
    %v163 = vld [vmem:[%s1 + $0x244] sm:$0xf]
    %v164 = vld [vmem:[%s1 + $0x248] sm:$0xf]
    %v165 = vld [vmem:[%s1 + $0x24c] sm:$0xf]
    %v166 = vld [vmem:[%s1 + $0x250] sm:$0xf]
    %v167 = vld [vmem:[%s1 + $0x254] sm:$0xf]
    %v168 = vld [vmem:[%s1 + $0x258] sm:$0xf]
    %v169 = vld [vmem:[%s1 + $0x25c] sm:$0xf]
    %v170 = vld [vmem:[%s1 + $0x260] sm:$0xf]
    %v171 = vld [vmem:[%s1 + $0x264] sm:$0xf]
    %v172 = vld [vmem:[%s1 + $0x268] sm:$0xf]
    %v173 = vld [vmem:[%s1 + $0x26c] sm:$0xf]
    %v174 = vld [vmem:[%s1 + $0x270] sm:$0xf]
    %v175 = vld [vmem:[%s1 + $0x274] sm:$0xf]
    %v176 = vld [vmem:[%s1 + $0x278] sm:$0xf]
    %v177 = vld [vmem:[%s1 + $0x27c] sm:$0xf]
    %v178 = vld [vmem:[%s1 + $0x280] sm:$0xf]
    %v179 = vld [vmem:[%s1 + $0x284] sm:$0xf]
    %v180 = vld [vmem:[%s1 + $0x288] sm:$0xf]
    %v181 = vld [vmem:[%s1 + $0x28c] sm:$0xf]
    %v182 = vld [vmem:[%s1 + $0x290] sm:$0xf]
    %v183 = vld [vmem:[%s1 + $0x294] sm:$0xf]
    %v184 = vld [vmem:[%s1 + $0x298] sm:$0xf]
    %v185 = vld [vmem:[%s1 + $0x29c] sm:$0xf]
    %v186 = vld [vmem:[%s1 + $0x2a0] sm:$0xf]
    %v187 = vld [vmem:[%s1 + $0x2a4] sm:$0xf]
    %v188 = vld [vmem:[%s1 + $0x2a8] sm:$0xf]
    %v189 = vld [vmem:[%s1 + $0x2ac] sm:$0xf]
    %v190 = vld [vmem:[%s1 + $0x2b0] sm:$0xf]
    %v191 = vld [vmem:[%s1 + $0x2b4] sm:$0xf]
    %v192 = vld [vmem:[%s1 + $0x2b8] sm:$0xf]
    %v193 = vld [vmem:[%s1 + $0x2bc] sm:$0xf]
    %v194 = vld [vmem:[%s1 + $0x2c0] sm:$0xf]
    %v195 = vld [vmem:[%s1 + $0x2c4] sm:$0xf]
    %v196 = vld [vmem:[%s1 + $0x2c8] sm:$0xf]
    %v197 = vld [vmem:[%s1 + $0x2cc] sm:$0xf]
    %v198 = vld [vmem:[%s1 + $0x2d0] sm:$0xf]
    %v199 = vld [vmem:[%s1 + $0x2d4] sm:$0xf]
    %v200 = vld [vmem:[%s1 + $0x2d8] sm:$0xf]
    %v201 = vld [vmem:[%s1 + $0x2dc] sm:$0xf]
    %v202 = vld [vmem:[%s1 + $0x2e0] sm:$0xf]
    %v203 = vld [vmem:[%s1 + $0x2e4] sm:$0xf]
    %v204 = vld [vmem:[%s1 + $0x2e8] sm:$0xf]
    %v205 = vld [vmem:[%s1 + $0x2ec] sm:$0xf]
    %v206 = vld [vmem:[%s1 + $0x2f0] sm:$0xf]
    %v207 = vld [vmem:[%s1 + $0x2f4] sm:$0xf]
    %v208 = vld [vmem:[%s1 + $0x2f8] sm:$0xf]
    %v209 = vld [vmem:[%s1 + $0x2fc] sm:$0xf]
    %v210 = vld [vmem:[%s1 + $0x300] sm:$0xf]
    %v211 = vld [vmem:[%s1 + $0x304] sm:$0xf]
    %v212 = vld [vmem:[%s1 + $0x308] sm:$0xf]
    %v213 = vld [vmem:[%s1 + $0x30c] sm:$0xf]
    %v214 = vld [vmem:[%s1 + $0x310] sm:$0xf]
    %v215 = vld [vmem:[%s1 + $0x314] sm:$0xf]
    %v216 = vld [vmem:[%s1 + $0x318] sm:$0xf]
    %v217 = vld [vmem:[%s1 + $0x31c] sm:$0xf]
    %v218 = vld [vmem:[%s1 + $0x320] sm:$0xf]
    %v219 = vld [vmem:[%s1 + $0x324] sm:$0xf]
    %v220 = vld [vmem:[%s1 + $0x328] sm:$0xf]
    %v221 = vld [vmem:[%s1 + $0x32c] sm:$0xf]
    %v222 = vld [vmem:[%s1 + $0x330] sm:$0xf]
    %v223 = vld [vmem:[%s1 + $0x334] sm:$0xf]
    %v224 = vld [vmem:[%s1 + $0x338] sm:$0xf]
    %v225 = vld [vmem:[%s1 + $0x33c] sm:$0xf]
    %v226 = vld [vmem:[%s1 + $0x340] sm:$0xf]
    %v227 = vld [vmem:[%s1 + $0x344] sm:$0xf]
    %v228 = vld [vmem:[%s1 + $0x348] sm:$0xf]
    %v229 = vld [vmem:[%s1 + $0x34c] sm:$0xf]
    %v230 = vld [vmem:[%s1 + $0x350] sm:$0xf]
    %v231 = vld [vmem:[%s1 + $0x354] sm:$0xf]
    %v232 = vld [vmem:[%s1 + $0x358] sm:$0xf]
    %v233 = vld [vmem:[%s1 + $0x35c] sm:$0xf]
    %v234 = vld [vmem:[%s1 + $0x360] sm:$0xf]
    %v235 = vld [vmem:[%s1 + $0x364] sm:$0xf]
    %v236 = vld [vmem:[%s1 + $0x368] sm:$0xf]
    %v237 = vld [vmem:[%s1 + $0x36c] sm:$0xf]
    %v238 = vld [vmem:[%s1 + $0x370] sm:$0xf]
    %v239 = vld [vmem:[%s1 + $0x374] sm:$0xf]
    %v240 = vld [vmem:[%s1 + $0x378] sm:$0xf]
    %v241 = vld [vmem:[%s1 + $0x37c] sm:$0xf]
    %v242 = vld [vmem:[%s2] sm:$0x1]
    %v244 = vlaneseq
    %v245 = vshrl.u32 %v244, 7
    %v246 = vsub.s32 0, %v245
    %v247 = vrot.slane %v242, %v246
    %v251 = vcombine.high %v16, %v16
    %v253 = vunpack.c.l.s4 1966171168
    %v254 = vunpack.c.0.s8 %v253
    %v255 = vlaneseq
    %v256 = vshrl.u32 %v255, 7
    %v257 = vsub.s32 %v254, %v256
    %v258 = vrot.slane %v16, %v257
    %v260 = vunpack.c.l.s4 1966171168
    %v261 = vunpack.c.0.s8 %v260
    %v262 = vlaneseq
    %v263 = vshrl.u32 %v262, 7
    %v264 = vsub.s32 %v261, %v263
    %v265 = vrot.slane %v251, %v264
    %v266 = vcombine.high %v258, %v258
    %v267 = vcombine.high %v265, %v265
    %v269 = vunpack.c.l.s4 1966171168
    %v270 = vunpack.c.0.s8 %v269
    %v271 = vlaneseq
    %v272 = vshrl.u32 %v271, 7
    %v273 = vsub.s32 %v270, %v272
    %v274 = vrot.slane %v258, %v273
    %v276 = vunpack.c.l.s4 1966171168
    %v277 = vunpack.c.0.s8 %v276
    %v278 = vlaneseq
    %v279 = vshrl.u32 %v278, 7
    %v280 = vsub.s32 %v277, %v279
    %v281 = vrot.slane %v265, %v280
    %v283 = vunpack.c.l.s4 1966171168
    %v284 = vunpack.c.0.s8 %v283
    %v285 = vlaneseq
    %v286 = vshrl.u32 %v285, 7
    %v287 = vsub.s32 %v284, %v286
    %v288 = vrot.slane %v266, %v287
    %v290 = vunpack.c.l.s4 1966171168
    %v291 = vunpack.c.0.s8 %v290
    %v292 = vlaneseq
    %v293 = vshrl.u32 %v292, 7
    %v294 = vsub.s32 %v291, %v293
    %v295 = vrot.slane %v267, %v294
    %v296 = vcombine.high %v274, %v274
    %v297 = vcombine.high %v281, %v281
    %v298 = vcombine.high %v288, %v288
    %v299 = vcombine.high %v295, %v295
    %v300 = vcombine.high %v17, %v17
    %v302 = vunpack.c.l.s4 1966171168
    %v303 = vunpack.c.0.s8 %v302
    %v304 = vlaneseq
    %v305 = vshrl.u32 %v304, 7
    %v306 = vsub.s32 %v303, %v305
    %v307 = vrot.slane %v17, %v306
    %v309 = vunpack.c.l.s4 1966171168
    %v310 = vunpack.c.0.s8 %v309
    %v311 = vlaneseq
    %v312 = vshrl.u32 %v311, 7
    %v313 = vsub.s32 %v310, %v312
    %v314 = vrot.slane %v300, %v313
    %v315 = vcombine.high %v307, %v307
    %v316 = vcombine.high %v314, %v314
    %v318 = vunpack.c.l.s4 1966171168
    %v319 = vunpack.c.0.s8 %v318
    %v320 = vlaneseq
    %v321 = vshrl.u32 %v320, 7
    %v322 = vsub.s32 %v319, %v321
    %v323 = vrot.slane %v307, %v322
    %v325 = vunpack.c.l.s4 1966171168
    %v326 = vunpack.c.0.s8 %v325
    %v327 = vlaneseq
    %v328 = vshrl.u32 %v327, 7
    %v329 = vsub.s32 %v326, %v328
    %v330 = vrot.slane %v314, %v329
    %v332 = vunpack.c.l.s4 1966171168
    %v333 = vunpack.c.0.s8 %v332
    %v334 = vlaneseq
    %v335 = vshrl.u32 %v334, 7
    %v336 = vsub.s32 %v333, %v335
    %v337 = vrot.slane %v315, %v336
    %v339 = vunpack.c.l.s4 1966171168
    %v340 = vunpack.c.0.s8 %v339
    %v341 = vlaneseq
    %v342 = vshrl.u32 %v341, 7
    %v343 = vsub.s32 %v340, %v342
    %v344 = vrot.slane %v316, %v343
    %v345 = vcombine.high %v323, %v323
    %v346 = vcombine.high %v337, %v337
    %v585 = vunpack.c.l.b16 %v18
    %v586 = vunpack.c.l.b16 %v19
    %v587 = vunpack.c.l.b16 %v20
    %v588 = vunpack.c.l.b16 %v21
    %v589 = vunpack.c.l.b16 %v22
    %v590 = vunpack.c.l.b16 %v23
    %v591 = vunpack.c.l.b16 %v24
    %v592 = vunpack.c.l.b16 %v25
    %v593 = vunpack.c.l.b16 %v26
    %v594 = vunpack.c.l.b16 %v27
    %v595 = vunpack.c.l.b16 %v28
    %v596 = vunpack.c.l.b16 %v29
    %v597 = vunpack.c.l.b16 %v30
    %v598 = vunpack.c.l.b16 %v31
    %v599 = vunpack.c.l.b16 %v32
    %v600 = vunpack.c.l.b16 %v33
    %v601 = vunpack.c.l.b16 %v34
    %v602 = vunpack.c.l.b16 %v35
    %v603 = vunpack.c.l.b16 %v36
    %v604 = vunpack.c.l.b16 %v37
    %v605 = vunpack.c.l.b16 %v38
    %v606 = vunpack.c.l.b16 %v39
    %v607 = vunpack.c.l.b16 %v40
    %v608 = vunpack.c.l.b16 %v41
    %v609 = vunpack.c.l.b16 %v42
    %v610 = vunpack.c.l.b16 %v43
    %v611 = vunpack.c.l.b16 %v44
    %v612 = vunpack.c.l.b16 %v45
    %v613 = vunpack.c.l.b16 %v46
    %v614 = vunpack.c.l.b16 %v47
    %v615 = vunpack.c.l.b16 %v48
    %v616 = vunpack.c.l.b16 %v49
    %v617 = vunpack.c.l.b16 %v50
    %v618 = vunpack.c.l.b16 %v51
    %v619 = vunpack.c.l.b16 %v52
    %v620 = vunpack.c.l.b16 %v53
    %v621 = vunpack.c.l.b16 %v54
    %v622 = vunpack.c.l.b16 %v55
    %v623 = vunpack.c.l.b16 %v56
    %v624 = vunpack.c.l.b16 %v57
    %v625 = vunpack.c.l.b16 %v58
    %v626 = vunpack.c.l.b16 %v59
    %v627 = vunpack.c.l.b16 %v60
    %v628 = vunpack.c.l.b16 %v61
    %v629 = vunpack.c.l.b16 %v62
    %v630 = vunpack.c.l.b16 %v63
    %v631 = vunpack.c.l.b16 %v64
    %v632 = vunpack.c.l.b16 %v65
    %v633 = vunpack.c.l.b16 %v66
    %v634 = vunpack.c.l.b16 %v67
    %v635 = vunpack.c.l.b16 %v68
    %v636 = vunpack.c.l.b16 %v69
    %v637 = vunpack.c.l.b16 %v70
    %v638 = vunpack.c.l.b16 %v71
    %v639 = vunpack.c.l.b16 %v72
    %v640 = vunpack.c.l.b16 %v73
    %v641 = vunpack.c.l.b16 %v74
    %v642 = vunpack.c.l.b16 %v75
    %v643 = vunpack.c.l.b16 %v76
    %v644 = vunpack.c.l.b16 %v77
    %v645 = vunpack.c.l.b16 %v78
    %v646 = vunpack.c.l.b16 %v79
    %v647 = vunpack.c.l.b16 %v80
    %v648 = vunpack.c.l.b16 %v81
    %v649 = vunpack.c.l.b16 %v82
    %v650 = vunpack.c.l.b16 %v83
    %v651 = vunpack.c.l.b16 %v84
    %v652 = vunpack.c.l.b16 %v85
    %v653 = vunpack.c.l.b16 %v86
    %v654 = vunpack.c.l.b16 %v87
    %v655 = vunpack.c.l.b16 %v88
    %v656 = vunpack.c.l.b16 %v89
    %v657 = vunpack.c.l.b16 %v90
    %v658 = vunpack.c.l.b16 %v91
    %v659 = vunpack.c.l.b16 %v92
    %v660 = vunpack.c.l.b16 %v93
    %v661 = vunpack.c.l.b16 %v94
    %v662 = vunpack.c.l.b16 %v95
    %v663 = vunpack.c.l.b16 %v96
    %v664 = vunpack.c.l.b16 %v97
    %v665 = vunpack.c.l.b16 %v98
    %v666 = vunpack.c.l.b16 %v99
    %v667 = vunpack.c.l.b16 %v100
    %v668 = vunpack.c.l.b16 %v101
    %v669 = vunpack.c.l.b16 %v102
    %v670 = vunpack.c.l.b16 %v103
    %v671 = vunpack.c.l.b16 %v104
    %v672 = vunpack.c.l.b16 %v105
    %v673 = vunpack.c.l.b16 %v106
    %v674 = vunpack.c.l.b16 %v107
    %v675 = vunpack.c.l.b16 %v108
    %v676 = vunpack.c.l.b16 %v109
    %v677 = vunpack.c.l.b16 %v110
    %v678 = vunpack.c.l.b16 %v111
    %v679 = vunpack.c.l.b16 %v112
    %v680 = vunpack.c.l.b16 %v113
    %v681 = vunpack.c.l.b16 %v114
    %v682 = vunpack.c.l.b16 %v115
    %v683 = vunpack.c.l.b16 %v116
    %v684 = vunpack.c.l.b16 %v117
    %v685 = vunpack.c.l.b16 %v118
    %v686 = vunpack.c.l.b16 %v119
    %v687 = vunpack.c.l.b16 %v120
    %v688 = vunpack.c.l.b16 %v121
    %v689 = vunpack.c.l.b16 %v122
    %v690 = vunpack.c.l.b16 %v123
    %v691 = vunpack.c.l.b16 %v124
    %v692 = vunpack.c.l.b16 %v125
    %v693 = vunpack.c.l.b16 %v126
    %v694 = vunpack.c.l.b16 %v127
    %v695 = vunpack.c.l.b16 %v128
    %v696 = vunpack.c.l.b16 %v129
    %v697 = vunpack.c.l.b16 %v130
    %v698 = vunpack.c.l.b16 %v131
    %v699 = vunpack.c.l.b16 %v132
    %v700 = vunpack.c.l.b16 %v133
    %v701 = vunpack.c.l.b16 %v134
    %v702 = vunpack.c.l.b16 %v135
    %v703 = vunpack.c.l.b16 %v136
    %v704 = vunpack.c.l.b16 %v137
    %v705 = vunpack.c.l.b16 %v138
    %v706 = vunpack.c.l.b16 %v139
    %v707 = vunpack.c.l.b16 %v140
    %v708 = vunpack.c.l.b16 %v141
    %v709 = vunpack.c.l.b16 %v142
    %v710 = vunpack.c.l.b16 %v143
    %v711 = vunpack.c.l.b16 %v144
    %v712 = vunpack.c.l.b16 %v145
    %v713 = vunpack.c.l.b16 %v146
    %v714 = vunpack.c.l.b16 %v147
    %v715 = vunpack.c.l.b16 %v148
    %v716 = vunpack.c.l.b16 %v149
    %v717 = vunpack.c.l.b16 %v150
    %v718 = vunpack.c.l.b16 %v151
    %v719 = vunpack.c.l.b16 %v152
    %v720 = vunpack.c.l.b16 %v153
    %v721 = vunpack.c.l.b16 %v154
    %v722 = vunpack.c.l.b16 %v155
    %v723 = vunpack.c.l.b16 %v156
    %v724 = vunpack.c.l.b16 %v157
    %v725 = vunpack.c.l.b16 %v158
    %v726 = vunpack.c.l.b16 %v159
    %v727 = vunpack.c.l.b16 %v160
    %v728 = vunpack.c.l.b16 %v161
    %v729 = vunpack.c.l.b16 %v162
    %v730 = vunpack.c.l.b16 %v163
    %v731 = vunpack.c.l.b16 %v164
    %v732 = vunpack.c.l.b16 %v165
    %v733 = vunpack.c.l.b16 %v166
    %v734 = vunpack.c.l.b16 %v167
    %v735 = vunpack.c.l.b16 %v168
    %v736 = vunpack.c.l.b16 %v169
    %v737 = vunpack.c.l.b16 %v170
    %v738 = vunpack.c.l.b16 %v171
    %v739 = vunpack.c.l.b16 %v172
    %v740 = vunpack.c.l.b16 %v173
    %v741 = vunpack.c.l.b16 %v174
    %v742 = vunpack.c.l.b16 %v175
    %v743 = vunpack.c.l.b16 %v176
    %v744 = vunpack.c.l.b16 %v177
    %v745 = vunpack.c.l.b16 %v178
    %v746 = vunpack.c.l.b16 %v179
    %v747 = vunpack.c.l.b16 %v180
    %v748 = vunpack.c.l.b16 %v181
    %v749 = vunpack.c.l.b16 %v182
    %v750 = vunpack.c.l.b16 %v183
    %v751 = vunpack.c.l.b16 %v184
    %v752 = vunpack.c.l.b16 %v185
    %v753 = vunpack.c.l.b16 %v186
    %v754 = vunpack.c.l.b16 %v187
    %v755 = vunpack.c.l.b16 %v188
    %v756 = vunpack.c.l.b16 %v189
    %v757 = vunpack.c.l.b16 %v190
    %v758 = vunpack.c.l.b16 %v191
    %v759 = vunpack.c.l.b16 %v192
    %v760 = vunpack.c.l.b16 %v193
    %v761 = vunpack.c.l.b16 %v194
    %v762 = vunpack.c.l.b16 %v195
    %v763 = vunpack.c.l.b16 %v196
    %v764 = vunpack.c.l.b16 %v197
    %v765 = vunpack.c.l.b16 %v198
    %v766 = vunpack.c.l.b16 %v199
    %v767 = vunpack.c.l.b16 %v200
    %v768 = vunpack.c.l.b16 %v201
    %v769 = vunpack.c.l.b16 %v202
    %v770 = vunpack.c.l.b16 %v203
    %v771 = vunpack.c.l.b16 %v204
    %v772 = vunpack.c.l.b16 %v205
    %v773 = vunpack.c.l.b16 %v206
    %v774 = vunpack.c.l.b16 %v207
    %v775 = vunpack.c.l.b16 %v208
    %v776 = vunpack.c.l.b16 %v209
    %v777 = vunpack.c.l.b16 %v210
    %v778 = vunpack.c.l.b16 %v211
    %v779 = vunpack.c.l.b16 %v212
    %v780 = vunpack.c.l.b16 %v213
    %v781 = vunpack.c.l.b16 %v214
    %v782 = vunpack.c.l.b16 %v215
    %v783 = vunpack.c.l.b16 %v216
    %v784 = vunpack.c.l.b16 %v217
    %v785 = vunpack.c.l.b16 %v218
    %v786 = vunpack.c.l.b16 %v219
    %v787 = vunpack.c.l.b16 %v220
    %v788 = vunpack.c.l.b16 %v221
    %v789 = vunpack.c.l.b16 %v222
    %v790 = vunpack.c.l.b16 %v223
    %v791 = vunpack.c.l.b16 %v224
    %v792 = vunpack.c.l.b16 %v225
    %v793 = vunpack.c.l.b16 %v226
    %v794 = vunpack.c.l.b16 %v227
    %v795 = vunpack.c.l.b16 %v228
    %v796 = vunpack.c.l.b16 %v229
    %v797 = vunpack.c.l.b16 %v230
    %v798 = vunpack.c.l.b16 %v231
    %v799 = vunpack.c.l.b16 %v232
    %v800 = vunpack.c.l.b16 %v233
    %v801 = vunpack.c.l.b16 %v234
    %v802 = vunpack.c.l.b16 %v235
    %v803 = vunpack.c.l.b16 %v236
    %v804 = vunpack.c.l.b16 %v237
    %v805 = vunpack.c.l.b16 %v238
    %v806 = vunpack.c.l.b16 %v239
    %v807 = vunpack.c.l.b16 %v240
    %v808 = vunpack.c.l.b16 %v241
    %v809 = vpack.c.b16 %v586, %v585
    %v810 = vpack.c.b16 %v588, %v587
    %v811 = vpack.c.b16 %v590, %v589
    %v812 = vpack.c.b16 %v592, %v591
    %v813 = vpack.c.b16 %v594, %v593
    %v814 = vpack.c.b16 %v596, %v595
    %v815 = vpack.c.b16 %v598, %v597
    %v816 = vpack.c.b16 %v600, %v599
    %v817 = vpack.c.b16 %v602, %v601
    %v818 = vpack.c.b16 %v604, %v603
    %v819 = vpack.c.b16 %v606, %v605
    %v820 = vpack.c.b16 %v608, %v607
    %v821 = vpack.c.b16 %v610, %v609
    %v822 = vpack.c.b16 %v612, %v611
    %v823 = vpack.c.b16 %v614, %v613
    %v824 = vpack.c.b16 %v616, %v615
    %v825 = vpack.c.b16 %v618, %v617
    %v826 = vpack.c.b16 %v620, %v619
    %v827 = vpack.c.b16 %v622, %v621
    %v828 = vpack.c.b16 %v624, %v623
    %v829 = vpack.c.b16 %v626, %v625
    %v830 = vpack.c.b16 %v628, %v627
    %v831 = vpack.c.b16 %v630, %v629
    %v832 = vpack.c.b16 %v632, %v631
    %v833 = vpack.c.b16 %v634, %v633
    %v834 = vpack.c.b16 %v636, %v635
    %v835 = vpack.c.b16 %v638, %v637
    %v836 = vpack.c.b16 %v640, %v639
    %v837 = vpack.c.b16 %v642, %v641
    %v838 = vpack.c.b16 %v644, %v643
    %v839 = vpack.c.b16 %v646, %v645
    %v840 = vpack.c.b16 %v648, %v647
    %v841 = vpack.c.b16 %v650, %v649
    %v842 = vpack.c.b16 %v652, %v651
    %v843 = vpack.c.b16 %v654, %v653
    %v844 = vpack.c.b16 %v656, %v655
    %v845 = vpack.c.b16 %v658, %v657
    %v846 = vpack.c.b16 %v660, %v659
    %v847 = vpack.c.b16 %v662, %v661
    %v848 = vpack.c.b16 %v664, %v663
    %v849 = vpack.c.b16 %v666, %v665
    %v850 = vpack.c.b16 %v668, %v667
    %v851 = vpack.c.b16 %v670, %v669
    %v852 = vpack.c.b16 %v672, %v671
    %v853 = vpack.c.b16 %v674, %v673
    %v854 = vpack.c.b16 %v676, %v675
    %v855 = vpack.c.b16 %v678, %v677
    %v856 = vpack.c.b16 %v680, %v679
    %v857 = vpack.c.b16 %v682, %v681
    %v858 = vpack.c.b16 %v684, %v683
    %v859 = vpack.c.b16 %v686, %v685
    %v860 = vpack.c.b16 %v688, %v687
    %v861 = vpack.c.b16 %v690, %v689
    %v862 = vpack.c.b16 %v692, %v691
    %v863 = vpack.c.b16 %v694, %v693
    %v864 = vpack.c.b16 %v696, %v695
    %v865 = vpack.c.b16 %v698, %v697
    %v866 = vpack.c.b16 %v700, %v699
    %v867 = vpack.c.b16 %v702, %v701
    %v868 = vpack.c.b16 %v704, %v703
    %v869 = vpack.c.b16 %v706, %v705
    %v870 = vpack.c.b16 %v708, %v707
    %v871 = vpack.c.b16 %v710, %v709
    %v872 = vpack.c.b16 %v712, %v711
    %v873 = vpack.c.b16 %v714, %v713
    %v874 = vpack.c.b16 %v716, %v715
    %v875 = vpack.c.b16 %v718, %v717
    %v876 = vpack.c.b16 %v720, %v719
    %v877 = vpack.c.b16 %v722, %v721
    %v878 = vpack.c.b16 %v724, %v723
    %v879 = vpack.c.b16 %v726, %v725
    %v880 = vpack.c.b16 %v728, %v727
    %v881 = vpack.c.b16 %v730, %v729
    %v882 = vpack.c.b16 %v732, %v731
    %v883 = vpack.c.b16 %v734, %v733
    %v884 = vpack.c.b16 %v736, %v735
    %v885 = vpack.c.b16 %v738, %v737
    %v886 = vpack.c.b16 %v740, %v739
    %v887 = vpack.c.b16 %v742, %v741
    %v888 = vpack.c.b16 %v744, %v743
    %v889 = vpack.c.b16 %v746, %v745
    %v890 = vpack.c.b16 %v748, %v747
    %v891 = vpack.c.b16 %v750, %v749
    %v892 = vpack.c.b16 %v752, %v751
    %v893 = vpack.c.b16 %v754, %v753
    %v894 = vpack.c.b16 %v756, %v755
    %v895 = vpack.c.b16 %v758, %v757
    %v896 = vpack.c.b16 %v760, %v759
    %v897 = vpack.c.b16 %v762, %v761
    %v898 = vpack.c.b16 %v764, %v763
    %v899 = vpack.c.b16 %v766, %v765
    %v900 = vpack.c.b16 %v768, %v767
    %v901 = vpack.c.b16 %v770, %v769
    %v902 = vpack.c.b16 %v772, %v771
    %v903 = vpack.c.b16 %v774, %v773
    %v904 = vpack.c.b16 %v776, %v775
    %v905 = vpack.c.b16 %v778, %v777
    %v906 = vpack.c.b16 %v780, %v779
    %v907 = vpack.c.b16 %v782, %v781
    %v908 = vpack.c.b16 %v784, %v783
    %v909 = vpack.c.b16 %v786, %v785
    %v910 = vpack.c.b16 %v788, %v787
    %v911 = vpack.c.b16 %v790, %v789
    %v912 = vpack.c.b16 %v792, %v791
    %v913 = vpack.c.b16 %v794, %v793
    %v914 = vpack.c.b16 %v796, %v795
    %v915 = vpack.c.b16 %v798, %v797
    %v916 = vpack.c.b16 %v800, %v799
    %v917 = vpack.c.b16 %v802, %v801
    %v918 = vpack.c.b16 %v804, %v803
    %v919 = vpack.c.b16 %v806, %v805
    %v920 = vpack.c.b16 %v808, %v807
    %1033 = vmatprep.subr.bf16.mxu0 0
    %1034 = vmatpush1.bf16.msra.mxu0 %v816
    %1035 = vmatprep.subr.bf16.mxu0 0
    %1036 = vmatpush1.bf16.msra.mxu0 %v815
    %1037 = vmatprep.subr.bf16.mxu0 0
    %1038 = vmatpush1.bf16.msra.mxu0 %v814
    %1039 = vmatprep.subr.bf16.mxu0 0
    %1040 = vmatpush1.bf16.msra.mxu0 %v813
    %1041 = vmatprep.subr.bf16.mxu0 0
    %1042 = vmatpush1.bf16.msra.mxu0 %v812
    %1043 = vmatprep.subr.bf16.mxu0 0
    %1044 = vmatpush1.bf16.msra.mxu0 %v811
    %1045 = vmatprep.subr.bf16.mxu0 0
    %1046 = vmatpush1.bf16.msra.mxu0 %v810
    %1047 = vmatprep.subr.bf16.mxu0 0
    %1048 = vmatpush1.bf16.msra.mxu0 %v809
    %1049 = vmatprep.subr.bf16.mxu0 0
    %1050 = vmatpush2.bf16.msra.mxu0 %v824
    %1051 = vmatprep.subr.bf16.mxu0 0
    %1052 = vmatpush2.bf16.msra.mxu0 %v823
    %1053 = vmatprep.subr.bf16.mxu0 0
    %1054 = vmatpush2.bf16.msra.mxu0 %v822
    %1055 = vmatprep.subr.bf16.mxu0 0
    %1056 = vmatpush2.bf16.msra.mxu0 %v821
    %1057 = vmatprep.subr.bf16.mxu0 0
    %1058 = vmatpush2.bf16.msra.mxu0 %v820
    %1059 = vmatprep.subr.bf16.mxu0 0
    %1060 = vmatpush2.bf16.msra.mxu0 %v819
    %1061 = vmatprep.subr.bf16.mxu0 0
    %1062 = vmatpush2.bf16.msra.mxu0 %v818
    %1063 = vmatprep.subr.bf16.mxu0 0
    %1064 = vmatpush2.bf16.msra.mxu0 %v817
    %1065 = vmatprep.mubr.bf16.mxu0 %v288
    %1066 = vmatmul.mubr.bf16.gmra.mxu0 %v274
    %v1067 = vpop.f32.mrf.mxu0
    %v1068 = vadd.f32 %v247, %v1067
    %v1069 = vpop.f32.mrf.mxu0
    %v1070 = vpop.f32.mrf.mxu0
    %v1071 = vpop.f32.mrf.mxu0
    %1072 = vdwg.mxu0
    %1073 = vmatprep.subr.bf16.mxu0 0
    %1074 = vmatpush1.bf16.msra.mxu0 %v832
    %1075 = vmatprep.subr.bf16.mxu0 0
    %1076 = vmatpush1.bf16.msra.mxu0 %v831
    %1077 = vmatprep.subr.bf16.mxu0 0
    %1078 = vmatpush1.bf16.msra.mxu0 %v830
    %1079 = vmatprep.subr.bf16.mxu0 0
    %1080 = vmatpush1.bf16.msra.mxu0 %v829
    %1081 = vmatprep.subr.bf16.mxu0 0
    %1082 = vmatpush1.bf16.msra.mxu0 %v828
    %1083 = vmatprep.subr.bf16.mxu0 0
    %1084 = vmatpush1.bf16.msra.mxu0 %v827
    %1085 = vmatprep.subr.bf16.mxu0 0
    %1086 = vmatpush1.bf16.msra.mxu0 %v826
    %1087 = vmatprep.subr.bf16.mxu0 0
    %1088 = vmatpush1.bf16.msra.mxu0 %v825
    %1089 = vmatprep.subr.bf16.mxu0 0
    %1090 = vmatpush2.bf16.msra.mxu0 %v840
    %1091 = vmatprep.subr.bf16.mxu0 0
    %1092 = vmatpush2.bf16.msra.mxu0 %v839
    %1093 = vmatprep.subr.bf16.mxu0 0
    %1094 = vmatpush2.bf16.msra.mxu0 %v838
    %1095 = vmatprep.subr.bf16.mxu0 0
    %1096 = vmatpush2.bf16.msra.mxu0 %v837
    %1097 = vmatprep.subr.bf16.mxu0 0
    %1098 = vmatpush2.bf16.msra.mxu0 %v836
    %1099 = vmatprep.subr.bf16.mxu0 0
    %1100 = vmatpush2.bf16.msra.mxu0 %v835
    %1101 = vmatprep.subr.bf16.mxu0 0
    %1102 = vmatpush2.bf16.msra.mxu0 %v834
    %1103 = vmatprep.subr.bf16.mxu0 0
    %1104 = vmatpush2.bf16.msra.mxu0 %v833
    %1105 = vmatprep.mubr.bf16.mxu0 %v298
    %1106 = vmatmul.mubr.bf16.gmra.mxu0 %v296
    %v1107 = vpop.f32.mrf.mxu0
    %v1108 = vadd.f32 %v1068, %v1107
    %v1109 = vpop.f32.mrf.mxu0
    %v1110 = vpop.f32.mrf.mxu0
    %v1111 = vpop.f32.mrf.mxu0
    %1112 = vdwg.mxu0
    %1113 = vmatprep.subr.bf16.mxu0 0
    %1114 = vmatpush1.bf16.msra.mxu0 %v848
    %1115 = vmatprep.subr.bf16.mxu0 0
    %1116 = vmatpush1.bf16.msra.mxu0 %v847
    %1117 = vmatprep.subr.bf16.mxu0 0
    %1118 = vmatpush1.bf16.msra.mxu0 %v846
    %1119 = vmatprep.subr.bf16.mxu0 0
    %1120 = vmatpush1.bf16.msra.mxu0 %v845
    %1121 = vmatprep.subr.bf16.mxu0 0
    %1122 = vmatpush1.bf16.msra.mxu0 %v844
    %1123 = vmatprep.subr.bf16.mxu0 0
    %1124 = vmatpush1.bf16.msra.mxu0 %v843
    %1125 = vmatprep.subr.bf16.mxu0 0
    %1126 = vmatpush1.bf16.msra.mxu0 %v842
    %1127 = vmatprep.subr.bf16.mxu0 0
    %1128 = vmatpush1.bf16.msra.mxu0 %v841
    %1129 = vmatprep.subr.bf16.mxu0 0
    %1130 = vmatpush2.bf16.msra.mxu0 %v856
    %1131 = vmatprep.subr.bf16.mxu0 0
    %1132 = vmatpush2.bf16.msra.mxu0 %v855
    %1133 = vmatprep.subr.bf16.mxu0 0
    %1134 = vmatpush2.bf16.msra.mxu0 %v854
    %1135 = vmatprep.subr.bf16.mxu0 0
    %1136 = vmatpush2.bf16.msra.mxu0 %v853
    %1137 = vmatprep.subr.bf16.mxu0 0
    %1138 = vmatpush2.bf16.msra.mxu0 %v852
    %1139 = vmatprep.subr.bf16.mxu0 0
    %1140 = vmatpush2.bf16.msra.mxu0 %v851
    %1141 = vmatprep.subr.bf16.mxu0 0
    %1142 = vmatpush2.bf16.msra.mxu0 %v850
    %1143 = vmatprep.subr.bf16.mxu0 0
    %1144 = vmatpush2.bf16.msra.mxu0 %v849
    %1145 = vmatprep.mubr.bf16.mxu0 %v295
    %1146 = vmatmul.mubr.bf16.gmra.mxu0 %v281
    %v1147 = vpop.f32.mrf.mxu0
    %v1148 = vadd.f32 %v1108, %v1147
    %v1149 = vpop.f32.mrf.mxu0
    %v1150 = vpop.f32.mrf.mxu0
    %v1151 = vpop.f32.mrf.mxu0
    %1152 = vdwg.mxu0
    %1153 = vmatprep.subr.bf16.mxu0 0
    %1154 = vmatpush1.bf16.msra.mxu0 %v864
    %1155 = vmatprep.subr.bf16.mxu0 0
    %1156 = vmatpush1.bf16.msra.mxu0 %v863
    %1157 = vmatprep.subr.bf16.mxu0 0
    %1158 = vmatpush1.bf16.msra.mxu0 %v862
    %1159 = vmatprep.subr.bf16.mxu0 0
    %1160 = vmatpush1.bf16.msra.mxu0 %v861
    %1161 = vmatprep.subr.bf16.mxu0 0
    %1162 = vmatpush1.bf16.msra.mxu0 %v860
    %1163 = vmatprep.subr.bf16.mxu0 0
    %1164 = vmatpush1.bf16.msra.mxu0 %v859
    %1165 = vmatprep.subr.bf16.mxu0 0
    %1166 = vmatpush1.bf16.msra.mxu0 %v858
    %1167 = vmatprep.subr.bf16.mxu0 0
    %1168 = vmatpush1.bf16.msra.mxu0 %v857
    %1169 = vmatprep.subr.bf16.mxu0 0
    %1170 = vmatpush2.bf16.msra.mxu0 %v872
    %1171 = vmatprep.subr.bf16.mxu0 0
    %1172 = vmatpush2.bf16.msra.mxu0 %v871
    %1173 = vmatprep.subr.bf16.mxu0 0
    %1174 = vmatpush2.bf16.msra.mxu0 %v870
    %1175 = vmatprep.subr.bf16.mxu0 0
    %1176 = vmatpush2.bf16.msra.mxu0 %v869
    %1177 = vmatprep.subr.bf16.mxu0 0
    %1178 = vmatpush2.bf16.msra.mxu0 %v868
    %1179 = vmatprep.subr.bf16.mxu0 0
    %1180 = vmatpush2.bf16.msra.mxu0 %v867
    %1181 = vmatprep.subr.bf16.mxu0 0
    %1182 = vmatpush2.bf16.msra.mxu0 %v866
    %1183 = vmatprep.subr.bf16.mxu0 0
    %1184 = vmatpush2.bf16.msra.mxu0 %v865
    %1185 = vmatprep.mubr.bf16.mxu0 %v299
    %1186 = vmatmul.mubr.bf16.gmra.mxu0 %v297
    %v1187 = vpop.f32.mrf.mxu0
    %v1188 = vadd.f32 %v1148, %v1187
    %v1189 = vpop.f32.mrf.mxu0
    %v1190 = vpop.f32.mrf.mxu0
    %v1191 = vpop.f32.mrf.mxu0
    %1192 = vdwg.mxu0
    %1193 = vmatprep.subr.bf16.mxu0 0
    %1194 = vmatpush1.bf16.msra.mxu0 %v880
    %1195 = vmatprep.subr.bf16.mxu0 0
    %1196 = vmatpush1.bf16.msra.mxu0 %v879
    %1197 = vmatprep.subr.bf16.mxu0 0
    %1198 = vmatpush1.bf16.msra.mxu0 %v878
    %1199 = vmatprep.subr.bf16.mxu0 0
    %1200 = vmatpush1.bf16.msra.mxu0 %v877
    %1201 = vmatprep.subr.bf16.mxu0 0
    %1202 = vmatpush1.bf16.msra.mxu0 %v876
    %1203 = vmatprep.subr.bf16.mxu0 0
    %1204 = vmatpush1.bf16.msra.mxu0 %v875
    %1205 = vmatprep.subr.bf16.mxu0 0
    %1206 = vmatpush1.bf16.msra.mxu0 %v874
    %1207 = vmatprep.subr.bf16.mxu0 0
    %1208 = vmatpush1.bf16.msra.mxu0 %v873
    %1209 = vmatprep.subr.bf16.mxu0 0
    %1210 = vmatpush2.bf16.msra.mxu0 %v888
    %1211 = vmatprep.subr.bf16.mxu0 0
    %1212 = vmatpush2.bf16.msra.mxu0 %v887
    %1213 = vmatprep.subr.bf16.mxu0 0
    %1214 = vmatpush2.bf16.msra.mxu0 %v886
    %1215 = vmatprep.subr.bf16.mxu0 0
    %1216 = vmatpush2.bf16.msra.mxu0 %v885
    %1217 = vmatprep.subr.bf16.mxu0 0
    %1218 = vmatpush2.bf16.msra.mxu0 %v884
    %1219 = vmatprep.subr.bf16.mxu0 0
    %1220 = vmatpush2.bf16.msra.mxu0 %v883
    %1221 = vmatprep.subr.bf16.mxu0 0
    %1222 = vmatpush2.bf16.msra.mxu0 %v882
    %1223 = vmatprep.subr.bf16.mxu0 0
    %1224 = vmatpush2.bf16.msra.mxu0 %v881
    %1225 = vmatprep.mubr.bf16.mxu0 %v337
    %1226 = vmatmul.mubr.bf16.gmra.mxu0 %v323
    %v1227 = vpop.f32.mrf.mxu0
    %v1228 = vadd.f32 %v1188, %v1227
    %v1229 = vpop.f32.mrf.mxu0
    %v1230 = vpop.f32.mrf.mxu0
    %v1231 = vpop.f32.mrf.mxu0
    %1232 = vdwg.mxu0
    %1233 = vmatprep.subr.bf16.mxu0 0
    %1234 = vmatpush1.bf16.msra.mxu0 %v896
    %1235 = vmatprep.subr.bf16.mxu0 0
    %1236 = vmatpush1.bf16.msra.mxu0 %v895
    %1237 = vmatprep.subr.bf16.mxu0 0
    %1238 = vmatpush1.bf16.msra.mxu0 %v894
    %1239 = vmatprep.subr.bf16.mxu0 0
    %1240 = vmatpush1.bf16.msra.mxu0 %v893
    %1241 = vmatprep.subr.bf16.mxu0 0
    %1242 = vmatpush1.bf16.msra.mxu0 %v892
    %1243 = vmatprep.subr.bf16.mxu0 0
    %1244 = vmatpush1.bf16.msra.mxu0 %v891
    %1245 = vmatprep.subr.bf16.mxu0 0
    %1246 = vmatpush1.bf16.msra.mxu0 %v890
    %1247 = vmatprep.subr.bf16.mxu0 0
    %1248 = vmatpush1.bf16.msra.mxu0 %v889
    %1249 = vmatprep.subr.bf16.mxu0 0
    %1250 = vmatpush2.bf16.msra.mxu0 %v904
    %1251 = vmatprep.subr.bf16.mxu0 0
    %1252 = vmatpush2.bf16.msra.mxu0 %v903
    %1253 = vmatprep.subr.bf16.mxu0 0
    %1254 = vmatpush2.bf16.msra.mxu0 %v902
    %1255 = vmatprep.subr.bf16.mxu0 0
    %1256 = vmatpush2.bf16.msra.mxu0 %v901
    %1257 = vmatprep.subr.bf16.mxu0 0
    %1258 = vmatpush2.bf16.msra.mxu0 %v900
    %1259 = vmatprep.subr.bf16.mxu0 0
    %1260 = vmatpush2.bf16.msra.mxu0 %v899
    %1261 = vmatprep.subr.bf16.mxu0 0
    %1262 = vmatpush2.bf16.msra.mxu0 %v898
    %1263 = vmatprep.subr.bf16.mxu0 0
    %1264 = vmatpush2.bf16.msra.mxu0 %v897
    %1265 = vmatprep.mubr.bf16.mxu0 %v346
    %1266 = vmatmul.mubr.bf16.gmra.mxu0 %v345
    %v1267 = vpop.f32.mrf.mxu0
    %v1268 = vadd.f32 %v1228, %v1267
    %v1269 = vpop.f32.mrf.mxu0
    %v1270 = vpop.f32.mrf.mxu0
    %v1271 = vpop.f32.mrf.mxu0
    %1272 = vdwg.mxu0
    %1273 = vmatprep.subr.bf16.mxu0 0
    %1274 = vmatpush1.bf16.msra.mxu0 %v912
    %1275 = vmatprep.subr.bf16.mxu0 0
    %1276 = vmatpush1.bf16.msra.mxu0 %v911
    %1277 = vmatprep.subr.bf16.mxu0 0
    %1278 = vmatpush1.bf16.msra.mxu0 %v910
    %1279 = vmatprep.subr.bf16.mxu0 0
    %1280 = vmatpush1.bf16.msra.mxu0 %v909
    %1281 = vmatprep.subr.bf16.mxu0 0
    %1282 = vmatpush1.bf16.msra.mxu0 %v908
    %1283 = vmatprep.subr.bf16.mxu0 0
    %1284 = vmatpush1.bf16.msra.mxu0 %v907
    %1285 = vmatprep.subr.bf16.mxu0 0
    %1286 = vmatpush1.bf16.msra.mxu0 %v906
    %1287 = vmatprep.subr.bf16.mxu0 0
    %1288 = vmatpush1.bf16.msra.mxu0 %v905
    %1289 = vmatprep.subr.bf16.mxu0 0
    %1290 = vmatpush2.bf16.msra.mxu0 %v920
    %1291 = vmatprep.subr.bf16.mxu0 0
    %1292 = vmatpush2.bf16.msra.mxu0 %v919
    %1293 = vmatprep.subr.bf16.mxu0 0
    %1294 = vmatpush2.bf16.msra.mxu0 %v918
    %1295 = vmatprep.subr.bf16.mxu0 0
    %1296 = vmatpush2.bf16.msra.mxu0 %v917
    %1297 = vmatprep.subr.bf16.mxu0 0
    %1298 = vmatpush2.bf16.msra.mxu0 %v916
    %1299 = vmatprep.subr.bf16.mxu0 0
    %1300 = vmatpush2.bf16.msra.mxu0 %v915
    %1301 = vmatprep.subr.bf16.mxu0 0
    %1302 = vmatpush2.bf16.msra.mxu0 %v914
    %1303 = vmatprep.subr.bf16.mxu0 0
    %1304 = vmatpush2.bf16.msra.mxu0 %v913
    %1305 = vmatprep.mubr.bf16.mxu0 %v344
    %1306 = vmatmul.mubr.bf16.gmra.mxu0 %v330
    %v1307 = vpop.f32.mrf.mxu0
    %v1308 = vadd.f32 %v1268, %v1307
    %v1309 = vpop.f32.mrf.mxu0
    %v1310 = vpop.f32.mrf.mxu0
    %v1311 = vpop.f32.mrf.mxu0
    %1312 = vdwg.mxu0
    %1313 = vst [vmem:[#allocation2] sm:$0x3] %v1308
    // Predicated region
    $region14: #{cnn_forward.5} parent=1 // pred_check
      _
    $region15: #{cnn_forward.5} parent=1 // pred_check_branch
      %1315 = sbr.rel (0) target = $region17
    $region16: #{cnn_forward.5} parent=1 // pred_region
      %s1317 = ssub.s32 32, 32
      %1318 = vsyncadd [#allocation3], %s1317
      %s1320 = sshll.u32 [#allocation2], 4
      %s1321 = int_to_ptr.vmem [resolvable:$true] %s1320
      %1323 = dma.vmem_to_hbm [thread:$0]  %s1321, 32, %s3, [#allocation3]
    $region17: #{cnn_forward.5} parent=1 // pred_fallthru
      _
    // Predicated region
    $region18: #{cnn_forward.5} parent=1 // pred_check
      _
    $region19: #{cnn_forward.5} parent=1 // pred_check_branch
      %1325 = sbr.rel (0) target = $region21
    $region20: #{cnn_forward.5} parent=1 // pred_region
      %1326 = dma.done [#allocation3], 32
    $region21: #{cnn_forward.5} parent=1 // pred_fallthru
      _
    %1327 = vsyncpa [#allocation3], 1

// kernel: cnn_forward.4
$region0: #{cnn_forward.4}
  #allocation0 [shape = 'u32[]', space=smem, size = 0x4, offset = 0x4, fixed_abs, tag = 'smem constant byte address 0x4 - core index']
  #allocation1 [shape = 'u32[144,128]{1,0:T(1,128)}', space=vmem, size = 0x12000, scoped, tag = 'internal scratch']
  %s0 = inlined_call_operand.vmem [shape: bf16[14,1728], index: 0, kind: input, shape index: {}]
  %s1 = inlined_call_operand.hbm [shape: bf16[1728,1024], index: 1, kind: input, shape index: {}]
  %s2 = inlined_call_operand.hbm [shape: f32[1,256], index: 2, kind: input, shape index: {}]
  %s3 = inlined_call_operand.vmem [shape: bf16[14,256], index: 3, kind: output, shape index: {}]
  %s4 = sld [smem:[#allocation0]]
  $region30: #{cnn_forward.4} parent=0
    _
  %s6 = ssub.s32 1, %s4
  %s7 = scalar_select 0, %s6, %s4
  $region1: #{cnn_forward.4} parent=0
    #allocation2 [shape = 'u8[3538944]{0}', space=vmem, size = 0x360000, scoped, tag = 'input window, operand 1, single buffered']
    #allocation3 [shape = 's32[1]{0}', space=sflag, size = 0x4, scoped, tag = 'scoped memory for cnn_forward.4']
    #allocation4 [shape = 'u8[1024]{0}', space=vmem, size = 0x400, scoped, tag = 'input window, operand 2, single buffered']
    #allocation5 [shape = 's32[1]{0}', space=sflag, size = 0x4, scoped, tag = 'scoped memory for cnn_forward.4']
    %8 = vsyncpa [#allocation3], 0
    %9 = vsyncpa [#allocation5], 0
    // Predicated region
    $region2: #{cnn_forward.4} parent=1 // pred_check
      _
    $region3: #{cnn_forward.4} parent=1 // pred_check_branch
      %11 = sbr.rel (0) target = $region5
    $region4: #{cnn_forward.4} parent=1 // pred_region
      _
    $region5: #{cnn_forward.4} parent=1 // pred_fallthru
      _
    // Predicated region
    $region6: #{cnn_forward.4} parent=1 // pred_check
      _
    $region7: #{cnn_forward.4} parent=1 // pred_check_branch
      %13 = sbr.rel (0) target = $region9
    $region8: #{cnn_forward.4} parent=1 // pred_region
      %s15 = ssub.s32 110592, 110592
      %16 = vsyncadd [#allocation3], %s15
      %s17 = sshll.u32 [#allocation2], 4
      %s18 = int_to_ptr.vmem [resolvable:$true] %s17
      %23 = dma.hbm_to_vmem [thread:$0]  %s1, 110592, %s18, [#allocation3], 512, 512, 32
    $region9: #{cnn_forward.4} parent=1 // pred_fallthru
      _
    // Predicated region
    $region10: #{cnn_forward.4} parent=1 // pred_check
      _
    $region11: #{cnn_forward.4} parent=1 // pred_check_branch
      %25 = sbr.rel (0) target = $region13
    $region12: #{cnn_forward.4} parent=1 // pred_region
      %s27 = ssub.s32 32, 32
      %28 = vsyncadd [#allocation5], %s27
      %s30 = sshll.u32 [#allocation4], 4
      %s31 = int_to_ptr.vmem [resolvable:$true] %s30
      %33 = dma.hbm_to_vmem [thread:$0]  %s2, 32, %s31, [#allocation5]
    $region13: #{cnn_forward.4} parent=1 // pred_fallthru
      _
    // Predicated region
    $region14: #{cnn_forward.4} parent=1 // pred_check
      _
    $region15: #{cnn_forward.4} parent=1 // pred_check_branch
      %35 = sbr.rel (0) target = $region17
    $region16: #{cnn_forward.4} parent=1 // pred_region
      %36 = dma.done [#allocation3], 110592
    $region17: #{cnn_forward.4} parent=1 // pred_fallthru
      _
    // Predicated region
    $region18: #{cnn_forward.4} parent=1 // pred_check
      _
    $region19: #{cnn_forward.4} parent=1 // pred_check_branch
      %38 = sbr.rel (0) target = $region21
    $region20: #{cnn_forward.4} parent=1 // pred_region
      %39 = dma.done [#allocation5], 32
    $region21: #{cnn_forward.4} parent=1 // pred_fallthru
      _
    %v41 = vld [vmem:[%s0] sm:$0xff]
    %v42 = vld [vmem:[%s0 + $0x8] sm:$0xff]
    %v43 = vld [vmem:[%s0 + $0x10] sm:$0xff]
    %v44 = vld [vmem:[%s0 + $0x18] sm:$0xff]
    %v45 = vld [vmem:[%s0 + $0x20] sm:$0xff]
    %v46 = vld [vmem:[%s0 + $0x28] sm:$0xff]
    %v47 = vld [vmem:[%s0 + $0x30] sm:$0xff]
    %v48 = vld [vmem:[%s0 + $0x38] sm:$0x77]
    %v49 = vld [vmem:[%s0 + $0x40] sm:$0x77]
    %v50 = vld [vmem:[%s0 + $0x48] sm:$0x77]
    %v51 = vld [vmem:[%s0 + $0x50] sm:$0x77]
    %v52 = vld [vmem:[%s0 + $0x58] sm:$0x77]
    %v53 = vld [vmem:[%s0 + $0x60] sm:$0x77]
    %v54 = vld [vmem:[%s0 + $0x68] sm:$0x77]
    %v55 = vld [vmem:[#allocation2] sm:$0xff]
    %v56 = vld [vmem:[#allocation2 + $0x8] sm:$0xff]
    %v57 = vld [vmem:[#allocation2 + $0x10] sm:$0xff]
    %v58 = vld [vmem:[#allocation2 + $0x18] sm:$0xff]
    %v59 = vld [vmem:[#allocation2 + $0x20] sm:$0xff]
    %v60 = vld [vmem:[#allocation2 + $0x28] sm:$0xff]
    %v61 = vld [vmem:[#allocation2 + $0x30] sm:$0xff]
    %v62 = vld [vmem:[#allocation2 + $0x38] sm:$0xff]
    %v63 = vld [vmem:[#allocation2 + $0x40] sm:$0xff]
    %v64 = vld [vmem:[#allocation2 + $0x48] sm:$0xff]
    %v65 = vld [vmem:[#allocation2 + $0x50] sm:$0xff]
    %v66 = vld [vmem:[#allocation2 + $0x58] sm:$0xff]
    %v67 = vld [vmem:[#allocation2 + $0x60] sm:$0xff]
    %v68 = vld [vmem:[#allocation2 + $0x68] sm:$0xff]
    %v69 = vld [vmem:[#allocation2 + $0x70] sm:$0xff]
    %v70 = vld [vmem:[#allocation2 + $0x78] sm:$0xff]
    %v71 = vld [vmem:[#allocation2 + $0x80] sm:$0xff]
    %v72 = vld [vmem:[#allocation2 + $0x88] sm:$0xff]
    %v73 = vld [vmem:[#allocation2 + $0x90] sm:$0xff]
    %v74 = vld [vmem:[#allocation2 + $0x98] sm:$0xff]
    %v75 = vld [vmem:[#allocation2 + $0xa0] sm:$0xff]
    %v76 = vld [vmem:[#allocation2 + $0xa8] sm:$0xff]
    %v77 = vld [vmem:[#allocation2 + $0xb0] sm:$0xff]
    %v78 = vld [vmem:[#allocation2 + $0xb8] sm:$0xff]
    %v79 = vld [vmem:[#allocation2 + $0xc0] sm:$0xff]
    %v80 = vld [vmem:[#allocation2 + $0xc8] sm:$0xff]
    %v81 = vld [vmem:[#allocation2 + $0xd0] sm:$0xff]
    %v82 = vld [vmem:[#allocation2 + $0xd8] sm:$0xff]
    %v83 = vld [vmem:[#allocation2 + $0xe0] sm:$0xff]
    %v84 = vld [vmem:[#allocation2 + $0xe8] sm:$0xff]
    %v85 = vld [vmem:[#allocation2 + $0xf0] sm:$0xff]
    %v86 = vld [vmem:[#allocation2 + $0xf8] sm:$0xff]
    %v87 = vld [vmem:[#allocation2 + $0x100] sm:$0xff]
    %v88 = vld [vmem:[#allocation2 + $0x108] sm:$0xff]
    %v89 = vld [vmem:[#allocation2 + $0x110] sm:$0xff]
    %v90 = vld [vmem:[#allocation2 + $0x118] sm:$0xff]
    %v91 = vld [vmem:[#allocation2 + $0x120] sm:$0xff]
    %v92 = vld [vmem:[#allocation2 + $0x128] sm:$0xff]
    %v93 = vld [vmem:[#allocation2 + $0x130] sm:$0xff]
    %v94 = vld [vmem:[#allocation2 + $0x138] sm:$0xff]
    %v95 = vld [vmem:[#allocation2 + $0x140] sm:$0xff]
    %v96 = vld [vmem:[#allocation2 + $0x148] sm:$0xff]
    %v97 = vld [vmem:[#allocation2 + $0x150] sm:$0xff]
    %v98 = vld [vmem:[#allocation2 + $0x158] sm:$0xff]
    %v99 = vld [vmem:[#allocation2 + $0x160] sm:$0xff]
    %v100 = vld [vmem:[#allocation2 + $0x168] sm:$0xff]
    %v101 = vld [vmem:[#allocation2 + $0x170] sm:$0xff]
    %v102 = vld [vmem:[#allocation2 + $0x178] sm:$0xff]
    %v103 = vld [vmem:[#allocation2 + $0x180] sm:$0xff]
    %v104 = vld [vmem:[#allocation2 + $0x188] sm:$0xff]
    %v105 = vld [vmem:[#allocation2 + $0x190] sm:$0xff]
    %v106 = vld [vmem:[#allocation2 + $0x198] sm:$0xff]
    %v107 = vld [vmem:[#allocation2 + $0x1a0] sm:$0xff]
    %v108 = vld [vmem:[#allocation2 + $0x1a8] sm:$0xff]
    %v109 = vld [vmem:[#allocation2 + $0x1b0] sm:$0xff]
    %v110 = vld [vmem:[#allocation2 + $0x1b8] sm:$0xff]
    %v111 = vld [vmem:[#allocation2 + $0x1c0] sm:$0xff]
    %v112 = vld [vmem:[#allocation2 + $0x1c8] sm:$0xff]
    %v113 = vld [vmem:[#allocation2 + $0x1d0] sm:$0xff]
    %v114 = vld [vmem:[#allocation2 + $0x1d8] sm:$0xff]
    %v115 = vld [vmem:[#allocation2 + $0x1e0] sm:$0xff]
    %v116 = vld [vmem:[#allocation2 + $0x1e8] sm:$0xff]
    %v117 = vld [vmem:[#allocation2 + $0x1f0] sm:$0xff]
    %v118 = vld [vmem:[#allocation2 + $0x1f8] sm:$0xff]
    %v119 = vld [vmem:[#allocation2 + $0x200] sm:$0xff]
    %v120 = vld [vmem:[#allocation2 + $0x208] sm:$0xff]
    %v121 = vld [vmem:[#allocation2 + $0x210] sm:$0xff]
    %v122 = vld [vmem:[#allocation2 + $0x218] sm:$0xff]
    %v123 = vld [vmem:[#allocation2 + $0x220] sm:$0xff]
    %v124 = vld [vmem:[#allocation2 + $0x228] sm:$0xff]
    %v125 = vld [vmem:[#allocation2 + $0x230] sm:$0xff]
    %v126 = vld [vmem:[#allocation2 + $0x238] sm:$0xff]
    %v127 = vld [vmem:[#allocation2 + $0x240] sm:$0xff]
    %v128 = vld [vmem:[#allocation2 + $0x248] sm:$0xff]
    %v129 = vld [vmem:[#allocation2 + $0x250] sm:$0xff]
    %v130 = vld [vmem:[#allocation2 + $0x258] sm:$0xff]
    %v131 = vld [vmem:[#allocation2 + $0x260] sm:$0xff]
    %v132 = vld [vmem:[#allocation2 + $0x268] sm:$0xff]
    %v133 = vld [vmem:[#allocation2 + $0x270] sm:$0xff]
    %v134 = vld [vmem:[#allocation2 + $0x278] sm:$0xff]
    %v135 = vld [vmem:[#allocation2 + $0x280] sm:$0xff]
    %v136 = vld [vmem:[#allocation2 + $0x288] sm:$0xff]
    %v137 = vld [vmem:[#allocation2 + $0x290] sm:$0xff]
    %v138 = vld [vmem:[#allocation2 + $0x298] sm:$0xff]
    %v139 = vld [vmem:[#allocation2 + $0x2a0] sm:$0xff]
    %v140 = vld [vmem:[#allocation2 + $0x2a8] sm:$0xff]
    %v141 = vld [vmem:[#allocation2 + $0x2b0] sm:$0xff]
    %v142 = vld [vmem:[#allocation2 + $0x2b8] sm:$0xff]
    %v143 = vld [vmem:[#allocation2 + $0x2c0] sm:$0xff]
    %v144 = vld [vmem:[#allocation2 + $0x2c8] sm:$0xff]
    %v145 = vld [vmem:[#allocation2 + $0x2d0] sm:$0xff]
    %v146 = vld [vmem:[#allocation2 + $0x2d8] sm:$0xff]
    %v147 = vld [vmem:[#allocation2 + $0x2e0] sm:$0xff]
    %v148 = vld [vmem:[#allocation2 + $0x2e8] sm:$0xff]
    %v149 = vld [vmem:[#allocation2 + $0x2f0] sm:$0xff]
    %v150 = vld [vmem:[#allocation2 + $0x2f8] sm:$0xff]
    %v151 = vld [vmem:[#allocation2 + $0x300] sm:$0xff]
    %v152 = vld [vmem:[#allocation2 + $0x308] sm:$0xff]
    %v153 = vld [vmem:[#allocation2 + $0x310] sm:$0xff]
    %v154 = vld [vmem:[#allocation2 + $0x318] sm:$0xff]
    %v155 = vld [vmem:[#allocation2 + $0x320] sm:$0xff]
    %v156 = vld [vmem:[#allocation2 + $0x328] sm:$0xff]
    %v157 = vld [vmem:[#allocation2 + $0x330] sm:$0xff]
    %v158 = vld [vmem:[#allocation2 + $0x338] sm:$0xff]
    %v159 = vld [vmem:[#allocation2 + $0x340] sm:$0xff]
    %v160 = vld [vmem:[#allocation2 + $0x348] sm:$0xff]
    %v161 = vld [vmem:[#allocation2 + $0x350] sm:$0xff]
    %v162 = vld [vmem:[#allocation2 + $0x358] sm:$0xff]
    %v163 = vld [vmem:[#allocation2 + $0x360] sm:$0xff]
    %v164 = vld [vmem:[#allocation2 + $0x368] sm:$0xff]
    %v165 = vld [vmem:[#allocation2 + $0x370] sm:$0xff]
    %v166 = vld [vmem:[#allocation2 + $0x378] sm:$0xff]
    %v167 = vld [vmem:[#allocation2 + $0x380] sm:$0xff]
    %v168 = vld [vmem:[#allocation2 + $0x388] sm:$0xff]
    %v169 = vld [vmem:[#allocation2 + $0x390] sm:$0xff]
    %v170 = vld [vmem:[#allocation2 + $0x398] sm:$0xff]
    %v171 = vld [vmem:[#allocation2 + $0x3a0] sm:$0xff]
    %v172 = vld [vmem:[#allocation2 + $0x3a8] sm:$0xff]
    %v173 = vld [vmem:[#allocation2 + $0x3b0] sm:$0xff]
    %v174 = vld [vmem:[#allocation2 + $0x3b8] sm:$0xff]
    %v175 = vld [vmem:[#allocation2 + $0x3c0] sm:$0xff]
    %v176 = vld [vmem:[#allocation2 + $0x3c8] sm:$0xff]
    %v177 = vld [vmem:[#allocation2 + $0x3d0] sm:$0xff]
    %v178 = vld [vmem:[#allocation2 + $0x3d8] sm:$0xff]
    %v179 = vld [vmem:[#allocation2 + $0x3e0] sm:$0xff]
    %v180 = vld [vmem:[#allocation2 + $0x3e8] sm:$0xff]
    %v181 = vld [vmem:[#allocation2 + $0x3f0] sm:$0xff]
    %v182 = vld [vmem:[#allocation2 + $0x3f8] sm:$0xff]
    %v183 = vld [vmem:[#allocation2 + $0x400] sm:$0xff]
    %v184 = vld [vmem:[#allocation2 + $0x408] sm:$0xff]
    %v185 = vld [vmem:[#allocation2 + $0x410] sm:$0xff]
    %v186 = vld [vmem:[#allocation2 + $0x418] sm:$0xff]
    %v187 = vld [vmem:[#allocation2 + $0x420] sm:$0xff]
    %v188 = vld [vmem:[#allocation2 + $0x428] sm:$0xff]
    %v189 = vld [vmem:[#allocation2 + $0x430] sm:$0xff]
    %v190 = vld [vmem:[#allocation2 + $0x438] sm:$0xff]
    %v191 = vld [vmem:[#allocation2 + $0x440] sm:$0xff]
    %v192 = vld [vmem:[#allocation2 + $0x448] sm:$0xff]
    %v193 = vld [vmem:[#allocation2 + $0x450] sm:$0xff]
    %v194 = vld [vmem:[#allocation2 + $0x458] sm:$0xff]
    %v195 = vld [vmem:[#allocation2 + $0x460] sm:$0xff]
    %v196 = vld [vmem:[#allocation2 + $0x468] sm:$0xff]
    %v197 = vld [vmem:[#allocation2 + $0x470] sm:$0xff]
    %v198 = vld [vmem:[#allocation2 + $0x478] sm:$0xff]
    %v199 = vld [vmem:[#allocation2 + $0x480] sm:$0xff]
    %v200 = vld [vmem:[#allocation2 + $0x488] sm:$0xff]
    %v201 = vld [vmem:[#allocation2 + $0x490] sm:$0xff]
    %v202 = vld [vmem:[#allocation2 + $0x498] sm:$0xff]
    %v203 = vld [vmem:[#allocation2 + $0x4a0] sm:$0xff]
    %v204 = vld [vmem:[#allocation2 + $0x4a8] sm:$0xff]
    %v205 = vld [vmem:[#allocation2 + $0x4b0] sm:$0xff]
    %v206 = vld [vmem:[#allocation2 + $0x4b8] sm:$0xff]
    %v207 = vld [vmem:[#allocation2 + $0x4c0] sm:$0xff]
    %v208 = vld [vmem:[#allocation2 + $0x4c8] sm:$0xff]
    %v209 = vld [vmem:[#allocation2 + $0x4d0] sm:$0xff]
    %v210 = vld [vmem:[#allocation2 + $0x4d8] sm:$0xff]
    %v211 = vld [vmem:[#allocation2 + $0x4e0] sm:$0xff]
    %v212 = vld [vmem:[#allocation2 + $0x4e8] sm:$0xff]
    %v213 = vld [vmem:[#allocation2 + $0x4f0] sm:$0xff]
    %v214 = vld [vmem:[#allocation2 + $0x4f8] sm:$0xff]
    %v215 = vld [vmem:[#allocation2 + $0x500] sm:$0xff]
    %v216 = vld [vmem:[#allocation2 + $0x508] sm:$0xff]
    %v217 = vld [vmem:[#allocation2 + $0x510] sm:$0xff]
    %v218 = vld [vmem:[#allocation2 + $0x518] sm:$0xff]
    %v219 = vld [vmem:[#allocation2 + $0x520] sm:$0xff]
    %v220 = vld [vmem:[#allocation2 + $0x528] sm:$0xff]
    %v221 = vld [vmem:[#allocation2 + $0x530] sm:$0xff]
    %v222 = vld [vmem:[#allocation2 + $0x538] sm:$0xff]
    %v223 = vld [vmem:[#allocation2 + $0x540] sm:$0xff]
    %v224 = vld [vmem:[#allocation2 + $0x548] sm:$0xff]
    %v225 = vld [vmem:[#allocation2 + $0x550] sm:$0xff]
    %v226 = vld [vmem:[#allocation2 + $0x558] sm:$0xff]
    %v227 = vld [vmem:[#allocation2 + $0x560] sm:$0xff]
    %v228 = vld [vmem:[#allocation2 + $0x568] sm:$0xff]
    %v229 = vld [vmem:[#allocation2 + $0x570] sm:$0xff]
    %v230 = vld [vmem:[#allocation2 + $0x578] sm:$0xff]
    %v231 = vld [vmem:[#allocation2 + $0x580] sm:$0xff]
    %v232 = vld [vmem:[#allocation2 + $0x588] sm:$0xff]
    %v233 = vld [vmem:[#allocation2 + $0x590] sm:$0xff]
    %v234 = vld [vmem:[#allocation2 + $0x598] sm:$0xff]
    %v235 = vld [vmem:[#allocation2 + $0x5a0] sm:$0xff]
    %v236 = vld [vmem:[#allocation2 + $0x5a8] sm:$0xff]
    %v237 = vld [vmem:[#allocation2 + $0x5b0] sm:$0xff]
    %v238 = vld [vmem:[#allocation2 + $0x5b8] sm:$0xff]
    %v239 = vld [vmem:[#allocation2 + $0x5c0] sm:$0xff]
    %v240 = vld [vmem:[#allocation2 + $0x5c8] sm:$0xff]
    %v241 = vld [vmem:[#allocation2 + $0x5d0] sm:$0xff]
    %v242 = vld [vmem:[#allocation2 + $0x5d8] sm:$0xff]
    %v243 = vld [vmem:[#allocation2 + $0x5e0] sm:$0xff]
    %v244 = vld [vmem:[#allocation2 + $0x5e8] sm:$0xff]
    %v245 = vld [vmem:[#allocation2 + $0x5f0] sm:$0xff]
    %v246 = vld [vmem:[#allocation2 + $0x5f8] sm:$0xff]
    %v247 = vld [vmem:[#allocation2 + $0x600] sm:$0xff]
    %v248 = vld [vmem:[#allocation2 + $0x608] sm:$0xff]
    %v249 = vld [vmem:[#allocation2 + $0x610] sm:$0xff]
    %v250 = vld [vmem:[#allocation2 + $0x618] sm:$0xff]
    %v251 = vld [vmem:[#allocation2 + $0x620] sm:$0xff]
    %v252 = vld [vmem:[#allocation2 + $0x628] sm:$0xff]
    %v253 = vld [vmem:[#allocation2 + $0x630] sm:$0xff]
    %v254 = vld [vmem:[#allocation2 + $0x638] sm:$0xff]
    %v255 = vld [vmem:[#allocation2 + $0x640] sm:$0xff]
    %v256 = vld [vmem:[#allocation2 + $0x648] sm:$0xff]
    %v257 = vld [vmem:[#allocation2 + $0x650] sm:$0xff]
    %v258 = vld [vmem:[#allocation2 + $0x658] sm:$0xff]
    %v259 = vld [vmem:[#allocation2 + $0x660] sm:$0xff]
    %v260 = vld [vmem:[#allocation2 + $0x668] sm:$0xff]
    %v261 = vld [vmem:[#allocation2 + $0x670] sm:$0xff]
    %v262 = vld [vmem:[#allocation2 + $0x678] sm:$0xff]
    %v263 = vld [vmem:[#allocation2 + $0x680] sm:$0xff]
    %v264 = vld [vmem:[#allocation2 + $0x688] sm:$0xff]
    %v265 = vld [vmem:[#allocation2 + $0x690] sm:$0xff]
    %v266 = vld [vmem:[#allocation2 + $0x698] sm:$0xff]
    %v267 = vld [vmem:[#allocation2 + $0x6a0] sm:$0xff]
    %v268 = vld [vmem:[#allocation2 + $0x6a8] sm:$0xff]
    %v269 = vld [vmem:[#allocation2 + $0x6b0] sm:$0xff]
    %v270 = vld [vmem:[#allocation2 + $0x6b8] sm:$0xff]
    %v271 = vld [vmem:[#allocation2 + $0x6c0] sm:$0xff]
    %v272 = vld [vmem:[#allocation2 + $0x6c8] sm:$0xff]
    %v273 = vld [vmem:[#allocation2 + $0x6d0] sm:$0xff]
    %v274 = vld [vmem:[#allocation2 + $0x6d8] sm:$0xff]
    %v275 = vld [vmem:[#allocation2 + $0x6e0] sm:$0xff]
    %v276 = vld [vmem:[#allocation2 + $0x6e8] sm:$0xff]
    %v277 = vld [vmem:[#allocation2 + $0x6f0] sm:$0xff]
    %v278 = vld [vmem:[#allocation2 + $0x6f8] sm:$0xff]
    %v279 = vld [vmem:[#allocation2 + $0x700] sm:$0xff]
    %v280 = vld [vmem:[#allocation2 + $0x708] sm:$0xff]
    %v281 = vld [vmem:[#allocation2 + $0x710] sm:$0xff]
    %v282 = vld [vmem:[#allocation2 + $0x718] sm:$0xff]
    %v283 = vld [vmem:[#allocation2 + $0x720] sm:$0xff]
    %v284 = vld [vmem:[#allocation2 + $0x728] sm:$0xff]
    %v285 = vld [vmem:[#allocation2 + $0x730] sm:$0xff]
    %v286 = vld [vmem:[#allocation2 + $0x738] sm:$0xff]
    %v287 = vld [vmem:[#allocation2 + $0x740] sm:$0xff]
    %v288 = vld [vmem:[#allocation2 + $0x748] sm:$0xff]
    %v289 = vld [vmem:[#allocation2 + $0x750] sm:$0xff]
    %v290 = vld [vmem:[#allocation2 + $0x758] sm:$0xff]
    %v291 = vld [vmem:[#allocation2 + $0x760] sm:$0xff]
    %v292 = vld [vmem:[#allocation2 + $0x768] sm:$0xff]
    %v293 = vld [vmem:[#allocation2 + $0x770] sm:$0xff]
    %v294 = vld [vmem:[#allocation2 + $0x778] sm:$0xff]
    %v295 = vld [vmem:[#allocation2 + $0x780] sm:$0xff]
    %v296 = vld [vmem:[#allocation2 + $0x788] sm:$0xff]
    %v297 = vld [vmem:[#allocation2 + $0x790] sm:$0xff]
    %v298 = vld [vmem:[#allocation2 + $0x798] sm:$0xff]
    %v299 = vld [vmem:[#allocation2 + $0x7a0] sm:$0xff]
    %v300 = vld [vmem:[#allocation2 + $0x7a8] sm:$0xff]
    %v301 = vld [vmem:[#allocation2 + $0x7b0] sm:$0xff]
    %v302 = vld [vmem:[#allocation2 + $0x7b8] sm:$0xff]
    %v303 = vld [vmem:[#allocation2 + $0x7c0] sm:$0xff]
    %v304 = vld [vmem:[#allocation2 + $0x7c8] sm:$0xff]
    %v305 = vld [vmem:[#allocation2 + $0x7d0] sm:$0xff]
    %v306 = vld [vmem:[#allocation2 + $0x7d8] sm:$0xff]
    %v307 = vld [vmem:[#allocation2 + $0x7e0] sm:$0xff]
    %v308 = vld [vmem:[#allocation2 + $0x7e8] sm:$0xff]
    %v309 = vld [vmem:[#allocation2 + $0x7f0] sm:$0xff]
    %v310 = vld [vmem:[#allocation2 + $0x7f8] sm:$0xff]
    %v311 = vld [vmem:[#allocation2 + $0x800] sm:$0xff]
    %v312 = vld [vmem:[#allocation2 + $0x808] sm:$0xff]
    %v313 = vld [vmem:[#allocation2 + $0x810] sm:$0xff]
    %v314 = vld [vmem:[#allocation2 + $0x818] sm:$0xff]
    %v315 = vld [vmem:[#allocation2 + $0x820] sm:$0xff]
    %v316 = vld [vmem:[#allocation2 + $0x828] sm:$0xff]
    %v317 = vld [vmem:[#allocation2 + $0x830] sm:$0xff]
    %v318 = vld [vmem:[#allocation2 + $0x838] sm:$0xff]
    %v319 = vld [vmem:[#allocation2 + $0x840] sm:$0xff]
    %v320 = vld [vmem:[#allocation2 + $0x848] sm:$0xff]
    %v321 = vld [vmem:[#allocation2 + $0x850] sm:$0xff]
    %v322 = vld [vmem:[#allocation2 + $0x858] sm:$0xff]
    %v323 = vld [vmem:[#allocation2 + $0x860] sm:$0xff]
    %v324 = vld [vmem:[#allocation2 + $0x868] sm:$0xff]
    %v325 = vld [vmem:[#allocation2 + $0x870] sm:$0xff]
    %v326 = vld [vmem:[#allocation2 + $0x878] sm:$0xff]
    %v327 = vld [vmem:[#allocation2 + $0x880] sm:$0xff]
    %v328 = vld [vmem:[#allocation2 + $0x888] sm:$0xff]
    %v329 = vld [vmem:[#allocation2 + $0x890] sm:$0xff]
    %v330 = vld [vmem:[#allocation2 + $0x898] sm:$0xff]
    %v331 = vld [vmem:[#allocation2 + $0x8a0] sm:$0xff]
    %v332 = vld [vmem:[#allocation2 + $0x8a8] sm:$0xff]
    %v333 = vld [vmem:[#allocation2 + $0x8b0] sm:$0xff]
    %v334 = vld [vmem:[#allocation2 + $0x8b8] sm:$0xff]
    %v335 = vld [vmem:[#allocation2 + $0x8c0] sm:$0xff]
    %v336 = vld [vmem:[#allocation2 + $0x8c8] sm:$0xff]
    %v337 = vld [vmem:[#allocation2 + $0x8d0] sm:$0xff]
    %v338 = vld [vmem:[#allocation2 + $0x8d8] sm:$0xff]
    %v339 = vld [vmem:[#allocation2 + $0x8e0] sm:$0xff]
    %v340 = vld [vmem:[#allocation2 + $0x8e8] sm:$0xff]
    %v341 = vld [vmem:[#allocation2 + $0x8f0] sm:$0xff]
    %v342 = vld [vmem:[#allocation2 + $0x8f8] sm:$0xff]
    %v343 = vld [vmem:[#allocation2 + $0x900] sm:$0xff]
    %v344 = vld [vmem:[#allocation2 + $0x908] sm:$0xff]
    %v345 = vld [vmem:[#allocation2 + $0x910] sm:$0xff]
    %v346 = vld [vmem:[#allocation2 + $0x918] sm:$0xff]
    %v347 = vld [vmem:[#allocation2 + $0x920] sm:$0xff]
    %v348 = vld [vmem:[#allocation2 + $0x928] sm:$0xff]
    %v349 = vld [vmem:[#allocation2 + $0x930] sm:$0xff]
    %v350 = vld [vmem:[#allocation2 + $0x938] sm:$0xff]
    %v351 = vld [vmem:[#allocation2 + $0x940] sm:$0xff]
    %v352 = vld [vmem:[#allocation2 + $0x948] sm:$0xff]
    %v353 = vld [vmem:[#allocation2 + $0x950] sm:$0xff]
    %v354 = vld [vmem:[#allocation2 + $0x958] sm:$0xff]
    %v355 = vld [vmem:[#allocation2 + $0x960] sm:$0xff]
    %v356 = vld [vmem:[#allocation2 + $0x968] sm:$0xff]
    %v357 = vld [vmem:[#allocation2 + $0x970] sm:$0xff]
    %v358 = vld [vmem:[#allocation2 + $0x978] sm:$0xff]
    %v359 = vld [vmem:[#allocation2 + $0x980] sm:$0xff]
    %v360 = vld [vmem:[#allocation2 + $0x988] sm:$0xff]
    %v361 = vld [vmem:[#allocation2 + $0x990] sm:$0xff]
    %v362 = vld [vmem:[#allocation2 + $0x998] sm:$0xff]
    %v363 = vld [vmem:[#allocation2 + $0x9a0] sm:$0xff]
    %v364 = vld [vmem:[#allocation2 + $0x9a8] sm:$0xff]
    %v365 = vld [vmem:[#allocation2 + $0x9b0] sm:$0xff]
    %v366 = vld [vmem:[#allocation2 + $0x9b8] sm:$0xff]
    %v367 = vld [vmem:[#allocation2 + $0x9c0] sm:$0xff]
    %v368 = vld [vmem:[#allocation2 + $0x9c8] sm:$0xff]
    %v369 = vld [vmem:[#allocation2 + $0x9d0] sm:$0xff]
    %v370 = vld [vmem:[#allocation2 + $0x9d8] sm:$0xff]
    %v371 = vld [vmem:[#allocation2 + $0x9e0] sm:$0xff]
    %v372 = vld [vmem:[#allocation2 + $0x9e8] sm:$0xff]
    %v373 = vld [vmem:[#allocation2 + $0x9f0] sm:$0xff]
    %v374 = vld [vmem:[#allocation2 + $0x9f8] sm:$0xff]
    %v375 = vld [vmem:[#allocation2 + $0xa00] sm:$0xff]
    %v376 = vld [vmem:[#allocation2 + $0xa08] sm:$0xff]
    %v377 = vld [vmem:[#allocation2 + $0xa10] sm:$0xff]
    %v378 = vld [vmem:[#allocation2 + $0xa18] sm:$0xff]
    %v379 = vld [vmem:[#allocation2 + $0xa20] sm:$0xff]
    %v380 = vld [vmem:[#allocation2 + $0xa28] sm:$0xff]
    %v381 = vld [vmem:[#allocation2 + $0xa30] sm:$0xff]
    %v382 = vld [vmem:[#allocation2 + $0xa38] sm:$0xff]
    %v383 = vld [vmem:[#allocation2 + $0xa40] sm:$0xff]
    %v384 = vld [vmem:[#allocation2 + $0xa48] sm:$0xff]
    %v385 = vld [vmem:[#allocation2 + $0xa50] sm:$0xff]
    %v386 = vld [vmem:[#allocation2 + $0xa58] sm:$0xff]
    %v387 = vld [vmem:[#allocation2 + $0xa60] sm:$0xff]
    %v388 = vld [vmem:[#allocation2 + $0xa68] sm:$0xff]
    %v389 = vld [vmem:[#allocation2 + $0xa70] sm:$0xff]
    %v390 = vld [vmem:[#allocation2 + $0xa78] sm:$0xff]
    %v391 = vld [vmem:[#allocation2 + $0xa80] sm:$0xff]
    %v392 = vld [vmem:[#allocation2 + $0xa88] sm:$0xff]
    %v393 = vld [vmem:[#allocation2 + $0xa90] sm:$0xff]
    %v394 = vld [vmem:[#allocation2 + $0xa98] sm:$0xff]
    %v395 = vld [vmem:[#allocation2 + $0xaa0] sm:$0xff]
    %v396 = vld [vmem:[#allocation2 + $0xaa8] sm:$0xff]
    %v397 = vld [vmem:[#allocation2 + $0xab0] sm:$0xff]
    %v398 = vld [vmem:[#allocation2 + $0xab8] sm:$0xff]
    %v399 = vld [vmem:[#allocation2 + $0xac0] sm:$0xff]
    %v400 = vld [vmem:[#allocation2 + $0xac8] sm:$0xff]
    %v401 = vld [vmem:[#allocation2 + $0xad0] sm:$0xff]
    %v402 = vld [vmem:[#allocation2 + $0xad8] sm:$0xff]
    %v403 = vld [vmem:[#allocation2 + $0xae0] sm:$0xff]
    %v404 = vld [vmem:[#allocation2 + $0xae8] sm:$0xff]
    %v405 = vld [vmem:[#allocation2 + $0xaf0] sm:$0xff]
    %v406 = vld [vmem:[#allocation2 + $0xaf8] sm:$0xff]
    %v407 = vld [vmem:[#allocation2 + $0xb00] sm:$0xff]
    %v408 = vld [vmem:[#allocation2 + $0xb08] sm:$0xff]
    %v409 = vld [vmem:[#allocation2 + $0xb10] sm:$0xff]
    %v410 = vld [vmem:[#allocation2 + $0xb18] sm:$0xff]
    %v411 = vld [vmem:[#allocation2 + $0xb20] sm:$0xff]
    %v412 = vld [vmem:[#allocation2 + $0xb28] sm:$0xff]
    %v413 = vld [vmem:[#allocation2 + $0xb30] sm:$0xff]
    %v414 = vld [vmem:[#allocation2 + $0xb38] sm:$0xff]
    %v415 = vld [vmem:[#allocation2 + $0xb40] sm:$0xff]
    %v416 = vld [vmem:[#allocation2 + $0xb48] sm:$0xff]
    %v417 = vld [vmem:[#allocation2 + $0xb50] sm:$0xff]
    %v418 = vld [vmem:[#allocation2 + $0xb58] sm:$0xff]
    %v419 = vld [vmem:[#allocation2 + $0xb60] sm:$0xff]
    %v420 = vld [vmem:[#allocation2 + $0xb68] sm:$0xff]
    %v421 = vld [vmem:[#allocation2 + $0xb70] sm:$0xff]
    %v422 = vld [vmem:[#allocation2 + $0xb78] sm:$0xff]
    %v423 = vld [vmem:[#allocation2 + $0xb80] sm:$0xff]
    %v424 = vld [vmem:[#allocation2 + $0xb88] sm:$0xff]
    %v425 = vld [vmem:[#allocation2 + $0xb90] sm:$0xff]
    %v426 = vld [vmem:[#allocation2 + $0xb98] sm:$0xff]
    %v427 = vld [vmem:[#allocation2 + $0xba0] sm:$0xff]
    %v428 = vld [vmem:[#allocation2 + $0xba8] sm:$0xff]
    %v429 = vld [vmem:[#allocation2 + $0xbb0] sm:$0xff]
    %v430 = vld [vmem:[#allocation2 + $0xbb8] sm:$0xff]
    %v431 = vld [vmem:[#allocation2 + $0xbc0] sm:$0xff]
    %v432 = vld [vmem:[#allocation2 + $0xbc8] sm:$0xff]
    %v433 = vld [vmem:[#allocation2 + $0xbd0] sm:$0xff]
    %v434 = vld [vmem:[#allocation2 + $0xbd8] sm:$0xff]
    %v435 = vld [vmem:[#allocation2 + $0xbe0] sm:$0xff]
    %v436 = vld [vmem:[#allocation2 + $0xbe8] sm:$0xff]
    %v437 = vld [vmem:[#allocation2 + $0xbf0] sm:$0xff]
    %v438 = vld [vmem:[#allocation2 + $0xbf8] sm:$0xff]
    %v439 = vld [vmem:[#allocation2 + $0xc00] sm:$0xff]
    %v440 = vld [vmem:[#allocation2 + $0xc08] sm:$0xff]
    %v441 = vld [vmem:[#allocation2 + $0xc10] sm:$0xff]
    %v442 = vld [vmem:[#allocation2 + $0xc18] sm:$0xff]
    %v443 = vld [vmem:[#allocation2 + $0xc20] sm:$0xff]
    %v444 = vld [vmem:[#allocation2 + $0xc28] sm:$0xff]
    %v445 = vld [vmem:[#allocation2 + $0xc30] sm:$0xff]
    %v446 = vld [vmem:[#allocation2 + $0xc38] sm:$0xff]
    %v447 = vld [vmem:[#allocation2 + $0xc40] sm:$0xff]
    %v448 = vld [vmem:[#allocation2 + $0xc48] sm:$0xff]
    %v449 = vld [vmem:[#allocation2 + $0xc50] sm:$0xff]
    %v450 = vld [vmem:[#allocation2 + $0xc58] sm:$0xff]
    %v451 = vld [vmem:[#allocation2 + $0xc60] sm:$0xff]
    %v452 = vld [vmem:[#allocation2 + $0xc68] sm:$0xff]
    %v453 = vld [vmem:[#allocation2 + $0xc70] sm:$0xff]
    %v454 = vld [vmem:[#allocation2 + $0xc78] sm:$0xff]
    %v455 = vld [vmem:[#allocation2 + $0xc80] sm:$0xff]
    %v456 = vld [vmem:[#allocation2 + $0xc88] sm:$0xff]
    %v457 = vld [vmem:[#allocation2 + $0xc90] sm:$0xff]
    %v458 = vld [vmem:[#allocation2 + $0xc98] sm:$0xff]
    %v459 = vld [vmem:[#allocation2 + $0xca0] sm:$0xff]
    %v460 = vld [vmem:[#allocation2 + $0xca8] sm:$0xff]
    %v461 = vld [vmem:[#allocation2 + $0xcb0] sm:$0xff]
    %v462 = vld [vmem:[#allocation2 + $0xcb8] sm:$0xff]
    %v463 = vld [vmem:[#allocation2 + $0xcc0] sm:$0xff]
    %v464 = vld [vmem:[#allocation2 + $0xcc8] sm:$0xff]
    %v465 = vld [vmem:[#allocation2 + $0xcd0] sm:$0xff]
    %v466 = vld [vmem:[#allocation2 + $0xcd8] sm:$0xff]
    %v467 = vld [vmem:[#allocation2 + $0xce0] sm:$0xff]
    %v468 = vld [vmem:[#allocation2 + $0xce8] sm:$0xff]
    %v469 = vld [vmem:[#allocation2 + $0xcf0] sm:$0xff]
    %v470 = vld [vmem:[#allocation2 + $0xcf8] sm:$0xff]
    %v471 = vld [vmem:[#allocation2 + $0xd00] sm:$0xff]
    %v472 = vld [vmem:[#allocation2 + $0xd08] sm:$0xff]
    %v473 = vld [vmem:[#allocation2 + $0xd10] sm:$0xff]
    %v474 = vld [vmem:[#allocation2 + $0xd18] sm:$0xff]
    %v475 = vld [vmem:[#allocation2 + $0xd20] sm:$0xff]
    %v476 = vld [vmem:[#allocation2 + $0xd28] sm:$0xff]
    %v477 = vld [vmem:[#allocation2 + $0xd30] sm:$0xff]
    %v478 = vld [vmem:[#allocation2 + $0xd38] sm:$0xff]
    %v479 = vld [vmem:[#allocation2 + $0xd40] sm:$0xff]
    %v480 = vld [vmem:[#allocation2 + $0xd48] sm:$0xff]
    %v481 = vld [vmem:[#allocation2 + $0xd50] sm:$0xff]
    %v482 = vld [vmem:[#allocation2 + $0xd58] sm:$0xff]
    %v483 = vld [vmem:[#allocation2 + $0xd60] sm:$0xff]
    %v484 = vld [vmem:[#allocation2 + $0xd68] sm:$0xff]
    %v485 = vld [vmem:[#allocation2 + $0xd70] sm:$0xff]
    %v486 = vld [vmem:[#allocation2 + $0xd78] sm:$0xff]
    %v487 = vld [vmem:[#allocation2 + $0xd80] sm:$0xff]
    %v488 = vld [vmem:[#allocation2 + $0xd88] sm:$0xff]
    %v489 = vld [vmem:[#allocation2 + $0xd90] sm:$0xff]
    %v490 = vld [vmem:[#allocation2 + $0xd98] sm:$0xff]
    %v491 = vld [vmem:[#allocation2 + $0xda0] sm:$0xff]
    %v492 = vld [vmem:[#allocation2 + $0xda8] sm:$0xff]
    %v493 = vld [vmem:[#allocation2 + $0xdb0] sm:$0xff]
    %v494 = vld [vmem:[#allocation2 + $0xdb8] sm:$0xff]
    %v495 = vld [vmem:[#allocation2 + $0xdc0] sm:$0xff]
    %v496 = vld [vmem:[#allocation2 + $0xdc8] sm:$0xff]
    %v497 = vld [vmem:[#allocation2 + $0xdd0] sm:$0xff]
    %v498 = vld [vmem:[#allocation2 + $0xdd8] sm:$0xff]
    %v499 = vld [vmem:[#allocation2 + $0xde0] sm:$0xff]
    %v500 = vld [vmem:[#allocation2 + $0xde8] sm:$0xff]
    %v501 = vld [vmem:[#allocation2 + $0xdf0] sm:$0xff]
    %v502 = vld [vmem:[#allocation2 + $0xdf8] sm:$0xff]
    %v503 = vld [vmem:[#allocation2 + $0xe00] sm:$0xff]
    %v504 = vld [vmem:[#allocation2 + $0xe08] sm:$0xff]
    %v505 = vld [vmem:[#allocation2 + $0xe10] sm:$0xff]
    %v506 = vld [vmem:[#allocation2 + $0xe18] sm:$0xff]
    %v507 = vld [vmem:[#allocation2 + $0xe20] sm:$0xff]
    %v508 = vld [vmem:[#allocation2 + $0xe28] sm:$0xff]
    %v509 = vld [vmem:[#allocation2 + $0xe30] sm:$0xff]
    %v510 = vld [vmem:[#allocation2 + $0xe38] sm:$0xff]
    %v511 = vld [vmem:[#allocation2 + $0xe40] sm:$0xff]
    %v512 = vld [vmem:[#allocation2 + $0xe48] sm:$0xff]
    %v513 = vld [vmem:[#allocation2 + $0xe50] sm:$0xff]
    %v514 = vld [vmem:[#allocation2 + $0xe58] sm:$0xff]
    %v515 = vld [vmem:[#allocation2 + $0xe60] sm:$0xff]
    %v516 = vld [vmem:[#allocation2 + $0xe68] sm:$0xff]
    %v517 = vld [vmem:[#allocation2 + $0xe70] sm:$0xff]
    %v518 = vld [vmem:[#allocation2 + $0xe78] sm:$0xff]
    %v519 = vld [vmem:[#allocation2 + $0xe80] sm:$0xff]
    %v520 = vld [vmem:[#allocation2 + $0xe88] sm:$0xff]
    %v521 = vld [vmem:[#allocation2 + $0xe90] sm:$0xff]
    %v522 = vld [vmem:[#allocation2 + $0xe98] sm:$0xff]
    %v523 = vld [vmem:[#allocation2 + $0xea0] sm:$0xff]
    %v524 = vld [vmem:[#allocation2 + $0xea8] sm:$0xff]
    %v525 = vld [vmem:[#allocation2 + $0xeb0] sm:$0xff]
    %v526 = vld [vmem:[#allocation2 + $0xeb8] sm:$0xff]
    %v527 = vld [vmem:[#allocation2 + $0xec0] sm:$0xff]
    %v528 = vld [vmem:[#allocation2 + $0xec8] sm:$0xff]
    %v529 = vld [vmem:[#allocation2 + $0xed0] sm:$0xff]
    %v530 = vld [vmem:[#allocation2 + $0xed8] sm:$0xff]
    %v531 = vld [vmem:[#allocation2 + $0xee0] sm:$0xff]
    %v532 = vld [vmem:[#allocation2 + $0xee8] sm:$0xff]
    %v533 = vld [vmem:[#allocation2 + $0xef0] sm:$0xff]
    %v534 = vld [vmem:[#allocation2 + $0xef8] sm:$0xff]
    %v535 = vld [vmem:[#allocation2 + $0xf00] sm:$0xff]
    %v536 = vld [vmem:[#allocation2 + $0xf08] sm:$0xff]
    %v537 = vld [vmem:[#allocation2 + $0xf10] sm:$0xff]
    %v538 = vld [vmem:[#allocation2 + $0xf18] sm:$0xff]
    %v539 = vld [vmem:[#allocation2 + $0xf20] sm:$0xff]
    %v540 = vld [vmem:[#allocation2 + $0xf28] sm:$0xff]
    %v541 = vld [vmem:[#allocation2 + $0xf30] sm:$0xff]
    %v542 = vld [vmem:[#allocation2 + $0xf38] sm:$0xff]
    %v543 = vld [vmem:[#allocation2 + $0xf40] sm:$0xff]
    %v544 = vld [vmem:[#allocation2 + $0xf48] sm:$0xff]
    %v545 = vld [vmem:[#allocation2 + $0xf50] sm:$0xff]
    %v546 = vld [vmem:[#allocation2 + $0xf58] sm:$0xff]
    %v547 = vld [vmem:[#allocation2 + $0xf60] sm:$0xff]
    %v548 = vld [vmem:[#allocation2 + $0xf68] sm:$0xff]
    %v549 = vld [vmem:[#allocation2 + $0xf70] sm:$0xff]
    %v550 = vld [vmem:[#allocation2 + $0xf78] sm:$0xff]
    %v551 = vld [vmem:[#allocation2 + $0xf80] sm:$0xff]
    %v552 = vld [vmem:[#allocation2 + $0xf88] sm:$0xff]
    %v553 = vld [vmem:[#allocation2 + $0xf90] sm:$0xff]
    %v554 = vld [vmem:[#allocation2 + $0xf98] sm:$0xff]
    %v555 = vld [vmem:[#allocation2 + $0xfa0] sm:$0xff]
    %v556 = vld [vmem:[#allocation2 + $0xfa8] sm:$0xff]
    %v557 = vld [vmem:[#allocation2 + $0xfb0] sm:$0xff]
    %v558 = vld [vmem:[#allocation2 + $0xfb8] sm:$0xff]
    %v559 = vld [vmem:[#allocation2 + $0xfc0] sm:$0xff]
    %v560 = vld [vmem:[#allocation2 + $0xfc8] sm:$0xff]
    %v561 = vld [vmem:[#allocation2 + $0xfd0] sm:$0xff]
    %v562 = vld [vmem:[#allocation2 + $0xfd8] sm:$0xff]
    %v563 = vld [vmem:[#allocation2 + $0xfe0] sm:$0xff]
    %v564 = vld [vmem:[#allocation2 + $0xfe8] sm:$0xff]
    %v565 = vld [vmem:[#allocation2 + $0xff0] sm:$0xff]
    %v566 = vld [vmem:[#allocation2 + $0xff8] sm:$0xff]
    %v567 = vld [vmem:[#allocation2 + $0x1000] sm:$0xff]
    %v568 = vld [vmem:[#allocation2 + $0x1008] sm:$0xff]
    %v569 = vld [vmem:[#allocation2 + $0x1010] sm:$0xff]
    %v570 = vld [vmem:[#allocation2 + $0x1018] sm:$0xff]
    %v571 = vld [vmem:[#allocation2 + $0x1020] sm:$0xff]
    %v572 = vld [vmem:[#allocation2 + $0x1028] sm:$0xff]
    %v573 = vld [vmem:[#allocation2 + $0x1030] sm:$0xff]
    %v574 = vld [vmem:[#allocation2 + $0x1038] sm:$0xff]
    %v575 = vld [vmem:[#allocation2 + $0x1040] sm:$0xff]
    %v576 = vld [vmem:[#allocation2 + $0x1048] sm:$0xff]
    %v577 = vld [vmem:[#allocation2 + $0x1050] sm:$0xff]
    %v578 = vld [vmem:[#allocation2 + $0x1058] sm:$0xff]
    %v579 = vld [vmem:[#allocation2 + $0x1060] sm:$0xff]
    %v580 = vld [vmem:[#allocation2 + $0x1068] sm:$0xff]
    %v581 = vld [vmem:[#allocation2 + $0x1070] sm:$0xff]
    %v582 = vld [vmem:[#allocation2 + $0x1078] sm:$0xff]
    %v583 = vld [vmem:[#allocation2 + $0x1080] sm:$0xff]
    %v584 = vld [vmem:[#allocation2 + $0x1088] sm:$0xff]
    %v585 = vld [vmem:[#allocation2 + $0x1090] sm:$0xff]
    %v586 = vld [vmem:[#allocation2 + $0x1098] sm:$0xff]
    %v587 = vld [vmem:[#allocation2 + $0x10a0] sm:$0xff]
    %v588 = vld [vmem:[#allocation2 + $0x10a8] sm:$0xff]
    %v589 = vld [vmem:[#allocation2 + $0x10b0] sm:$0xff]
    %v590 = vld [vmem:[#allocation2 + $0x10b8] sm:$0xff]
    %v591 = vld [vmem:[#allocation2 + $0x10c0] sm:$0xff]
    %v592 = vld [vmem:[#allocation2 + $0x10c8] sm:$0xff]
    %v593 = vld [vmem:[#allocation2 + $0x10d0] sm:$0xff]
    %v594 = vld [vmem:[#allocation2 + $0x10d8] sm:$0xff]
    %v595 = vld [vmem:[#allocation2 + $0x10e0] sm:$0xff]
    %v596 = vld [vmem:[#allocation2 + $0x10e8] sm:$0xff]
    %v597 = vld [vmem:[#allocation2 + $0x10f0] sm:$0xff]
    %v598 = vld [vmem:[#allocation2 + $0x10f8] sm:$0xff]
    %v599 = vld [vmem:[#allocation2 + $0x1100] sm:$0xff]
    %v600 = vld [vmem:[#allocation2 + $0x1108] sm:$0xff]
    %v601 = vld [vmem:[#allocation2 + $0x1110] sm:$0xff]
    %v602 = vld [vmem:[#allocation2 + $0x1118] sm:$0xff]
    %v603 = vld [vmem:[#allocation2 + $0x1120] sm:$0xff]
    %v604 = vld [vmem:[#allocation2 + $0x1128] sm:$0xff]
    %v605 = vld [vmem:[#allocation2 + $0x1130] sm:$0xff]
    %v606 = vld [vmem:[#allocation2 + $0x1138] sm:$0xff]
    %v607 = vld [vmem:[#allocation2 + $0x1140] sm:$0xff]
    %v608 = vld [vmem:[#allocation2 + $0x1148] sm:$0xff]
    %v609 = vld [vmem:[#allocation2 + $0x1150] sm:$0xff]
    %v610 = vld [vmem:[#allocation2 + $0x1158] sm:$0xff]
    %v611 = vld [vmem:[#allocation2 + $0x1160] sm:$0xff]
    %v612 = vld [vmem:[#allocation2 + $0x1168] sm:$0xff]
    %v613 = vld [vmem:[#allocation2 + $0x1170] sm:$0xff]
    %v614 = vld [vmem:[#allocation2 + $0x1178] sm:$0xff]
    %v615 = vld [vmem:[#allocation2 + $0x1180] sm:$0xff]
    %v616 = vld [vmem:[#allocation2 + $0x1188] sm:$0xff]
    %v617 = vld [vmem:[#allocation2 + $0x1190] sm:$0xff]
    %v618 = vld [vmem:[#allocation2 + $0x1198] sm:$0xff]
    %v619 = vld [vmem:[#allocation2 + $0x11a0] sm:$0xff]
    %v620 = vld [vmem:[#allocation2 + $0x11a8] sm:$0xff]
    %v621 = vld [vmem:[#allocation2 + $0x11b0] sm:$0xff]
    %v622 = vld [vmem:[#allocation2 + $0x11b8] sm:$0xff]
    %v623 = vld [vmem:[#allocation2 + $0x11c0] sm:$0xff]
    %v624 = vld [vmem:[#allocation2 + $0x11c8] sm:$0xff]
    %v625 = vld [vmem:[#allocation2 + $0x11d0] sm:$0xff]
    %v626 = vld [vmem:[#allocation2 + $0x11d8] sm:$0xff]
    %v627 = vld [vmem:[#allocation2 + $0x11e0] sm:$0xff]
    %v628 = vld [vmem:[#allocation2 + $0x11e8] sm:$0xff]
    %v629 = vld [vmem:[#allocation2 + $0x11f0] sm:$0xff]
    %v630 = vld [vmem:[#allocation2 + $0x11f8] sm:$0xff]
    %v631 = vld [vmem:[#allocation2 + $0x1200] sm:$0xff]
    %v632 = vld [vmem:[#allocation2 + $0x1208] sm:$0xff]
    %v633 = vld [vmem:[#allocation2 + $0x1210] sm:$0xff]
    %v634 = vld [vmem:[#allocation2 + $0x1218] sm:$0xff]
    %v635 = vld [vmem:[#allocation2 + $0x1220] sm:$0xff]
    %v636 = vld [vmem:[#allocation2 + $0x1228] sm:$0xff]
    %v637 = vld [vmem:[#allocation2 + $0x1230] sm:$0xff]
    %v638 = vld [vmem:[#allocation2 + $0x1238] sm:$0xff]
    %v639 = vld [vmem:[#allocation2 + $0x1240] sm:$0xff]
    %v640 = vld [vmem:[#allocation2 + $0x1248] sm:$0xff]
    %v641 = vld [vmem:[#allocation2 + $0x1250] sm:$0xff]
    %v642 = vld [vmem:[#allocation2 + $0x1258] sm:$0xff]
    %v643 = vld [vmem:[#allocation2 + $0x1260] sm:$0xff]
    %v644 = vld [vmem:[#allocation2 + $0x1268] sm:$0xff]
    %v645 = vld [vmem:[#allocation2 + $0x1270] sm:$0xff]
    %v646 = vld [vmem:[#allocation2 + $0x1278] sm:$0xff]
    %v647 = vld [vmem:[#allocation2 + $0x1280] sm:$0xff]
    %v648 = vld [vmem:[#allocation2 + $0x1288] sm:$0xff]
    %v649 = vld [vmem:[#allocation2 + $0x1290] sm:$0xff]
    %v650 = vld [vmem:[#allocation2 + $0x1298] sm:$0xff]
    %v651 = vld [vmem:[#allocation2 + $0x12a0] sm:$0xff]
    %v652 = vld [vmem:[#allocation2 + $0x12a8] sm:$0xff]
    %v653 = vld [vmem:[#allocation2 + $0x12b0] sm:$0xff]
    %v654 = vld [vmem:[#allocation2 + $0x12b8] sm:$0xff]
    %v655 = vld [vmem:[#allocation2 + $0x12c0] sm:$0xff]
    %v656 = vld [vmem:[#allocation2 + $0x12c8] sm:$0xff]
    %v657 = vld [vmem:[#allocation2 + $0x12d0] sm:$0xff]
    %v658 = vld [vmem:[#allocation2 + $0x12d8] sm:$0xff]
    %v659 = vld [vmem:[#allocation2 + $0x12e0] sm:$0xff]
    %v660 = vld [vmem:[#allocation2 + $0x12e8] sm:$0xff]
    %v661 = vld [vmem:[#allocation2 + $0x12f0] sm:$0xff]
    %v662 = vld [vmem:[#allocation2 + $0x12f8] sm:$0xff]
    %v663 = vld [vmem:[#allocation2 + $0x1300] sm:$0xff]
    %v664 = vld [vmem:[#allocation2 + $0x1308] sm:$0xff]
    %v665 = vld [vmem:[#allocation2 + $0x1310] sm:$0xff]
    %v666 = vld [vmem:[#allocation2 + $0x1318] sm:$0xff]
    %v667 = vld [vmem:[#allocation2 + $0x1320] sm:$0xff]
    %v668 = vld [vmem:[#allocation2 + $0x1328] sm:$0xff]
    %v669 = vld [vmem:[#allocation2 + $0x1330] sm:$0xff]
    %v670 = vld [vmem:[#allocation2 + $0x1338] sm:$0xff]
    %v671 = vld [vmem:[#allocation2 + $0x1340] sm:$0xff]
    %v672 = vld [vmem:[#allocation2 + $0x1348] sm:$0xff]
    %v673 = vld [vmem:[#allocation2 + $0x1350] sm:$0xff]
    %v674 = vld [vmem:[#allocation2 + $0x1358] sm:$0xff]
    %v675 = vld [vmem:[#allocation2 + $0x1360] sm:$0xff]
    %v676 = vld [vmem:[#allocation2 + $0x1368] sm:$0xff]
    %v677 = vld [vmem:[#allocation2 + $0x1370] sm:$0xff]
    %v678 = vld [vmem:[#allocation2 + $0x1378] sm:$0xff]
    %v679 = vld [vmem:[#allocation2 + $0x1380] sm:$0xff]
    %v680 = vld [vmem:[#allocation2 + $0x1388] sm:$0xff]
    %v681 = vld [vmem:[#allocation2 + $0x1390] sm:$0xff]
    %v682 = vld [vmem:[#allocation2 + $0x1398] sm:$0xff]
    %v683 = vld [vmem:[#allocation2 + $0x13a0] sm:$0xff]
    %v684 = vld [vmem:[#allocation2 + $0x13a8] sm:$0xff]
    %v685 = vld [vmem:[#allocation2 + $0x13b0] sm:$0xff]
    %v686 = vld [vmem:[#allocation2 + $0x13b8] sm:$0xff]
    %v687 = vld [vmem:[#allocation2 + $0x13c0] sm:$0xff]
    %v688 = vld [vmem:[#allocation2 + $0x13c8] sm:$0xff]
    %v689 = vld [vmem:[#allocation2 + $0x13d0] sm:$0xff]
    %v690 = vld [vmem:[#allocation2 + $0x13d8] sm:$0xff]
    %v691 = vld [vmem:[#allocation2 + $0x13e0] sm:$0xff]
    %v692 = vld [vmem:[#allocation2 + $0x13e8] sm:$0xff]
    %v693 = vld [vmem:[#allocation2 + $0x13f0] sm:$0xff]
    %v694 = vld [vmem:[#allocation2 + $0x13f8] sm:$0xff]
    %v695 = vld [vmem:[#allocation2 + $0x1400] sm:$0xff]
    %v696 = vld [vmem:[#allocation2 + $0x1408] sm:$0xff]
    %v697 = vld [vmem:[#allocation2 + $0x1410] sm:$0xff]
    %v698 = vld [vmem:[#allocation2 + $0x1418] sm:$0xff]
    %v699 = vld [vmem:[#allocation2 + $0x1420] sm:$0xff]
    %v700 = vld [vmem:[#allocation2 + $0x1428] sm:$0xff]
    %v701 = vld [vmem:[#allocation2 + $0x1430] sm:$0xff]
    %v702 = vld [vmem:[#allocation2 + $0x1438] sm:$0xff]
    %v703 = vld [vmem:[#allocation2 + $0x1440] sm:$0xff]
    %v704 = vld [vmem:[#allocation2 + $0x1448] sm:$0xff]
    %v705 = vld [vmem:[#allocation2 + $0x1450] sm:$0xff]
    %v706 = vld [vmem:[#allocation2 + $0x1458] sm:$0xff]
    %v707 = vld [vmem:[#allocation2 + $0x1460] sm:$0xff]
    %v708 = vld [vmem:[#allocation2 + $0x1468] sm:$0xff]
    %v709 = vld [vmem:[#allocation2 + $0x1470] sm:$0xff]
    %v710 = vld [vmem:[#allocation2 + $0x1478] sm:$0xff]
    %v711 = vld [vmem:[#allocation2 + $0x1480] sm:$0xff]
    %v712 = vld [vmem:[#allocation2 + $0x1488] sm:$0xff]
    %v713 = vld [vmem:[#allocation2 + $0x1490] sm:$0xff]
    %v714 = vld [vmem:[#allocation2 + $0x1498] sm:$0xff]
    %v715 = vld [vmem:[#allocation2 + $0x14a0] sm:$0xff]
    %v716 = vld [vmem:[#allocation2 + $0x14a8] sm:$0xff]
    %v717 = vld [vmem:[#allocation2 + $0x14b0] sm:$0xff]
    %v718 = vld [vmem:[#allocation2 + $0x14b8] sm:$0xff]
    %v719 = vld [vmem:[#allocation2 + $0x14c0] sm:$0xff]
    %v720 = vld [vmem:[#allocation2 + $0x14c8] sm:$0xff]
    %v721 = vld [vmem:[#allocation2 + $0x14d0] sm:$0xff]
    %v722 = vld [vmem:[#allocation2 + $0x14d8] sm:$0xff]
    %v723 = vld [vmem:[#allocation2 + $0x14e0] sm:$0xff]
    %v724 = vld [vmem:[#allocation2 + $0x14e8] sm:$0xff]
    %v725 = vld [vmem:[#allocation2 + $0x14f0] sm:$0xff]
    %v726 = vld [vmem:[#allocation2 + $0x14f8] sm:$0xff]
    %v727 = vld [vmem:[#allocation2 + $0x1500] sm:$0xff]
    %v728 = vld [vmem:[#allocation2 + $0x1508] sm:$0xff]
    %v729 = vld [vmem:[#allocation2 + $0x1510] sm:$0xff]
    %v730 = vld [vmem:[#allocation2 + $0x1518] sm:$0xff]
    %v731 = vld [vmem:[#allocation2 + $0x1520] sm:$0xff]
    %v732 = vld [vmem:[#allocation2 + $0x1528] sm:$0xff]
    %v733 = vld [vmem:[#allocation2 + $0x1530] sm:$0xff]
    %v734 = vld [vmem:[#allocation2 + $0x1538] sm:$0xff]
    %v735 = vld [vmem:[#allocation2 + $0x1540] sm:$0xff]
    %v736 = vld [vmem:[#allocation2 + $0x1548] sm:$0xff]
    %v737 = vld [vmem:[#allocation2 + $0x1550] sm:$0xff]
    %v738 = vld [vmem:[#allocation2 + $0x1558] sm:$0xff]
    %v739 = vld [vmem:[#allocation2 + $0x1560] sm:$0xff]
    %v740 = vld [vmem:[#allocation2 + $0x1568] sm:$0xff]
    %v741 = vld [vmem:[#allocation2 + $0x1570] sm:$0xff]
    %v742 = vld [vmem:[#allocation2 + $0x1578] sm:$0xff]
    %v743 = vld [vmem:[#allocation2 + $0x1580] sm:$0xff]
    %v744 = vld [vmem:[#allocation2 + $0x1588] sm:$0xff]
    %v745 = vld [vmem:[#allocation2 + $0x1590] sm:$0xff]
    %v746 = vld [vmem:[#allocation2 + $0x1598] sm:$0xff]
    %v747 = vld [vmem:[#allocation2 + $0x15a0] sm:$0xff]
    %v748 = vld [vmem:[#allocation2 + $0x15a8] sm:$0xff]
    %v749 = vld [vmem:[#allocation2 + $0x15b0] sm:$0xff]
    %v750 = vld [vmem:[#allocation2 + $0x15b8] sm:$0xff]
    %v751 = vld [vmem:[#allocation2 + $0x15c0] sm:$0xff]
    %v752 = vld [vmem:[#allocation2 + $0x15c8] sm:$0xff]
    %v753 = vld [vmem:[#allocation2 + $0x15d0] sm:$0xff]
    %v754 = vld [vmem:[#allocation2 + $0x15d8] sm:$0xff]
    %v755 = vld [vmem:[#allocation2 + $0x15e0] sm:$0xff]
    %v756 = vld [vmem:[#allocation2 + $0x15e8] sm:$0xff]
    %v757 = vld [vmem:[#allocation2 + $0x15f0] sm:$0xff]
    %v758 = vld [vmem:[#allocation2 + $0x15f8] sm:$0xff]
    %v759 = vld [vmem:[#allocation2 + $0x1600] sm:$0xff]
    %v760 = vld [vmem:[#allocation2 + $0x1608] sm:$0xff]
    %v761 = vld [vmem:[#allocation2 + $0x1610] sm:$0xff]
    %v762 = vld [vmem:[#allocation2 + $0x1618] sm:$0xff]
    %v763 = vld [vmem:[#allocation2 + $0x1620] sm:$0xff]
    %v764 = vld [vmem:[#allocation2 + $0x1628] sm:$0xff]
    %v765 = vld [vmem:[#allocation2 + $0x1630] sm:$0xff]
    %v766 = vld [vmem:[#allocation2 + $0x1638] sm:$0xff]
    %v767 = vld [vmem:[#allocation2 + $0x1640] sm:$0xff]
    %v768 = vld [vmem:[#allocation2 + $0x1648] sm:$0xff]
    %v769 = vld [vmem:[#allocation2 + $0x1650] sm:$0xff]
    %v770 = vld [vmem:[#allocation2 + $0x1658] sm:$0xff]
    %v771 = vld [vmem:[#allocation2 + $0x1660] sm:$0xff]
    %v772 = vld [vmem:[#allocation2 + $0x1668] sm:$0xff]
    %v773 = vld [vmem:[#allocation2 + $0x1670] sm:$0xff]
    %v774 = vld [vmem:[#allocation2 + $0x1678] sm:$0xff]
    %v775 = vld [vmem:[#allocation2 + $0x1680] sm:$0xff]
    %v776 = vld [vmem:[#allocation2 + $0x1688] sm:$0xff]
    %v777 = vld [vmem:[#allocation2 + $0x1690] sm:$0xff]
    %v778 = vld [vmem:[#allocation2 + $0x1698] sm:$0xff]
    %v779 = vld [vmem:[#allocation2 + $0x16a0] sm:$0xff]
    %v780 = vld [vmem:[#allocation2 + $0x16a8] sm:$0xff]
    %v781 = vld [vmem:[#allocation2 + $0x16b0] sm:$0xff]
    %v782 = vld [vmem:[#allocation2 + $0x16b8] sm:$0xff]
    %v783 = vld [vmem:[#allocation2 + $0x16c0] sm:$0xff]
    %v784 = vld [vmem:[#allocation2 + $0x16c8] sm:$0xff]
    %v785 = vld [vmem:[#allocation2 + $0x16d0] sm:$0xff]
    %v786 = vld [vmem:[#allocation2 + $0x16d8] sm:$0xff]
    %v787 = vld [vmem:[#allocation2 + $0x16e0] sm:$0xff]
    %v788 = vld [vmem:[#allocation2 + $0x16e8] sm:$0xff]
    %v789 = vld [vmem:[#allocation2 + $0x16f0] sm:$0xff]
    %v790 = vld [vmem:[#allocation2 + $0x16f8] sm:$0xff]
    %v791 = vld [vmem:[#allocation2 + $0x1700] sm:$0xff]
    %v792 = vld [vmem:[#allocation2 + $0x1708] sm:$0xff]
    %v793 = vld [vmem:[#allocation2 + $0x1710] sm:$0xff]
    %v794 = vld [vmem:[#allocation2 + $0x1718] sm:$0xff]
    %v795 = vld [vmem:[#allocation2 + $0x1720] sm:$0xff]
    %v796 = vld [vmem:[#allocation2 + $0x1728] sm:$0xff]
    %v797 = vld [vmem:[#allocation2 + $0x1730] sm:$0xff]
    %v798 = vld [vmem:[#allocation2 + $0x1738] sm:$0xff]
    %v799 = vld [vmem:[#allocation2 + $0x1740] sm:$0xff]
    %v800 = vld [vmem:[#allocation2 + $0x1748] sm:$0xff]
    %v801 = vld [vmem:[#allocation2 + $0x1750] sm:$0xff]
    %v802 = vld [vmem:[#allocation2 + $0x1758] sm:$0xff]
    %v803 = vld [vmem:[#allocation2 + $0x1760] sm:$0xff]
    %v804 = vld [vmem:[#allocation2 + $0x1768] sm:$0xff]
    %v805 = vld [vmem:[#allocation2 + $0x1770] sm:$0xff]
    %v806 = vld [vmem:[#allocation2 + $0x1778] sm:$0xff]
    %v807 = vld [vmem:[#allocation2 + $0x1780] sm:$0xff]
    %v808 = vld [vmem:[#allocation2 + $0x1788] sm:$0xff]
    %v809 = vld [vmem:[#allocation2 + $0x1790] sm:$0xff]
    %v810 = vld [vmem:[#allocation2 + $0x1798] sm:$0xff]
    %v811 = vld [vmem:[#allocation2 + $0x17a0] sm:$0xff]
    %v812 = vld [vmem:[#allocation2 + $0x17a8] sm:$0xff]
    %v813 = vld [vmem:[#allocation2 + $0x17b0] sm:$0xff]
    %v814 = vld [vmem:[#allocation2 + $0x17b8] sm:$0xff]
    %v815 = vld [vmem:[#allocation2 + $0x17c0] sm:$0xff]
    %v816 = vld [vmem:[#allocation2 + $0x17c8] sm:$0xff]
    %v817 = vld [vmem:[#allocation2 + $0x17d0] sm:$0xff]
    %v818 = vld [vmem:[#allocation2 + $0x17d8] sm:$0xff]
    %v819 = vld [vmem:[#allocation2 + $0x17e0] sm:$0xff]
    %v820 = vld [vmem:[#allocation2 + $0x17e8] sm:$0xff]
    %v821 = vld [vmem:[#allocation2 + $0x17f0] sm:$0xff]
    %v822 = vld [vmem:[#allocation2 + $0x17f8] sm:$0xff]
    %v823 = vld [vmem:[#allocation2 + $0x1800] sm:$0xff]
    %v824 = vld [vmem:[#allocation2 + $0x1808] sm:$0xff]
    %v825 = vld [vmem:[#allocation2 + $0x1810] sm:$0xff]
    %v826 = vld [vmem:[#allocation2 + $0x1818] sm:$0xff]
    %v827 = vld [vmem:[#allocation2 + $0x1820] sm:$0xff]
    %v828 = vld [vmem:[#allocation2 + $0x1828] sm:$0xff]
    %v829 = vld [vmem:[#allocation2 + $0x1830] sm:$0xff]
    %v830 = vld [vmem:[#allocation2 + $0x1838] sm:$0xff]
    %v831 = vld [vmem:[#allocation2 + $0x1840] sm:$0xff]
    %v832 = vld [vmem:[#allocation2 + $0x1848] sm:$0xff]
    %v833 = vld [vmem:[#allocation2 + $0x1850] sm:$0xff]
    %v834 = vld [vmem:[#allocation2 + $0x1858] sm:$0xff]
    %v835 = vld [vmem:[#allocation2 + $0x1860] sm:$0xff]
    %v836 = vld [vmem:[#allocation2 + $0x1868] sm:$0xff]
    %v837 = vld [vmem:[#allocation2 + $0x1870] sm:$0xff]
    %v838 = vld [vmem:[#allocation2 + $0x1878] sm:$0xff]
    %v839 = vld [vmem:[#allocation2 + $0x1880] sm:$0xff]
    %v840 = vld [vmem:[#allocation2 + $0x1888] sm:$0xff]
    %v841 = vld [vmem:[#allocation2 + $0x1890] sm:$0xff]
    %v842 = vld [vmem:[#allocation2 + $0x1898] sm:$0xff]
    %v843 = vld [vmem:[#allocation2 + $0x18a0] sm:$0xff]
    %v844 = vld [vmem:[#allocation2 + $0x18a8] sm:$0xff]
    %v845 = vld [vmem:[#allocation2 + $0x18b0] sm:$0xff]
    %v846 = vld [vmem:[#allocation2 + $0x18b8] sm:$0xff]
    %v847 = vld [vmem:[#allocation2 + $0x18c0] sm:$0xff]
    %v848 = vld [vmem:[#allocation2 + $0x18c8] sm:$0xff]
    %v849 = vld [vmem:[#allocation2 + $0x18d0] sm:$0xff]
    %v850 = vld [vmem:[#allocation2 + $0x18d8] sm:$0xff]
    %v851 = vld [vmem:[#allocation2 + $0x18e0] sm:$0xff]
    %v852 = vld [vmem:[#allocation2 + $0x18e8] sm:$0xff]
    %v853 = vld [vmem:[#allocation2 + $0x18f0] sm:$0xff]
    %v854 = vld [vmem:[#allocation2 + $0x18f8] sm:$0xff]
    %v855 = vld [vmem:[#allocation2 + $0x1900] sm:$0xff]
    %v856 = vld [vmem:[#allocation2 + $0x1908] sm:$0xff]
    %v857 = vld [vmem:[#allocation2 + $0x1910] sm:$0xff]
    %v858 = vld [vmem:[#allocation2 + $0x1918] sm:$0xff]
    %v859 = vld [vmem:[#allocation2 + $0x1920] sm:$0xff]
    %v860 = vld [vmem:[#allocation2 + $0x1928] sm:$0xff]
    %v861 = vld [vmem:[#allocation2 + $0x1930] sm:$0xff]
    %v862 = vld [vmem:[#allocation2 + $0x1938] sm:$0xff]
    %v863 = vld [vmem:[#allocation2 + $0x1940] sm:$0xff]
    %v864 = vld [vmem:[#allocation2 + $0x1948] sm:$0xff]
    %v865 = vld [vmem:[#allocation2 + $0x1950] sm:$0xff]
    %v866 = vld [vmem:[#allocation2 + $0x1958] sm:$0xff]
    %v867 = vld [vmem:[#allocation2 + $0x1960] sm:$0xff]
    %v868 = vld [vmem:[#allocation2 + $0x1968] sm:$0xff]
    %v869 = vld [vmem:[#allocation2 + $0x1970] sm:$0xff]
    %v870 = vld [vmem:[#allocation2 + $0x1978] sm:$0xff]
    %v871 = vld [vmem:[#allocation2 + $0x1980] sm:$0xff]
    %v872 = vld [vmem:[#allocation2 + $0x1988] sm:$0xff]
    %v873 = vld [vmem:[#allocation2 + $0x1990] sm:$0xff]
    %v874 = vld [vmem:[#allocation2 + $0x1998] sm:$0xff]
    %v875 = vld [vmem:[#allocation2 + $0x19a0] sm:$0xff]
    %v876 = vld [vmem:[#allocation2 + $0x19a8] sm:$0xff]
    %v877 = vld [vmem:[#allocation2 + $0x19b0] sm:$0xff]
    %v878 = vld [vmem:[#allocation2 + $0x19b8] sm:$0xff]
    %v879 = vld [vmem:[#allocation2 + $0x19c0] sm:$0xff]
    %v880 = vld [vmem:[#allocation2 + $0x19c8] sm:$0xff]
    %v881 = vld [vmem:[#allocation2 + $0x19d0] sm:$0xff]
    %v882 = vld [vmem:[#allocation2 + $0x19d8] sm:$0xff]
    %v883 = vld [vmem:[#allocation2 + $0x19e0] sm:$0xff]
    %v884 = vld [vmem:[#allocation2 + $0x19e8] sm:$0xff]
    %v885 = vld [vmem:[#allocation2 + $0x19f0] sm:$0xff]
    %v886 = vld [vmem:[#allocation2 + $0x19f8] sm:$0xff]
    %v887 = vld [vmem:[#allocation2 + $0x1a00] sm:$0xff]
    %v888 = vld [vmem:[#allocation2 + $0x1a08] sm:$0xff]
    %v889 = vld [vmem:[#allocation2 + $0x1a10] sm:$0xff]
    %v890 = vld [vmem:[#allocation2 + $0x1a18] sm:$0xff]
    %v891 = vld [vmem:[#allocation2 + $0x1a20] sm:$0xff]
    %v892 = vld [vmem:[#allocation2 + $0x1a28] sm:$0xff]
    %v893 = vld [vmem:[#allocation2 + $0x1a30] sm:$0xff]
    %v894 = vld [vmem:[#allocation2 + $0x1a38] sm:$0xff]
    %v895 = vld [vmem:[#allocation2 + $0x1a40] sm:$0xff]
    %v896 = vld [vmem:[#allocation2 + $0x1a48] sm:$0xff]
    %v897 = vld [vmem:[#allocation2 + $0x1a50] sm:$0xff]
    %v898 = vld [vmem:[#allocation2 + $0x1a58] sm:$0xff]
    %v899 = vld [vmem:[#allocation2 + $0x1a60] sm:$0xff]
    %v900 = vld [vmem:[#allocation2 + $0x1a68] sm:$0xff]
    %v901 = vld [vmem:[#allocation2 + $0x1a70] sm:$0xff]
    %v902 = vld [vmem:[#allocation2 + $0x1a78] sm:$0xff]
    %v903 = vld [vmem:[#allocation2 + $0x1a80] sm:$0xff]
    %v904 = vld [vmem:[#allocation2 + $0x1a88] sm:$0xff]
    %v905 = vld [vmem:[#allocation2 + $0x1a90] sm:$0xff]
    %v906 = vld [vmem:[#allocation2 + $0x1a98] sm:$0xff]
    %v907 = vld [vmem:[#allocation2 + $0x1aa0] sm:$0xff]
    %v908 = vld [vmem:[#allocation2 + $0x1aa8] sm:$0xff]
    %v909 = vld [vmem:[#allocation2 + $0x1ab0] sm:$0xff]
    %v910 = vld [vmem:[#allocation2 + $0x1ab8] sm:$0xff]
    %v911 = vld [vmem:[#allocation2 + $0x1ac0] sm:$0xff]
    %v912 = vld [vmem:[#allocation2 + $0x1ac8] sm:$0xff]
    %v913 = vld [vmem:[#allocation2 + $0x1ad0] sm:$0xff]
    %v914 = vld [vmem:[#allocation2 + $0x1ad8] sm:$0xff]
    %v915 = vld [vmem:[#allocation2 + $0x1ae0] sm:$0xff]
    %v916 = vld [vmem:[#allocation2 + $0x1ae8] sm:$0xff]
    %v917 = vld [vmem:[#allocation2 + $0x1af0] sm:$0xff]
    %v918 = vld [vmem:[#allocation2 + $0x1af8] sm:$0xff]
    %v933 = vunpack.c.l.b16 %v41
    %v934 = vunpack.c.h.b16 %v41
    %v935 = vunpack.c.l.b16 %v42
    %v936 = vunpack.c.h.b16 %v42
    %v937 = vunpack.c.l.b16 %v43
    %v938 = vunpack.c.h.b16 %v43
    %v939 = vunpack.c.l.b16 %v44
    %v940 = vunpack.c.h.b16 %v44
    %v941 = vunpack.c.l.b16 %v45
    %v942 = vunpack.c.h.b16 %v45
    %v943 = vunpack.c.l.b16 %v46
    %v944 = vunpack.c.h.b16 %v46
    %v945 = vunpack.c.l.b16 %v47
    %v946 = vunpack.c.h.b16 %v47
    %v947 = vunpack.c.l.b16 %v48
    %v948 = vunpack.c.h.b16 %v48
    %v949 = vunpack.c.l.b16 %v49
    %v950 = vunpack.c.h.b16 %v49
    %v951 = vunpack.c.l.b16 %v50
    %v952 = vunpack.c.h.b16 %v50
    %v953 = vunpack.c.l.b16 %v51
    %v954 = vunpack.c.h.b16 %v51
    %v955 = vunpack.c.l.b16 %v52
    %v956 = vunpack.c.h.b16 %v52
    %v957 = vunpack.c.l.b16 %v53
    %v958 = vunpack.c.h.b16 %v53
    %v959 = vunpack.c.l.b16 %v54
    %v960 = vunpack.c.h.b16 %v54
    %v961 = vpack.c.b16 %v947, %v933
    %v962 = vpack.c.b16 %v948, %v934
    %v963 = vpack.c.b16 %v949, %v935
    %v964 = vpack.c.b16 %v950, %v936
    %v965 = vpack.c.b16 %v951, %v937
    %v966 = vpack.c.b16 %v952, %v938
    %v967 = vpack.c.b16 %v953, %v939
    %v968 = vpack.c.b16 %v954, %v940
    %v969 = vpack.c.b16 %v955, %v941
    %v970 = vpack.c.b16 %v956, %v942
    %v971 = vpack.c.b16 %v957, %v943
    %v972 = vpack.c.b16 %v958, %v944
    %v973 = vpack.c.b16 %v959, %v945
    %v974 = vpack.c.b16 %v960, %v946
    %v1852 = vunpack.c.l.b16 %v55
    %v1853 = vunpack.c.h.b16 %v55
    %v1854 = vunpack.c.l.b16 %v56
    %v1855 = vunpack.c.h.b16 %v56
    %v1856 = vunpack.c.l.b16 %v57
    %v1857 = vunpack.c.h.b16 %v57
    %v1858 = vunpack.c.l.b16 %v58
    %v1859 = vunpack.c.h.b16 %v58
    %v1860 = vunpack.c.l.b16 %v59
    %v1861 = vunpack.c.h.b16 %v59
    %v1862 = vunpack.c.l.b16 %v60
    %v1863 = vunpack.c.h.b16 %v60
    %v1864 = vunpack.c.l.b16 %v61
    %v1865 = vunpack.c.h.b16 %v61
    %v1866 = vunpack.c.l.b16 %v62
    %v1867 = vunpack.c.h.b16 %v62
    %v1868 = vunpack.c.l.b16 %v63
    %v1869 = vunpack.c.h.b16 %v63
    %v1870 = vunpack.c.l.b16 %v64
    %v1871 = vunpack.c.h.b16 %v64
    %v1872 = vunpack.c.l.b16 %v65
    %v1873 = vunpack.c.h.b16 %v65
    %v1874 = vunpack.c.l.b16 %v66
    %v1875 = vunpack.c.h.b16 %v66
    %v1876 = vunpack.c.l.b16 %v67
    %v1877 = vunpack.c.h.b16 %v67
    %v1878 = vunpack.c.l.b16 %v68
    %v1879 = vunpack.c.h.b16 %v68
    %v1880 = vunpack.c.l.b16 %v69
    %v1881 = vunpack.c.h.b16 %v69
    %v1882 = vunpack.c.l.b16 %v70
    %v1883 = vunpack.c.h.b16 %v70
    %v1884 = vunpack.c.l.b16 %v71
    %v1885 = vunpack.c.h.b16 %v71
    %v1886 = vunpack.c.l.b16 %v72
    %v1887 = vunpack.c.h.b16 %v72
    %v1888 = vunpack.c.l.b16 %v73
    %v1889 = vunpack.c.h.b16 %v73
    %v1890 = vunpack.c.l.b16 %v74
    %v1891 = vunpack.c.h.b16 %v74
    %v1892 = vunpack.c.l.b16 %v75
    %v1893 = vunpack.c.h.b16 %v75
    %v1894 = vunpack.c.l.b16 %v76
    %v1895 = vunpack.c.h.b16 %v76
    %v1896 = vunpack.c.l.b16 %v77
    %v1897 = vunpack.c.h.b16 %v77
    %v1898 = vunpack.c.l.b16 %v78
    %v1899 = vunpack.c.h.b16 %v78
    %v1900 = vunpack.c.l.b16 %v79
    %v1901 = vunpack.c.h.b16 %v79
    %v1902 = vunpack.c.l.b16 %v80
    %v1903 = vunpack.c.h.b16 %v80
    %v1904 = vunpack.c.l.b16 %v81
    %v1905 = vunpack.c.h.b16 %v81
    %v1906 = vunpack.c.l.b16 %v82
    %v1907 = vunpack.c.h.b16 %v82
    %v1908 = vunpack.c.l.b16 %v83
    %v1909 = vunpack.c.h.b16 %v83
    %v1910 = vunpack.c.l.b16 %v84
    %v1911 = vunpack.c.h.b16 %v84
    %v1912 = vunpack.c.l.b16 %v85
    %v1913 = vunpack.c.h.b16 %v85
    %v1914 = vunpack.c.l.b16 %v86
    %v1915 = vunpack.c.h.b16 %v86
    %v1916 = vunpack.c.l.b16 %v87
    %v1917 = vunpack.c.h.b16 %v87
    %v1918 = vunpack.c.l.b16 %v88
    %v1919 = vunpack.c.h.b16 %v88
    %v1920 = vunpack.c.l.b16 %v89
    %v1921 = vunpack.c.h.b16 %v89
    %v1922 = vunpack.c.l.b16 %v90
    %v1923 = vunpack.c.h.b16 %v90
    %v1924 = vunpack.c.l.b16 %v91
    %v1925 = vunpack.c.h.b16 %v91
    %v1926 = vunpack.c.l.b16 %v92
    %v1927 = vunpack.c.h.b16 %v92
    %v1928 = vunpack.c.l.b16 %v93
    %v1929 = vunpack.c.h.b16 %v93
    %v1930 = vunpack.c.l.b16 %v94
    %v1931 = vunpack.c.h.b16 %v94
    %v1932 = vunpack.c.l.b16 %v95
    %v1933 = vunpack.c.h.b16 %v95
    %v1934 = vunpack.c.l.b16 %v96
    %v1935 = vunpack.c.h.b16 %v96
    %v1936 = vunpack.c.l.b16 %v97
    %v1937 = vunpack.c.h.b16 %v97
    %v1938 = vunpack.c.l.b16 %v98
    %v1939 = vunpack.c.h.b16 %v98
    %v1940 = vunpack.c.l.b16 %v99
    %v1941 = vunpack.c.h.b16 %v99
    %v1942 = vunpack.c.l.b16 %v100
    %v1943 = vunpack.c.h.b16 %v100
    %v1944 = vunpack.c.l.b16 %v101
    %v1945 = vunpack.c.h.b16 %v101
    %v1946 = vunpack.c.l.b16 %v102
    %v1947 = vunpack.c.h.b16 %v102
    %v1948 = vunpack.c.l.b16 %v103
    %v1949 = vunpack.c.h.b16 %v103
    %v1950 = vunpack.c.l.b16 %v104
    %v1951 = vunpack.c.h.b16 %v104
    %v1952 = vunpack.c.l.b16 %v105
    %v1953 = vunpack.c.h.b16 %v105
    %v1954 = vunpack.c.l.b16 %v106
    %v1955 = vunpack.c.h.b16 %v106
    %v1956 = vunpack.c.l.b16 %v107
    %v1957 = vunpack.c.h.b16 %v107
    %v1958 = vunpack.c.l.b16 %v108
    %v1959 = vunpack.c.h.b16 %v108
    %v1960 = vunpack.c.l.b16 %v109
    %v1961 = vunpack.c.h.b16 %v109
    %v1962 = vunpack.c.l.b16 %v110
    %v1963 = vunpack.c.h.b16 %v110
    %v1964 = vunpack.c.l.b16 %v111
    %v1965 = vunpack.c.h.b16 %v111
    %v1966 = vunpack.c.l.b16 %v112
    %v1967 = vunpack.c.h.b16 %v112
    %v1968 = vunpack.c.l.b16 %v113
    %v1969 = vunpack.c.h.b16 %v113
    %v1970 = vunpack.c.l.b16 %v114
    %v1971 = vunpack.c.h.b16 %v114
    %v1972 = vunpack.c.l.b16 %v115
    %v1973 = vunpack.c.h.b16 %v115
    %v1974 = vunpack.c.l.b16 %v116
    %v1975 = vunpack.c.h.b16 %v116
    %v1976 = vunpack.c.l.b16 %v117
    %v1977 = vunpack.c.h.b16 %v117
    %v1978 = vunpack.c.l.b16 %v118
    %v1979 = vunpack.c.h.b16 %v118
    %v1980 = vunpack.c.l.b16 %v119
    %v1981 = vunpack.c.h.b16 %v119
    %v1982 = vunpack.c.l.b16 %v120
    %v1983 = vunpack.c.h.b16 %v120
    %v1984 = vunpack.c.l.b16 %v121
    %v1985 = vunpack.c.h.b16 %v121
    %v1986 = vunpack.c.l.b16 %v122
    %v1987 = vunpack.c.h.b16 %v122
    %v1988 = vunpack.c.l.b16 %v123
    %v1989 = vunpack.c.h.b16 %v123
    %v1990 = vunpack.c.l.b16 %v124
    %v1991 = vunpack.c.h.b16 %v124
    %v1992 = vunpack.c.l.b16 %v125
    %v1993 = vunpack.c.h.b16 %v125
    %v1994 = vunpack.c.l.b16 %v126
    %v1995 = vunpack.c.h.b16 %v126
    %v1996 = vunpack.c.l.b16 %v127
    %v1997 = vunpack.c.h.b16 %v127
    %v1998 = vunpack.c.l.b16 %v128
    %v1999 = vunpack.c.h.b16 %v128
    %v2000 = vunpack.c.l.b16 %v129
    %v2001 = vunpack.c.h.b16 %v129
    %v2002 = vunpack.c.l.b16 %v130
    %v2003 = vunpack.c.h.b16 %v130
    %v2004 = vunpack.c.l.b16 %v131
    %v2005 = vunpack.c.h.b16 %v131
    %v2006 = vunpack.c.l.b16 %v132
    %v2007 = vunpack.c.h.b16 %v132
    %v2008 = vunpack.c.l.b16 %v133
    %v2009 = vunpack.c.h.b16 %v133
    %v2010 = vunpack.c.l.b16 %v134
    %v2011 = vunpack.c.h.b16 %v134
    %v2012 = vunpack.c.l.b16 %v135
    %v2013 = vunpack.c.h.b16 %v135
    %v2014 = vunpack.c.l.b16 %v136
    %v2015 = vunpack.c.h.b16 %v136
    %v2016 = vunpack.c.l.b16 %v137
    %v2017 = vunpack.c.h.b16 %v137
    %v2018 = vunpack.c.l.b16 %v138
    %v2019 = vunpack.c.h.b16 %v138
    %v2020 = vunpack.c.l.b16 %v139
    %v2021 = vunpack.c.h.b16 %v139
    %v2022 = vunpack.c.l.b16 %v140
    %v2023 = vunpack.c.h.b16 %v140
    %v2024 = vunpack.c.l.b16 %v141
    %v2025 = vunpack.c.h.b16 %v141
    %v2026 = vunpack.c.l.b16 %v142
    %v2027 = vunpack.c.h.b16 %v142
    %v2028 = vunpack.c.l.b16 %v143
    %v2029 = vunpack.c.h.b16 %v143
    %v2030 = vunpack.c.l.b16 %v144
    %v2031 = vunpack.c.h.b16 %v144
    %v2032 = vunpack.c.l.b16 %v145
    %v2033 = vunpack.c.h.b16 %v145
    %v2034 = vunpack.c.l.b16 %v146
    %v2035 = vunpack.c.h.b16 %v146
    %v2036 = vunpack.c.l.b16 %v147
    %v2037 = vunpack.c.h.b16 %v147
    %v2038 = vunpack.c.l.b16 %v148
    %v2039 = vunpack.c.h.b16 %v148
    %v2040 = vunpack.c.l.b16 %v149
    %v2041 = vunpack.c.h.b16 %v149
    %v2042 = vunpack.c.l.b16 %v150
    %v2043 = vunpack.c.h.b16 %v150
    %v2044 = vunpack.c.l.b16 %v151
    %v2045 = vunpack.c.h.b16 %v151
    %v2046 = vunpack.c.l.b16 %v152
    %v2047 = vunpack.c.h.b16 %v152
    %v2048 = vunpack.c.l.b16 %v153
    %v2049 = vunpack.c.h.b16 %v153
    %v2050 = vunpack.c.l.b16 %v154
    %v2051 = vunpack.c.h.b16 %v154
    %v2052 = vunpack.c.l.b16 %v155
    %v2053 = vunpack.c.h.b16 %v155
    %v2054 = vunpack.c.l.b16 %v156
    %v2055 = vunpack.c.h.b16 %v156
    %v2056 = vunpack.c.l.b16 %v157
    %v2057 = vunpack.c.h.b16 %v157
    %v2058 = vunpack.c.l.b16 %v158
    %v2059 = vunpack.c.h.b16 %v158
    %v2060 = vunpack.c.l.b16 %v159
    %v2061 = vunpack.c.h.b16 %v159
    %v2062 = vunpack.c.l.b16 %v160
    %v2063 = vunpack.c.h.b16 %v160
    %v2064 = vunpack.c.l.b16 %v161
    %v2065 = vunpack.c.h.b16 %v161
    %v2066 = vunpack.c.l.b16 %v162
    %v2067 = vunpack.c.h.b16 %v162
    %v2068 = vunpack.c.l.b16 %v163
    %v2069 = vunpack.c.h.b16 %v163
    %v2070 = vunpack.c.l.b16 %v164
    %v2071 = vunpack.c.h.b16 %v164
    %v2072 = vunpack.c.l.b16 %v165
    %v2073 = vunpack.c.h.b16 %v165
    %v2074 = vunpack.c.l.b16 %v166
    %v2075 = vunpack.c.h.b16 %v166
    %v2076 = vunpack.c.l.b16 %v167
    %v2077 = vunpack.c.h.b16 %v167
    %v2078 = vunpack.c.l.b16 %v168
    %v2079 = vunpack.c.h.b16 %v168
    %v2080 = vunpack.c.l.b16 %v169
    %v2081 = vunpack.c.h.b16 %v169
    %v2082 = vunpack.c.l.b16 %v170
    %v2083 = vunpack.c.h.b16 %v170
    %v2084 = vunpack.c.l.b16 %v171
    %v2085 = vunpack.c.h.b16 %v171
    %v2086 = vunpack.c.l.b16 %v172
    %v2087 = vunpack.c.h.b16 %v172
    %v2088 = vunpack.c.l.b16 %v173
    %v2089 = vunpack.c.h.b16 %v173
    %v2090 = vunpack.c.l.b16 %v174
    %v2091 = vunpack.c.h.b16 %v174
    %v2092 = vunpack.c.l.b16 %v175
    %v2093 = vunpack.c.h.b16 %v175
    %v2094 = vunpack.c.l.b16 %v176
    %v2095 = vunpack.c.h.b16 %v176
    %v2096 = vunpack.c.l.b16 %v177
    %v2097 = vunpack.c.h.b16 %v177
    %v2098 = vunpack.c.l.b16 %v178
    %v2099 = vunpack.c.h.b16 %v178
    %v2100 = vunpack.c.l.b16 %v179
    %v2101 = vunpack.c.h.b16 %v179
    %v2102 = vunpack.c.l.b16 %v180
    %v2103 = vunpack.c.h.b16 %v180
    %v2104 = vunpack.c.l.b16 %v181
    %v2105 = vunpack.c.h.b16 %v181
    %v2106 = vunpack.c.l.b16 %v182
    %v2107 = vunpack.c.h.b16 %v182
    %v2108 = vunpack.c.l.b16 %v183
    %v2109 = vunpack.c.h.b16 %v183
    %v2110 = vunpack.c.l.b16 %v184
    %v2111 = vunpack.c.h.b16 %v184
    %v2112 = vunpack.c.l.b16 %v185
    %v2113 = vunpack.c.h.b16 %v185
    %v2114 = vunpack.c.l.b16 %v186
    %v2115 = vunpack.c.h.b16 %v186
    %v2116 = vunpack.c.l.b16 %v187
    %v2117 = vunpack.c.h.b16 %v187
    %v2118 = vunpack.c.l.b16 %v188
    %v2119 = vunpack.c.h.b16 %v188
    %v2120 = vunpack.c.l.b16 %v189
    %v2121 = vunpack.c.h.b16 %v189
    %v2122 = vunpack.c.l.b16 %v190
    %v2123 = vunpack.c.h.b16 %v190
    %v2124 = vunpack.c.l.b16 %v191
    %v2125 = vunpack.c.h.b16 %v191
    %v2126 = vunpack.c.l.b16 %v192
    %v2127 = vunpack.c.h.b16 %v192
    %v2128 = vunpack.c.l.b16 %v193
    %v2129 = vunpack.c.h.b16 %v193
    %v2130 = vunpack.c.l.b16 %v194
    %v2131 = vunpack.c.h.b16 %v194
    %v2132 = vunpack.c.l.b16 %v195
    %v2133 = vunpack.c.h.b16 %v195
    %v2134 = vunpack.c.l.b16 %v196
    %v2135 = vunpack.c.h.b16 %v196
    %v2136 = vunpack.c.l.b16 %v197
    %v2137 = vunpack.c.h.b16 %v197
    %v2138 = vunpack.c.l.b16 %v198
    %v2139 = vunpack.c.h.b16 %v198
    %v2140 = vunpack.c.l.b16 %v199
    %v2141 = vunpack.c.h.b16 %v199
    %v2142 = vunpack.c.l.b16 %v200
    %v2143 = vunpack.c.h.b16 %v200
    %v2144 = vunpack.c.l.b16 %v201
    %v2145 = vunpack.c.h.b16 %v201
    %v2146 = vunpack.c.l.b16 %v202
    %v2147 = vunpack.c.h.b16 %v202
    %v2148 = vunpack.c.l.b16 %v203
    %v2149 = vunpack.c.h.b16 %v203
    %v2150 = vunpack.c.l.b16 %v204
    %v2151 = vunpack.c.h.b16 %v204
    %v2152 = vunpack.c.l.b16 %v205
    %v2153 = vunpack.c.h.b16 %v205
    %v2154 = vunpack.c.l.b16 %v206
    %v2155 = vunpack.c.h.b16 %v206
    %v2156 = vunpack.c.l.b16 %v207
    %v2157 = vunpack.c.h.b16 %v207
    %v2158 = vunpack.c.l.b16 %v208
    %v2159 = vunpack.c.h.b16 %v208
    %v2160 = vunpack.c.l.b16 %v209
    %v2161 = vunpack.c.h.b16 %v209
    %v2162 = vunpack.c.l.b16 %v210
    %v2163 = vunpack.c.h.b16 %v210
    %v2164 = vunpack.c.l.b16 %v211
    %v2165 = vunpack.c.h.b16 %v211
    %v2166 = vunpack.c.l.b16 %v212
    %v2167 = vunpack.c.h.b16 %v212
    %v2168 = vunpack.c.l.b16 %v213
    %v2169 = vunpack.c.h.b16 %v213
    %v2170 = vunpack.c.l.b16 %v214
    %v2171 = vunpack.c.h.b16 %v214
    %v2172 = vunpack.c.l.b16 %v215
    %v2173 = vunpack.c.h.b16 %v215
    %v2174 = vunpack.c.l.b16 %v216
    %v2175 = vunpack.c.h.b16 %v216
    %v2176 = vunpack.c.l.b16 %v217
    %v2177 = vunpack.c.h.b16 %v217
    %v2178 = vunpack.c.l.b16 %v218
    %v2179 = vunpack.c.h.b16 %v218
    %v2180 = vunpack.c.l.b16 %v219
    %v2181 = vunpack.c.h.b16 %v219
    %v2182 = vunpack.c.l.b16 %v220
    %v2183 = vunpack.c.h.b16 %v220
    %v2184 = vunpack.c.l.b16 %v221
    %v2185 = vunpack.c.h.b16 %v221
    %v2186 = vunpack.c.l.b16 %v222
    %v2187 = vunpack.c.h.b16 %v222
    %v2188 = vunpack.c.l.b16 %v223
    %v2189 = vunpack.c.h.b16 %v223
    %v2190 = vunpack.c.l.b16 %v224
    %v2191 = vunpack.c.h.b16 %v224
    %v2192 = vunpack.c.l.b16 %v225
    %v2193 = vunpack.c.h.b16 %v225
    %v2194 = vunpack.c.l.b16 %v226
    %v2195 = vunpack.c.h.b16 %v226
    %v2196 = vunpack.c.l.b16 %v227
    %v2197 = vunpack.c.h.b16 %v227
    %v2198 = vunpack.c.l.b16 %v228
    %v2199 = vunpack.c.h.b16 %v228
    %v2200 = vunpack.c.l.b16 %v229
    %v2201 = vunpack.c.h.b16 %v229
    %v2202 = vunpack.c.l.b16 %v230
    %v2203 = vunpack.c.h.b16 %v230
    %v2204 = vunpack.c.l.b16 %v231
    %v2205 = vunpack.c.h.b16 %v231
    %v2206 = vunpack.c.l.b16 %v232
    %v2207 = vunpack.c.h.b16 %v232
    %v2208 = vunpack.c.l.b16 %v233
    %v2209 = vunpack.c.h.b16 %v233
    %v2210 = vunpack.c.l.b16 %v234
    %v2211 = vunpack.c.h.b16 %v234
    %v2212 = vunpack.c.l.b16 %v235
    %v2213 = vunpack.c.h.b16 %v235
    %v2214 = vunpack.c.l.b16 %v236
    %v2215 = vunpack.c.h.b16 %v236
    %v2216 = vunpack.c.l.b16 %v237
    %v2217 = vunpack.c.h.b16 %v237
    %v2218 = vunpack.c.l.b16 %v238
    %v2219 = vunpack.c.h.b16 %v238
    %v2220 = vunpack.c.l.b16 %v239
    %v2221 = vunpack.c.h.b16 %v239
    %v2222 = vunpack.c.l.b16 %v240
    %v2223 = vunpack.c.h.b16 %v240
    %v2224 = vunpack.c.l.b16 %v241
    %v2225 = vunpack.c.h.b16 %v241
    %v2226 = vunpack.c.l.b16 %v242
    %v2227 = vunpack.c.h.b16 %v242
    %v2228 = vunpack.c.l.b16 %v243
    %v2229 = vunpack.c.h.b16 %v243
    %v2230 = vunpack.c.l.b16 %v244
    %v2231 = vunpack.c.h.b16 %v244
    %v2232 = vunpack.c.l.b16 %v245
    %v2233 = vunpack.c.h.b16 %v245
    %v2234 = vunpack.c.l.b16 %v246
    %v2235 = vunpack.c.h.b16 %v246
    %v2236 = vunpack.c.l.b16 %v247
    %v2237 = vunpack.c.h.b16 %v247
    %v2238 = vunpack.c.l.b16 %v248
    %v2239 = vunpack.c.h.b16 %v248
    %v2240 = vunpack.c.l.b16 %v249
    %v2241 = vunpack.c.h.b16 %v249
    %v2242 = vunpack.c.l.b16 %v250
    %v2243 = vunpack.c.h.b16 %v250
    %v2244 = vunpack.c.l.b16 %v251
    %v2245 = vunpack.c.h.b16 %v251
    %v2246 = vunpack.c.l.b16 %v252
    %v2247 = vunpack.c.h.b16 %v252
    %v2248 = vunpack.c.l.b16 %v253
    %v2249 = vunpack.c.h.b16 %v253
    %v2250 = vunpack.c.l.b16 %v254
    %v2251 = vunpack.c.h.b16 %v254
    %v2252 = vunpack.c.l.b16 %v255
    %v2253 = vunpack.c.h.b16 %v255
    %v2254 = vunpack.c.l.b16 %v256
    %v2255 = vunpack.c.h.b16 %v256
    %v2256 = vunpack.c.l.b16 %v257
    %v2257 = vunpack.c.h.b16 %v257
    %v2258 = vunpack.c.l.b16 %v258
    %v2259 = vunpack.c.h.b16 %v258
    %v2260 = vunpack.c.l.b16 %v259
    %v2261 = vunpack.c.h.b16 %v259
    %v2262 = vunpack.c.l.b16 %v260
    %v2263 = vunpack.c.h.b16 %v260
    %v2264 = vunpack.c.l.b16 %v261
    %v2265 = vunpack.c.h.b16 %v261
    %v2266 = vunpack.c.l.b16 %v262
    %v2267 = vunpack.c.h.b16 %v262
    %v2268 = vunpack.c.l.b16 %v263
    %v2269 = vunpack.c.h.b16 %v263
    %v2270 = vunpack.c.l.b16 %v264
    %v2271 = vunpack.c.h.b16 %v264
    %v2272 = vunpack.c.l.b16 %v265
    %v2273 = vunpack.c.h.b16 %v265
    %v2274 = vunpack.c.l.b16 %v266
    %v2275 = vunpack.c.h.b16 %v266
    %v2276 = vunpack.c.l.b16 %v267
    %v2277 = vunpack.c.h.b16 %v267
    %v2278 = vunpack.c.l.b16 %v268
    %v2279 = vunpack.c.h.b16 %v268
    %v2280 = vunpack.c.l.b16 %v269
    %v2281 = vunpack.c.h.b16 %v269
    %v2282 = vunpack.c.l.b16 %v270
    %v2283 = vunpack.c.h.b16 %v270
    %v2284 = vunpack.c.l.b16 %v271
    %v2285 = vunpack.c.h.b16 %v271
    %v2286 = vunpack.c.l.b16 %v272
    %v2287 = vunpack.c.h.b16 %v272
    %v2288 = vunpack.c.l.b16 %v273
    %v2289 = vunpack.c.h.b16 %v273
    %v2290 = vunpack.c.l.b16 %v274
    %v2291 = vunpack.c.h.b16 %v274
    %v2292 = vunpack.c.l.b16 %v275
    %v2293 = vunpack.c.h.b16 %v275
    %v2294 = vunpack.c.l.b16 %v276
    %v2295 = vunpack.c.h.b16 %v276
    %v2296 = vunpack.c.l.b16 %v277
    %v2297 = vunpack.c.h.b16 %v277
    %v2298 = vunpack.c.l.b16 %v278
    %v2299 = vunpack.c.h.b16 %v278
    %v2300 = vunpack.c.l.b16 %v279
    %v2301 = vunpack.c.h.b16 %v279
    %v2302 = vunpack.c.l.b16 %v280
    %v2303 = vunpack.c.h.b16 %v280
    %v2304 = vunpack.c.l.b16 %v281
    %v2305 = vunpack.c.h.b16 %v281
    %v2306 = vunpack.c.l.b16 %v282
    %v2307 = vunpack.c.h.b16 %v282
    %v2308 = vunpack.c.l.b16 %v283
    %v2309 = vunpack.c.h.b16 %v283
    %v2310 = vunpack.c.l.b16 %v284
    %v2311 = vunpack.c.h.b16 %v284
    %v2312 = vunpack.c.l.b16 %v285
    %v2313 = vunpack.c.h.b16 %v285
    %v2314 = vunpack.c.l.b16 %v286
    %v2315 = vunpack.c.h.b16 %v286
    %v2316 = vunpack.c.l.b16 %v287
    %v2317 = vunpack.c.h.b16 %v287
    %v2318 = vunpack.c.l.b16 %v288
    %v2319 = vunpack.c.h.b16 %v288
    %v2320 = vunpack.c.l.b16 %v289
    %v2321 = vunpack.c.h.b16 %v289
    %v2322 = vunpack.c.l.b16 %v290
    %v2323 = vunpack.c.h.b16 %v290
    %v2324 = vunpack.c.l.b16 %v291
    %v2325 = vunpack.c.h.b16 %v291
    %v2326 = vunpack.c.l.b16 %v292
    %v2327 = vunpack.c.h.b16 %v292
    %v2328 = vunpack.c.l.b16 %v293
    %v2329 = vunpack.c.h.b16 %v293
    %v2330 = vunpack.c.l.b16 %v294
    %v2331 = vunpack.c.h.b16 %v294
    %v2332 = vunpack.c.l.b16 %v295
    %v2333 = vunpack.c.h.b16 %v295
    %v2334 = vunpack.c.l.b16 %v296
    %v2335 = vunpack.c.h.b16 %v296
    %v2336 = vunpack.c.l.b16 %v297
    %v2337 = vunpack.c.h.b16 %v297
    %v2338 = vunpack.c.l.b16 %v298
    %v2339 = vunpack.c.h.b16 %v298
    %v2340 = vunpack.c.l.b16 %v299
    %v2341 = vunpack.c.h.b16 %v299
    %v2342 = vunpack.c.l.b16 %v300
    %v2343 = vunpack.c.h.b16 %v300
    %v2344 = vunpack.c.l.b16 %v301
    %v2345 = vunpack.c.h.b16 %v301
    %v2346 = vunpack.c.l.b16 %v302
    %v2347 = vunpack.c.h.b16 %v302
    %v2348 = vunpack.c.l.b16 %v303
    %v2349 = vunpack.c.h.b16 %v303
    %v2350 = vunpack.c.l.b16 %v304
    %v2351 = vunpack.c.h.b16 %v304
    %v2352 = vunpack.c.l.b16 %v305
    %v2353 = vunpack.c.h.b16 %v305
    %v2354 = vunpack.c.l.b16 %v306
    %v2355 = vunpack.c.h.b16 %v306
    %v2356 = vunpack.c.l.b16 %v307
    %v2357 = vunpack.c.h.b16 %v307
    %v2358 = vunpack.c.l.b16 %v308
    %v2359 = vunpack.c.h.b16 %v308
    %v2360 = vunpack.c.l.b16 %v309
    %v2361 = vunpack.c.h.b16 %v309
    %v2362 = vunpack.c.l.b16 %v310
    %v2363 = vunpack.c.h.b16 %v310
    %v2364 = vunpack.c.l.b16 %v311
    %v2365 = vunpack.c.h.b16 %v311
    %v2366 = vunpack.c.l.b16 %v312
    %v2367 = vunpack.c.h.b16 %v312
    %v2368 = vunpack.c.l.b16 %v313
    %v2369 = vunpack.c.h.b16 %v313
    %v2370 = vunpack.c.l.b16 %v314
    %v2371 = vunpack.c.h.b16 %v314
    %v2372 = vunpack.c.l.b16 %v315
    %v2373 = vunpack.c.h.b16 %v315
    %v2374 = vunpack.c.l.b16 %v316
    %v2375 = vunpack.c.h.b16 %v316
    %v2376 = vunpack.c.l.b16 %v317
    %v2377 = vunpack.c.h.b16 %v317
    %v2378 = vunpack.c.l.b16 %v318
    %v2379 = vunpack.c.h.b16 %v318
    %v2380 = vunpack.c.l.b16 %v319
    %v2381 = vunpack.c.h.b16 %v319
    %v2382 = vunpack.c.l.b16 %v320
    %v2383 = vunpack.c.h.b16 %v320
    %v2384 = vunpack.c.l.b16 %v321
    %v2385 = vunpack.c.h.b16 %v321
    %v2386 = vunpack.c.l.b16 %v322
    %v2387 = vunpack.c.h.b16 %v322
    %v2388 = vunpack.c.l.b16 %v323
    %v2389 = vunpack.c.h.b16 %v323
    %v2390 = vunpack.c.l.b16 %v324
    %v2391 = vunpack.c.h.b16 %v324
    %v2392 = vunpack.c.l.b16 %v325
    %v2393 = vunpack.c.h.b16 %v325
    %v2394 = vunpack.c.l.b16 %v326
    %v2395 = vunpack.c.h.b16 %v326
    %v2396 = vunpack.c.l.b16 %v327
    %v2397 = vunpack.c.h.b16 %v327
    %v2398 = vunpack.c.l.b16 %v328
    %v2399 = vunpack.c.h.b16 %v328
    %v2400 = vunpack.c.l.b16 %v329
    %v2401 = vunpack.c.h.b16 %v329
    %v2402 = vunpack.c.l.b16 %v330
    %v2403 = vunpack.c.h.b16 %v330
    %v2404 = vunpack.c.l.b16 %v331
    %v2405 = vunpack.c.h.b16 %v331
    %v2406 = vunpack.c.l.b16 %v332
    %v2407 = vunpack.c.h.b16 %v332
    %v2408 = vunpack.c.l.b16 %v333
    %v2409 = vunpack.c.h.b16 %v333
    %v2410 = vunpack.c.l.b16 %v334
    %v2411 = vunpack.c.h.b16 %v334
    %v2412 = vunpack.c.l.b16 %v335
    %v2413 = vunpack.c.h.b16 %v335
    %v2414 = vunpack.c.l.b16 %v336
    %v2415 = vunpack.c.h.b16 %v336
    %v2416 = vunpack.c.l.b16 %v337
    %v2417 = vunpack.c.h.b16 %v337
    %v2418 = vunpack.c.l.b16 %v338
    %v2419 = vunpack.c.h.b16 %v338
    %v2420 = vunpack.c.l.b16 %v339
    %v2421 = vunpack.c.h.b16 %v339
    %v2422 = vunpack.c.l.b16 %v340
    %v2423 = vunpack.c.h.b16 %v340
    %v2424 = vunpack.c.l.b16 %v341
    %v2425 = vunpack.c.h.b16 %v341
    %v2426 = vunpack.c.l.b16 %v342
    %v2427 = vunpack.c.h.b16 %v342
    %v2428 = vunpack.c.l.b16 %v343
    %v2429 = vunpack.c.h.b16 %v343
    %v2430 = vunpack.c.l.b16 %v344
    %v2431 = vunpack.c.h.b16 %v344
    %v2432 = vunpack.c.l.b16 %v345
    %v2433 = vunpack.c.h.b16 %v345
    %v2434 = vunpack.c.l.b16 %v346
    %v2435 = vunpack.c.h.b16 %v346
    %v2436 = vunpack.c.l.b16 %v347
    %v2437 = vunpack.c.h.b16 %v347
    %v2438 = vunpack.c.l.b16 %v348
    %v2439 = vunpack.c.h.b16 %v348
    %v2440 = vunpack.c.l.b16 %v349
    %v2441 = vunpack.c.h.b16 %v349
    %v2442 = vunpack.c.l.b16 %v350
    %v2443 = vunpack.c.h.b16 %v350
    %v2444 = vunpack.c.l.b16 %v351
    %v2445 = vunpack.c.h.b16 %v351
    %v2446 = vunpack.c.l.b16 %v352
    %v2447 = vunpack.c.h.b16 %v352
    %v2448 = vunpack.c.l.b16 %v353
    %v2449 = vunpack.c.h.b16 %v353
    %v2450 = vunpack.c.l.b16 %v354
    %v2451 = vunpack.c.h.b16 %v354
    %v2452 = vunpack.c.l.b16 %v355
    %v2453 = vunpack.c.h.b16 %v355
    %v2454 = vunpack.c.l.b16 %v356
    %v2455 = vunpack.c.h.b16 %v356
    %v2456 = vunpack.c.l.b16 %v357
    %v2457 = vunpack.c.h.b16 %v357
    %v2458 = vunpack.c.l.b16 %v358
    %v2459 = vunpack.c.h.b16 %v358
    %v2460 = vunpack.c.l.b16 %v359
    %v2461 = vunpack.c.h.b16 %v359
    %v2462 = vunpack.c.l.b16 %v360
    %v2463 = vunpack.c.h.b16 %v360
    %v2464 = vunpack.c.l.b16 %v361
    %v2465 = vunpack.c.h.b16 %v361
    %v2466 = vunpack.c.l.b16 %v362
    %v2467 = vunpack.c.h.b16 %v362
    %v2468 = vunpack.c.l.b16 %v363
    %v2469 = vunpack.c.h.b16 %v363
    %v2470 = vunpack.c.l.b16 %v364
    %v2471 = vunpack.c.h.b16 %v364
    %v2472 = vunpack.c.l.b16 %v365
    %v2473 = vunpack.c.h.b16 %v365
    %v2474 = vunpack.c.l.b16 %v366
    %v2475 = vunpack.c.h.b16 %v366
    %v2476 = vunpack.c.l.b16 %v367
    %v2477 = vunpack.c.h.b16 %v367
    %v2478 = vunpack.c.l.b16 %v368
    %v2479 = vunpack.c.h.b16 %v368
    %v2480 = vunpack.c.l.b16 %v369
    %v2481 = vunpack.c.h.b16 %v369
    %v2482 = vunpack.c.l.b16 %v370
    %v2483 = vunpack.c.h.b16 %v370
    %v2484 = vunpack.c.l.b16 %v371
    %v2485 = vunpack.c.h.b16 %v371
    %v2486 = vunpack.c.l.b16 %v372
    %v2487 = vunpack.c.h.b16 %v372
    %v2488 = vunpack.c.l.b16 %v373
    %v2489 = vunpack.c.h.b16 %v373
    %v2490 = vunpack.c.l.b16 %v374
    %v2491 = vunpack.c.h.b16 %v374
    %v2492 = vunpack.c.l.b16 %v375
    %v2493 = vunpack.c.h.b16 %v375
    %v2494 = vunpack.c.l.b16 %v376
    %v2495 = vunpack.c.h.b16 %v376
    %v2496 = vunpack.c.l.b16 %v377
    %v2497 = vunpack.c.h.b16 %v377
    %v2498 = vunpack.c.l.b16 %v378
    %v2499 = vunpack.c.h.b16 %v378
    %v2500 = vunpack.c.l.b16 %v379
    %v2501 = vunpack.c.h.b16 %v379
    %v2502 = vunpack.c.l.b16 %v380
    %v2503 = vunpack.c.h.b16 %v380
    %v2504 = vunpack.c.l.b16 %v381
    %v2505 = vunpack.c.h.b16 %v381
    %v2506 = vunpack.c.l.b16 %v382
    %v2507 = vunpack.c.h.b16 %v382
    %v2508 = vunpack.c.l.b16 %v383
    %v2509 = vunpack.c.h.b16 %v383
    %v2510 = vunpack.c.l.b16 %v384
    %v2511 = vunpack.c.h.b16 %v384
    %v2512 = vunpack.c.l.b16 %v385
    %v2513 = vunpack.c.h.b16 %v385
    %v2514 = vunpack.c.l.b16 %v386
    %v2515 = vunpack.c.h.b16 %v386
    %v2516 = vunpack.c.l.b16 %v387
    %v2517 = vunpack.c.h.b16 %v387
    %v2518 = vunpack.c.l.b16 %v388
    %v2519 = vunpack.c.h.b16 %v388
    %v2520 = vunpack.c.l.b16 %v389
    %v2521 = vunpack.c.h.b16 %v389
    %v2522 = vunpack.c.l.b16 %v390
    %v2523 = vunpack.c.h.b16 %v390
    %v2524 = vunpack.c.l.b16 %v391
    %v2525 = vunpack.c.h.b16 %v391
    %v2526 = vunpack.c.l.b16 %v392
    %v2527 = vunpack.c.h.b16 %v392
    %v2528 = vunpack.c.l.b16 %v393
    %v2529 = vunpack.c.h.b16 %v393
    %v2530 = vunpack.c.l.b16 %v394
    %v2531 = vunpack.c.h.b16 %v394
    %v2532 = vunpack.c.l.b16 %v395
    %v2533 = vunpack.c.h.b16 %v395
    %v2534 = vunpack.c.l.b16 %v396
    %v2535 = vunpack.c.h.b16 %v396
    %v2536 = vunpack.c.l.b16 %v397
    %v2537 = vunpack.c.h.b16 %v397
    %v2538 = vunpack.c.l.b16 %v398
    %v2539 = vunpack.c.h.b16 %v398
    %v2540 = vunpack.c.l.b16 %v399
    %v2541 = vunpack.c.h.b16 %v399
    %v2542 = vunpack.c.l.b16 %v400
    %v2543 = vunpack.c.h.b16 %v400
    %v2544 = vunpack.c.l.b16 %v401
    %v2545 = vunpack.c.h.b16 %v401
    %v2546 = vunpack.c.l.b16 %v402
    %v2547 = vunpack.c.h.b16 %v402
    %v2548 = vunpack.c.l.b16 %v403
    %v2549 = vunpack.c.h.b16 %v403
    %v2550 = vunpack.c.l.b16 %v404
    %v2551 = vunpack.c.h.b16 %v404
    %v2552 = vunpack.c.l.b16 %v405
    %v2553 = vunpack.c.h.b16 %v405
    %v2554 = vunpack.c.l.b16 %v406
    %v2555 = vunpack.c.h.b16 %v406
    %v2556 = vunpack.c.l.b16 %v407
    %v2557 = vunpack.c.h.b16 %v407
    %v2558 = vunpack.c.l.b16 %v408
    %v2559 = vunpack.c.h.b16 %v408
    %v2560 = vunpack.c.l.b16 %v409
    %v2561 = vunpack.c.h.b16 %v409
    %v2562 = vunpack.c.l.b16 %v410
    %v2563 = vunpack.c.h.b16 %v410
    %v2564 = vunpack.c.l.b16 %v411
    %v2565 = vunpack.c.h.b16 %v411
    %v2566 = vunpack.c.l.b16 %v412
    %v2567 = vunpack.c.h.b16 %v412
    %v2568 = vunpack.c.l.b16 %v413
    %v2569 = vunpack.c.h.b16 %v413
    %v2570 = vunpack.c.l.b16 %v414
    %v2571 = vunpack.c.h.b16 %v414
    %v2572 = vunpack.c.l.b16 %v415
    %v2573 = vunpack.c.h.b16 %v415
    %v2574 = vunpack.c.l.b16 %v416
    %v2575 = vunpack.c.h.b16 %v416
    %v2576 = vunpack.c.l.b16 %v417
    %v2577 = vunpack.c.h.b16 %v417
    %v2578 = vunpack.c.l.b16 %v418
    %v2579 = vunpack.c.h.b16 %v418
    %v2580 = vunpack.c.l.b16 %v419
    %v2581 = vunpack.c.h.b16 %v419
    %v2582 = vunpack.c.l.b16 %v420
    %v2583 = vunpack.c.h.b16 %v420
    %v2584 = vunpack.c.l.b16 %v421
    %v2585 = vunpack.c.h.b16 %v421
    %v2586 = vunpack.c.l.b16 %v422
    %v2587 = vunpack.c.h.b16 %v422
    %v2588 = vunpack.c.l.b16 %v423
    %v2589 = vunpack.c.h.b16 %v423
    %v2590 = vunpack.c.l.b16 %v424
    %v2591 = vunpack.c.h.b16 %v424
    %v2592 = vunpack.c.l.b16 %v425
    %v2593 = vunpack.c.h.b16 %v425
    %v2594 = vunpack.c.l.b16 %v426
    %v2595 = vunpack.c.h.b16 %v426
    %v2596 = vunpack.c.l.b16 %v427
    %v2597 = vunpack.c.h.b16 %v427
    %v2598 = vunpack.c.l.b16 %v428
    %v2599 = vunpack.c.h.b16 %v428
    %v2600 = vunpack.c.l.b16 %v429
    %v2601 = vunpack.c.h.b16 %v429
    %v2602 = vunpack.c.l.b16 %v430
    %v2603 = vunpack.c.h.b16 %v430
    %v2604 = vunpack.c.l.b16 %v431
    %v2605 = vunpack.c.h.b16 %v431
    %v2606 = vunpack.c.l.b16 %v432
    %v2607 = vunpack.c.h.b16 %v432
    %v2608 = vunpack.c.l.b16 %v433
    %v2609 = vunpack.c.h.b16 %v433
    %v2610 = vunpack.c.l.b16 %v434
    %v2611 = vunpack.c.h.b16 %v434
    %v2612 = vunpack.c.l.b16 %v435
    %v2613 = vunpack.c.h.b16 %v435
    %v2614 = vunpack.c.l.b16 %v436
    %v2615 = vunpack.c.h.b16 %v436
    %v2616 = vunpack.c.l.b16 %v437
    %v2617 = vunpack.c.h.b16 %v437
    %v2618 = vunpack.c.l.b16 %v438
    %v2619 = vunpack.c.h.b16 %v438
    %v2620 = vunpack.c.l.b16 %v439
    %v2621 = vunpack.c.h.b16 %v439
    %v2622 = vunpack.c.l.b16 %v440
    %v2623 = vunpack.c.h.b16 %v440
    %v2624 = vunpack.c.l.b16 %v441
    %v2625 = vunpack.c.h.b16 %v441
    %v2626 = vunpack.c.l.b16 %v442
    %v2627 = vunpack.c.h.b16 %v442
    %v2628 = vunpack.c.l.b16 %v443
    %v2629 = vunpack.c.h.b16 %v443
    %v2630 = vunpack.c.l.b16 %v444
    %v2631 = vunpack.c.h.b16 %v444
    %v2632 = vunpack.c.l.b16 %v445
    %v2633 = vunpack.c.h.b16 %v445
    %v2634 = vunpack.c.l.b16 %v446
    %v2635 = vunpack.c.h.b16 %v446
    %v2636 = vunpack.c.l.b16 %v447
    %v2637 = vunpack.c.h.b16 %v447
    %v2638 = vunpack.c.l.b16 %v448
    %v2639 = vunpack.c.h.b16 %v448
    %v2640 = vunpack.c.l.b16 %v449
    %v2641 = vunpack.c.h.b16 %v449
    %v2642 = vunpack.c.l.b16 %v450
    %v2643 = vunpack.c.h.b16 %v450
    %v2644 = vunpack.c.l.b16 %v451
    %v2645 = vunpack.c.h.b16 %v451
    %v2646 = vunpack.c.l.b16 %v452
    %v2647 = vunpack.c.h.b16 %v452
    %v2648 = vunpack.c.l.b16 %v453
    %v2649 = vunpack.c.h.b16 %v453
    %v2650 = vunpack.c.l.b16 %v454
    %v2651 = vunpack.c.h.b16 %v454
    %v2652 = vunpack.c.l.b16 %v455
    %v2653 = vunpack.c.h.b16 %v455
    %v2654 = vunpack.c.l.b16 %v456
    %v2655 = vunpack.c.h.b16 %v456
    %v2656 = vunpack.c.l.b16 %v457
    %v2657 = vunpack.c.h.b16 %v457
    %v2658 = vunpack.c.l.b16 %v458
    %v2659 = vunpack.c.h.b16 %v458
    %v2660 = vunpack.c.l.b16 %v459
    %v2661 = vunpack.c.h.b16 %v459
    %v2662 = vunpack.c.l.b16 %v460
    %v2663 = vunpack.c.h.b16 %v460
    %v2664 = vunpack.c.l.b16 %v461
    %v2665 = vunpack.c.h.b16 %v461
    %v2666 = vunpack.c.l.b16 %v462
    %v2667 = vunpack.c.h.b16 %v462
    %v2668 = vunpack.c.l.b16 %v463
    %v2669 = vunpack.c.h.b16 %v463
    %v2670 = vunpack.c.l.b16 %v464
    %v2671 = vunpack.c.h.b16 %v464
    %v2672 = vunpack.c.l.b16 %v465
    %v2673 = vunpack.c.h.b16 %v465
    %v2674 = vunpack.c.l.b16 %v466
    %v2675 = vunpack.c.h.b16 %v466
    %v2676 = vunpack.c.l.b16 %v467
    %v2677 = vunpack.c.h.b16 %v467
    %v2678 = vunpack.c.l.b16 %v468
    %v2679 = vunpack.c.h.b16 %v468
    %v2680 = vunpack.c.l.b16 %v469
    %v2681 = vunpack.c.h.b16 %v469
    %v2682 = vunpack.c.l.b16 %v470
    %v2683 = vunpack.c.h.b16 %v470
    %v2684 = vunpack.c.l.b16 %v471
    %v2685 = vunpack.c.h.b16 %v471
    %v2686 = vunpack.c.l.b16 %v472
    %v2687 = vunpack.c.h.b16 %v472
    %v2688 = vunpack.c.l.b16 %v473
    %v2689 = vunpack.c.h.b16 %v473
    %v2690 = vunpack.c.l.b16 %v474
    %v2691 = vunpack.c.h.b16 %v474
    %v2692 = vunpack.c.l.b16 %v475
    %v2693 = vunpack.c.h.b16 %v475
    %v2694 = vunpack.c.l.b16 %v476
    %v2695 = vunpack.c.h.b16 %v476
    %v2696 = vunpack.c.l.b16 %v477
    %v2697 = vunpack.c.h.b16 %v477
    %v2698 = vunpack.c.l.b16 %v478
    %v2699 = vunpack.c.h.b16 %v478
    %v2700 = vunpack.c.l.b16 %v479
    %v2701 = vunpack.c.h.b16 %v479
    %v2702 = vunpack.c.l.b16 %v480
    %v2703 = vunpack.c.h.b16 %v480
    %v2704 = vunpack.c.l.b16 %v481
    %v2705 = vunpack.c.h.b16 %v481
    %v2706 = vunpack.c.l.b16 %v482
    %v2707 = vunpack.c.h.b16 %v482
    %v2708 = vunpack.c.l.b16 %v483
    %v2709 = vunpack.c.h.b16 %v483
    %v2710 = vunpack.c.l.b16 %v484
    %v2711 = vunpack.c.h.b16 %v484
    %v2712 = vunpack.c.l.b16 %v485
    %v2713 = vunpack.c.h.b16 %v485
    %v2714 = vunpack.c.l.b16 %v486
    %v2715 = vunpack.c.h.b16 %v486
    %v2716 = vunpack.c.l.b16 %v487
    %v2717 = vunpack.c.h.b16 %v487
    %v2718 = vunpack.c.l.b16 %v488
    %v2719 = vunpack.c.h.b16 %v488
    %v2720 = vunpack.c.l.b16 %v489
    %v2721 = vunpack.c.h.b16 %v489
    %v2722 = vunpack.c.l.b16 %v490
    %v2723 = vunpack.c.h.b16 %v490
    %v2724 = vunpack.c.l.b16 %v491
    %v2725 = vunpack.c.h.b16 %v491
    %v2726 = vunpack.c.l.b16 %v492
    %v2727 = vunpack.c.h.b16 %v492
    %v2728 = vunpack.c.l.b16 %v493
    %v2729 = vunpack.c.h.b16 %v493
    %v2730 = vunpack.c.l.b16 %v494
    %v2731 = vunpack.c.h.b16 %v494
    %v2732 = vunpack.c.l.b16 %v495
    %v2733 = vunpack.c.h.b16 %v495
    %v2734 = vunpack.c.l.b16 %v496
    %v2735 = vunpack.c.h.b16 %v496
    %v2736 = vunpack.c.l.b16 %v497
    %v2737 = vunpack.c.h.b16 %v497
    %v2738 = vunpack.c.l.b16 %v498
    %v2739 = vunpack.c.h.b16 %v498
    %v2740 = vunpack.c.l.b16 %v499
    %v2741 = vunpack.c.h.b16 %v499
    %v2742 = vunpack.c.l.b16 %v500
    %v2743 = vunpack.c.h.b16 %v500
    %v2744 = vunpack.c.l.b16 %v501
    %v2745 = vunpack.c.h.b16 %v501
    %v2746 = vunpack.c.l.b16 %v502
    %v2747 = vunpack.c.h.b16 %v502
    %v2748 = vunpack.c.l.b16 %v503
    %v2749 = vunpack.c.h.b16 %v503
    %v2750 = vunpack.c.l.b16 %v504
    %v2751 = vunpack.c.h.b16 %v504
    %v2752 = vunpack.c.l.b16 %v505
    %v2753 = vunpack.c.h.b16 %v505
    %v2754 = vunpack.c.l.b16 %v506
    %v2755 = vunpack.c.h.b16 %v506
    %v2756 = vunpack.c.l.b16 %v507
    %v2757 = vunpack.c.h.b16 %v507
    %v2758 = vunpack.c.l.b16 %v508
    %v2759 = vunpack.c.h.b16 %v508
    %v2760 = vunpack.c.l.b16 %v509
    %v2761 = vunpack.c.h.b16 %v509
    %v2762 = vunpack.c.l.b16 %v510
    %v2763 = vunpack.c.h.b16 %v510
    %v2764 = vunpack.c.l.b16 %v511
    %v2765 = vunpack.c.h.b16 %v511
    %v2766 = vunpack.c.l.b16 %v512
    %v2767 = vunpack.c.h.b16 %v512
    %v2768 = vunpack.c.l.b16 %v513
    %v2769 = vunpack.c.h.b16 %v513
    %v2770 = vunpack.c.l.b16 %v514
    %v2771 = vunpack.c.h.b16 %v514
    %v2772 = vunpack.c.l.b16 %v515
    %v2773 = vunpack.c.h.b16 %v515
    %v2774 = vunpack.c.l.b16 %v516
    %v2775 = vunpack.c.h.b16 %v516
    %v2776 = vunpack.c.l.b16 %v517
    %v2777 = vunpack.c.h.b16 %v517
    %v2778 = vunpack.c.l.b16 %v518
    %v2779 = vunpack.c.h.b16 %v518
    %v2780 = vunpack.c.l.b16 %v519
    %v2781 = vunpack.c.h.b16 %v519
    %v2782 = vunpack.c.l.b16 %v520
    %v2783 = vunpack.c.h.b16 %v520
    %v2784 = vunpack.c.l.b16 %v521
    %v2785 = vunpack.c.h.b16 %v521
    %v2786 = vunpack.c.l.b16 %v522
    %v2787 = vunpack.c.h.b16 %v522
    %v2788 = vunpack.c.l.b16 %v523
    %v2789 = vunpack.c.h.b16 %v523
    %v2790 = vunpack.c.l.b16 %v524
    %v2791 = vunpack.c.h.b16 %v524
    %v2792 = vunpack.c.l.b16 %v525
    %v2793 = vunpack.c.h.b16 %v525
    %v2794 = vunpack.c.l.b16 %v526
    %v2795 = vunpack.c.h.b16 %v526
    %v2796 = vunpack.c.l.b16 %v527
    %v2797 = vunpack.c.h.b16 %v527
    %v2798 = vunpack.c.l.b16 %v528
    %v2799 = vunpack.c.h.b16 %v528
    %v2800 = vunpack.c.l.b16 %v529
    %v2801 = vunpack.c.h.b16 %v529
    %v2802 = vunpack.c.l.b16 %v530
    %v2803 = vunpack.c.h.b16 %v530
    %v2804 = vunpack.c.l.b16 %v531
    %v2805 = vunpack.c.h.b16 %v531
    %v2806 = vunpack.c.l.b16 %v532
    %v2807 = vunpack.c.h.b16 %v532
    %v2808 = vunpack.c.l.b16 %v533
    %v2809 = vunpack.c.h.b16 %v533
    %v2810 = vunpack.c.l.b16 %v534
    %v2811 = vunpack.c.h.b16 %v534
    %v2812 = vunpack.c.l.b16 %v535
    %v2813 = vunpack.c.h.b16 %v535
    %v2814 = vunpack.c.l.b16 %v536
    %v2815 = vunpack.c.h.b16 %v536
    %v2816 = vunpack.c.l.b16 %v537
    %v2817 = vunpack.c.h.b16 %v537
    %v2818 = vunpack.c.l.b16 %v538
    %v2819 = vunpack.c.h.b16 %v538
    %v2820 = vunpack.c.l.b16 %v539
    %v2821 = vunpack.c.h.b16 %v539
    %v2822 = vunpack.c.l.b16 %v540
    %v2823 = vunpack.c.h.b16 %v540
    %v2824 = vunpack.c.l.b16 %v541
    %v2825 = vunpack.c.h.b16 %v541
    %v2826 = vunpack.c.l.b16 %v542
    %v2827 = vunpack.c.h.b16 %v542
    %v2828 = vunpack.c.l.b16 %v543
    %v2829 = vunpack.c.h.b16 %v543
    %v2830 = vunpack.c.l.b16 %v544
    %v2831 = vunpack.c.h.b16 %v544
    %v2832 = vunpack.c.l.b16 %v545
    %v2833 = vunpack.c.h.b16 %v545
    %v2834 = vunpack.c.l.b16 %v546
    %v2835 = vunpack.c.h.b16 %v546
    %v2836 = vunpack.c.l.b16 %v547
    %v2837 = vunpack.c.h.b16 %v547
    %v2838 = vunpack.c.l.b16 %v548
    %v2839 = vunpack.c.h.b16 %v548
    %v2840 = vunpack.c.l.b16 %v549
    %v2841 = vunpack.c.h.b16 %v549
    %v2842 = vunpack.c.l.b16 %v550
    %v2843 = vunpack.c.h.b16 %v550
    %v2844 = vunpack.c.l.b16 %v551
    %v2845 = vunpack.c.h.b16 %v551
    %v2846 = vunpack.c.l.b16 %v552
    %v2847 = vunpack.c.h.b16 %v552
    %v2848 = vunpack.c.l.b16 %v553
    %v2849 = vunpack.c.h.b16 %v553
    %v2850 = vunpack.c.l.b16 %v554
    %v2851 = vunpack.c.h.b16 %v554
    %v2852 = vunpack.c.l.b16 %v555
    %v2853 = vunpack.c.h.b16 %v555
    %v2854 = vunpack.c.l.b16 %v556
    %v2855 = vunpack.c.h.b16 %v556
    %v2856 = vunpack.c.l.b16 %v557
    %v2857 = vunpack.c.h.b16 %v557
    %v2858 = vunpack.c.l.b16 %v558
    %v2859 = vunpack.c.h.b16 %v558
    %v2860 = vunpack.c.l.b16 %v559
    %v2861 = vunpack.c.h.b16 %v559
    %v2862 = vunpack.c.l.b16 %v560
    %v2863 = vunpack.c.h.b16 %v560
    %v2864 = vunpack.c.l.b16 %v561
    %v2865 = vunpack.c.h.b16 %v561
    %v2866 = vunpack.c.l.b16 %v562
    %v2867 = vunpack.c.h.b16 %v562
    %v2868 = vunpack.c.l.b16 %v563
    %v2869 = vunpack.c.h.b16 %v563
    %v2870 = vunpack.c.l.b16 %v564
    %v2871 = vunpack.c.h.b16 %v564
    %v2872 = vunpack.c.l.b16 %v565
    %v2873 = vunpack.c.h.b16 %v565
    %v2874 = vunpack.c.l.b16 %v566
    %v2875 = vunpack.c.h.b16 %v566
    %v2876 = vunpack.c.l.b16 %v567
    %v2877 = vunpack.c.h.b16 %v567
    %v2878 = vunpack.c.l.b16 %v568
    %v2879 = vunpack.c.h.b16 %v568
    %v2880 = vunpack.c.l.b16 %v569
    %v2881 = vunpack.c.h.b16 %v569
    %v2882 = vunpack.c.l.b16 %v570
    %v2883 = vunpack.c.h.b16 %v570
    %v2884 = vunpack.c.l.b16 %v571
    %v2885 = vunpack.c.h.b16 %v571
    %v2886 = vunpack.c.l.b16 %v572
    %v2887 = vunpack.c.h.b16 %v572
    %v2888 = vunpack.c.l.b16 %v573
    %v2889 = vunpack.c.h.b16 %v573
    %v2890 = vunpack.c.l.b16 %v574
    %v2891 = vunpack.c.h.b16 %v574
    %v2892 = vunpack.c.l.b16 %v575
    %v2893 = vunpack.c.h.b16 %v575
    %v2894 = vunpack.c.l.b16 %v576
    %v2895 = vunpack.c.h.b16 %v576
    %v2896 = vunpack.c.l.b16 %v577
    %v2897 = vunpack.c.h.b16 %v577
    %v2898 = vunpack.c.l.b16 %v578
    %v2899 = vunpack.c.h.b16 %v578
    %v2900 = vunpack.c.l.b16 %v579
    %v2901 = vunpack.c.h.b16 %v579
    %v2902 = vunpack.c.l.b16 %v580
    %v2903 = vunpack.c.h.b16 %v580
    %v2904 = vunpack.c.l.b16 %v581
    %v2905 = vunpack.c.h.b16 %v581
    %v2906 = vunpack.c.l.b16 %v582
    %v2907 = vunpack.c.h.b16 %v582
    %v2908 = vunpack.c.l.b16 %v583
    %v2909 = vunpack.c.h.b16 %v583
    %v2910 = vunpack.c.l.b16 %v584
    %v2911 = vunpack.c.h.b16 %v584
    %v2912 = vunpack.c.l.b16 %v585
    %v2913 = vunpack.c.h.b16 %v585
    %v2914 = vunpack.c.l.b16 %v586
    %v2915 = vunpack.c.h.b16 %v586
    %v2916 = vunpack.c.l.b16 %v587
    %v2917 = vunpack.c.h.b16 %v587
    %v2918 = vunpack.c.l.b16 %v588
    %v2919 = vunpack.c.h.b16 %v588
    %v2920 = vunpack.c.l.b16 %v589
    %v2921 = vunpack.c.h.b16 %v589
    %v2922 = vunpack.c.l.b16 %v590
    %v2923 = vunpack.c.h.b16 %v590
    %v2924 = vunpack.c.l.b16 %v591
    %v2925 = vunpack.c.h.b16 %v591
    %v2926 = vunpack.c.l.b16 %v592
    %v2927 = vunpack.c.h.b16 %v592
    %v2928 = vunpack.c.l.b16 %v593
    %v2929 = vunpack.c.h.b16 %v593
    %v2930 = vunpack.c.l.b16 %v594
    %v2931 = vunpack.c.h.b16 %v594
    %v2932 = vunpack.c.l.b16 %v595
    %v2933 = vunpack.c.h.b16 %v595
    %v2934 = vunpack.c.l.b16 %v596
    %v2935 = vunpack.c.h.b16 %v596
    %v2936 = vunpack.c.l.b16 %v597
    %v2937 = vunpack.c.h.b16 %v597
    %v2938 = vunpack.c.l.b16 %v598
    %v2939 = vunpack.c.h.b16 %v598
    %v2940 = vunpack.c.l.b16 %v599
    %v2941 = vunpack.c.h.b16 %v599
    %v2942 = vunpack.c.l.b16 %v600
    %v2943 = vunpack.c.h.b16 %v600
    %v2944 = vunpack.c.l.b16 %v601
    %v2945 = vunpack.c.h.b16 %v601
    %v2946 = vunpack.c.l.b16 %v602
    %v2947 = vunpack.c.h.b16 %v602
    %v2948 = vunpack.c.l.b16 %v603
    %v2949 = vunpack.c.h.b16 %v603
    %v2950 = vunpack.c.l.b16 %v604
    %v2951 = vunpack.c.h.b16 %v604
    %v2952 = vunpack.c.l.b16 %v605
    %v2953 = vunpack.c.h.b16 %v605
    %v2954 = vunpack.c.l.b16 %v606
    %v2955 = vunpack.c.h.b16 %v606
    %v2956 = vunpack.c.l.b16 %v607
    %v2957 = vunpack.c.h.b16 %v607
    %v2958 = vunpack.c.l.b16 %v608
    %v2959 = vunpack.c.h.b16 %v608
    %v2960 = vunpack.c.l.b16 %v609
    %v2961 = vunpack.c.h.b16 %v609
    %v2962 = vunpack.c.l.b16 %v610
    %v2963 = vunpack.c.h.b16 %v610
    %v2964 = vunpack.c.l.b16 %v611
    %v2965 = vunpack.c.h.b16 %v611
    %v2966 = vunpack.c.l.b16 %v612
    %v2967 = vunpack.c.h.b16 %v612
    %v2968 = vunpack.c.l.b16 %v613
    %v2969 = vunpack.c.h.b16 %v613
    %v2970 = vunpack.c.l.b16 %v614
    %v2971 = vunpack.c.h.b16 %v614
    %v2972 = vunpack.c.l.b16 %v615
    %v2973 = vunpack.c.h.b16 %v615
    %v2974 = vunpack.c.l.b16 %v616
    %v2975 = vunpack.c.h.b16 %v616
    %v2976 = vunpack.c.l.b16 %v617
    %v2977 = vunpack.c.h.b16 %v617
    %v2978 = vunpack.c.l.b16 %v618
    %v2979 = vunpack.c.h.b16 %v618
    %v2980 = vunpack.c.l.b16 %v619
    %v2981 = vunpack.c.h.b16 %v619
    %v2982 = vunpack.c.l.b16 %v620
    %v2983 = vunpack.c.h.b16 %v620
    %v2984 = vunpack.c.l.b16 %v621
    %v2985 = vunpack.c.h.b16 %v621
    %v2986 = vunpack.c.l.b16 %v622
    %v2987 = vunpack.c.h.b16 %v622
    %v2988 = vunpack.c.l.b16 %v623
    %v2989 = vunpack.c.h.b16 %v623
    %v2990 = vunpack.c.l.b16 %v624
    %v2991 = vunpack.c.h.b16 %v624
    %v2992 = vunpack.c.l.b16 %v625
    %v2993 = vunpack.c.h.b16 %v625
    %v2994 = vunpack.c.l.b16 %v626
    %v2995 = vunpack.c.h.b16 %v626
    %v2996 = vunpack.c.l.b16 %v627
    %v2997 = vunpack.c.h.b16 %v627
    %v2998 = vunpack.c.l.b16 %v628
    %v2999 = vunpack.c.h.b16 %v628
    %v3000 = vunpack.c.l.b16 %v629
    %v3001 = vunpack.c.h.b16 %v629
    %v3002 = vunpack.c.l.b16 %v630
    %v3003 = vunpack.c.h.b16 %v630
    %v3004 = vunpack.c.l.b16 %v631
    %v3005 = vunpack.c.h.b16 %v631
    %v3006 = vunpack.c.l.b16 %v632
    %v3007 = vunpack.c.h.b16 %v632
    %v3008 = vunpack.c.l.b16 %v633
    %v3009 = vunpack.c.h.b16 %v633
    %v3010 = vunpack.c.l.b16 %v634
    %v3011 = vunpack.c.h.b16 %v634
    %v3012 = vunpack.c.l.b16 %v635
    %v3013 = vunpack.c.h.b16 %v635
    %v3014 = vunpack.c.l.b16 %v636
    %v3015 = vunpack.c.h.b16 %v636
    %v3016 = vunpack.c.l.b16 %v637
    %v3017 = vunpack.c.h.b16 %v637
    %v3018 = vunpack.c.l.b16 %v638
    %v3019 = vunpack.c.h.b16 %v638
    %v3020 = vunpack.c.l.b16 %v639
    %v3021 = vunpack.c.h.b16 %v639
    %v3022 = vunpack.c.l.b16 %v640
    %v3023 = vunpack.c.h.b16 %v640
    %v3024 = vunpack.c.l.b16 %v641
    %v3025 = vunpack.c.h.b16 %v641
    %v3026 = vunpack.c.l.b16 %v642
    %v3027 = vunpack.c.h.b16 %v642
    %v3028 = vunpack.c.l.b16 %v643
    %v3029 = vunpack.c.h.b16 %v643
    %v3030 = vunpack.c.l.b16 %v644
    %v3031 = vunpack.c.h.b16 %v644
    %v3032 = vunpack.c.l.b16 %v645
    %v3033 = vunpack.c.h.b16 %v645
    %v3034 = vunpack.c.l.b16 %v646
    %v3035 = vunpack.c.h.b16 %v646
    %v3036 = vunpack.c.l.b16 %v647
    %v3037 = vunpack.c.h.b16 %v647
    %v3038 = vunpack.c.l.b16 %v648
    %v3039 = vunpack.c.h.b16 %v648
    %v3040 = vunpack.c.l.b16 %v649
    %v3041 = vunpack.c.h.b16 %v649
    %v3042 = vunpack.c.l.b16 %v650
    %v3043 = vunpack.c.h.b16 %v650
    %v3044 = vunpack.c.l.b16 %v651
    %v3045 = vunpack.c.h.b16 %v651
    %v3046 = vunpack.c.l.b16 %v652
    %v3047 = vunpack.c.h.b16 %v652
    %v3048 = vunpack.c.l.b16 %v653
    %v3049 = vunpack.c.h.b16 %v653
    %v3050 = vunpack.c.l.b16 %v654
    %v3051 = vunpack.c.h.b16 %v654
    %v3052 = vunpack.c.l.b16 %v655
    %v3053 = vunpack.c.h.b16 %v655
    %v3054 = vunpack.c.l.b16 %v656
    %v3055 = vunpack.c.h.b16 %v656
    %v3056 = vunpack.c.l.b16 %v657
    %v3057 = vunpack.c.h.b16 %v657
    %v3058 = vunpack.c.l.b16 %v658
    %v3059 = vunpack.c.h.b16 %v658
    %v3060 = vunpack.c.l.b16 %v659
    %v3061 = vunpack.c.h.b16 %v659
    %v3062 = vunpack.c.l.b16 %v660
    %v3063 = vunpack.c.h.b16 %v660
    %v3064 = vunpack.c.l.b16 %v661
    %v3065 = vunpack.c.h.b16 %v661
    %v3066 = vunpack.c.l.b16 %v662
    %v3067 = vunpack.c.h.b16 %v662
    %v3068 = vunpack.c.l.b16 %v663
    %v3069 = vunpack.c.h.b16 %v663
    %v3070 = vunpack.c.l.b16 %v664
    %v3071 = vunpack.c.h.b16 %v664
    %v3072 = vunpack.c.l.b16 %v665
    %v3073 = vunpack.c.h.b16 %v665
    %v3074 = vunpack.c.l.b16 %v666
    %v3075 = vunpack.c.h.b16 %v666
    %v3076 = vunpack.c.l.b16 %v667
    %v3077 = vunpack.c.h.b16 %v667
    %v3078 = vunpack.c.l.b16 %v668
    %v3079 = vunpack.c.h.b16 %v668
    %v3080 = vunpack.c.l.b16 %v669
    %v3081 = vunpack.c.h.b16 %v669
    %v3082 = vunpack.c.l.b16 %v670
    %v3083 = vunpack.c.h.b16 %v670
    %v3084 = vunpack.c.l.b16 %v671
    %v3085 = vunpack.c.h.b16 %v671
    %v3086 = vunpack.c.l.b16 %v672
    %v3087 = vunpack.c.h.b16 %v672
    %v3088 = vunpack.c.l.b16 %v673
    %v3089 = vunpack.c.h.b16 %v673
    %v3090 = vunpack.c.l.b16 %v674
    %v3091 = vunpack.c.h.b16 %v674
    %v3092 = vunpack.c.l.b16 %v675
    %v3093 = vunpack.c.h.b16 %v675
    %v3094 = vunpack.c.l.b16 %v676
    %v3095 = vunpack.c.h.b16 %v676
    %v3096 = vunpack.c.l.b16 %v677
    %v3097 = vunpack.c.h.b16 %v677
    %v3098 = vunpack.c.l.b16 %v678
    %v3099 = vunpack.c.h.b16 %v678
    %v3100 = vunpack.c.l.b16 %v679
    %v3101 = vunpack.c.h.b16 %v679
    %v3102 = vunpack.c.l.b16 %v680
    %v3103 = vunpack.c.h.b16 %v680
    %v3104 = vunpack.c.l.b16 %v681
    %v3105 = vunpack.c.h.b16 %v681
    %v3106 = vunpack.c.l.b16 %v682
    %v3107 = vunpack.c.h.b16 %v682
    %v3108 = vunpack.c.l.b16 %v683
    %v3109 = vunpack.c.h.b16 %v683
    %v3110 = vunpack.c.l.b16 %v684
    %v3111 = vunpack.c.h.b16 %v684
    %v3112 = vunpack.c.l.b16 %v685
    %v3113 = vunpack.c.h.b16 %v685
    %v3114 = vunpack.c.l.b16 %v686
    %v3115 = vunpack.c.h.b16 %v686
    %v3116 = vunpack.c.l.b16 %v687
    %v3117 = vunpack.c.h.b16 %v687
    %v3118 = vunpack.c.l.b16 %v688
    %v3119 = vunpack.c.h.b16 %v688
    %v3120 = vunpack.c.l.b16 %v689
    %v3121 = vunpack.c.h.b16 %v689
    %v3122 = vunpack.c.l.b16 %v690
    %v3123 = vunpack.c.h.b16 %v690
    %v3124 = vunpack.c.l.b16 %v691
    %v3125 = vunpack.c.h.b16 %v691
    %v3126 = vunpack.c.l.b16 %v692
    %v3127 = vunpack.c.h.b16 %v692
    %v3128 = vunpack.c.l.b16 %v693
    %v3129 = vunpack.c.h.b16 %v693
    %v3130 = vunpack.c.l.b16 %v694
    %v3131 = vunpack.c.h.b16 %v694
    %v3132 = vunpack.c.l.b16 %v695
    %v3133 = vunpack.c.h.b16 %v695
    %v3134 = vunpack.c.l.b16 %v696
    %v3135 = vunpack.c.h.b16 %v696
    %v3136 = vunpack.c.l.b16 %v697
    %v3137 = vunpack.c.h.b16 %v697
    %v3138 = vunpack.c.l.b16 %v698
    %v3139 = vunpack.c.h.b16 %v698
    %v3140 = vunpack.c.l.b16 %v699
    %v3141 = vunpack.c.h.b16 %v699
    %v3142 = vunpack.c.l.b16 %v700
    %v3143 = vunpack.c.h.b16 %v700
    %v3144 = vunpack.c.l.b16 %v701
    %v3145 = vunpack.c.h.b16 %v701
    %v3146 = vunpack.c.l.b16 %v702
    %v3147 = vunpack.c.h.b16 %v702
    %v3148 = vunpack.c.l.b16 %v703
    %v3149 = vunpack.c.h.b16 %v703
    %v3150 = vunpack.c.l.b16 %v704
    %v3151 = vunpack.c.h.b16 %v704
    %v3152 = vunpack.c.l.b16 %v705
    %v3153 = vunpack.c.h.b16 %v705
    %v3154 = vunpack.c.l.b16 %v706
    %v3155 = vunpack.c.h.b16 %v706
    %v3156 = vunpack.c.l.b16 %v707
    %v3157 = vunpack.c.h.b16 %v707
    %v3158 = vunpack.c.l.b16 %v708
    %v3159 = vunpack.c.h.b16 %v708
    %v3160 = vunpack.c.l.b16 %v709
    %v3161 = vunpack.c.h.b16 %v709
    %v3162 = vunpack.c.l.b16 %v710
    %v3163 = vunpack.c.h.b16 %v710
    %v3164 = vunpack.c.l.b16 %v711
    %v3165 = vunpack.c.h.b16 %v711
    %v3166 = vunpack.c.l.b16 %v712
    %v3167 = vunpack.c.h.b16 %v712
    %v3168 = vunpack.c.l.b16 %v713
    %v3169 = vunpack.c.h.b16 %v713
    %v3170 = vunpack.c.l.b16 %v714
    %v3171 = vunpack.c.h.b16 %v714
    %v3172 = vunpack.c.l.b16 %v715
    %v3173 = vunpack.c.h.b16 %v715
    %v3174 = vunpack.c.l.b16 %v716
    %v3175 = vunpack.c.h.b16 %v716
    %v3176 = vunpack.c.l.b16 %v717
    %v3177 = vunpack.c.h.b16 %v717
    %v3178 = vunpack.c.l.b16 %v718
    %v3179 = vunpack.c.h.b16 %v718
    %v3180 = vunpack.c.l.b16 %v719
    %v3181 = vunpack.c.h.b16 %v719
    %v3182 = vunpack.c.l.b16 %v720
    %v3183 = vunpack.c.h.b16 %v720
    %v3184 = vunpack.c.l.b16 %v721
    %v3185 = vunpack.c.h.b16 %v721
    %v3186 = vunpack.c.l.b16 %v722
    %v3187 = vunpack.c.h.b16 %v722
    %v3188 = vunpack.c.l.b16 %v723
    %v3189 = vunpack.c.h.b16 %v723
    %v3190 = vunpack.c.l.b16 %v724
    %v3191 = vunpack.c.h.b16 %v724
    %v3192 = vunpack.c.l.b16 %v725
    %v3193 = vunpack.c.h.b16 %v725
    %v3194 = vunpack.c.l.b16 %v726
    %v3195 = vunpack.c.h.b16 %v726
    %v3196 = vunpack.c.l.b16 %v727
    %v3197 = vunpack.c.h.b16 %v727
    %v3198 = vunpack.c.l.b16 %v728
    %v3199 = vunpack.c.h.b16 %v728
    %v3200 = vunpack.c.l.b16 %v729
    %v3201 = vunpack.c.h.b16 %v729
    %v3202 = vunpack.c.l.b16 %v730
    %v3203 = vunpack.c.h.b16 %v730
    %v3204 = vunpack.c.l.b16 %v731
    %v3205 = vunpack.c.h.b16 %v731
    %v3206 = vunpack.c.l.b16 %v732
    %v3207 = vunpack.c.h.b16 %v732
    %v3208 = vunpack.c.l.b16 %v733
    %v3209 = vunpack.c.h.b16 %v733
    %v3210 = vunpack.c.l.b16 %v734
    %v3211 = vunpack.c.h.b16 %v734
    %v3212 = vunpack.c.l.b16 %v735
    %v3213 = vunpack.c.h.b16 %v735
    %v3214 = vunpack.c.l.b16 %v736
    %v3215 = vunpack.c.h.b16 %v736
    %v3216 = vunpack.c.l.b16 %v737
    %v3217 = vunpack.c.h.b16 %v737
    %v3218 = vunpack.c.l.b16 %v738
    %v3219 = vunpack.c.h.b16 %v738
    %v3220 = vunpack.c.l.b16 %v739
    %v3221 = vunpack.c.h.b16 %v739
    %v3222 = vunpack.c.l.b16 %v740
    %v3223 = vunpack.c.h.b16 %v740
    %v3224 = vunpack.c.l.b16 %v741
    %v3225 = vunpack.c.h.b16 %v741
    %v3226 = vunpack.c.l.b16 %v742
    %v3227 = vunpack.c.h.b16 %v742
    %v3228 = vunpack.c.l.b16 %v743
    %v3229 = vunpack.c.h.b16 %v743
    %v3230 = vunpack.c.l.b16 %v744
    %v3231 = vunpack.c.h.b16 %v744
    %v3232 = vunpack.c.l.b16 %v745
    %v3233 = vunpack.c.h.b16 %v745
    %v3234 = vunpack.c.l.b16 %v746
    %v3235 = vunpack.c.h.b16 %v746
    %v3236 = vunpack.c.l.b16 %v747
    %v3237 = vunpack.c.h.b16 %v747
    %v3238 = vunpack.c.l.b16 %v748
    %v3239 = vunpack.c.h.b16 %v748
    %v3240 = vunpack.c.l.b16 %v749
    %v3241 = vunpack.c.h.b16 %v749
    %v3242 = vunpack.c.l.b16 %v750
    %v3243 = vunpack.c.h.b16 %v750
    %v3244 = vunpack.c.l.b16 %v751
    %v3245 = vunpack.c.h.b16 %v751
    %v3246 = vunpack.c.l.b16 %v752
    %v3247 = vunpack.c.h.b16 %v752
    %v3248 = vunpack.c.l.b16 %v753
    %v3249 = vunpack.c.h.b16 %v753
    %v3250 = vunpack.c.l.b16 %v754
    %v3251 = vunpack.c.h.b16 %v754
    %v3252 = vunpack.c.l.b16 %v755
    %v3253 = vunpack.c.h.b16 %v755
    %v3254 = vunpack.c.l.b16 %v756
    %v3255 = vunpack.c.h.b16 %v756
    %v3256 = vunpack.c.l.b16 %v757
    %v3257 = vunpack.c.h.b16 %v757
    %v3258 = vunpack.c.l.b16 %v758
    %v3259 = vunpack.c.h.b16 %v758
    %v3260 = vunpack.c.l.b16 %v759
    %v3261 = vunpack.c.h.b16 %v759
    %v3262 = vunpack.c.l.b16 %v760
    %v3263 = vunpack.c.h.b16 %v760
    %v3264 = vunpack.c.l.b16 %v761
    %v3265 = vunpack.c.h.b16 %v761
    %v3266 = vunpack.c.l.b16 %v762
    %v3267 = vunpack.c.h.b16 %v762
    %v3268 = vunpack.c.l.b16 %v763
    %v3269 = vunpack.c.h.b16 %v763
    %v3270 = vunpack.c.l.b16 %v764
    %v3271 = vunpack.c.h.b16 %v764
    %v3272 = vunpack.c.l.b16 %v765
    %v3273 = vunpack.c.h.b16 %v765
    %v3274 = vunpack.c.l.b16 %v766
    %v3275 = vunpack.c.h.b16 %v766
    %v3276 = vunpack.c.l.b16 %v767
    %v3277 = vunpack.c.h.b16 %v767
    %v3278 = vunpack.c.l.b16 %v768
    %v3279 = vunpack.c.h.b16 %v768
    %v3280 = vunpack.c.l.b16 %v769
    %v3281 = vunpack.c.h.b16 %v769
    %v3282 = vunpack.c.l.b16 %v770
    %v3283 = vunpack.c.h.b16 %v770
    %v3284 = vunpack.c.l.b16 %v771
    %v3285 = vunpack.c.h.b16 %v771
    %v3286 = vunpack.c.l.b16 %v772
    %v3287 = vunpack.c.h.b16 %v772
    %v3288 = vunpack.c.l.b16 %v773
    %v3289 = vunpack.c.h.b16 %v773
    %v3290 = vunpack.c.l.b16 %v774
    %v3291 = vunpack.c.h.b16 %v774
    %v3292 = vunpack.c.l.b16 %v775
    %v3293 = vunpack.c.h.b16 %v775
    %v3294 = vunpack.c.l.b16 %v776
    %v3295 = vunpack.c.h.b16 %v776
    %v3296 = vunpack.c.l.b16 %v777
    %v3297 = vunpack.c.h.b16 %v777
    %v3298 = vunpack.c.l.b16 %v778
    %v3299 = vunpack.c.h.b16 %v778
    %v3300 = vunpack.c.l.b16 %v779
    %v3301 = vunpack.c.h.b16 %v779
    %v3302 = vunpack.c.l.b16 %v780
    %v3303 = vunpack.c.h.b16 %v780
    %v3304 = vunpack.c.l.b16 %v781
    %v3305 = vunpack.c.h.b16 %v781
    %v3306 = vunpack.c.l.b16 %v782
    %v3307 = vunpack.c.h.b16 %v782
    %v3308 = vunpack.c.l.b16 %v783
    %v3309 = vunpack.c.h.b16 %v783
    %v3310 = vunpack.c.l.b16 %v784
    %v3311 = vunpack.c.h.b16 %v784
    %v3312 = vunpack.c.l.b16 %v785
    %v3313 = vunpack.c.h.b16 %v785
    %v3314 = vunpack.c.l.b16 %v786
    %v3315 = vunpack.c.h.b16 %v786
    %v3316 = vunpack.c.l.b16 %v787
    %v3317 = vunpack.c.h.b16 %v787
    %v3318 = vunpack.c.l.b16 %v788
    %v3319 = vunpack.c.h.b16 %v788
    %v3320 = vunpack.c.l.b16 %v789
    %v3321 = vunpack.c.h.b16 %v789
    %v3322 = vunpack.c.l.b16 %v790
    %v3323 = vunpack.c.h.b16 %v790
    %v3324 = vunpack.c.l.b16 %v791
    %v3325 = vunpack.c.h.b16 %v791
    %v3326 = vunpack.c.l.b16 %v792
    %v3327 = vunpack.c.h.b16 %v792
    %v3328 = vunpack.c.l.b16 %v793
    %v3329 = vunpack.c.h.b16 %v793
    %v3330 = vunpack.c.l.b16 %v794
    %v3331 = vunpack.c.h.b16 %v794
    %v3332 = vunpack.c.l.b16 %v795
    %v3333 = vunpack.c.h.b16 %v795
    %v3334 = vunpack.c.l.b16 %v796
    %v3335 = vunpack.c.h.b16 %v796
    %v3336 = vunpack.c.l.b16 %v797
    %v3337 = vunpack.c.h.b16 %v797
    %v3338 = vunpack.c.l.b16 %v798
    %v3339 = vunpack.c.h.b16 %v798
    %v3340 = vunpack.c.l.b16 %v799
    %v3341 = vunpack.c.h.b16 %v799
    %v3342 = vunpack.c.l.b16 %v800
    %v3343 = vunpack.c.h.b16 %v800
    %v3344 = vunpack.c.l.b16 %v801
    %v3345 = vunpack.c.h.b16 %v801
    %v3346 = vunpack.c.l.b16 %v802
    %v3347 = vunpack.c.h.b16 %v802
    %v3348 = vunpack.c.l.b16 %v803
    %v3349 = vunpack.c.h.b16 %v803
    %v3350 = vunpack.c.l.b16 %v804
    %v3351 = vunpack.c.h.b16 %v804
    %v3352 = vunpack.c.l.b16 %v805
    %v3353 = vunpack.c.h.b16 %v805
    %v3354 = vunpack.c.l.b16 %v806
    %v3355 = vunpack.c.h.b16 %v806
    %v3356 = vunpack.c.l.b16 %v807
    %v3357 = vunpack.c.h.b16 %v807
    %v3358 = vunpack.c.l.b16 %v808
    %v3359 = vunpack.c.h.b16 %v808
    %v3360 = vunpack.c.l.b16 %v809
    %v3361 = vunpack.c.h.b16 %v809
    %v3362 = vunpack.c.l.b16 %v810
    %v3363 = vunpack.c.h.b16 %v810
    %v3364 = vunpack.c.l.b16 %v811
    %v3365 = vunpack.c.h.b16 %v811
    %v3366 = vunpack.c.l.b16 %v812
    %v3367 = vunpack.c.h.b16 %v812
    %v3368 = vunpack.c.l.b16 %v813
    %v3369 = vunpack.c.h.b16 %v813
    %v3370 = vunpack.c.l.b16 %v814
    %v3371 = vunpack.c.h.b16 %v814
    %v3372 = vunpack.c.l.b16 %v815
    %v3373 = vunpack.c.h.b16 %v815
    %v3374 = vunpack.c.l.b16 %v816
    %v3375 = vunpack.c.h.b16 %v816
    %v3376 = vunpack.c.l.b16 %v817
    %v3377 = vunpack.c.h.b16 %v817
    %v3378 = vunpack.c.l.b16 %v818
    %v3379 = vunpack.c.h.b16 %v818
    %v3380 = vunpack.c.l.b16 %v819
    %v3381 = vunpack.c.h.b16 %v819
    %v3382 = vunpack.c.l.b16 %v820
    %v3383 = vunpack.c.h.b16 %v820
    %v3384 = vunpack.c.l.b16 %v821
    %v3385 = vunpack.c.h.b16 %v821
    %v3386 = vunpack.c.l.b16 %v822
    %v3387 = vunpack.c.h.b16 %v822
    %v3388 = vunpack.c.l.b16 %v823
    %v3389 = vunpack.c.h.b16 %v823
    %v3390 = vunpack.c.l.b16 %v824
    %v3391 = vunpack.c.h.b16 %v824
    %v3392 = vunpack.c.l.b16 %v825
    %v3393 = vunpack.c.h.b16 %v825
    %v3394 = vunpack.c.l.b16 %v826
    %v3395 = vunpack.c.h.b16 %v826
    %v3396 = vunpack.c.l.b16 %v827
    %v3397 = vunpack.c.h.b16 %v827
    %v3398 = vunpack.c.l.b16 %v828
    %v3399 = vunpack.c.h.b16 %v828
    %v3400 = vunpack.c.l.b16 %v829
    %v3401 = vunpack.c.h.b16 %v829
    %v3402 = vunpack.c.l.b16 %v830
    %v3403 = vunpack.c.h.b16 %v830
    %v3404 = vunpack.c.l.b16 %v831
    %v3405 = vunpack.c.h.b16 %v831
    %v3406 = vunpack.c.l.b16 %v832
    %v3407 = vunpack.c.h.b16 %v832
    %v3408 = vunpack.c.l.b16 %v833
    %v3409 = vunpack.c.h.b16 %v833
    %v3410 = vunpack.c.l.b16 %v834
    %v3411 = vunpack.c.h.b16 %v834
    %v3412 = vunpack.c.l.b16 %v835
    %v3413 = vunpack.c.h.b16 %v835
    %v3414 = vunpack.c.l.b16 %v836
    %v3415 = vunpack.c.h.b16 %v836
    %v3416 = vunpack.c.l.b16 %v837
    %v3417 = vunpack.c.h.b16 %v837
    %v3418 = vunpack.c.l.b16 %v838
    %v3419 = vunpack.c.h.b16 %v838
    %v3420 = vunpack.c.l.b16 %v839
    %v3421 = vunpack.c.h.b16 %v839
    %v3422 = vunpack.c.l.b16 %v840
    %v3423 = vunpack.c.h.b16 %v840
    %v3424 = vunpack.c.l.b16 %v841
    %v3425 = vunpack.c.h.b16 %v841
    %v3426 = vunpack.c.l.b16 %v842
    %v3427 = vunpack.c.h.b16 %v842
    %v3428 = vunpack.c.l.b16 %v843
    %v3429 = vunpack.c.h.b16 %v843
    %v3430 = vunpack.c.l.b16 %v844
    %v3431 = vunpack.c.h.b16 %v844
    %v3432 = vunpack.c.l.b16 %v845
    %v3433 = vunpack.c.h.b16 %v845
    %v3434 = vunpack.c.l.b16 %v846
    %v3435 = vunpack.c.h.b16 %v846
    %v3436 = vunpack.c.l.b16 %v847
    %v3437 = vunpack.c.h.b16 %v847
    %v3438 = vunpack.c.l.b16 %v848
    %v3439 = vunpack.c.h.b16 %v848
    %v3440 = vunpack.c.l.b16 %v849
    %v3441 = vunpack.c.h.b16 %v849
    %v3442 = vunpack.c.l.b16 %v850
    %v3443 = vunpack.c.h.b16 %v850
    %v3444 = vunpack.c.l.b16 %v851
    %v3445 = vunpack.c.h.b16 %v851
    %v3446 = vunpack.c.l.b16 %v852
    %v3447 = vunpack.c.h.b16 %v852
    %v3448 = vunpack.c.l.b16 %v853
    %v3449 = vunpack.c.h.b16 %v853
    %v3450 = vunpack.c.l.b16 %v854
    %v3451 = vunpack.c.h.b16 %v854
    %v3452 = vunpack.c.l.b16 %v855
    %v3453 = vunpack.c.h.b16 %v855
    %v3454 = vunpack.c.l.b16 %v856
    %v3455 = vunpack.c.h.b16 %v856
    %v3456 = vunpack.c.l.b16 %v857
    %v3457 = vunpack.c.h.b16 %v857
    %v3458 = vunpack.c.l.b16 %v858
    %v3459 = vunpack.c.h.b16 %v858
    %v3460 = vunpack.c.l.b16 %v859
    %v3461 = vunpack.c.h.b16 %v859
    %v3462 = vunpack.c.l.b16 %v860
    %v3463 = vunpack.c.h.b16 %v860
    %v3464 = vunpack.c.l.b16 %v861
    %v3465 = vunpack.c.h.b16 %v861
    %v3466 = vunpack.c.l.b16 %v862
    %v3467 = vunpack.c.h.b16 %v862
    %v3468 = vunpack.c.l.b16 %v863
    %v3469 = vunpack.c.h.b16 %v863
    %v3470 = vunpack.c.l.b16 %v864
    %v3471 = vunpack.c.h.b16 %v864
    %v3472 = vunpack.c.l.b16 %v865
    %v3473 = vunpack.c.h.b16 %v865
    %v3474 = vunpack.c.l.b16 %v866
    %v3475 = vunpack.c.h.b16 %v866
    %v3476 = vunpack.c.l.b16 %v867
    %v3477 = vunpack.c.h.b16 %v867
    %v3478 = vunpack.c.l.b16 %v868
    %v3479 = vunpack.c.h.b16 %v868
    %v3480 = vunpack.c.l.b16 %v869
    %v3481 = vunpack.c.h.b16 %v869
    %v3482 = vunpack.c.l.b16 %v870
    %v3483 = vunpack.c.h.b16 %v870
    %v3484 = vunpack.c.l.b16 %v871
    %v3485 = vunpack.c.h.b16 %v871
    %v3486 = vunpack.c.l.b16 %v872
    %v3487 = vunpack.c.h.b16 %v872
    %v3488 = vunpack.c.l.b16 %v873
    %v3489 = vunpack.c.h.b16 %v873
    %v3490 = vunpack.c.l.b16 %v874
    %v3491 = vunpack.c.h.b16 %v874
    %v3492 = vunpack.c.l.b16 %v875
    %v3493 = vunpack.c.h.b16 %v875
    %v3494 = vunpack.c.l.b16 %v876
    %v3495 = vunpack.c.h.b16 %v876
    %v3496 = vunpack.c.l.b16 %v877
    %v3497 = vunpack.c.h.b16 %v877
    %v3498 = vunpack.c.l.b16 %v878
    %v3499 = vunpack.c.h.b16 %v878
    %v3500 = vunpack.c.l.b16 %v879
    %v3501 = vunpack.c.h.b16 %v879
    %v3502 = vunpack.c.l.b16 %v880
    %v3503 = vunpack.c.h.b16 %v880
    %v3504 = vunpack.c.l.b16 %v881
    %v3505 = vunpack.c.h.b16 %v881
    %v3506 = vunpack.c.l.b16 %v882
    %v3507 = vunpack.c.h.b16 %v882
    %v3508 = vunpack.c.l.b16 %v883
    %v3509 = vunpack.c.h.b16 %v883
    %v3510 = vunpack.c.l.b16 %v884
    %v3511 = vunpack.c.h.b16 %v884
    %v3512 = vunpack.c.l.b16 %v885
    %v3513 = vunpack.c.h.b16 %v885
    %v3514 = vunpack.c.l.b16 %v886
    %v3515 = vunpack.c.h.b16 %v886
    %v3516 = vunpack.c.l.b16 %v887
    %v3517 = vunpack.c.h.b16 %v887
    %v3518 = vunpack.c.l.b16 %v888
    %v3519 = vunpack.c.h.b16 %v888
    %v3520 = vunpack.c.l.b16 %v889
    %v3521 = vunpack.c.h.b16 %v889
    %v3522 = vunpack.c.l.b16 %v890
    %v3523 = vunpack.c.h.b16 %v890
    %v3524 = vunpack.c.l.b16 %v891
    %v3525 = vunpack.c.h.b16 %v891
    %v3526 = vunpack.c.l.b16 %v892
    %v3527 = vunpack.c.h.b16 %v892
    %v3528 = vunpack.c.l.b16 %v893
    %v3529 = vunpack.c.h.b16 %v893
    %v3530 = vunpack.c.l.b16 %v894
    %v3531 = vunpack.c.h.b16 %v894
    %v3532 = vunpack.c.l.b16 %v895
    %v3533 = vunpack.c.h.b16 %v895
    %v3534 = vunpack.c.l.b16 %v896
    %v3535 = vunpack.c.h.b16 %v896
    %v3536 = vunpack.c.l.b16 %v897
    %v3537 = vunpack.c.h.b16 %v897
    %v3538 = vunpack.c.l.b16 %v898
    %v3539 = vunpack.c.h.b16 %v898
    %v3540 = vunpack.c.l.b16 %v899
    %v3541 = vunpack.c.h.b16 %v899
    %v3542 = vunpack.c.l.b16 %v900
    %v3543 = vunpack.c.h.b16 %v900
    %v3544 = vunpack.c.l.b16 %v901
    %v3545 = vunpack.c.h.b16 %v901
    %v3546 = vunpack.c.l.b16 %v902
    %v3547 = vunpack.c.h.b16 %v902
    %v3548 = vunpack.c.l.b16 %v903
    %v3549 = vunpack.c.h.b16 %v903
    %v3550 = vunpack.c.l.b16 %v904
    %v3551 = vunpack.c.h.b16 %v904
    %v3552 = vunpack.c.l.b16 %v905
    %v3553 = vunpack.c.h.b16 %v905
    %v3554 = vunpack.c.l.b16 %v906
    %v3555 = vunpack.c.h.b16 %v906
    %v3556 = vunpack.c.l.b16 %v907
    %v3557 = vunpack.c.h.b16 %v907
    %v3558 = vunpack.c.l.b16 %v908
    %v3559 = vunpack.c.h.b16 %v908
    %v3560 = vunpack.c.l.b16 %v909
    %v3561 = vunpack.c.h.b16 %v909
    %v3562 = vunpack.c.l.b16 %v910
    %v3563 = vunpack.c.h.b16 %v910
    %v3564 = vunpack.c.l.b16 %v911
    %v3565 = vunpack.c.h.b16 %v911
    %v3566 = vunpack.c.l.b16 %v912
    %v3567 = vunpack.c.h.b16 %v912
    %v3568 = vunpack.c.l.b16 %v913
    %v3569 = vunpack.c.h.b16 %v913
    %v3570 = vunpack.c.l.b16 %v914
    %v3571 = vunpack.c.h.b16 %v914
    %v3572 = vunpack.c.l.b16 %v915
    %v3573 = vunpack.c.h.b16 %v915
    %v3574 = vunpack.c.l.b16 %v916
    %v3575 = vunpack.c.h.b16 %v916
    %v3576 = vunpack.c.l.b16 %v917
    %v3577 = vunpack.c.h.b16 %v917
    %v3578 = vunpack.c.l.b16 %v918
    %v3579 = vunpack.c.h.b16 %v918
    %v3580 = vpack.c.b16 %v1860, %v1852
    %v3581 = vpack.c.b16 %v1861, %v1853
    %v3582 = vpack.c.b16 %v1862, %v1854
    %v3583 = vpack.c.b16 %v1863, %v1855
    %v3584 = vpack.c.b16 %v1864, %v1856
    %v3585 = vpack.c.b16 %v1865, %v1857
    %v3586 = vpack.c.b16 %v1866, %v1858
    %v3587 = vpack.c.b16 %v1867, %v1859
    %v3588 = vpack.c.b16 %v1876, %v1868
    %v3589 = vpack.c.b16 %v1877, %v1869
    %v3590 = vpack.c.b16 %v1878, %v1870
    %v3591 = vpack.c.b16 %v1879, %v1871
    %v3592 = vpack.c.b16 %v1880, %v1872
    %v3593 = vpack.c.b16 %v1881, %v1873
    %v3594 = vpack.c.b16 %v1882, %v1874
    %v3595 = vpack.c.b16 %v1883, %v1875
    %v3596 = vpack.c.b16 %v1892, %v1884
    %v3597 = vpack.c.b16 %v1893, %v1885
    %v3598 = vpack.c.b16 %v1894, %v1886
    %v3599 = vpack.c.b16 %v1895, %v1887
    %v3600 = vpack.c.b16 %v1896, %v1888
    %v3601 = vpack.c.b16 %v1897, %v1889
    %v3602 = vpack.c.b16 %v1898, %v1890
    %v3603 = vpack.c.b16 %v1899, %v1891
    %v3604 = vpack.c.b16 %v1908, %v1900
    %v3605 = vpack.c.b16 %v1909, %v1901
    %v3606 = vpack.c.b16 %v1910, %v1902
    %v3607 = vpack.c.b16 %v1911, %v1903
    %v3608 = vpack.c.b16 %v1912, %v1904
    %v3609 = vpack.c.b16 %v1913, %v1905
    %v3610 = vpack.c.b16 %v1914, %v1906
    %v3611 = vpack.c.b16 %v1915, %v1907
    %v3612 = vpack.c.b16 %v1924, %v1916
    %v3613 = vpack.c.b16 %v1925, %v1917
    %v3614 = vpack.c.b16 %v1926, %v1918
    %v3615 = vpack.c.b16 %v1927, %v1919
    %v3616 = vpack.c.b16 %v1928, %v1920
    %v3617 = vpack.c.b16 %v1929, %v1921
    %v3618 = vpack.c.b16 %v1930, %v1922
    %v3619 = vpack.c.b16 %v1931, %v1923
    %v3620 = vpack.c.b16 %v1940, %v1932
    %v3621 = vpack.c.b16 %v1941, %v1933
    %v3622 = vpack.c.b16 %v1942, %v1934
    %v3623 = vpack.c.b16 %v1943, %v1935
    %v3624 = vpack.c.b16 %v1944, %v1936
    %v3625 = vpack.c.b16 %v1945, %v1937
    %v3626 = vpack.c.b16 %v1946, %v1938
    %v3627 = vpack.c.b16 %v1947, %v1939
    %v3628 = vpack.c.b16 %v1956, %v1948
    %v3629 = vpack.c.b16 %v1957, %v1949
    %v3630 = vpack.c.b16 %v1958, %v1950
    %v3631 = vpack.c.b16 %v1959, %v1951
    %v3632 = vpack.c.b16 %v1960, %v1952
    %v3633 = vpack.c.b16 %v1961, %v1953
    %v3634 = vpack.c.b16 %v1962, %v1954
    %v3635 = vpack.c.b16 %v1963, %v1955
    %v3636 = vpack.c.b16 %v1972, %v1964
    %v3637 = vpack.c.b16 %v1973, %v1965
    %v3638 = vpack.c.b16 %v1974, %v1966
    %v3639 = vpack.c.b16 %v1975, %v1967
    %v3640 = vpack.c.b16 %v1976, %v1968
    %v3641 = vpack.c.b16 %v1977, %v1969
    %v3642 = vpack.c.b16 %v1978, %v1970
    %v3643 = vpack.c.b16 %v1979, %v1971
    %v3644 = vpack.c.b16 %v1988, %v1980
    %v3645 = vpack.c.b16 %v1989, %v1981
    %v3646 = vpack.c.b16 %v1990, %v1982
    %v3647 = vpack.c.b16 %v1991, %v1983
    %v3648 = vpack.c.b16 %v1992, %v1984
    %v3649 = vpack.c.b16 %v1993, %v1985
    %v3650 = vpack.c.b16 %v1994, %v1986
    %v3651 = vpack.c.b16 %v1995, %v1987
    %v3652 = vpack.c.b16 %v2004, %v1996
    %v3653 = vpack.c.b16 %v2005, %v1997
    %v3654 = vpack.c.b16 %v2006, %v1998
    %v3655 = vpack.c.b16 %v2007, %v1999
    %v3656 = vpack.c.b16 %v2008, %v2000
    %v3657 = vpack.c.b16 %v2009, %v2001
    %v3658 = vpack.c.b16 %v2010, %v2002
    %v3659 = vpack.c.b16 %v2011, %v2003
    %v3660 = vpack.c.b16 %v2020, %v2012
    %v3661 = vpack.c.b16 %v2021, %v2013
    %v3662 = vpack.c.b16 %v2022, %v2014
    %v3663 = vpack.c.b16 %v2023, %v2015
    %v3664 = vpack.c.b16 %v2024, %v2016
    %v3665 = vpack.c.b16 %v2025, %v2017
    %v3666 = vpack.c.b16 %v2026, %v2018
    %v3667 = vpack.c.b16 %v2027, %v2019
    %v3668 = vpack.c.b16 %v2036, %v2028
    %v3669 = vpack.c.b16 %v2037, %v2029
    %v3670 = vpack.c.b16 %v2038, %v2030
    %v3671 = vpack.c.b16 %v2039, %v2031
    %v3672 = vpack.c.b16 %v2040, %v2032
    %v3673 = vpack.c.b16 %v2041, %v2033
    %v3674 = vpack.c.b16 %v2042, %v2034
    %v3675 = vpack.c.b16 %v2043, %v2035
    %v3676 = vpack.c.b16 %v2052, %v2044
    %v3677 = vpack.c.b16 %v2053, %v2045
    %v3678 = vpack.c.b16 %v2054, %v2046
    %v3679 = vpack.c.b16 %v2055, %v2047
    %v3680 = vpack.c.b16 %v2056, %v2048
    %v3681 = vpack.c.b16 %v2057, %v2049
    %v3682 = vpack.c.b16 %v2058, %v2050
    %v3683 = vpack.c.b16 %v2059, %v2051
    %v3684 = vpack.c.b16 %v2068, %v2060
    %v3685 = vpack.c.b16 %v2069, %v2061
    %v3686 = vpack.c.b16 %v2070, %v2062
    %v3687 = vpack.c.b16 %v2071, %v2063
    %v3688 = vpack.c.b16 %v2072, %v2064
    %v3689 = vpack.c.b16 %v2073, %v2065
    %v3690 = vpack.c.b16 %v2074, %v2066
    %v3691 = vpack.c.b16 %v2075, %v2067
    %v3692 = vpack.c.b16 %v2084, %v2076
    %v3693 = vpack.c.b16 %v2085, %v2077
    %v3694 = vpack.c.b16 %v2086, %v2078
    %v3695 = vpack.c.b16 %v2087, %v2079
    %v3696 = vpack.c.b16 %v2088, %v2080
    %v3697 = vpack.c.b16 %v2089, %v2081
    %v3698 = vpack.c.b16 %v2090, %v2082
    %v3699 = vpack.c.b16 %v2091, %v2083
    %v3700 = vpack.c.b16 %v2100, %v2092
    %v3701 = vpack.c.b16 %v2101, %v2093
    %v3702 = vpack.c.b16 %v2102, %v2094
    %v3703 = vpack.c.b16 %v2103, %v2095
    %v3704 = vpack.c.b16 %v2104, %v2096
    %v3705 = vpack.c.b16 %v2105, %v2097
    %v3706 = vpack.c.b16 %v2106, %v2098
    %v3707 = vpack.c.b16 %v2107, %v2099
    %v3708 = vpack.c.b16 %v2116, %v2108
    %v3709 = vpack.c.b16 %v2117, %v2109
    %v3710 = vpack.c.b16 %v2118, %v2110
    %v3711 = vpack.c.b16 %v2119, %v2111
    %v3712 = vpack.c.b16 %v2120, %v2112
    %v3713 = vpack.c.b16 %v2121, %v2113
    %v3714 = vpack.c.b16 %v2122, %v2114
    %v3715 = vpack.c.b16 %v2123, %v2115
    %v3716 = vpack.c.b16 %v2132, %v2124
    %v3717 = vpack.c.b16 %v2133, %v2125
    %v3718 = vpack.c.b16 %v2134, %v2126
    %v3719 = vpack.c.b16 %v2135, %v2127
    %v3720 = vpack.c.b16 %v2136, %v2128
    %v3721 = vpack.c.b16 %v2137, %v2129
    %v3722 = vpack.c.b16 %v2138, %v2130
    %v3723 = vpack.c.b16 %v2139, %v2131
    %v3724 = vpack.c.b16 %v2148, %v2140
    %v3725 = vpack.c.b16 %v2149, %v2141
    %v3726 = vpack.c.b16 %v2150, %v2142
    %v3727 = vpack.c.b16 %v2151, %v2143
    %v3728 = vpack.c.b16 %v2152, %v2144
    %v3729 = vpack.c.b16 %v2153, %v2145
    %v3730 = vpack.c.b16 %v2154, %v2146
    %v3731 = vpack.c.b16 %v2155, %v2147
    %v3732 = vpack.c.b16 %v2164, %v2156
    %v3733 = vpack.c.b16 %v2165, %v2157
    %v3734 = vpack.c.b16 %v2166, %v2158
    %v3735 = vpack.c.b16 %v2167, %v2159
    %v3736 = vpack.c.b16 %v2168, %v2160
    %v3737 = vpack.c.b16 %v2169, %v2161
    %v3738 = vpack.c.b16 %v2170, %v2162
    %v3739 = vpack.c.b16 %v2171, %v2163
    %v3740 = vpack.c.b16 %v2180, %v2172
    %v3741 = vpack.c.b16 %v2181, %v2173
    %v3742 = vpack.c.b16 %v2182, %v2174
    %v3743 = vpack.c.b16 %v2183, %v2175
    %v3744 = vpack.c.b16 %v2184, %v2176
    %v3745 = vpack.c.b16 %v2185, %v2177
    %v3746 = vpack.c.b16 %v2186, %v2178
    %v3747 = vpack.c.b16 %v2187, %v2179
    %v3748 = vpack.c.b16 %v2196, %v2188
    %v3749 = vpack.c.b16 %v2197, %v2189
    %v3750 = vpack.c.b16 %v2198, %v2190
    %v3751 = vpack.c.b16 %v2199, %v2191
    %v3752 = vpack.c.b16 %v2200, %v2192
    %v3753 = vpack.c.b16 %v2201, %v2193
    %v3754 = vpack.c.b16 %v2202, %v2194
    %v3755 = vpack.c.b16 %v2203, %v2195
    %v3756 = vpack.c.b16 %v2212, %v2204
    %v3757 = vpack.c.b16 %v2213, %v2205
    %v3758 = vpack.c.b16 %v2214, %v2206
    %v3759 = vpack.c.b16 %v2215, %v2207
    %v3760 = vpack.c.b16 %v2216, %v2208
    %v3761 = vpack.c.b16 %v2217, %v2209
    %v3762 = vpack.c.b16 %v2218, %v2210
    %v3763 = vpack.c.b16 %v2219, %v2211
    %v3764 = vpack.c.b16 %v2228, %v2220
    %v3765 = vpack.c.b16 %v2229, %v2221
    %v3766 = vpack.c.b16 %v2230, %v2222
    %v3767 = vpack.c.b16 %v2231, %v2223
    %v3768 = vpack.c.b16 %v2232, %v2224
    %v3769 = vpack.c.b16 %v2233, %v2225
    %v3770 = vpack.c.b16 %v2234, %v2226
    %v3771 = vpack.c.b16 %v2235, %v2227
    %v3772 = vpack.c.b16 %v2244, %v2236
    %v3773 = vpack.c.b16 %v2245, %v2237
    %v3774 = vpack.c.b16 %v2246, %v2238
    %v3775 = vpack.c.b16 %v2247, %v2239
    %v3776 = vpack.c.b16 %v2248, %v2240
    %v3777 = vpack.c.b16 %v2249, %v2241
    %v3778 = vpack.c.b16 %v2250, %v2242
    %v3779 = vpack.c.b16 %v2251, %v2243
    %v3780 = vpack.c.b16 %v2260, %v2252
    %v3781 = vpack.c.b16 %v2261, %v2253
    %v3782 = vpack.c.b16 %v2262, %v2254
    %v3783 = vpack.c.b16 %v2263, %v2255
    %v3784 = vpack.c.b16 %v2264, %v2256
    %v3785 = vpack.c.b16 %v2265, %v2257
    %v3786 = vpack.c.b16 %v2266, %v2258
    %v3787 = vpack.c.b16 %v2267, %v2259
    %v3788 = vpack.c.b16 %v2276, %v2268
    %v3789 = vpack.c.b16 %v2277, %v2269
    %v3790 = vpack.c.b16 %v2278, %v2270
    %v3791 = vpack.c.b16 %v2279, %v2271
    %v3792 = vpack.c.b16 %v2280, %v2272
    %v3793 = vpack.c.b16 %v2281, %v2273
    %v3794 = vpack.c.b16 %v2282, %v2274
    %v3795 = vpack.c.b16 %v2283, %v2275
    %v3796 = vpack.c.b16 %v2292, %v2284
    %v3797 = vpack.c.b16 %v2293, %v2285
    %v3798 = vpack.c.b16 %v2294, %v2286
    %v3799 = vpack.c.b16 %v2295, %v2287
    %v3800 = vpack.c.b16 %v2296, %v2288
    %v3801 = vpack.c.b16 %v2297, %v2289
    %v3802 = vpack.c.b16 %v2298, %v2290
    %v3803 = vpack.c.b16 %v2299, %v2291
    %v3804 = vpack.c.b16 %v2308, %v2300
    %v3805 = vpack.c.b16 %v2309, %v2301
    %v3806 = vpack.c.b16 %v2310, %v2302
    %v3807 = vpack.c.b16 %v2311, %v2303
    %v3808 = vpack.c.b16 %v2312, %v2304
    %v3809 = vpack.c.b16 %v2313, %v2305
    %v3810 = vpack.c.b16 %v2314, %v2306
    %v3811 = vpack.c.b16 %v2315, %v2307
    %v3812 = vpack.c.b16 %v2324, %v2316
    %v3813 = vpack.c.b16 %v2325, %v2317
    %v3814 = vpack.c.b16 %v2326, %v2318
    %v3815 = vpack.c.b16 %v2327, %v2319
    %v3816 = vpack.c.b16 %v2328, %v2320
    %v3817 = vpack.c.b16 %v2329, %v2321
    %v3818 = vpack.c.b16 %v2330, %v2322
    %v3819 = vpack.c.b16 %v2331, %v2323
    %v3820 = vpack.c.b16 %v2340, %v2332
    %v3821 = vpack.c.b16 %v2341, %v2333
    %v3822 = vpack.c.b16 %v2342, %v2334
    %v3823 = vpack.c.b16 %v2343, %v2335
    %v3824 = vpack.c.b16 %v2344, %v2336
    %v3825 = vpack.c.b16 %v2345, %v2337
    %v3826 = vpack.c.b16 %v2346, %v2338
    %v3827 = vpack.c.b16 %v2347, %v2339
    %v3828 = vpack.c.b16 %v2356, %v2348
    %v3829 = vpack.c.b16 %v2357, %v2349
    %v3830 = vpack.c.b16 %v2358, %v2350
    %v3831 = vpack.c.b16 %v2359, %v2351
    %v3832 = vpack.c.b16 %v2360, %v2352
    %v3833 = vpack.c.b16 %v2361, %v2353
    %v3834 = vpack.c.b16 %v2362, %v2354
    %v3835 = vpack.c.b16 %v2363, %v2355
    %v3836 = vpack.c.b16 %v2372, %v2364
    %v3837 = vpack.c.b16 %v2373, %v2365
    %v3838 = vpack.c.b16 %v2374, %v2366
    %v3839 = vpack.c.b16 %v2375, %v2367
    %v3840 = vpack.c.b16 %v2376, %v2368
    %v3841 = vpack.c.b16 %v2377, %v2369
    %v3842 = vpack.c.b16 %v2378, %v2370
    %v3843 = vpack.c.b16 %v2379, %v2371
    %v3844 = vpack.c.b16 %v2388, %v2380
    %v3845 = vpack.c.b16 %v2389, %v2381
    %v3846 = vpack.c.b16 %v2390, %v2382
    %v3847 = vpack.c.b16 %v2391, %v2383
    %v3848 = vpack.c.b16 %v2392, %v2384
    %v3849 = vpack.c.b16 %v2393, %v2385
    %v3850 = vpack.c.b16 %v2394, %v2386
    %v3851 = vpack.c.b16 %v2395, %v2387
    %v3852 = vpack.c.b16 %v2404, %v2396
    %v3853 = vpack.c.b16 %v2405, %v2397
    %v3854 = vpack.c.b16 %v2406, %v2398
    %v3855 = vpack.c.b16 %v2407, %v2399
    %v3856 = vpack.c.b16 %v2408, %v2400
    %v3857 = vpack.c.b16 %v2409, %v2401
    %v3858 = vpack.c.b16 %v2410, %v2402
    %v3859 = vpack.c.b16 %v2411, %v2403
    %v3860 = vpack.c.b16 %v2420, %v2412
    %v3861 = vpack.c.b16 %v2421, %v2413
    %v3862 = vpack.c.b16 %v2422, %v2414
    %v3863 = vpack.c.b16 %v2423, %v2415
    %v3864 = vpack.c.b16 %v2424, %v2416
    %v3865 = vpack.c.b16 %v2425, %v2417
    %v3866 = vpack.c.b16 %v2426, %v2418
    %v3867 = vpack.c.b16 %v2427, %v2419
    %v3868 = vpack.c.b16 %v2436, %v2428
    %v3869 = vpack.c.b16 %v2437, %v2429
    %v3870 = vpack.c.b16 %v2438, %v2430
    %v3871 = vpack.c.b16 %v2439, %v2431
    %v3872 = vpack.c.b16 %v2440, %v2432
    %v3873 = vpack.c.b16 %v2441, %v2433
    %v3874 = vpack.c.b16 %v2442, %v2434
    %v3875 = vpack.c.b16 %v2443, %v2435
    %v3876 = vpack.c.b16 %v2452, %v2444
    %v3877 = vpack.c.b16 %v2453, %v2445
    %v3878 = vpack.c.b16 %v2454, %v2446
    %v3879 = vpack.c.b16 %v2455, %v2447
    %v3880 = vpack.c.b16 %v2456, %v2448
    %v3881 = vpack.c.b16 %v2457, %v2449
    %v3882 = vpack.c.b16 %v2458, %v2450
    %v3883 = vpack.c.b16 %v2459, %v2451
    %v3884 = vpack.c.b16 %v2468, %v2460
    %v3885 = vpack.c.b16 %v2469, %v2461
    %v3886 = vpack.c.b16 %v2470, %v2462
    %v3887 = vpack.c.b16 %v2471, %v2463
    %v3888 = vpack.c.b16 %v2472, %v2464
    %v3889 = vpack.c.b16 %v2473, %v2465
    %v3890 = vpack.c.b16 %v2474, %v2466
    %v3891 = vpack.c.b16 %v2475, %v2467
    %v3892 = vpack.c.b16 %v2484, %v2476
    %v3893 = vpack.c.b16 %v2485, %v2477
    %v3894 = vpack.c.b16 %v2486, %v2478
    %v3895 = vpack.c.b16 %v2487, %v2479
    %v3896 = vpack.c.b16 %v2488, %v2480
    %v3897 = vpack.c.b16 %v2489, %v2481
    %v3898 = vpack.c.b16 %v2490, %v2482
    %v3899 = vpack.c.b16 %v2491, %v2483
    %v3900 = vpack.c.b16 %v2500, %v2492
    %v3901 = vpack.c.b16 %v2501, %v2493
    %v3902 = vpack.c.b16 %v2502, %v2494
    %v3903 = vpack.c.b16 %v2503, %v2495
    %v3904 = vpack.c.b16 %v2504, %v2496
    %v3905 = vpack.c.b16 %v2505, %v2497
    %v3906 = vpack.c.b16 %v2506, %v2498
    %v3907 = vpack.c.b16 %v2507, %v2499
    %v3908 = vpack.c.b16 %v2516, %v2508
    %v3909 = vpack.c.b16 %v2517, %v2509
    %v3910 = vpack.c.b16 %v2518, %v2510
    %v3911 = vpack.c.b16 %v2519, %v2511
    %v3912 = vpack.c.b16 %v2520, %v2512
    %v3913 = vpack.c.b16 %v2521, %v2513
    %v3914 = vpack.c.b16 %v2522, %v2514
    %v3915 = vpack.c.b16 %v2523, %v2515
    %v3916 = vpack.c.b16 %v2532, %v2524
    %v3917 = vpack.c.b16 %v2533, %v2525
    %v3918 = vpack.c.b16 %v2534, %v2526
    %v3919 = vpack.c.b16 %v2535, %v2527
    %v3920 = vpack.c.b16 %v2536, %v2528
    %v3921 = vpack.c.b16 %v2537, %v2529
    %v3922 = vpack.c.b16 %v2538, %v2530
    %v3923 = vpack.c.b16 %v2539, %v2531
    %v3924 = vpack.c.b16 %v2548, %v2540
    %v3925 = vpack.c.b16 %v2549, %v2541
    %v3926 = vpack.c.b16 %v2550, %v2542
    %v3927 = vpack.c.b16 %v2551, %v2543
    %v3928 = vpack.c.b16 %v2552, %v2544
    %v3929 = vpack.c.b16 %v2553, %v2545
    %v3930 = vpack.c.b16 %v2554, %v2546
    %v3931 = vpack.c.b16 %v2555, %v2547
    %v3932 = vpack.c.b16 %v2564, %v2556
    %v3933 = vpack.c.b16 %v2565, %v2557
    %v3934 = vpack.c.b16 %v2566, %v2558
    %v3935 = vpack.c.b16 %v2567, %v2559
    %v3936 = vpack.c.b16 %v2568, %v2560
    %v3937 = vpack.c.b16 %v2569, %v2561
    %v3938 = vpack.c.b16 %v2570, %v2562
    %v3939 = vpack.c.b16 %v2571, %v2563
    %v3940 = vpack.c.b16 %v2580, %v2572
    %v3941 = vpack.c.b16 %v2581, %v2573
    %v3942 = vpack.c.b16 %v2582, %v2574
    %v3943 = vpack.c.b16 %v2583, %v2575
    %v3944 = vpack.c.b16 %v2584, %v2576
    %v3945 = vpack.c.b16 %v2585, %v2577
    %v3946 = vpack.c.b16 %v2586, %v2578
    %v3947 = vpack.c.b16 %v2587, %v2579
    %v3948 = vpack.c.b16 %v2596, %v2588
    %v3949 = vpack.c.b16 %v2597, %v2589
    %v3950 = vpack.c.b16 %v2598, %v2590
    %v3951 = vpack.c.b16 %v2599, %v2591
    %v3952 = vpack.c.b16 %v2600, %v2592
    %v3953 = vpack.c.b16 %v2601, %v2593
    %v3954 = vpack.c.b16 %v2602, %v2594
    %v3955 = vpack.c.b16 %v2603, %v2595
    %v3956 = vpack.c.b16 %v2612, %v2604
    %v3957 = vpack.c.b16 %v2613, %v2605
    %v3958 = vpack.c.b16 %v2614, %v2606
    %v3959 = vpack.c.b16 %v2615, %v2607
    %v3960 = vpack.c.b16 %v2616, %v2608
    %v3961 = vpack.c.b16 %v2617, %v2609
    %v3962 = vpack.c.b16 %v2618, %v2610
    %v3963 = vpack.c.b16 %v2619, %v2611
    %v3964 = vpack.c.b16 %v2628, %v2620
    %v3965 = vpack.c.b16 %v2629, %v2621
    %v3966 = vpack.c.b16 %v2630, %v2622
    %v3967 = vpack.c.b16 %v2631, %v2623
    %v3968 = vpack.c.b16 %v2632, %v2624
    %v3969 = vpack.c.b16 %v2633, %v2625
    %v3970 = vpack.c.b16 %v2634, %v2626
    %v3971 = vpack.c.b16 %v2635, %v2627
    %v3972 = vpack.c.b16 %v2644, %v2636
    %v3973 = vpack.c.b16 %v2645, %v2637
    %v3974 = vpack.c.b16 %v2646, %v2638
    %v3975 = vpack.c.b16 %v2647, %v2639
    %v3976 = vpack.c.b16 %v2648, %v2640
    %v3977 = vpack.c.b16 %v2649, %v2641
    %v3978 = vpack.c.b16 %v2650, %v2642
    %v3979 = vpack.c.b16 %v2651, %v2643
    %v3980 = vpack.c.b16 %v2660, %v2652
    %v3981 = vpack.c.b16 %v2661, %v2653
    %v3982 = vpack.c.b16 %v2662, %v2654
    %v3983 = vpack.c.b16 %v2663, %v2655
    %v3984 = vpack.c.b16 %v2664, %v2656
    %v3985 = vpack.c.b16 %v2665, %v2657
    %v3986 = vpack.c.b16 %v2666, %v2658
    %v3987 = vpack.c.b16 %v2667, %v2659
    %v3988 = vpack.c.b16 %v2676, %v2668
    %v3989 = vpack.c.b16 %v2677, %v2669
    %v3990 = vpack.c.b16 %v2678, %v2670
    %v3991 = vpack.c.b16 %v2679, %v2671
    %v3992 = vpack.c.b16 %v2680, %v2672
    %v3993 = vpack.c.b16 %v2681, %v2673
    %v3994 = vpack.c.b16 %v2682, %v2674
    %v3995 = vpack.c.b16 %v2683, %v2675
    %v3996 = vpack.c.b16 %v2692, %v2684
    %v3997 = vpack.c.b16 %v2693, %v2685
    %v3998 = vpack.c.b16 %v2694, %v2686
    %v3999 = vpack.c.b16 %v2695, %v2687
    %v4000 = vpack.c.b16 %v2696, %v2688
    %v4001 = vpack.c.b16 %v2697, %v2689
    %v4002 = vpack.c.b16 %v2698, %v2690
    %v4003 = vpack.c.b16 %v2699, %v2691
    %v4004 = vpack.c.b16 %v2708, %v2700
    %v4005 = vpack.c.b16 %v2709, %v2701
    %v4006 = vpack.c.b16 %v2710, %v2702
    %v4007 = vpack.c.b16 %v2711, %v2703
    %v4008 = vpack.c.b16 %v2712, %v2704
    %v4009 = vpack.c.b16 %v2713, %v2705
    %v4010 = vpack.c.b16 %v2714, %v2706
    %v4011 = vpack.c.b16 %v2715, %v2707
    %v4012 = vpack.c.b16 %v2724, %v2716
    %v4013 = vpack.c.b16 %v2725, %v2717
    %v4014 = vpack.c.b16 %v2726, %v2718
    %v4015 = vpack.c.b16 %v2727, %v2719
    %v4016 = vpack.c.b16 %v2728, %v2720
    %v4017 = vpack.c.b16 %v2729, %v2721
    %v4018 = vpack.c.b16 %v2730, %v2722
    %v4019 = vpack.c.b16 %v2731, %v2723
    %v4020 = vpack.c.b16 %v2740, %v2732
    %v4021 = vpack.c.b16 %v2741, %v2733
    %v4022 = vpack.c.b16 %v2742, %v2734
    %v4023 = vpack.c.b16 %v2743, %v2735
    %v4024 = vpack.c.b16 %v2744, %v2736
    %v4025 = vpack.c.b16 %v2745, %v2737
    %v4026 = vpack.c.b16 %v2746, %v2738
    %v4027 = vpack.c.b16 %v2747, %v2739
    %v4028 = vpack.c.b16 %v2756, %v2748
    %v4029 = vpack.c.b16 %v2757, %v2749
    %v4030 = vpack.c.b16 %v2758, %v2750
    %v4031 = vpack.c.b16 %v2759, %v2751
    %v4032 = vpack.c.b16 %v2760, %v2752
    %v4033 = vpack.c.b16 %v2761, %v2753
    %v4034 = vpack.c.b16 %v2762, %v2754
    %v4035 = vpack.c.b16 %v2763, %v2755
    %v4036 = vpack.c.b16 %v2772, %v2764
    %v4037 = vpack.c.b16 %v2773, %v2765
    %v4038 = vpack.c.b16 %v2774, %v2766
    %v4039 = vpack.c.b16 %v2775, %v2767
    %v4040 = vpack.c.b16 %v2776, %v2768
    %v4041 = vpack.c.b16 %v2777, %v2769
    %v4042 = vpack.c.b16 %v2778, %v2770
    %v4043 = vpack.c.b16 %v2779, %v2771
    %v4044 = vpack.c.b16 %v2788, %v2780
    %v4045 = vpack.c.b16 %v2789, %v2781
    %v4046 = vpack.c.b16 %v2790, %v2782
    %v4047 = vpack.c.b16 %v2791, %v2783
    %v4048 = vpack.c.b16 %v2792, %v2784
    %v4049 = vpack.c.b16 %v2793, %v2785
    %v4050 = vpack.c.b16 %v2794, %v2786
    %v4051 = vpack.c.b16 %v2795, %v2787
    %v4052 = vpack.c.b16 %v2804, %v2796
    %v4053 = vpack.c.b16 %v2805, %v2797
    %v4054 = vpack.c.b16 %v2806, %v2798
    %v4055 = vpack.c.b16 %v2807, %v2799
    %v4056 = vpack.c.b16 %v2808, %v2800
    %v4057 = vpack.c.b16 %v2809, %v2801
    %v4058 = vpack.c.b16 %v2810, %v2802
    %v4059 = vpack.c.b16 %v2811, %v2803
    %v4060 = vpack.c.b16 %v2820, %v2812
    %v4061 = vpack.c.b16 %v2821, %v2813
    %v4062 = vpack.c.b16 %v2822, %v2814
    %v4063 = vpack.c.b16 %v2823, %v2815
    %v4064 = vpack.c.b16 %v2824, %v2816
    %v4065 = vpack.c.b16 %v2825, %v2817
    %v4066 = vpack.c.b16 %v2826, %v2818
    %v4067 = vpack.c.b16 %v2827, %v2819
    %v4068 = vpack.c.b16 %v2836, %v2828
    %v4069 = vpack.c.b16 %v2837, %v2829
    %v4070 = vpack.c.b16 %v2838, %v2830
    %v4071 = vpack.c.b16 %v2839, %v2831
    %v4072 = vpack.c.b16 %v2840, %v2832
    %v4073 = vpack.c.b16 %v2841, %v2833
    %v4074 = vpack.c.b16 %v2842, %v2834
    %v4075 = vpack.c.b16 %v2843, %v2835
    %v4076 = vpack.c.b16 %v2852, %v2844
    %v4077 = vpack.c.b16 %v2853, %v2845
    %v4078 = vpack.c.b16 %v2854, %v2846
    %v4079 = vpack.c.b16 %v2855, %v2847
    %v4080 = vpack.c.b16 %v2856, %v2848
    %v4081 = vpack.c.b16 %v2857, %v2849
    %v4082 = vpack.c.b16 %v2858, %v2850
    %v4083 = vpack.c.b16 %v2859, %v2851
    %v4084 = vpack.c.b16 %v2868, %v2860
    %v4085 = vpack.c.b16 %v2869, %v2861
    %v4086 = vpack.c.b16 %v2870, %v2862
    %v4087 = vpack.c.b16 %v2871, %v2863
    %v4088 = vpack.c.b16 %v2872, %v2864
    %v4089 = vpack.c.b16 %v2873, %v2865
    %v4090 = vpack.c.b16 %v2874, %v2866
    %v4091 = vpack.c.b16 %v2875, %v2867
    %v4092 = vpack.c.b16 %v2884, %v2876
    %v4093 = vpack.c.b16 %v2885, %v2877
    %v4094 = vpack.c.b16 %v2886, %v2878
    %v4095 = vpack.c.b16 %v2887, %v2879
    %v4096 = vpack.c.b16 %v2888, %v2880
    %v4097 = vpack.c.b16 %v2889, %v2881
    %v4098 = vpack.c.b16 %v2890, %v2882
    %v4099 = vpack.c.b16 %v2891, %v2883
    %v4100 = vpack.c.b16 %v2900, %v2892
    %v4101 = vpack.c.b16 %v2901, %v2893
    %v4102 = vpack.c.b16 %v2902, %v2894
    %v4103 = vpack.c.b16 %v2903, %v2895
    %v4104 = vpack.c.b16 %v2904, %v2896
    %v4105 = vpack.c.b16 %v2905, %v2897
    %v4106 = vpack.c.b16 %v2906, %v2898
    %v4107 = vpack.c.b16 %v2907, %v2899
    %v4108 = vpack.c.b16 %v2916, %v2908
    %v4109 = vpack.c.b16 %v2917, %v2909
    %v4110 = vpack.c.b16 %v2918, %v2910
    %v4111 = vpack.c.b16 %v2919, %v2911
    %v4112 = vpack.c.b16 %v2920, %v2912
    %v4113 = vpack.c.b16 %v2921, %v2913
    %v4114 = vpack.c.b16 %v2922, %v2914
    %v4115 = vpack.c.b16 %v2923, %v2915
    %v4116 = vpack.c.b16 %v2932, %v2924
    %v4117 = vpack.c.b16 %v2933, %v2925
    %v4118 = vpack.c.b16 %v2934, %v2926
    %v4119 = vpack.c.b16 %v2935, %v2927
    %v4120 = vpack.c.b16 %v2936, %v2928
    %v4121 = vpack.c.b16 %v2937, %v2929
    %v4122 = vpack.c.b16 %v2938, %v2930
    %v4123 = vpack.c.b16 %v2939, %v2931
    %v4124 = vpack.c.b16 %v2948, %v2940
    %v4125 = vpack.c.b16 %v2949, %v2941
    %v4126 = vpack.c.b16 %v2950, %v2942
    %v4127 = vpack.c.b16 %v2951, %v2943
    %v4128 = vpack.c.b16 %v2952, %v2944
    %v4129 = vpack.c.b16 %v2953, %v2945
    %v4130 = vpack.c.b16 %v2954, %v2946
    %v4131 = vpack.c.b16 %v2955, %v2947
    %v4132 = vpack.c.b16 %v2964, %v2956
    %v4133 = vpack.c.b16 %v2965, %v2957
    %v4134 = vpack.c.b16 %v2966, %v2958
    %v4135 = vpack.c.b16 %v2967, %v2959
    %v4136 = vpack.c.b16 %v2968, %v2960
    %v4137 = vpack.c.b16 %v2969, %v2961
    %v4138 = vpack.c.b16 %v2970, %v2962
    %v4139 = vpack.c.b16 %v2971, %v2963
    %v4140 = vpack.c.b16 %v2980, %v2972
    %v4141 = vpack.c.b16 %v2981, %v2973
    %v4142 = vpack.c.b16 %v2982, %v2974
    %v4143 = vpack.c.b16 %v2983, %v2975
    %v4144 = vpack.c.b16 %v2984, %v2976
    %v4145 = vpack.c.b16 %v2985, %v2977
    %v4146 = vpack.c.b16 %v2986, %v2978
    %v4147 = vpack.c.b16 %v2987, %v2979
    %v4148 = vpack.c.b16 %v2996, %v2988
    %v4149 = vpack.c.b16 %v2997, %v2989
    %v4150 = vpack.c.b16 %v2998, %v2990
    %v4151 = vpack.c.b16 %v2999, %v2991
    %v4152 = vpack.c.b16 %v3000, %v2992
    %v4153 = vpack.c.b16 %v3001, %v2993
    %v4154 = vpack.c.b16 %v3002, %v2994
    %v4155 = vpack.c.b16 %v3003, %v2995
    %v4156 = vpack.c.b16 %v3012, %v3004
    %v4157 = vpack.c.b16 %v3013, %v3005
    %v4158 = vpack.c.b16 %v3014, %v3006
    %v4159 = vpack.c.b16 %v3015, %v3007
    %v4160 = vpack.c.b16 %v3016, %v3008
    %v4161 = vpack.c.b16 %v3017, %v3009
    %v4162 = vpack.c.b16 %v3018, %v3010
    %v4163 = vpack.c.b16 %v3019, %v3011
    %v4164 = vpack.c.b16 %v3028, %v3020
    %v4165 = vpack.c.b16 %v3029, %v3021
    %v4166 = vpack.c.b16 %v3030, %v3022
    %v4167 = vpack.c.b16 %v3031, %v3023
    %v4168 = vpack.c.b16 %v3032, %v3024
    %v4169 = vpack.c.b16 %v3033, %v3025
    %v4170 = vpack.c.b16 %v3034, %v3026
    %v4171 = vpack.c.b16 %v3035, %v3027
    %v4172 = vpack.c.b16 %v3044, %v3036
    %v4173 = vpack.c.b16 %v3045, %v3037
    %v4174 = vpack.c.b16 %v3046, %v3038
    %v4175 = vpack.c.b16 %v3047, %v3039
    %v4176 = vpack.c.b16 %v3048, %v3040
    %v4177 = vpack.c.b16 %v3049, %v3041
    %v4178 = vpack.c.b16 %v3050, %v3042
    %v4179 = vpack.c.b16 %v3051, %v3043
    %v4180 = vpack.c.b16 %v3060, %v3052
    %v4181 = vpack.c.b16 %v3061, %v3053
    %v4182 = vpack.c.b16 %v3062, %v3054
    %v4183 = vpack.c.b16 %v3063, %v3055
    %v4184 = vpack.c.b16 %v3064, %v3056
    %v4185 = vpack.c.b16 %v3065, %v3057
    %v4186 = vpack.c.b16 %v3066, %v3058
    %v4187 = vpack.c.b16 %v3067, %v3059
    %v4188 = vpack.c.b16 %v3076, %v3068
    %v4189 = vpack.c.b16 %v3077, %v3069
    %v4190 = vpack.c.b16 %v3078, %v3070
    %v4191 = vpack.c.b16 %v3079, %v3071
    %v4192 = vpack.c.b16 %v3080, %v3072
    %v4193 = vpack.c.b16 %v3081, %v3073
    %v4194 = vpack.c.b16 %v3082, %v3074
    %v4195 = vpack.c.b16 %v3083, %v3075
    %v4196 = vpack.c.b16 %v3092, %v3084
    %v4197 = vpack.c.b16 %v3093, %v3085
    %v4198 = vpack.c.b16 %v3094, %v3086
    %v4199 = vpack.c.b16 %v3095, %v3087
    %v4200 = vpack.c.b16 %v3096, %v3088
    %v4201 = vpack.c.b16 %v3097, %v3089
    %v4202 = vpack.c.b16 %v3098, %v3090
    %v4203 = vpack.c.b16 %v3099, %v3091
    %v4204 = vpack.c.b16 %v3108, %v3100
    %v4205 = vpack.c.b16 %v3109, %v3101
    %v4206 = vpack.c.b16 %v3110, %v3102
    %v4207 = vpack.c.b16 %v3111, %v3103
    %v4208 = vpack.c.b16 %v3112, %v3104
    %v4209 = vpack.c.b16 %v3113, %v3105
    %v4210 = vpack.c.b16 %v3114, %v3106
    %v4211 = vpack.c.b16 %v3115, %v3107
    %v4212 = vpack.c.b16 %v3124, %v3116
    %v4213 = vpack.c.b16 %v3125, %v3117
    %v4214 = vpack.c.b16 %v3126, %v3118
    %v4215 = vpack.c.b16 %v3127, %v3119
    %v4216 = vpack.c.b16 %v3128, %v3120
    %v4217 = vpack.c.b16 %v3129, %v3121
    %v4218 = vpack.c.b16 %v3130, %v3122
    %v4219 = vpack.c.b16 %v3131, %v3123
    %v4220 = vpack.c.b16 %v3140, %v3132
    %v4221 = vpack.c.b16 %v3141, %v3133
    %v4222 = vpack.c.b16 %v3142, %v3134
    %v4223 = vpack.c.b16 %v3143, %v3135
    %v4224 = vpack.c.b16 %v3144, %v3136
    %v4225 = vpack.c.b16 %v3145, %v3137
    %v4226 = vpack.c.b16 %v3146, %v3138
    %v4227 = vpack.c.b16 %v3147, %v3139
    %v4228 = vpack.c.b16 %v3156, %v3148
    %v4229 = vpack.c.b16 %v3157, %v3149
    %v4230 = vpack.c.b16 %v3158, %v3150
    %v4231 = vpack.c.b16 %v3159, %v3151
    %v4232 = vpack.c.b16 %v3160, %v3152
    %v4233 = vpack.c.b16 %v3161, %v3153
    %v4234 = vpack.c.b16 %v3162, %v3154
    %v4235 = vpack.c.b16 %v3163, %v3155
    %v4236 = vpack.c.b16 %v3172, %v3164
    %v4237 = vpack.c.b16 %v3173, %v3165
    %v4238 = vpack.c.b16 %v3174, %v3166
    %v4239 = vpack.c.b16 %v3175, %v3167
    %v4240 = vpack.c.b16 %v3176, %v3168
    %v4241 = vpack.c.b16 %v3177, %v3169
    %v4242 = vpack.c.b16 %v3178, %v3170
    %v4243 = vpack.c.b16 %v3179, %v3171
    %v4244 = vpack.c.b16 %v3188, %v3180
    %v4245 = vpack.c.b16 %v3189, %v3181
    %v4246 = vpack.c.b16 %v3190, %v3182
    %v4247 = vpack.c.b16 %v3191, %v3183
    %v4248 = vpack.c.b16 %v3192, %v3184
    %v4249 = vpack.c.b16 %v3193, %v3185
    %v4250 = vpack.c.b16 %v3194, %v3186
    %v4251 = vpack.c.b16 %v3195, %v3187
    %v4252 = vpack.c.b16 %v3204, %v3196
    %v4253 = vpack.c.b16 %v3205, %v3197
    %v4254 = vpack.c.b16 %v3206, %v3198
    %v4255 = vpack.c.b16 %v3207, %v3199
    %v4256 = vpack.c.b16 %v3208, %v3200
    %v4257 = vpack.c.b16 %v3209, %v3201
    %v4258 = vpack.c.b16 %v3210, %v3202
    %v4259 = vpack.c.b16 %v3211, %v3203
    %v4260 = vpack.c.b16 %v3220, %v3212
    %v4261 = vpack.c.b16 %v3221, %v3213
    %v4262 = vpack.c.b16 %v3222, %v3214
    %v4263 = vpack.c.b16 %v3223, %v3215
    %v4264 = vpack.c.b16 %v3224, %v3216
    %v4265 = vpack.c.b16 %v3225, %v3217
    %v4266 = vpack.c.b16 %v3226, %v3218
    %v4267 = vpack.c.b16 %v3227, %v3219
    %v4268 = vpack.c.b16 %v3236, %v3228
    %v4269 = vpack.c.b16 %v3237, %v3229
    %v4270 = vpack.c.b16 %v3238, %v3230
    %v4271 = vpack.c.b16 %v3239, %v3231
    %v4272 = vpack.c.b16 %v3240, %v3232
    %v4273 = vpack.c.b16 %v3241, %v3233
    %v4274 = vpack.c.b16 %v3242, %v3234
    %v4275 = vpack.c.b16 %v3243, %v3235
    %v4276 = vpack.c.b16 %v3252, %v3244
    %v4277 = vpack.c.b16 %v3253, %v3245
    %v4278 = vpack.c.b16 %v3254, %v3246
    %v4279 = vpack.c.b16 %v3255, %v3247
    %v4280 = vpack.c.b16 %v3256, %v3248
    %v4281 = vpack.c.b16 %v3257, %v3249
    %v4282 = vpack.c.b16 %v3258, %v3250
    %v4283 = vpack.c.b16 %v3259, %v3251
    %v4284 = vpack.c.b16 %v3268, %v3260
    %v4285 = vpack.c.b16 %v3269, %v3261
    %v4286 = vpack.c.b16 %v3270, %v3262
    %v4287 = vpack.c.b16 %v3271, %v3263
    %v4288 = vpack.c.b16 %v3272, %v3264
    %v4289 = vpack.c.b16 %v3273, %v3265
    %v4290 = vpack.c.b16 %v3274, %v3266
    %v4291 = vpack.c.b16 %v3275, %v3267
    %v4292 = vpack.c.b16 %v3284, %v3276
    %v4293 = vpack.c.b16 %v3285, %v3277
    %v4294 = vpack.c.b16 %v3286, %v3278
    %v4295 = vpack.c.b16 %v3287, %v3279
    %v4296 = vpack.c.b16 %v3288, %v3280
    %v4297 = vpack.c.b16 %v3289, %v3281
    %v4298 = vpack.c.b16 %v3290, %v3282
    %v4299 = vpack.c.b16 %v3291, %v3283
    %v4300 = vpack.c.b16 %v3300, %v3292
    %v4301 = vpack.c.b16 %v3301, %v3293
    %v4302 = vpack.c.b16 %v3302, %v3294
    %v4303 = vpack.c.b16 %v3303, %v3295
    %v4304 = vpack.c.b16 %v3304, %v3296
    %v4305 = vpack.c.b16 %v3305, %v3297
    %v4306 = vpack.c.b16 %v3306, %v3298
    %v4307 = vpack.c.b16 %v3307, %v3299
    %v4308 = vpack.c.b16 %v3316, %v3308
    %v4309 = vpack.c.b16 %v3317, %v3309
    %v4310 = vpack.c.b16 %v3318, %v3310
    %v4311 = vpack.c.b16 %v3319, %v3311
    %v4312 = vpack.c.b16 %v3320, %v3312
    %v4313 = vpack.c.b16 %v3321, %v3313
    %v4314 = vpack.c.b16 %v3322, %v3314
    %v4315 = vpack.c.b16 %v3323, %v3315
    %v4316 = vpack.c.b16 %v3332, %v3324
    %v4317 = vpack.c.b16 %v3333, %v3325
    %v4318 = vpack.c.b16 %v3334, %v3326
    %v4319 = vpack.c.b16 %v3335, %v3327
    %v4320 = vpack.c.b16 %v3336, %v3328
    %v4321 = vpack.c.b16 %v3337, %v3329
    %v4322 = vpack.c.b16 %v3338, %v3330
    %v4323 = vpack.c.b16 %v3339, %v3331
    %v4324 = vpack.c.b16 %v3348, %v3340
    %v4325 = vpack.c.b16 %v3349, %v3341
    %v4326 = vpack.c.b16 %v3350, %v3342
    %v4327 = vpack.c.b16 %v3351, %v3343
    %v4328 = vpack.c.b16 %v3352, %v3344
    %v4329 = vpack.c.b16 %v3353, %v3345
    %v4330 = vpack.c.b16 %v3354, %v3346
    %v4331 = vpack.c.b16 %v3355, %v3347
    %v4332 = vpack.c.b16 %v3364, %v3356
    %v4333 = vpack.c.b16 %v3365, %v3357
    %v4334 = vpack.c.b16 %v3366, %v3358
    %v4335 = vpack.c.b16 %v3367, %v3359
    %v4336 = vpack.c.b16 %v3368, %v3360
    %v4337 = vpack.c.b16 %v3369, %v3361
    %v4338 = vpack.c.b16 %v3370, %v3362
    %v4339 = vpack.c.b16 %v3371, %v3363
    %v4340 = vpack.c.b16 %v3380, %v3372
    %v4341 = vpack.c.b16 %v3381, %v3373
    %v4342 = vpack.c.b16 %v3382, %v3374
    %v4343 = vpack.c.b16 %v3383, %v3375
    %v4344 = vpack.c.b16 %v3384, %v3376
    %v4345 = vpack.c.b16 %v3385, %v3377
    %v4346 = vpack.c.b16 %v3386, %v3378
    %v4347 = vpack.c.b16 %v3387, %v3379
    %v4348 = vpack.c.b16 %v3396, %v3388
    %v4349 = vpack.c.b16 %v3397, %v3389
    %v4350 = vpack.c.b16 %v3398, %v3390
    %v4351 = vpack.c.b16 %v3399, %v3391
    %v4352 = vpack.c.b16 %v3400, %v3392
    %v4353 = vpack.c.b16 %v3401, %v3393
    %v4354 = vpack.c.b16 %v3402, %v3394
    %v4355 = vpack.c.b16 %v3403, %v3395
    %v4356 = vpack.c.b16 %v3412, %v3404
    %v4357 = vpack.c.b16 %v3413, %v3405
    %v4358 = vpack.c.b16 %v3414, %v3406
    %v4359 = vpack.c.b16 %v3415, %v3407
    %v4360 = vpack.c.b16 %v3416, %v3408
    %v4361 = vpack.c.b16 %v3417, %v3409
    %v4362 = vpack.c.b16 %v3418, %v3410
    %v4363 = vpack.c.b16 %v3419, %v3411
    %v4364 = vpack.c.b16 %v3428, %v3420
    %v4365 = vpack.c.b16 %v3429, %v3421
    %v4366 = vpack.c.b16 %v3430, %v3422
    %v4367 = vpack.c.b16 %v3431, %v3423
    %v4368 = vpack.c.b16 %v3432, %v3424
    %v4369 = vpack.c.b16 %v3433, %v3425
    %v4370 = vpack.c.b16 %v3434, %v3426
    %v4371 = vpack.c.b16 %v3435, %v3427
    %v4372 = vpack.c.b16 %v3444, %v3436
    %v4373 = vpack.c.b16 %v3445, %v3437
    %v4374 = vpack.c.b16 %v3446, %v3438
    %v4375 = vpack.c.b16 %v3447, %v3439
    %v4376 = vpack.c.b16 %v3448, %v3440
    %v4377 = vpack.c.b16 %v3449, %v3441
    %v4378 = vpack.c.b16 %v3450, %v3442
    %v4379 = vpack.c.b16 %v3451, %v3443
    %v4380 = vpack.c.b16 %v3460, %v3452
    %v4381 = vpack.c.b16 %v3461, %v3453
    %v4382 = vpack.c.b16 %v3462, %v3454
    %v4383 = vpack.c.b16 %v3463, %v3455
    %v4384 = vpack.c.b16 %v3464, %v3456
    %v4385 = vpack.c.b16 %v3465, %v3457
    %v4386 = vpack.c.b16 %v3466, %v3458
    %v4387 = vpack.c.b16 %v3467, %v3459
    %v4388 = vpack.c.b16 %v3476, %v3468
    %v4389 = vpack.c.b16 %v3477, %v3469
    %v4390 = vpack.c.b16 %v3478, %v3470
    %v4391 = vpack.c.b16 %v3479, %v3471
    %v4392 = vpack.c.b16 %v3480, %v3472
    %v4393 = vpack.c.b16 %v3481, %v3473
    %v4394 = vpack.c.b16 %v3482, %v3474
    %v4395 = vpack.c.b16 %v3483, %v3475
    %v4396 = vpack.c.b16 %v3492, %v3484
    %v4397 = vpack.c.b16 %v3493, %v3485
    %v4398 = vpack.c.b16 %v3494, %v3486
    %v4399 = vpack.c.b16 %v3495, %v3487
    %v4400 = vpack.c.b16 %v3496, %v3488
    %v4401 = vpack.c.b16 %v3497, %v3489
    %v4402 = vpack.c.b16 %v3498, %v3490
    %v4403 = vpack.c.b16 %v3499, %v3491
    %v4404 = vpack.c.b16 %v3508, %v3500
    %v4405 = vpack.c.b16 %v3509, %v3501
    %v4406 = vpack.c.b16 %v3510, %v3502
    %v4407 = vpack.c.b16 %v3511, %v3503
    %v4408 = vpack.c.b16 %v3512, %v3504
    %v4409 = vpack.c.b16 %v3513, %v3505
    %v4410 = vpack.c.b16 %v3514, %v3506
    %v4411 = vpack.c.b16 %v3515, %v3507
    %v4412 = vpack.c.b16 %v3524, %v3516
    %v4413 = vpack.c.b16 %v3525, %v3517
    %v4414 = vpack.c.b16 %v3526, %v3518
    %v4415 = vpack.c.b16 %v3527, %v3519
    %v4416 = vpack.c.b16 %v3528, %v3520
    %v4417 = vpack.c.b16 %v3529, %v3521
    %v4418 = vpack.c.b16 %v3530, %v3522
    %v4419 = vpack.c.b16 %v3531, %v3523
    %v4420 = vpack.c.b16 %v3540, %v3532
    %v4421 = vpack.c.b16 %v3541, %v3533
    %v4422 = vpack.c.b16 %v3542, %v3534
    %v4423 = vpack.c.b16 %v3543, %v3535
    %v4424 = vpack.c.b16 %v3544, %v3536
    %v4425 = vpack.c.b16 %v3545, %v3537
    %v4426 = vpack.c.b16 %v3546, %v3538
    %v4427 = vpack.c.b16 %v3547, %v3539
    %v4428 = vpack.c.b16 %v3556, %v3548
    %v4429 = vpack.c.b16 %v3557, %v3549
    %v4430 = vpack.c.b16 %v3558, %v3550
    %v4431 = vpack.c.b16 %v3559, %v3551
    %v4432 = vpack.c.b16 %v3560, %v3552
    %v4433 = vpack.c.b16 %v3561, %v3553
    %v4434 = vpack.c.b16 %v3562, %v3554
    %v4435 = vpack.c.b16 %v3563, %v3555
    %v4436 = vpack.c.b16 %v3572, %v3564
    %v4437 = vpack.c.b16 %v3573, %v3565
    %v4438 = vpack.c.b16 %v3574, %v3566
    %v4439 = vpack.c.b16 %v3575, %v3567
    %v4440 = vpack.c.b16 %v3576, %v3568
    %v4441 = vpack.c.b16 %v3577, %v3569
    %v4442 = vpack.c.b16 %v3578, %v3570
    %v4443 = vpack.c.b16 %v3579, %v3571
    %vm5308 = vcmask 523264
    %v5310 = vsel %vm5308, %v974, 0
    %5312 = vmatprep.subr.bf16.mxu0 %v3637
    %5313 = vmatpush1.bf16.msra.mxu0 %v3636
    %5314 = vmatprep.subr.bf16.mxu0 %v3629
    %5315 = vmatpush1.bf16.msra.mxu0 %v3628
    %5316 = vmatprep.subr.bf16.mxu0 %v3621
    %5317 = vmatpush1.bf16.msra.mxu0 %v3620
    %5318 = vmatprep.subr.bf16.mxu0 %v3613
    %5319 = vmatpush1.bf16.msra.mxu0 %v3612
    %5320 = vmatprep.subr.bf16.mxu0 %v3605
    %5321 = vmatpush1.bf16.msra.mxu0 %v3604
    %5322 = vmatprep.subr.bf16.mxu0 %v3597
    %5323 = vmatpush1.bf16.msra.mxu0 %v3596
    %5324 = vmatprep.subr.bf16.mxu0 %v3589
    %5325 = vmatpush1.bf16.msra.mxu0 %v3588
    %5326 = vmatprep.subr.bf16.mxu0 %v3581
    %5327 = vmatpush1.bf16.msra.mxu0 %v3580
    %5328 = vmatprep.subr.bf16.mxu0 %v3701
    %5329 = vmatpush2.bf16.msra.mxu0 %v3700
    %5330 = vmatprep.subr.bf16.mxu0 %v3693
    %5331 = vmatpush2.bf16.msra.mxu0 %v3692
    %5332 = vmatprep.subr.bf16.mxu0 %v3685
    %5333 = vmatpush2.bf16.msra.mxu0 %v3684
    %5334 = vmatprep.subr.bf16.mxu0 %v3677
    %5335 = vmatpush2.bf16.msra.mxu0 %v3676
    %5336 = vmatprep.subr.bf16.mxu0 %v3669
    %5337 = vmatpush2.bf16.msra.mxu0 %v3668
    %5338 = vmatprep.subr.bf16.mxu0 %v3661
    %5339 = vmatpush2.bf16.msra.mxu0 %v3660
    %5340 = vmatprep.subr.bf16.mxu0 %v3653
    %5341 = vmatpush2.bf16.msra.mxu0 %v3652
    %5342 = vmatprep.subr.bf16.mxu0 %v3645
    %5343 = vmatpush2.bf16.msra.mxu0 %v3644
    %5344 = vmatprep.mubr.bf16.mxu0 %v962
    %5345 = vmatmul.mubr.bf16.gmra.mxu0 %v961
    %v5346 = vpop.f32.mrf.mxu0
    %v5347 = vadd.f32 0.0, %v5346
    %v5348 = vpop.f32.mrf.mxu0
    %v5349 = vadd.f32 0.0, %v5348
    %v5350 = vpop.f32.mrf.mxu0
    %v5351 = vadd.f32 0.0, %v5350
    %v5352 = vpop.f32.mrf.mxu0
    %v5353 = vadd.f32 0.0, %v5352
    %5354 = vdwg.mxu0
    %5355 = vmatprep.subr.bf16.mxu0 %v3765
    %5356 = vmatpush1.bf16.msra.mxu0 %v3764
    %5357 = vmatprep.subr.bf16.mxu0 %v3757
    %5358 = vmatpush1.bf16.msra.mxu0 %v3756
    %5359 = vmatprep.subr.bf16.mxu0 %v3749
    %5360 = vmatpush1.bf16.msra.mxu0 %v3748
    %5361 = vmatprep.subr.bf16.mxu0 %v3741
    %5362 = vmatpush1.bf16.msra.mxu0 %v3740
    %5363 = vmatprep.subr.bf16.mxu0 %v3733
    %5364 = vmatpush1.bf16.msra.mxu0 %v3732
    %5365 = vmatprep.subr.bf16.mxu0 %v3725
    %5366 = vmatpush1.bf16.msra.mxu0 %v3724
    %5367 = vmatprep.subr.bf16.mxu0 %v3717
    %5368 = vmatpush1.bf16.msra.mxu0 %v3716
    %5369 = vmatprep.subr.bf16.mxu0 %v3709
    %5370 = vmatpush1.bf16.msra.mxu0 %v3708
    %5371 = vmatprep.subr.bf16.mxu0 %v3829
    %5372 = vmatpush2.bf16.msra.mxu0 %v3828
    %5373 = vmatprep.subr.bf16.mxu0 %v3821
    %5374 = vmatpush2.bf16.msra.mxu0 %v3820
    %5375 = vmatprep.subr.bf16.mxu0 %v3813
    %5376 = vmatpush2.bf16.msra.mxu0 %v3812
    %5377 = vmatprep.subr.bf16.mxu0 %v3805
    %5378 = vmatpush2.bf16.msra.mxu0 %v3804
    %5379 = vmatprep.subr.bf16.mxu0 %v3797
    %5380 = vmatpush2.bf16.msra.mxu0 %v3796
    %5381 = vmatprep.subr.bf16.mxu0 %v3789
    %5382 = vmatpush2.bf16.msra.mxu0 %v3788
    %5383 = vmatprep.subr.bf16.mxu0 %v3781
    %5384 = vmatpush2.bf16.msra.mxu0 %v3780
    %5385 = vmatprep.subr.bf16.mxu0 %v3773
    %5386 = vmatpush2.bf16.msra.mxu0 %v3772
    %5387 = vmatprep.mubr.bf16.mxu0 %v964
    %5388 = vmatmul.mubr.bf16.gmra.mxu0 %v963
    %v5389 = vpop.f32.mrf.mxu0
    %v5390 = vadd.f32 %v5347, %v5389
    %v5391 = vpop.f32.mrf.mxu0
    %v5392 = vadd.f32 %v5349, %v5391
    %v5393 = vpop.f32.mrf.mxu0
    %v5394 = vadd.f32 %v5351, %v5393
    %v5395 = vpop.f32.mrf.mxu0
    %v5396 = vadd.f32 %v5353, %v5395
    %5397 = vdwg.mxu0
    %5398 = vmatprep.subr.bf16.mxu0 %v3893
    %5399 = vmatpush1.bf16.msra.mxu0 %v3892
    %5400 = vmatprep.subr.bf16.mxu0 %v3885
    %5401 = vmatpush1.bf16.msra.mxu0 %v3884
    %5402 = vmatprep.subr.bf16.mxu0 %v3877
    %5403 = vmatpush1.bf16.msra.mxu0 %v3876
    %5404 = vmatprep.subr.bf16.mxu0 %v3869
    %5405 = vmatpush1.bf16.msra.mxu0 %v3868
    %5406 = vmatprep.subr.bf16.mxu0 %v3861
    %5407 = vmatpush1.bf16.msra.mxu0 %v3860
    %5408 = vmatprep.subr.bf16.mxu0 %v3853
    %5409 = vmatpush1.bf16.msra.mxu0 %v3852
    %5410 = vmatprep.subr.bf16.mxu0 %v3845
    %5411 = vmatpush1.bf16.msra.mxu0 %v3844
    %5412 = vmatprep.subr.bf16.mxu0 %v3837
    %5413 = vmatpush1.bf16.msra.mxu0 %v3836
    %5414 = vmatprep.subr.bf16.mxu0 %v3957
    %5415 = vmatpush2.bf16.msra.mxu0 %v3956
    %5416 = vmatprep.subr.bf16.mxu0 %v3949
    %5417 = vmatpush2.bf16.msra.mxu0 %v3948
    %5418 = vmatprep.subr.bf16.mxu0 %v3941
    %5419 = vmatpush2.bf16.msra.mxu0 %v3940
    %5420 = vmatprep.subr.bf16.mxu0 %v3933
    %5421 = vmatpush2.bf16.msra.mxu0 %v3932
    %5422 = vmatprep.subr.bf16.mxu0 %v3925
    %5423 = vmatpush2.bf16.msra.mxu0 %v3924
    %5424 = vmatprep.subr.bf16.mxu0 %v3917
    %5425 = vmatpush2.bf16.msra.mxu0 %v3916
    %5426 = vmatprep.subr.bf16.mxu0 %v3909
    %5427 = vmatpush2.bf16.msra.mxu0 %v3908
    %5428 = vmatprep.subr.bf16.mxu0 %v3901
    %5429 = vmatpush2.bf16.msra.mxu0 %v3900
    %5430 = vmatprep.mubr.bf16.mxu0 %v966
    %5431 = vmatmul.mubr.bf16.gmra.mxu0 %v965
    %v5432 = vpop.f32.mrf.mxu0
    %v5433 = vadd.f32 %v5390, %v5432
    %v5434 = vpop.f32.mrf.mxu0
    %v5435 = vadd.f32 %v5392, %v5434
    %v5436 = vpop.f32.mrf.mxu0
    %v5437 = vadd.f32 %v5394, %v5436
    %v5438 = vpop.f32.mrf.mxu0
    %v5439 = vadd.f32 %v5396, %v5438
    %5440 = vdwg.mxu0
    %5441 = vmatprep.subr.bf16.mxu0 %v4021
    %5442 = vmatpush1.bf16.msra.mxu0 %v4020
    %5443 = vmatprep.subr.bf16.mxu0 %v4013
    %5444 = vmatpush1.bf16.msra.mxu0 %v4012
    %5445 = vmatprep.subr.bf16.mxu0 %v4005
    %5446 = vmatpush1.bf16.msra.mxu0 %v4004
    %5447 = vmatprep.subr.bf16.mxu0 %v3997
    %5448 = vmatpush1.bf16.msra.mxu0 %v3996
    %5449 = vmatprep.subr.bf16.mxu0 %v3989
    %5450 = vmatpush1.bf16.msra.mxu0 %v3988
    %5451 = vmatprep.subr.bf16.mxu0 %v3981
    %5452 = vmatpush1.bf16.msra.mxu0 %v3980
    %5453 = vmatprep.subr.bf16.mxu0 %v3973
    %5454 = vmatpush1.bf16.msra.mxu0 %v3972
    %5455 = vmatprep.subr.bf16.mxu0 %v3965
    %5456 = vmatpush1.bf16.msra.mxu0 %v3964
    %5457 = vmatprep.subr.bf16.mxu0 %v4085
    %5458 = vmatpush2.bf16.msra.mxu0 %v4084
    %5459 = vmatprep.subr.bf16.mxu0 %v4077
    %5460 = vmatpush2.bf16.msra.mxu0 %v4076
    %5461 = vmatprep.subr.bf16.mxu0 %v4069
    %5462 = vmatpush2.bf16.msra.mxu0 %v4068
    %5463 = vmatprep.subr.bf16.mxu0 %v4061
    %5464 = vmatpush2.bf16.msra.mxu0 %v4060
    %5465 = vmatprep.subr.bf16.mxu0 %v4053
    %5466 = vmatpush2.bf16.msra.mxu0 %v4052
    %5467 = vmatprep.subr.bf16.mxu0 %v4045
    %5468 = vmatpush2.bf16.msra.mxu0 %v4044
    %5469 = vmatprep.subr.bf16.mxu0 %v4037
    %5470 = vmatpush2.bf16.msra.mxu0 %v4036
    %5471 = vmatprep.subr.bf16.mxu0 %v4029
    %5472 = vmatpush2.bf16.msra.mxu0 %v4028
    %5473 = vmatprep.mubr.bf16.mxu0 %v968
    %5474 = vmatmul.mubr.bf16.gmra.mxu0 %v967
    %v5475 = vpop.f32.mrf.mxu0
    %v5476 = vadd.f32 %v5433, %v5475
    %v5477 = vpop.f32.mrf.mxu0
    %v5478 = vadd.f32 %v5435, %v5477
    %v5479 = vpop.f32.mrf.mxu0
    %v5480 = vadd.f32 %v5437, %v5479
    %v5481 = vpop.f32.mrf.mxu0
    %v5482 = vadd.f32 %v5439, %v5481
    %5483 = vdwg.mxu0
    %5484 = vmatprep.subr.bf16.mxu0 %v4149
    %5485 = vmatpush1.bf16.msra.mxu0 %v4148
    %5486 = vmatprep.subr.bf16.mxu0 %v4141
    %5487 = vmatpush1.bf16.msra.mxu0 %v4140
    %5488 = vmatprep.subr.bf16.mxu0 %v4133
    %5489 = vmatpush1.bf16.msra.mxu0 %v4132
    %5490 = vmatprep.subr.bf16.mxu0 %v4125
    %5491 = vmatpush1.bf16.msra.mxu0 %v4124
    %5492 = vmatprep.subr.bf16.mxu0 %v4117
    %5493 = vmatpush1.bf16.msra.mxu0 %v4116
    %5494 = vmatprep.subr.bf16.mxu0 %v4109
    %5495 = vmatpush1.bf16.msra.mxu0 %v4108
    %5496 = vmatprep.subr.bf16.mxu0 %v4101
    %5497 = vmatpush1.bf16.msra.mxu0 %v4100
    %5498 = vmatprep.subr.bf16.mxu0 %v4093
    %5499 = vmatpush1.bf16.msra.mxu0 %v4092
    %5500 = vmatprep.subr.bf16.mxu0 %v4213
    %5501 = vmatpush2.bf16.msra.mxu0 %v4212
    %5502 = vmatprep.subr.bf16.mxu0 %v4205
    %5503 = vmatpush2.bf16.msra.mxu0 %v4204
    %5504 = vmatprep.subr.bf16.mxu0 %v4197
    %5505 = vmatpush2.bf16.msra.mxu0 %v4196
    %5506 = vmatprep.subr.bf16.mxu0 %v4189
    %5507 = vmatpush2.bf16.msra.mxu0 %v4188
    %5508 = vmatprep.subr.bf16.mxu0 %v4181
    %5509 = vmatpush2.bf16.msra.mxu0 %v4180
    %5510 = vmatprep.subr.bf16.mxu0 %v4173
    %5511 = vmatpush2.bf16.msra.mxu0 %v4172
    %5512 = vmatprep.subr.bf16.mxu0 %v4165
    %5513 = vmatpush2.bf16.msra.mxu0 %v4164
    %5514 = vmatprep.subr.bf16.mxu0 %v4157
    %5515 = vmatpush2.bf16.msra.mxu0 %v4156
    %5516 = vmatprep.mubr.bf16.mxu0 %v970
    %5517 = vmatmul.mubr.bf16.gmra.mxu0 %v969
    %v5518 = vpop.f32.mrf.mxu0
    %v5519 = vadd.f32 %v5476, %v5518
    %v5520 = vpop.f32.mrf.mxu0
    %v5521 = vadd.f32 %v5478, %v5520
    %v5522 = vpop.f32.mrf.mxu0
    %v5523 = vadd.f32 %v5480, %v5522
    %v5524 = vpop.f32.mrf.mxu0
    %v5525 = vadd.f32 %v5482, %v5524
    %5526 = vdwg.mxu0
    %5527 = vmatprep.subr.bf16.mxu0 %v4277
    %5528 = vmatpush1.bf16.msra.mxu0 %v4276
    %5529 = vmatprep.subr.bf16.mxu0 %v4269
    %5530 = vmatpush1.bf16.msra.mxu0 %v4268
    %5531 = vmatprep.subr.bf16.mxu0 %v4261
    %5532 = vmatpush1.bf16.msra.mxu0 %v4260
    %5533 = vmatprep.subr.bf16.mxu0 %v4253
    %5534 = vmatpush1.bf16.msra.mxu0 %v4252
    %5535 = vmatprep.subr.bf16.mxu0 %v4245
    %5536 = vmatpush1.bf16.msra.mxu0 %v4244
    %5537 = vmatprep.subr.bf16.mxu0 %v4237
    %5538 = vmatpush1.bf16.msra.mxu0 %v4236
    %5539 = vmatprep.subr.bf16.mxu0 %v4229
    %5540 = vmatpush1.bf16.msra.mxu0 %v4228
    %5541 = vmatprep.subr.bf16.mxu0 %v4221
    %5542 = vmatpush1.bf16.msra.mxu0 %v4220
    %5543 = vmatprep.subr.bf16.mxu0 %v4341
    %5544 = vmatpush2.bf16.msra.mxu0 %v4340
    %5545 = vmatprep.subr.bf16.mxu0 %v4333
    %5546 = vmatpush2.bf16.msra.mxu0 %v4332
    %5547 = vmatprep.subr.bf16.mxu0 %v4325
    %5548 = vmatpush2.bf16.msra.mxu0 %v4324
    %5549 = vmatprep.subr.bf16.mxu0 %v4317
    %5550 = vmatpush2.bf16.msra.mxu0 %v4316
    %5551 = vmatprep.subr.bf16.mxu0 %v4309
    %5552 = vmatpush2.bf16.msra.mxu0 %v4308
    %5553 = vmatprep.subr.bf16.mxu0 %v4301
    %5554 = vmatpush2.bf16.msra.mxu0 %v4300
    %5555 = vmatprep.subr.bf16.mxu0 %v4293
    %5556 = vmatpush2.bf16.msra.mxu0 %v4292
    %5557 = vmatprep.subr.bf16.mxu0 %v4285
    %5558 = vmatpush2.bf16.msra.mxu0 %v4284
    %5559 = vmatprep.mubr.bf16.mxu0 %v972
    %5560 = vmatmul.mubr.bf16.gmra.mxu0 %v971
    %v5561 = vpop.f32.mrf.mxu0
    %v5562 = vadd.f32 %v5519, %v5561
    %v5563 = vpop.f32.mrf.mxu0
    %v5564 = vadd.f32 %v5521, %v5563
    %v5565 = vpop.f32.mrf.mxu0
    %v5566 = vadd.f32 %v5523, %v5565
    %v5567 = vpop.f32.mrf.mxu0
    %v5568 = vadd.f32 %v5525, %v5567
    %5569 = vdwg.mxu0
    %5570 = vmatprep.subr.bf16.mxu0 %v4405
    %5571 = vmatpush1.bf16.msra.mxu0 %v4404
    %5572 = vmatprep.subr.bf16.mxu0 %v4397
    %5573 = vmatpush1.bf16.msra.mxu0 %v4396
    %5574 = vmatprep.subr.bf16.mxu0 %v4389
    %5575 = vmatpush1.bf16.msra.mxu0 %v4388
    %5576 = vmatprep.subr.bf16.mxu0 %v4381
    %5577 = vmatpush1.bf16.msra.mxu0 %v4380
    %5578 = vmatprep.subr.bf16.mxu0 %v4373
    %5579 = vmatpush1.bf16.msra.mxu0 %v4372
    %5580 = vmatprep.subr.bf16.mxu0 %v4365
    %5581 = vmatpush1.bf16.msra.mxu0 %v4364
    %5582 = vmatprep.subr.bf16.mxu0 %v4357
    %5583 = vmatpush1.bf16.msra.mxu0 %v4356
    %5584 = vmatprep.subr.bf16.mxu0 %v4349
    %5585 = vmatpush1.bf16.msra.mxu0 %v4348
    %5586 = vmatprep.subr.bf16.mxu0 0
    %5587 = vmatpush2.bf16.msra.mxu0 0
    %5588 = vmatprep.subr.bf16.mxu0 0
    %5589 = vmatpush2.bf16.msra.mxu0 0
    %5590 = vmatprep.subr.bf16.mxu0 0
    %5591 = vmatpush2.bf16.msra.mxu0 0
    %5592 = vmatprep.subr.bf16.mxu0 0
    %5593 = vmatpush2.bf16.msra.mxu0 0
    %5594 = vmatprep.subr.bf16.mxu0 %v4437
    %5595 = vmatpush2.bf16.msra.mxu0 %v4436
    %5596 = vmatprep.subr.bf16.mxu0 %v4429
    %5597 = vmatpush2.bf16.msra.mxu0 %v4428
    %5598 = vmatprep.subr.bf16.mxu0 %v4421
    %5599 = vmatpush2.bf16.msra.mxu0 %v4420
    %5600 = vmatprep.subr.bf16.mxu0 %v4413
    %5601 = vmatpush2.bf16.msra.mxu0 %v4412
    %5602 = vmatprep.mubr.bf16.mxu0 %v5310
    %5603 = vmatmul.mubr.bf16.gmra.mxu0 %v973
    %v5604 = vpop.f32.mrf.mxu0
    %v5605 = vadd.f32 %v5562, %v5604
    %v5606 = vpop.f32.mrf.mxu0
    %v5607 = vadd.f32 %v5564, %v5606
    %v5608 = vpop.f32.mrf.mxu0
    %v5609 = vadd.f32 %v5566, %v5608
    %v5610 = vpop.f32.mrf.mxu0
    %v5611 = vadd.f32 %v5568, %v5610
    %5612 = vdwg.mxu0
    %5613 = vmatprep.subr.bf16.mxu0 %v3639
    %5614 = vmatpush1.bf16.msra.mxu0 %v3638
    %5615 = vmatprep.subr.bf16.mxu0 %v3631
    %5616 = vmatpush1.bf16.msra.mxu0 %v3630
    %5617 = vmatprep.subr.bf16.mxu0 %v3623
    %5618 = vmatpush1.bf16.msra.mxu0 %v3622
    %5619 = vmatprep.subr.bf16.mxu0 %v3615
    %5620 = vmatpush1.bf16.msra.mxu0 %v3614
    %5621 = vmatprep.subr.bf16.mxu0 %v3607
    %5622 = vmatpush1.bf16.msra.mxu0 %v3606
    %5623 = vmatprep.subr.bf16.mxu0 %v3599
    %5624 = vmatpush1.bf16.msra.mxu0 %v3598
    %5625 = vmatprep.subr.bf16.mxu0 %v3591
    %5626 = vmatpush1.bf16.msra.mxu0 %v3590
    %5627 = vmatprep.subr.bf16.mxu0 %v3583
    %5628 = vmatpush1.bf16.msra.mxu0 %v3582
    %5629 = vmatprep.subr.bf16.mxu0 %v3703
    %5630 = vmatpush2.bf16.msra.mxu0 %v3702
    %5631 = vmatprep.subr.bf16.mxu0 %v3695
    %5632 = vmatpush2.bf16.msra.mxu0 %v3694
    %5633 = vmatprep.subr.bf16.mxu0 %v3687
    %5634 = vmatpush2.bf16.msra.mxu0 %v3686
    %5635 = vmatprep.subr.bf16.mxu0 %v3679
    %5636 = vmatpush2.bf16.msra.mxu0 %v3678
    %5637 = vmatprep.subr.bf16.mxu0 %v3671
    %5638 = vmatpush2.bf16.msra.mxu0 %v3670
    %5639 = vmatprep.subr.bf16.mxu0 %v3663
    %5640 = vmatpush2.bf16.msra.mxu0 %v3662
    %5641 = vmatprep.subr.bf16.mxu0 %v3655
    %5642 = vmatpush2.bf16.msra.mxu0 %v3654
    %5643 = vmatprep.subr.bf16.mxu0 %v3647
    %5644 = vmatpush2.bf16.msra.mxu0 %v3646
    %5645 = vmatprep.mubr.bf16.mxu0 %v962
    %5646 = vmatmul.mubr.bf16.gmra.mxu0 %v961
    %v5647 = vpop.f32.mrf.mxu0
    %v5648 = vadd.f32 0.0, %v5647
    %v5649 = vpop.f32.mrf.mxu0
    %v5650 = vadd.f32 0.0, %v5649
    %v5651 = vpop.f32.mrf.mxu0
    %v5652 = vadd.f32 0.0, %v5651
    %v5653 = vpop.f32.mrf.mxu0
    %v5654 = vadd.f32 0.0, %v5653
    %5655 = vdwg.mxu0
    %5656 = vmatprep.subr.bf16.mxu0 %v3767
    %5657 = vmatpush1.bf16.msra.mxu0 %v3766
    %5658 = vmatprep.subr.bf16.mxu0 %v3759
    %5659 = vmatpush1.bf16.msra.mxu0 %v3758
    %5660 = vmatprep.subr.bf16.mxu0 %v3751
    %5661 = vmatpush1.bf16.msra.mxu0 %v3750
    %5662 = vmatprep.subr.bf16.mxu0 %v3743
    %5663 = vmatpush1.bf16.msra.mxu0 %v3742
    %5664 = vmatprep.subr.bf16.mxu0 %v3735
    %5665 = vmatpush1.bf16.msra.mxu0 %v3734
    %5666 = vmatprep.subr.bf16.mxu0 %v3727
    %5667 = vmatpush1.bf16.msra.mxu0 %v3726
    %5668 = vmatprep.subr.bf16.mxu0 %v3719
    %5669 = vmatpush1.bf16.msra.mxu0 %v3718
    %5670 = vmatprep.subr.bf16.mxu0 %v3711
    %5671 = vmatpush1.bf16.msra.mxu0 %v3710
    %5672 = vmatprep.subr.bf16.mxu0 %v3831
    %5673 = vmatpush2.bf16.msra.mxu0 %v3830
    %5674 = vmatprep.subr.bf16.mxu0 %v3823
    %5675 = vmatpush2.bf16.msra.mxu0 %v3822
    %5676 = vmatprep.subr.bf16.mxu0 %v3815
    %5677 = vmatpush2.bf16.msra.mxu0 %v3814
    %5678 = vmatprep.subr.bf16.mxu0 %v3807
    %5679 = vmatpush2.bf16.msra.mxu0 %v3806
    %5680 = vmatprep.subr.bf16.mxu0 %v3799
    %5681 = vmatpush2.bf16.msra.mxu0 %v3798
    %5682 = vmatprep.subr.bf16.mxu0 %v3791
    %5683 = vmatpush2.bf16.msra.mxu0 %v3790
    %5684 = vmatprep.subr.bf16.mxu0 %v3783
    %5685 = vmatpush2.bf16.msra.mxu0 %v3782
    %5686 = vmatprep.subr.bf16.mxu0 %v3775
    %5687 = vmatpush2.bf16.msra.mxu0 %v3774
    %5688 = vmatprep.mubr.bf16.mxu0 %v964
    %5689 = vmatmul.mubr.bf16.gmra.mxu0 %v963
    %v5690 = vpop.f32.mrf.mxu0
    %v5691 = vadd.f32 %v5648, %v5690
    %v5692 = vpop.f32.mrf.mxu0
    %v5693 = vadd.f32 %v5650, %v5692
    %v5694 = vpop.f32.mrf.mxu0
    %v5695 = vadd.f32 %v5652, %v5694
    %v5696 = vpop.f32.mrf.mxu0
    %v5697 = vadd.f32 %v5654, %v5696
    %5698 = vdwg.mxu0
    %5699 = vmatprep.subr.bf16.mxu0 %v3895
    %5700 = vmatpush1.bf16.msra.mxu0 %v3894
    %5701 = vmatprep.subr.bf16.mxu0 %v3887
    %5702 = vmatpush1.bf16.msra.mxu0 %v3886
    %5703 = vmatprep.subr.bf16.mxu0 %v3879
    %5704 = vmatpush1.bf16.msra.mxu0 %v3878
    %5705 = vmatprep.subr.bf16.mxu0 %v3871
    %5706 = vmatpush1.bf16.msra.mxu0 %v3870
    %5707 = vmatprep.subr.bf16.mxu0 %v3863
    %5708 = vmatpush1.bf16.msra.mxu0 %v3862
    %5709 = vmatprep.subr.bf16.mxu0 %v3855
    %5710 = vmatpush1.bf16.msra.mxu0 %v3854
    %5711 = vmatprep.subr.bf16.mxu0 %v3847
    %5712 = vmatpush1.bf16.msra.mxu0 %v3846
    %5713 = vmatprep.subr.bf16.mxu0 %v3839
    %5714 = vmatpush1.bf16.msra.mxu0 %v3838
    %5715 = vmatprep.subr.bf16.mxu0 %v3959
    %5716 = vmatpush2.bf16.msra.mxu0 %v3958
    %5717 = vmatprep.subr.bf16.mxu0 %v3951
    %5718 = vmatpush2.bf16.msra.mxu0 %v3950
    %5719 = vmatprep.subr.bf16.mxu0 %v3943
    %5720 = vmatpush2.bf16.msra.mxu0 %v3942
    %5721 = vmatprep.subr.bf16.mxu0 %v3935
    %5722 = vmatpush2.bf16.msra.mxu0 %v3934
    %5723 = vmatprep.subr.bf16.mxu0 %v3927
    %5724 = vmatpush2.bf16.msra.mxu0 %v3926
    %5725 = vmatprep.subr.bf16.mxu0 %v3919
    %5726 = vmatpush2.bf16.msra.mxu0 %v3918
    %5727 = vmatprep.subr.bf16.mxu0 %v3911
    %5728 = vmatpush2.bf16.msra.mxu0 %v3910
    %5729 = vmatprep.subr.bf16.mxu0 %v3903
    %5730 = vmatpush2.bf16.msra.mxu0 %v3902
    %5731 = vmatprep.mubr.bf16.mxu0 %v966
    %5732 = vmatmul.mubr.bf16.gmra.mxu0 %v965
    %v5733 = vpop.f32.mrf.mxu0
    %v5734 = vadd.f32 %v5691, %v5733
    %v5735 = vpop.f32.mrf.mxu0
    %v5736 = vadd.f32 %v5693, %v5735
    %v5737 = vpop.f32.mrf.mxu0
    %v5738 = vadd.f32 %v5695, %v5737
    %v5739 = vpop.f32.mrf.mxu0
    %v5740 = vadd.f32 %v5697, %v5739
    %5741 = vdwg.mxu0
    %5742 = vmatprep.subr.bf16.mxu0 %v4023
    %5743 = vmatpush1.bf16.msra.mxu0 %v4022
    %5744 = vmatprep.subr.bf16.mxu0 %v4015
    %5745 = vmatpush1.bf16.msra.mxu0 %v4014
    %5746 = vmatprep.subr.bf16.mxu0 %v4007
    %5747 = vmatpush1.bf16.msra.mxu0 %v4006
    %5748 = vmatprep.subr.bf16.mxu0 %v3999
    %5749 = vmatpush1.bf16.msra.mxu0 %v3998
    %5750 = vmatprep.subr.bf16.mxu0 %v3991
    %5751 = vmatpush1.bf16.msra.mxu0 %v3990
    %5752 = vmatprep.subr.bf16.mxu0 %v3983
    %5753 = vmatpush1.bf16.msra.mxu0 %v3982
    %5754 = vmatprep.subr.bf16.mxu0 %v3975
    %5755 = vmatpush1.bf16.msra.mxu0 %v3974
    %5756 = vmatprep.subr.bf16.mxu0 %v3967
    %5757 = vmatpush1.bf16.msra.mxu0 %v3966
    %5758 = vmatprep.subr.bf16.mxu0 %v4087
    %5759 = vmatpush2.bf16.msra.mxu0 %v4086
    %5760 = vmatprep.subr.bf16.mxu0 %v4079
    %5761 = vmatpush2.bf16.msra.mxu0 %v4078
    %5762 = vmatprep.subr.bf16.mxu0 %v4071
    %5763 = vmatpush2.bf16.msra.mxu0 %v4070
    %5764 = vmatprep.subr.bf16.mxu0 %v4063
    %5765 = vmatpush2.bf16.msra.mxu0 %v4062
    %5766 = vmatprep.subr.bf16.mxu0 %v4055
    %5767 = vmatpush2.bf16.msra.mxu0 %v4054
    %5768 = vmatprep.subr.bf16.mxu0 %v4047
    %5769 = vmatpush2.bf16.msra.mxu0 %v4046
    %5770 = vmatprep.subr.bf16.mxu0 %v4039
    %5771 = vmatpush2.bf16.msra.mxu0 %v4038
    %5772 = vmatprep.subr.bf16.mxu0 %v4031
    %5773 = vmatpush2.bf16.msra.mxu0 %v4030
    %5774 = vmatprep.mubr.bf16.mxu0 %v968
    %5775 = vmatmul.mubr.bf16.gmra.mxu0 %v967
    %v5776 = vpop.f32.mrf.mxu0
    %v5777 = vadd.f32 %v5734, %v5776
    %v5778 = vpop.f32.mrf.mxu0
    %v5779 = vadd.f32 %v5736, %v5778
    %v5780 = vpop.f32.mrf.mxu0
    %v5781 = vadd.f32 %v5738, %v5780
    %v5782 = vpop.f32.mrf.mxu0
    %v5783 = vadd.f32 %v5740, %v5782
    %5784 = vdwg.mxu0
    %5785 = vmatprep.subr.bf16.mxu0 %v4151
    %5786 = vmatpush1.bf16.msra.mxu0 %v4150
    %5787 = vmatprep.subr.bf16.mxu0 %v4143
    %5788 = vmatpush1.bf16.msra.mxu0 %v4142
    %5789 = vmatprep.subr.bf16.mxu0 %v4135
    %5790 = vmatpush1.bf16.msra.mxu0 %v4134
    %5791 = vmatprep.subr.bf16.mxu0 %v4127
    %5792 = vmatpush1.bf16.msra.mxu0 %v4126
    %5793 = vmatprep.subr.bf16.mxu0 %v4119
    %5794 = vmatpush1.bf16.msra.mxu0 %v4118
    %5795 = vmatprep.subr.bf16.mxu0 %v4111
    %5796 = vmatpush1.bf16.msra.mxu0 %v4110
    %5797 = vmatprep.subr.bf16.mxu0 %v4103
    %5798 = vmatpush1.bf16.msra.mxu0 %v4102
    %5799 = vmatprep.subr.bf16.mxu0 %v4095
    %5800 = vmatpush1.bf16.msra.mxu0 %v4094
    %5801 = vmatprep.subr.bf16.mxu0 %v4215
    %5802 = vmatpush2.bf16.msra.mxu0 %v4214
    %5803 = vmatprep.subr.bf16.mxu0 %v4207
    %5804 = vmatpush2.bf16.msra.mxu0 %v4206
    %5805 = vmatprep.subr.bf16.mxu0 %v4199
    %5806 = vmatpush2.bf16.msra.mxu0 %v4198
    %5807 = vmatprep.subr.bf16.mxu0 %v4191
    %5808 = vmatpush2.bf16.msra.mxu0 %v4190
    %5809 = vmatprep.subr.bf16.mxu0 %v4183
    %5810 = vmatpush2.bf16.msra.mxu0 %v4182
    %5811 = vmatprep.subr.bf16.mxu0 %v4175
    %5812 = vmatpush2.bf16.msra.mxu0 %v4174
    %5813 = vmatprep.subr.bf16.mxu0 %v4167
    %5814 = vmatpush2.bf16.msra.mxu0 %v4166
    %5815 = vmatprep.subr.bf16.mxu0 %v4159
    %5816 = vmatpush2.bf16.msra.mxu0 %v4158
    %5817 = vmatprep.mubr.bf16.mxu0 %v970
    %5818 = vmatmul.mubr.bf16.gmra.mxu0 %v969
    %v5819 = vpop.f32.mrf.mxu0
    %v5820 = vadd.f32 %v5777, %v5819
    %v5821 = vpop.f32.mrf.mxu0
    %v5822 = vadd.f32 %v5779, %v5821
    %v5823 = vpop.f32.mrf.mxu0
    %v5824 = vadd.f32 %v5781, %v5823
    %v5825 = vpop.f32.mrf.mxu0
    %v5826 = vadd.f32 %v5783, %v5825
    %5827 = vdwg.mxu0
    %5828 = vmatprep.subr.bf16.mxu0 %v4279
    %5829 = vmatpush1.bf16.msra.mxu0 %v4278
    %5830 = vmatprep.subr.bf16.mxu0 %v4271
    %5831 = vmatpush1.bf16.msra.mxu0 %v4270
    %5832 = vmatprep.subr.bf16.mxu0 %v4263
    %5833 = vmatpush1.bf16.msra.mxu0 %v4262
    %5834 = vmatprep.subr.bf16.mxu0 %v4255
    %5835 = vmatpush1.bf16.msra.mxu0 %v4254
    %5836 = vmatprep.subr.bf16.mxu0 %v4247
    %5837 = vmatpush1.bf16.msra.mxu0 %v4246
    %5838 = vmatprep.subr.bf16.mxu0 %v4239
    %5839 = vmatpush1.bf16.msra.mxu0 %v4238
    %5840 = vmatprep.subr.bf16.mxu0 %v4231
    %5841 = vmatpush1.bf16.msra.mxu0 %v4230
    %5842 = vmatprep.subr.bf16.mxu0 %v4223
    %5843 = vmatpush1.bf16.msra.mxu0 %v4222
    %5844 = vmatprep.subr.bf16.mxu0 %v4343
    %5845 = vmatpush2.bf16.msra.mxu0 %v4342
    %5846 = vmatprep.subr.bf16.mxu0 %v4335
    %5847 = vmatpush2.bf16.msra.mxu0 %v4334
    %5848 = vmatprep.subr.bf16.mxu0 %v4327
    %5849 = vmatpush2.bf16.msra.mxu0 %v4326
    %5850 = vmatprep.subr.bf16.mxu0 %v4319
    %5851 = vmatpush2.bf16.msra.mxu0 %v4318
    %5852 = vmatprep.subr.bf16.mxu0 %v4311
    %5853 = vmatpush2.bf16.msra.mxu0 %v4310
    %5854 = vmatprep.subr.bf16.mxu0 %v4303
    %5855 = vmatpush2.bf16.msra.mxu0 %v4302
    %5856 = vmatprep.subr.bf16.mxu0 %v4295
    %5857 = vmatpush2.bf16.msra.mxu0 %v4294
    %5858 = vmatprep.subr.bf16.mxu0 %v4287
    %5859 = vmatpush2.bf16.msra.mxu0 %v4286
    %5860 = vmatprep.mubr.bf16.mxu0 %v972
    %5861 = vmatmul.mubr.bf16.gmra.mxu0 %v971
    %v5862 = vpop.f32.mrf.mxu0
    %v5863 = vadd.f32 %v5820, %v5862
    %v5864 = vpop.f32.mrf.mxu0
    %v5865 = vadd.f32 %v5822, %v5864
    %v5866 = vpop.f32.mrf.mxu0
    %v5867 = vadd.f32 %v5824, %v5866
    %v5868 = vpop.f32.mrf.mxu0
    %v5869 = vadd.f32 %v5826, %v5868
    %5870 = vdwg.mxu0
    %5871 = vmatprep.subr.bf16.mxu0 %v4407
    %5872 = vmatpush1.bf16.msra.mxu0 %v4406
    %5873 = vmatprep.subr.bf16.mxu0 %v4399
    %5874 = vmatpush1.bf16.msra.mxu0 %v4398
    %5875 = vmatprep.subr.bf16.mxu0 %v4391
    %5876 = vmatpush1.bf16.msra.mxu0 %v4390
    %5877 = vmatprep.subr.bf16.mxu0 %v4383
    %5878 = vmatpush1.bf16.msra.mxu0 %v4382
    %5879 = vmatprep.subr.bf16.mxu0 %v4375
    %5880 = vmatpush1.bf16.msra.mxu0 %v4374
    %5881 = vmatprep.subr.bf16.mxu0 %v4367
    %5882 = vmatpush1.bf16.msra.mxu0 %v4366
    %5883 = vmatprep.subr.bf16.mxu0 %v4359
    %5884 = vmatpush1.bf16.msra.mxu0 %v4358
    %5885 = vmatprep.subr.bf16.mxu0 %v4351
    %5886 = vmatpush1.bf16.msra.mxu0 %v4350
    %5887 = vmatprep.subr.bf16.mxu0 0
    %5888 = vmatpush2.bf16.msra.mxu0 0
    %5889 = vmatprep.subr.bf16.mxu0 0
    %5890 = vmatpush2.bf16.msra.mxu0 0
    %5891 = vmatprep.subr.bf16.mxu0 0
    %5892 = vmatpush2.bf16.msra.mxu0 0
    %5893 = vmatprep.subr.bf16.mxu0 0
    %5894 = vmatpush2.bf16.msra.mxu0 0
    %5895 = vmatprep.subr.bf16.mxu0 %v4439
    %5896 = vmatpush2.bf16.msra.mxu0 %v4438
    %5897 = vmatprep.subr.bf16.mxu0 %v4431
    %5898 = vmatpush2.bf16.msra.mxu0 %v4430
    %5899 = vmatprep.subr.bf16.mxu0 %v4423
    %5900 = vmatpush2.bf16.msra.mxu0 %v4422
    %5901 = vmatprep.subr.bf16.mxu0 %v4415
    %5902 = vmatpush2.bf16.msra.mxu0 %v4414
    %5903 = vmatprep.mubr.bf16.mxu0 %v5310
    %5904 = vmatmul.mubr.bf16.gmra.mxu0 %v973
    %v5905 = vpop.f32.mrf.mxu0
    %v5906 = vadd.f32 %v5863, %v5905
    %v5907 = vpop.f32.mrf.mxu0
    %v5908 = vadd.f32 %v5865, %v5907
    %v5909 = vpop.f32.mrf.mxu0
    %v5910 = vadd.f32 %v5867, %v5909
    %v5911 = vpop.f32.mrf.mxu0
    %v5912 = vadd.f32 %v5869, %v5911
    %5913 = vdwg.mxu0
    %5914 = vmatprep.subr.bf16.mxu0 %v3641
    %5915 = vmatpush1.bf16.msra.mxu0 %v3640
    %5916 = vmatprep.subr.bf16.mxu0 %v3633
    %5917 = vmatpush1.bf16.msra.mxu0 %v3632
    %5918 = vmatprep.subr.bf16.mxu0 %v3625
    %5919 = vmatpush1.bf16.msra.mxu0 %v3624
    %5920 = vmatprep.subr.bf16.mxu0 %v3617
    %5921 = vmatpush1.bf16.msra.mxu0 %v3616
    %5922 = vmatprep.subr.bf16.mxu0 %v3609
    %5923 = vmatpush1.bf16.msra.mxu0 %v3608
    %5924 = vmatprep.subr.bf16.mxu0 %v3601
    %5925 = vmatpush1.bf16.msra.mxu0 %v3600
    %5926 = vmatprep.subr.bf16.mxu0 %v3593
    %5927 = vmatpush1.bf16.msra.mxu0 %v3592
    %5928 = vmatprep.subr.bf16.mxu0 %v3585
    %5929 = vmatpush1.bf16.msra.mxu0 %v3584
    %5930 = vmatprep.subr.bf16.mxu0 %v3705
    %5931 = vmatpush2.bf16.msra.mxu0 %v3704
    %5932 = vmatprep.subr.bf16.mxu0 %v3697
    %5933 = vmatpush2.bf16.msra.mxu0 %v3696
    %5934 = vmatprep.subr.bf16.mxu0 %v3689
    %5935 = vmatpush2.bf16.msra.mxu0 %v3688
    %5936 = vmatprep.subr.bf16.mxu0 %v3681
    %5937 = vmatpush2.bf16.msra.mxu0 %v3680
    %5938 = vmatprep.subr.bf16.mxu0 %v3673
    %5939 = vmatpush2.bf16.msra.mxu0 %v3672
    %5940 = vmatprep.subr.bf16.mxu0 %v3665
    %5941 = vmatpush2.bf16.msra.mxu0 %v3664
    %5942 = vmatprep.subr.bf16.mxu0 %v3657
    %5943 = vmatpush2.bf16.msra.mxu0 %v3656
    %5944 = vmatprep.subr.bf16.mxu0 %v3649
    %5945 = vmatpush2.bf16.msra.mxu0 %v3648
    %5946 = vmatprep.mubr.bf16.mxu0 %v962
    %5947 = vmatmul.mubr.bf16.gmra.mxu0 %v961
    %v5948 = vpop.f32.mrf.mxu0
    %v5949 = vadd.f32 0.0, %v5948
    %v5950 = vpop.f32.mrf.mxu0
    %v5951 = vadd.f32 0.0, %v5950
    %v5952 = vpop.f32.mrf.mxu0
    %v5953 = vadd.f32 0.0, %v5952
    %v5954 = vpop.f32.mrf.mxu0
    %v5955 = vadd.f32 0.0, %v5954
    %5956 = vdwg.mxu0
    %5957 = vmatprep.subr.bf16.mxu0 %v3769
    %5958 = vmatpush1.bf16.msra.mxu0 %v3768
    %5959 = vmatprep.subr.bf16.mxu0 %v3761
    %5960 = vmatpush1.bf16.msra.mxu0 %v3760
    %5961 = vmatprep.subr.bf16.mxu0 %v3753
    %5962 = vmatpush1.bf16.msra.mxu0 %v3752
    %5963 = vmatprep.subr.bf16.mxu0 %v3745
    %5964 = vmatpush1.bf16.msra.mxu0 %v3744
    %5965 = vmatprep.subr.bf16.mxu0 %v3737
    %5966 = vmatpush1.bf16.msra.mxu0 %v3736
    %5967 = vmatprep.subr.bf16.mxu0 %v3729
    %5968 = vmatpush1.bf16.msra.mxu0 %v3728
    %5969 = vmatprep.subr.bf16.mxu0 %v3721
    %5970 = vmatpush1.bf16.msra.mxu0 %v3720
    %5971 = vmatprep.subr.bf16.mxu0 %v3713
    %5972 = vmatpush1.bf16.msra.mxu0 %v3712
    %5973 = vmatprep.subr.bf16.mxu0 %v3833
    %5974 = vmatpush2.bf16.msra.mxu0 %v3832
    %5975 = vmatprep.subr.bf16.mxu0 %v3825
    %5976 = vmatpush2.bf16.msra.mxu0 %v3824
    %5977 = vmatprep.subr.bf16.mxu0 %v3817
    %5978 = vmatpush2.bf16.msra.mxu0 %v3816
    %5979 = vmatprep.subr.bf16.mxu0 %v3809
    %5980 = vmatpush2.bf16.msra.mxu0 %v3808
    %5981 = vmatprep.subr.bf16.mxu0 %v3801
    %5982 = vmatpush2.bf16.msra.mxu0 %v3800
    %5983 = vmatprep.subr.bf16.mxu0 %v3793
    %5984 = vmatpush2.bf16.msra.mxu0 %v3792
    %5985 = vmatprep.subr.bf16.mxu0 %v3785
    %5986 = vmatpush2.bf16.msra.mxu0 %v3784
    %5987 = vmatprep.subr.bf16.mxu0 %v3777
    %5988 = vmatpush2.bf16.msra.mxu0 %v3776
    %5989 = vmatprep.mubr.bf16.mxu0 %v964
    %5990 = vmatmul.mubr.bf16.gmra.mxu0 %v963
    %v5991 = vpop.f32.mrf.mxu0
    %v5992 = vadd.f32 %v5949, %v5991
    %v5993 = vpop.f32.mrf.mxu0
    %v5994 = vadd.f32 %v5951, %v5993
    %v5995 = vpop.f32.mrf.mxu0
    %v5996 = vadd.f32 %v5953, %v5995
    %v5997 = vpop.f32.mrf.mxu0
    %v5998 = vadd.f32 %v5955, %v5997
    %5999 = vdwg.mxu0
    %6000 = vmatprep.subr.bf16.mxu0 %v3897
    %6001 = vmatpush1.bf16.msra.mxu0 %v3896
    %6002 = vmatprep.subr.bf16.mxu0 %v3889
    %6003 = vmatpush1.bf16.msra.mxu0 %v3888
    %6004 = vmatprep.subr.bf16.mxu0 %v3881
    %6005 = vmatpush1.bf16.msra.mxu0 %v3880
    %6006 = vmatprep.subr.bf16.mxu0 %v3873
    %6007 = vmatpush1.bf16.msra.mxu0 %v3872
    %6008 = vmatprep.subr.bf16.mxu0 %v3865
    %6009 = vmatpush1.bf16.msra.mxu0 %v3864
    %6010 = vmatprep.subr.bf16.mxu0 %v3857
    %6011 = vmatpush1.bf16.msra.mxu0 %v3856
    %6012 = vmatprep.subr.bf16.mxu0 %v3849
    %6013 = vmatpush1.bf16.msra.mxu0 %v3848
    %6014 = vmatprep.subr.bf16.mxu0 %v3841
    %6015 = vmatpush1.bf16.msra.mxu0 %v3840
    %6016 = vmatprep.subr.bf16.mxu0 %v3961
    %6017 = vmatpush2.bf16.msra.mxu0 %v3960
    %6018 = vmatprep.subr.bf16.mxu0 %v3953
    %6019 = vmatpush2.bf16.msra.mxu0 %v3952
    %6020 = vmatprep.subr.bf16.mxu0 %v3945
    %6021 = vmatpush2.bf16.msra.mxu0 %v3944
    %6022 = vmatprep.subr.bf16.mxu0 %v3937
    %6023 = vmatpush2.bf16.msra.mxu0 %v3936
    %6024 = vmatprep.subr.bf16.mxu0 %v3929
    %6025 = vmatpush2.bf16.msra.mxu0 %v3928
    %6026 = vmatprep.subr.bf16.mxu0 %v3921
    %6027 = vmatpush2.bf16.msra.mxu0 %v3920
    %6028 = vmatprep.subr.bf16.mxu0 %v3913
    %6029 = vmatpush2.bf16.msra.mxu0 %v3912
    %6030 = vmatprep.subr.bf16.mxu0 %v3905
    %6031 = vmatpush2.bf16.msra.mxu0 %v3904
    %6032 = vmatprep.mubr.bf16.mxu0 %v966
    %6033 = vmatmul.mubr.bf16.gmra.mxu0 %v965
    %v6034 = vpop.f32.mrf.mxu0
    %v6035 = vadd.f32 %v5992, %v6034
    %v6036 = vpop.f32.mrf.mxu0
    %v6037 = vadd.f32 %v5994, %v6036
    %v6038 = vpop.f32.mrf.mxu0
    %v6039 = vadd.f32 %v5996, %v6038
    %v6040 = vpop.f32.mrf.mxu0
    %v6041 = vadd.f32 %v5998, %v6040
    %6042 = vdwg.mxu0
    %6043 = vmatprep.subr.bf16.mxu0 %v4025
    %6044 = vmatpush1.bf16.msra.mxu0 %v4024
    %6045 = vmatprep.subr.bf16.mxu0 %v4017
    %6046 = vmatpush1.bf16.msra.mxu0 %v4016
    %6047 = vmatprep.subr.bf16.mxu0 %v4009
    %6048 = vmatpush1.bf16.msra.mxu0 %v4008
    %6049 = vmatprep.subr.bf16.mxu0 %v4001
    %6050 = vmatpush1.bf16.msra.mxu0 %v4000
    %6051 = vmatprep.subr.bf16.mxu0 %v3993
    %6052 = vmatpush1.bf16.msra.mxu0 %v3992
    %6053 = vmatprep.subr.bf16.mxu0 %v3985
    %6054 = vmatpush1.bf16.msra.mxu0 %v3984
    %6055 = vmatprep.subr.bf16.mxu0 %v3977
    %6056 = vmatpush1.bf16.msra.mxu0 %v3976
    %6057 = vmatprep.subr.bf16.mxu0 %v3969
    %6058 = vmatpush1.bf16.msra.mxu0 %v3968
    %6059 = vmatprep.subr.bf16.mxu0 %v4089
    %6060 = vmatpush2.bf16.msra.mxu0 %v4088
    %6061 = vmatprep.subr.bf16.mxu0 %v4081
    %6062 = vmatpush2.bf16.msra.mxu0 %v4080
    %6063 = vmatprep.subr.bf16.mxu0 %v4073
    %6064 = vmatpush2.bf16.msra.mxu0 %v4072
    %6065 = vmatprep.subr.bf16.mxu0 %v4065
    %6066 = vmatpush2.bf16.msra.mxu0 %v4064
    %6067 = vmatprep.subr.bf16.mxu0 %v4057
    %6068 = vmatpush2.bf16.msra.mxu0 %v4056
    %6069 = vmatprep.subr.bf16.mxu0 %v4049
    %6070 = vmatpush2.bf16.msra.mxu0 %v4048
    %6071 = vmatprep.subr.bf16.mxu0 %v4041
    %6072 = vmatpush2.bf16.msra.mxu0 %v4040
    %6073 = vmatprep.subr.bf16.mxu0 %v4033
    %6074 = vmatpush2.bf16.msra.mxu0 %v4032
    %6075 = vmatprep.mubr.bf16.mxu0 %v968
    %6076 = vmatmul.mubr.bf16.gmra.mxu0 %v967
    %v6077 = vpop.f32.mrf.mxu0
    %v6078 = vadd.f32 %v6035, %v6077
    %v6079 = vpop.f32.mrf.mxu0
    %v6080 = vadd.f32 %v6037, %v6079
    %v6081 = vpop.f32.mrf.mxu0
    %v6082 = vadd.f32 %v6039, %v6081
    %v6083 = vpop.f32.mrf.mxu0
    %v6084 = vadd.f32 %v6041, %v6083
    %6085 = vdwg.mxu0
    %6086 = vmatprep.subr.bf16.mxu0 %v4153
    %6087 = vmatpush1.bf16.msra.mxu0 %v4152
    %6088 = vmatprep.subr.bf16.mxu0 %v4145
    %6089 = vmatpush1.bf16.msra.mxu0 %v4144
    %6090 = vmatprep.subr.bf16.mxu0 %v4137
    %6091 = vmatpush1.bf16.msra.mxu0 %v4136
    %6092 = vmatprep.subr.bf16.mxu0 %v4129
    %6093 = vmatpush1.bf16.msra.mxu0 %v4128
    %6094 = vmatprep.subr.bf16.mxu0 %v4121
    %6095 = vmatpush1.bf16.msra.mxu0 %v4120
    %6096 = vmatprep.subr.bf16.mxu0 %v4113
    %6097 = vmatpush1.bf16.msra.mxu0 %v4112
    %6098 = vmatprep.subr.bf16.mxu0 %v4105
    %6099 = vmatpush1.bf16.msra.mxu0 %v4104
    %6100 = vmatprep.subr.bf16.mxu0 %v4097
    %6101 = vmatpush1.bf16.msra.mxu0 %v4096
    %6102 = vmatprep.subr.bf16.mxu0 %v4217
    %6103 = vmatpush2.bf16.msra.mxu0 %v4216
    %6104 = vmatprep.subr.bf16.mxu0 %v4209
    %6105 = vmatpush2.bf16.msra.mxu0 %v4208
    %6106 = vmatprep.subr.bf16.mxu0 %v4201
    %6107 = vmatpush2.bf16.msra.mxu0 %v4200
    %6108 = vmatprep.subr.bf16.mxu0 %v4193
    %6109 = vmatpush2.bf16.msra.mxu0 %v4192
    %6110 = vmatprep.subr.bf16.mxu0 %v4185
    %6111 = vmatpush2.bf16.msra.mxu0 %v4184
    %6112 = vmatprep.subr.bf16.mxu0 %v4177
    %6113 = vmatpush2.bf16.msra.mxu0 %v4176
    %6114 = vmatprep.subr.bf16.mxu0 %v4169
    %6115 = vmatpush2.bf16.msra.mxu0 %v4168
    %6116 = vmatprep.subr.bf16.mxu0 %v4161
    %6117 = vmatpush2.bf16.msra.mxu0 %v4160
    %6118 = vmatprep.mubr.bf16.mxu0 %v970
    %6119 = vmatmul.mubr.bf16.gmra.mxu0 %v969
    %v6120 = vpop.f32.mrf.mxu0
    %v6121 = vadd.f32 %v6078, %v6120
    %v6122 = vpop.f32.mrf.mxu0
    %v6123 = vadd.f32 %v6080, %v6122
    %v6124 = vpop.f32.mrf.mxu0
    %v6125 = vadd.f32 %v6082, %v6124
    %v6126 = vpop.f32.mrf.mxu0
    %v6127 = vadd.f32 %v6084, %v6126
    %6128 = vdwg.mxu0
    %6129 = vmatprep.subr.bf16.mxu0 %v4281
    %6130 = vmatpush1.bf16.msra.mxu0 %v4280
    %6131 = vmatprep.subr.bf16.mxu0 %v4273
    %6132 = vmatpush1.bf16.msra.mxu0 %v4272
    %6133 = vmatprep.subr.bf16.mxu0 %v4265
    %6134 = vmatpush1.bf16.msra.mxu0 %v4264
    %6135 = vmatprep.subr.bf16.mxu0 %v4257
    %6136 = vmatpush1.bf16.msra.mxu0 %v4256
    %6137 = vmatprep.subr.bf16.mxu0 %v4249
    %6138 = vmatpush1.bf16.msra.mxu0 %v4248
    %6139 = vmatprep.subr.bf16.mxu0 %v4241
    %6140 = vmatpush1.bf16.msra.mxu0 %v4240
    %6141 = vmatprep.subr.bf16.mxu0 %v4233
    %6142 = vmatpush1.bf16.msra.mxu0 %v4232
    %6143 = vmatprep.subr.bf16.mxu0 %v4225
    %6144 = vmatpush1.bf16.msra.mxu0 %v4224
    %6145 = vmatprep.subr.bf16.mxu0 %v4345
    %6146 = vmatpush2.bf16.msra.mxu0 %v4344
    %6147 = vmatprep.subr.bf16.mxu0 %v4337
    %6148 = vmatpush2.bf16.msra.mxu0 %v4336
    %6149 = vmatprep.subr.bf16.mxu0 %v4329
    %6150 = vmatpush2.bf16.msra.mxu0 %v4328
    %6151 = vmatprep.subr.bf16.mxu0 %v4321
    %6152 = vmatpush2.bf16.msra.mxu0 %v4320
    %6153 = vmatprep.subr.bf16.mxu0 %v4313
    %6154 = vmatpush2.bf16.msra.mxu0 %v4312
    %6155 = vmatprep.subr.bf16.mxu0 %v4305
    %6156 = vmatpush2.bf16.msra.mxu0 %v4304
    %6157 = vmatprep.subr.bf16.mxu0 %v4297
    %6158 = vmatpush2.bf16.msra.mxu0 %v4296
    %6159 = vmatprep.subr.bf16.mxu0 %v4289
    %6160 = vmatpush2.bf16.msra.mxu0 %v4288
    %6161 = vmatprep.mubr.bf16.mxu0 %v972
    %6162 = vmatmul.mubr.bf16.gmra.mxu0 %v971
    %v6163 = vpop.f32.mrf.mxu0
    %v6164 = vadd.f32 %v6121, %v6163
    %v6165 = vpop.f32.mrf.mxu0
    %v6166 = vadd.f32 %v6123, %v6165
    %v6167 = vpop.f32.mrf.mxu0
    %v6168 = vadd.f32 %v6125, %v6167
    %v6169 = vpop.f32.mrf.mxu0
    %v6170 = vadd.f32 %v6127, %v6169
    %6171 = vdwg.mxu0
    %6172 = vmatprep.subr.bf16.mxu0 %v4409
    %6173 = vmatpush1.bf16.msra.mxu0 %v4408
    %6174 = vmatprep.subr.bf16.mxu0 %v4401
    %6175 = vmatpush1.bf16.msra.mxu0 %v4400
    %6176 = vmatprep.subr.bf16.mxu0 %v4393
    %6177 = vmatpush1.bf16.msra.mxu0 %v4392
    %6178 = vmatprep.subr.bf16.mxu0 %v4385
    %6179 = vmatpush1.bf16.msra.mxu0 %v4384
    %6180 = vmatprep.subr.bf16.mxu0 %v4377
    %6181 = vmatpush1.bf16.msra.mxu0 %v4376
    %6182 = vmatprep.subr.bf16.mxu0 %v4369
    %6183 = vmatpush1.bf16.msra.mxu0 %v4368
    %6184 = vmatprep.subr.bf16.mxu0 %v4361
    %6185 = vmatpush1.bf16.msra.mxu0 %v4360
    %6186 = vmatprep.subr.bf16.mxu0 %v4353
    %6187 = vmatpush1.bf16.msra.mxu0 %v4352
    %6188 = vmatprep.subr.bf16.mxu0 0
    %6189 = vmatpush2.bf16.msra.mxu0 0
    %6190 = vmatprep.subr.bf16.mxu0 0
    %6191 = vmatpush2.bf16.msra.mxu0 0
    %6192 = vmatprep.subr.bf16.mxu0 0
    %6193 = vmatpush2.bf16.msra.mxu0 0
    %6194 = vmatprep.subr.bf16.mxu0 0
    %6195 = vmatpush2.bf16.msra.mxu0 0
    %6196 = vmatprep.subr.bf16.mxu0 %v4441
    %6197 = vmatpush2.bf16.msra.mxu0 %v4440
    %6198 = vmatprep.subr.bf16.mxu0 %v4433
    %6199 = vmatpush2.bf16.msra.mxu0 %v4432
    %6200 = vmatprep.subr.bf16.mxu0 %v4425
    %6201 = vmatpush2.bf16.msra.mxu0 %v4424
    %6202 = vmatprep.subr.bf16.mxu0 %v4417
    %6203 = vmatpush2.bf16.msra.mxu0 %v4416
    %6204 = vmatprep.mubr.bf16.mxu0 %v5310
    %6205 = vmatmul.mubr.bf16.gmra.mxu0 %v973
    %v6206 = vpop.f32.mrf.mxu0
    %v6207 = vadd.f32 %v6164, %v6206
    %v6208 = vpop.f32.mrf.mxu0
    %v6209 = vadd.f32 %v6166, %v6208
    %v6210 = vpop.f32.mrf.mxu0
    %v6211 = vadd.f32 %v6168, %v6210
    %v6212 = vpop.f32.mrf.mxu0
    %v6213 = vadd.f32 %v6170, %v6212
    %6214 = vdwg.mxu0
    %6215 = vmatprep.subr.bf16.mxu0 %v3643
    %6216 = vmatpush1.bf16.msra.mxu0 %v3642
    %6217 = vmatprep.subr.bf16.mxu0 %v3635
    %6218 = vmatpush1.bf16.msra.mxu0 %v3634
    %6219 = vmatprep.subr.bf16.mxu0 %v3627
    %6220 = vmatpush1.bf16.msra.mxu0 %v3626
    %6221 = vmatprep.subr.bf16.mxu0 %v3619
    %6222 = vmatpush1.bf16.msra.mxu0 %v3618
    %6223 = vmatprep.subr.bf16.mxu0 %v3611
    %6224 = vmatpush1.bf16.msra.mxu0 %v3610
    %6225 = vmatprep.subr.bf16.mxu0 %v3603
    %6226 = vmatpush1.bf16.msra.mxu0 %v3602
    %6227 = vmatprep.subr.bf16.mxu0 %v3595
    %6228 = vmatpush1.bf16.msra.mxu0 %v3594
    %6229 = vmatprep.subr.bf16.mxu0 %v3587
    %6230 = vmatpush1.bf16.msra.mxu0 %v3586
    %6231 = vmatprep.subr.bf16.mxu0 %v3707
    %6232 = vmatpush2.bf16.msra.mxu0 %v3706
    %6233 = vmatprep.subr.bf16.mxu0 %v3699
    %6234 = vmatpush2.bf16.msra.mxu0 %v3698
    %6235 = vmatprep.subr.bf16.mxu0 %v3691
    %6236 = vmatpush2.bf16.msra.mxu0 %v3690
    %6237 = vmatprep.subr.bf16.mxu0 %v3683
    %6238 = vmatpush2.bf16.msra.mxu0 %v3682
    %6239 = vmatprep.subr.bf16.mxu0 %v3675
    %6240 = vmatpush2.bf16.msra.mxu0 %v3674
    %6241 = vmatprep.subr.bf16.mxu0 %v3667
    %6242 = vmatpush2.bf16.msra.mxu0 %v3666
    %6243 = vmatprep.subr.bf16.mxu0 %v3659
    %6244 = vmatpush2.bf16.msra.mxu0 %v3658
    %6245 = vmatprep.subr.bf16.mxu0 %v3651
    %6246 = vmatpush2.bf16.msra.mxu0 %v3650
    %6247 = vmatprep.mubr.bf16.mxu0 %v962
    %6248 = vmatmul.mubr.bf16.gmra.mxu0 %v961
    %v6249 = vpop.f32.mrf.mxu0
    %v6250 = vadd.f32 0.0, %v6249
    %v6251 = vpop.f32.mrf.mxu0
    %v6252 = vadd.f32 0.0, %v6251
    %v6253 = vpop.f32.mrf.mxu0
    %v6254 = vadd.f32 0.0, %v6253
    %v6255 = vpop.f32.mrf.mxu0
    %v6256 = vadd.f32 0.0, %v6255
    %6257 = vdwg.mxu0
    %6258 = vmatprep.subr.bf16.mxu0 %v3771
    %6259 = vmatpush1.bf16.msra.mxu0 %v3770
    %6260 = vmatprep.subr.bf16.mxu0 %v3763
    %6261 = vmatpush1.bf16.msra.mxu0 %v3762
    %6262 = vmatprep.subr.bf16.mxu0 %v3755
    %6263 = vmatpush1.bf16.msra.mxu0 %v3754
    %6264 = vmatprep.subr.bf16.mxu0 %v3747
    %6265 = vmatpush1.bf16.msra.mxu0 %v3746
    %6266 = vmatprep.subr.bf16.mxu0 %v3739
    %6267 = vmatpush1.bf16.msra.mxu0 %v3738
    %6268 = vmatprep.subr.bf16.mxu0 %v3731
    %6269 = vmatpush1.bf16.msra.mxu0 %v3730
    %6270 = vmatprep.subr.bf16.mxu0 %v3723
    %6271 = vmatpush1.bf16.msra.mxu0 %v3722
    %6272 = vmatprep.subr.bf16.mxu0 %v3715
    %6273 = vmatpush1.bf16.msra.mxu0 %v3714
    %6274 = vmatprep.subr.bf16.mxu0 %v3835
    %6275 = vmatpush2.bf16.msra.mxu0 %v3834
    %6276 = vmatprep.subr.bf16.mxu0 %v3827
    %6277 = vmatpush2.bf16.msra.mxu0 %v3826
    %6278 = vmatprep.subr.bf16.mxu0 %v3819
    %6279 = vmatpush2.bf16.msra.mxu0 %v3818
    %6280 = vmatprep.subr.bf16.mxu0 %v3811
    %6281 = vmatpush2.bf16.msra.mxu0 %v3810
    %6282 = vmatprep.subr.bf16.mxu0 %v3803
    %6283 = vmatpush2.bf16.msra.mxu0 %v3802
    %6284 = vmatprep.subr.bf16.mxu0 %v3795
    %6285 = vmatpush2.bf16.msra.mxu0 %v3794
    %6286 = vmatprep.subr.bf16.mxu0 %v3787
    %6287 = vmatpush2.bf16.msra.mxu0 %v3786
    %6288 = vmatprep.subr.bf16.mxu0 %v3779
    %6289 = vmatpush2.bf16.msra.mxu0 %v3778
    %6290 = vmatprep.mubr.bf16.mxu0 %v964
    %6291 = vmatmul.mubr.bf16.gmra.mxu0 %v963
    %v6292 = vpop.f32.mrf.mxu0
    %v6293 = vadd.f32 %v6250, %v6292
    %v6294 = vpop.f32.mrf.mxu0
    %v6295 = vadd.f32 %v6252, %v6294
    %v6296 = vpop.f32.mrf.mxu0
    %v6297 = vadd.f32 %v6254, %v6296
    %v6298 = vpop.f32.mrf.mxu0
    %v6299 = vadd.f32 %v6256, %v6298
    %6300 = vdwg.mxu0
    %6301 = vmatprep.subr.bf16.mxu0 %v3899
    %6302 = vmatpush1.bf16.msra.mxu0 %v3898
    %6303 = vmatprep.subr.bf16.mxu0 %v3891
    %6304 = vmatpush1.bf16.msra.mxu0 %v3890
    %6305 = vmatprep.subr.bf16.mxu0 %v3883
    %6306 = vmatpush1.bf16.msra.mxu0 %v3882
    %6307 = vmatprep.subr.bf16.mxu0 %v3875
    %6308 = vmatpush1.bf16.msra.mxu0 %v3874
    %6309 = vmatprep.subr.bf16.mxu0 %v3867
    %6310 = vmatpush1.bf16.msra.mxu0 %v3866
    %6311 = vmatprep.subr.bf16.mxu0 %v3859
    %6312 = vmatpush1.bf16.msra.mxu0 %v3858
    %6313 = vmatprep.subr.bf16.mxu0 %v3851
    %6314 = vmatpush1.bf16.msra.mxu0 %v3850
    %6315 = vmatprep.subr.bf16.mxu0 %v3843
    %6316 = vmatpush1.bf16.msra.mxu0 %v3842
    %6317 = vmatprep.subr.bf16.mxu0 %v3963
    %6318 = vmatpush2.bf16.msra.mxu0 %v3962
    %6319 = vmatprep.subr.bf16.mxu0 %v3955
    %6320 = vmatpush2.bf16.msra.mxu0 %v3954
    %6321 = vmatprep.subr.bf16.mxu0 %v3947
    %6322 = vmatpush2.bf16.msra.mxu0 %v3946
    %6323 = vmatprep.subr.bf16.mxu0 %v3939
    %6324 = vmatpush2.bf16.msra.mxu0 %v3938
    %6325 = vmatprep.subr.bf16.mxu0 %v3931
    %6326 = vmatpush2.bf16.msra.mxu0 %v3930
    %6327 = vmatprep.subr.bf16.mxu0 %v3923
    %6328 = vmatpush2.bf16.msra.mxu0 %v3922
    %6329 = vmatprep.subr.bf16.mxu0 %v3915
    %6330 = vmatpush2.bf16.msra.mxu0 %v3914
    %6331 = vmatprep.subr.bf16.mxu0 %v3907
    %6332 = vmatpush2.bf16.msra.mxu0 %v3906
    %6333 = vmatprep.mubr.bf16.mxu0 %v966
    %6334 = vmatmul.mubr.bf16.gmra.mxu0 %v965
    %v6335 = vpop.f32.mrf.mxu0
    %v6336 = vadd.f32 %v6293, %v6335
    %v6337 = vpop.f32.mrf.mxu0
    %v6338 = vadd.f32 %v6295, %v6337
    %v6339 = vpop.f32.mrf.mxu0
    %v6340 = vadd.f32 %v6297, %v6339
    %v6341 = vpop.f32.mrf.mxu0
    %v6342 = vadd.f32 %v6299, %v6341
    %6343 = vdwg.mxu0
    %6344 = vmatprep.subr.bf16.mxu0 %v4027
    %6345 = vmatpush1.bf16.msra.mxu0 %v4026
    %6346 = vmatprep.subr.bf16.mxu0 %v4019
    %6347 = vmatpush1.bf16.msra.mxu0 %v4018
    %6348 = vmatprep.subr.bf16.mxu0 %v4011
    %6349 = vmatpush1.bf16.msra.mxu0 %v4010
    %6350 = vmatprep.subr.bf16.mxu0 %v4003
    %6351 = vmatpush1.bf16.msra.mxu0 %v4002
    %6352 = vmatprep.subr.bf16.mxu0 %v3995
    %6353 = vmatpush1.bf16.msra.mxu0 %v3994
    %6354 = vmatprep.subr.bf16.mxu0 %v3987
    %6355 = vmatpush1.bf16.msra.mxu0 %v3986
    %6356 = vmatprep.subr.bf16.mxu0 %v3979
    %6357 = vmatpush1.bf16.msra.mxu0 %v3978
    %6358 = vmatprep.subr.bf16.mxu0 %v3971
    %6359 = vmatpush1.bf16.msra.mxu0 %v3970
    %6360 = vmatprep.subr.bf16.mxu0 %v4091
    %6361 = vmatpush2.bf16.msra.mxu0 %v4090
    %6362 = vmatprep.subr.bf16.mxu0 %v4083
    %6363 = vmatpush2.bf16.msra.mxu0 %v4082
    %6364 = vmatprep.subr.bf16.mxu0 %v4075
    %6365 = vmatpush2.bf16.msra.mxu0 %v4074
    %6366 = vmatprep.subr.bf16.mxu0 %v4067
    %6367 = vmatpush2.bf16.msra.mxu0 %v4066
    %6368 = vmatprep.subr.bf16.mxu0 %v4059
    %6369 = vmatpush2.bf16.msra.mxu0 %v4058
    %6370 = vmatprep.subr.bf16.mxu0 %v4051
    %6371 = vmatpush2.bf16.msra.mxu0 %v4050
    %6372 = vmatprep.subr.bf16.mxu0 %v4043
    %6373 = vmatpush2.bf16.msra.mxu0 %v4042
    %6374 = vmatprep.subr.bf16.mxu0 %v4035
    %6375 = vmatpush2.bf16.msra.mxu0 %v4034
    %6376 = vmatprep.mubr.bf16.mxu0 %v968
    %6377 = vmatmul.mubr.bf16.gmra.mxu0 %v967
    %v6378 = vpop.f32.mrf.mxu0
    %v6379 = vadd.f32 %v6336, %v6378
    %v6380 = vpop.f32.mrf.mxu0
    %v6381 = vadd.f32 %v6338, %v6380
    %v6382 = vpop.f32.mrf.mxu0
    %v6383 = vadd.f32 %v6340, %v6382
    %v6384 = vpop.f32.mrf.mxu0
    %v6385 = vadd.f32 %v6342, %v6384
    %6386 = vdwg.mxu0
    %6387 = vmatprep.subr.bf16.mxu0 %v4155
    %6388 = vmatpush1.bf16.msra.mxu0 %v4154
    %6389 = vmatprep.subr.bf16.mxu0 %v4147
    %6390 = vmatpush1.bf16.msra.mxu0 %v4146
    %6391 = vmatprep.subr.bf16.mxu0 %v4139
    %6392 = vmatpush1.bf16.msra.mxu0 %v4138
    %6393 = vmatprep.subr.bf16.mxu0 %v4131
    %6394 = vmatpush1.bf16.msra.mxu0 %v4130
    %6395 = vmatprep.subr.bf16.mxu0 %v4123
    %6396 = vmatpush1.bf16.msra.mxu0 %v4122
    %6397 = vmatprep.subr.bf16.mxu0 %v4115
    %6398 = vmatpush1.bf16.msra.mxu0 %v4114
    %6399 = vmatprep.subr.bf16.mxu0 %v4107
    %6400 = vmatpush1.bf16.msra.mxu0 %v4106
    %6401 = vmatprep.subr.bf16.mxu0 %v4099
    %6402 = vmatpush1.bf16.msra.mxu0 %v4098
    %6403 = vmatprep.subr.bf16.mxu0 %v4219
    %6404 = vmatpush2.bf16.msra.mxu0 %v4218
    %6405 = vmatprep.subr.bf16.mxu0 %v4211
    %6406 = vmatpush2.bf16.msra.mxu0 %v4210
    %6407 = vmatprep.subr.bf16.mxu0 %v4203
    %6408 = vmatpush2.bf16.msra.mxu0 %v4202
    %6409 = vmatprep.subr.bf16.mxu0 %v4195
    %6410 = vmatpush2.bf16.msra.mxu0 %v4194
    %6411 = vmatprep.subr.bf16.mxu0 %v4187
    %6412 = vmatpush2.bf16.msra.mxu0 %v4186
    %6413 = vmatprep.subr.bf16.mxu0 %v4179
    %6414 = vmatpush2.bf16.msra.mxu0 %v4178
    %6415 = vmatprep.subr.bf16.mxu0 %v4171
    %6416 = vmatpush2.bf16.msra.mxu0 %v4170
    %6417 = vmatprep.subr.bf16.mxu0 %v4163
    %6418 = vmatpush2.bf16.msra.mxu0 %v4162
    %6419 = vmatprep.mubr.bf16.mxu0 %v970
    %6420 = vmatmul.mubr.bf16.gmra.mxu0 %v969
    %v6421 = vpop.f32.mrf.mxu0
    %v6422 = vadd.f32 %v6379, %v6421
    %v6423 = vpop.f32.mrf.mxu0
    %v6424 = vadd.f32 %v6381, %v6423
    %v6425 = vpop.f32.mrf.mxu0
    %v6426 = vadd.f32 %v6383, %v6425
    %v6427 = vpop.f32.mrf.mxu0
    %v6428 = vadd.f32 %v6385, %v6427
    %6429 = vdwg.mxu0
    %6430 = vmatprep.subr.bf16.mxu0 %v4283
    %6431 = vmatpush1.bf16.msra.mxu0 %v4282
    %6432 = vmatprep.subr.bf16.mxu0 %v4275
    %6433 = vmatpush1.bf16.msra.mxu0 %v4274
    %6434 = vmatprep.subr.bf16.mxu0 %v4267
    %6435 = vmatpush1.bf16.msra.mxu0 %v4266
    %6436 = vmatprep.subr.bf16.mxu0 %v4259
    %6437 = vmatpush1.bf16.msra.mxu0 %v4258
    %6438 = vmatprep.subr.bf16.mxu0 %v4251
    %6439 = vmatpush1.bf16.msra.mxu0 %v4250
    %6440 = vmatprep.subr.bf16.mxu0 %v4243
    %6441 = vmatpush1.bf16.msra.mxu0 %v4242
    %6442 = vmatprep.subr.bf16.mxu0 %v4235
    %6443 = vmatpush1.bf16.msra.mxu0 %v4234
    %6444 = vmatprep.subr.bf16.mxu0 %v4227
    %6445 = vmatpush1.bf16.msra.mxu0 %v4226
    %6446 = vmatprep.subr.bf16.mxu0 %v4347
    %6447 = vmatpush2.bf16.msra.mxu0 %v4346
    %6448 = vmatprep.subr.bf16.mxu0 %v4339
    %6449 = vmatpush2.bf16.msra.mxu0 %v4338
    %6450 = vmatprep.subr.bf16.mxu0 %v4331
    %6451 = vmatpush2.bf16.msra.mxu0 %v4330
    %6452 = vmatprep.subr.bf16.mxu0 %v4323
    %6453 = vmatpush2.bf16.msra.mxu0 %v4322
    %6454 = vmatprep.subr.bf16.mxu0 %v4315
    %6455 = vmatpush2.bf16.msra.mxu0 %v4314
    %6456 = vmatprep.subr.bf16.mxu0 %v4307
    %6457 = vmatpush2.bf16.msra.mxu0 %v4306
    %6458 = vmatprep.subr.bf16.mxu0 %v4299
    %6459 = vmatpush2.bf16.msra.mxu0 %v4298
    %6460 = vmatprep.subr.bf16.mxu0 %v4291
    %6461 = vmatpush2.bf16.msra.mxu0 %v4290
    %6462 = vmatprep.mubr.bf16.mxu0 %v972
    %6463 = vmatmul.mubr.bf16.gmra.mxu0 %v971
    %v6464 = vpop.f32.mrf.mxu0
    %v6465 = vadd.f32 %v6422, %v6464
    %v6466 = vpop.f32.mrf.mxu0
    %v6467 = vadd.f32 %v6424, %v6466
    %v6468 = vpop.f32.mrf.mxu0
    %v6469 = vadd.f32 %v6426, %v6468
    %v6470 = vpop.f32.mrf.mxu0
    %v6471 = vadd.f32 %v6428, %v6470
    %6472 = vdwg.mxu0
    %6473 = vmatprep.subr.bf16.mxu0 %v4411
    %6474 = vmatpush1.bf16.msra.mxu0 %v4410
    %6475 = vmatprep.subr.bf16.mxu0 %v4403
    %6476 = vmatpush1.bf16.msra.mxu0 %v4402
    %6477 = vmatprep.subr.bf16.mxu0 %v4395
    %6478 = vmatpush1.bf16.msra.mxu0 %v4394
    %6479 = vmatprep.subr.bf16.mxu0 %v4387
    %6480 = vmatpush1.bf16.msra.mxu0 %v4386
    %6481 = vmatprep.subr.bf16.mxu0 %v4379
    %6482 = vmatpush1.bf16.msra.mxu0 %v4378
    %6483 = vmatprep.subr.bf16.mxu0 %v4371
    %6484 = vmatpush1.bf16.msra.mxu0 %v4370
    %6485 = vmatprep.subr.bf16.mxu0 %v4363
    %6486 = vmatpush1.bf16.msra.mxu0 %v4362
    %6487 = vmatprep.subr.bf16.mxu0 %v4355
    %6488 = vmatpush1.bf16.msra.mxu0 %v4354
    %6489 = vmatprep.subr.bf16.mxu0 0
    %6490 = vmatpush2.bf16.msra.mxu0 0
    %6491 = vmatprep.subr.bf16.mxu0 0
    %6492 = vmatpush2.bf16.msra.mxu0 0
    %6493 = vmatprep.subr.bf16.mxu0 0
    %6494 = vmatpush2.bf16.msra.mxu0 0
    %6495 = vmatprep.subr.bf16.mxu0 0
    %6496 = vmatpush2.bf16.msra.mxu0 0
    %6497 = vmatprep.subr.bf16.mxu0 %v4443
    %6498 = vmatpush2.bf16.msra.mxu0 %v4442
    %6499 = vmatprep.subr.bf16.mxu0 %v4435
    %6500 = vmatpush2.bf16.msra.mxu0 %v4434
    %6501 = vmatprep.subr.bf16.mxu0 %v4427
    %6502 = vmatpush2.bf16.msra.mxu0 %v4426
    %6503 = vmatprep.subr.bf16.mxu0 %v4419
    %6504 = vmatpush2.bf16.msra.mxu0 %v4418
    %6505 = vmatprep.mubr.bf16.mxu0 %v5310
    %6506 = vmatmul.mubr.bf16.gmra.mxu0 %v973
    %v6507 = vpop.f32.mrf.mxu0
    %v6508 = vadd.f32 %v6465, %v6507
    %v6509 = vpop.f32.mrf.mxu0
    %v6510 = vadd.f32 %v6467, %v6509
    %v6511 = vpop.f32.mrf.mxu0
    %v6512 = vadd.f32 %v6469, %v6511
    %v6513 = vpop.f32.mrf.mxu0
    %v6514 = vadd.f32 %v6471, %v6513
    %6515 = vdwg.mxu0
    %v6516 = vmax.f32 %v5605, %v5906
    %v6517 = vmax.f32 %v5607, %v5908
    %v6518 = vmax.f32 %v5609, %v5910
    %v6519 = vmax.f32 %v5611, %v5912
    %v6520 = vmax.f32 %v6207, %v6508
    %v6521 = vmax.f32 %v6209, %v6510
    %v6522 = vmax.f32 %v6211, %v6512
    %v6523 = vmax.f32 %v6213, %v6514
    %v6524 = vmax.f32 %v6516, %v6520
    %v6525 = vmax.f32 %v6517, %v6521
    %v6526 = vmax.f32 %v6518, %v6522
    %v6527 = vmax.f32 %v6519, %v6523
    %v6528 = vld [vmem:[#allocation4] sm:$0x3]
    %v6530 = vlaneseq
    %v6531 = vshrl.u32 %v6530, 7
    %v6532 = vsub.s32 0, %v6531
    %v6533 = vrot.slane %v6528, %v6532
    %v6534 = vlaneseq
    %v6535 = vshrl.u32 %v6534, 7
    %v6536 = vsub.s32 1, %v6535
    %v6537 = vrot.slane %v6528, %v6536
    %v6540 = vadd.f32 %v6524, %v6533
    %v6541 = vadd.f32 %v6525, %v6537
    %v6542 = vadd.f32 %v6526, %v6533
    %v6543 = vadd.f32 %v6527, %v6537
    %v6544 = vmax.f32 %v6540, 0.0
    %v6545 = vmax.f32 %v6541, 0.0
    %v6546 = vmax.f32 %v6542, 0.0
    %v6547 = vmax.f32 %v6543, 0.0
    %v6548 = vpack.c.bf16 %v6546, %v6544
    %v6549 = vpack.c.bf16 %v6547, %v6545
    %v6552 = vunpack.c.l.b16 %v6548
    %v6553 = vunpack.c.l.b16 %v6549
    %v6554 = vunpack.c.h.b16 %v6548
    %v6555 = vunpack.c.h.b16 %v6549
    %v6556 = vpack.c.b16 %v6553, %v6552
    %v6557 = vpack.c.b16 %v6555, %v6554
    %6560 = vst [vmem:[%s3] sm:$0xff] %v6556
    %6561 = vst [vmem:[%s3 + $0x8] sm:$0x77] %v6557
    // Predicated region
    $region22: #{cnn_forward.4} parent=1 // pred_check
      _
    $region23: #{cnn_forward.4} parent=1 // pred_check_branch
      %6563 = sbr.rel (0) target = $region25
    $region24: #{cnn_forward.4} parent=1 // pred_region
      _
    $region25: #{cnn_forward.4} parent=1 // pred_fallthru
      _
    // Predicated region
    $region26: #{cnn_forward.4} parent=1 // pred_check
      _
    $region27: #{cnn_forward.4} parent=1 // pred_check_branch
      %6565 = sbr.rel (0) target = $region29
    $region28: #{cnn_forward.4} parent=1 // pred_region
      _
    $region29: #{cnn_forward.4} parent=1 // pred_fallthru
      _
    %6566 = vsyncpa [#allocation3], 1
    %6567 = vsyncpa [#allocation5], 1

</llo_original>
